<compile_context>
chip_gen: v7x
topology: tpu7x:2x2x1
jax: 0.10.0
libtpu: 0.0.40
codegen_flags: <defaults>
</compile_context>

<pallas_src>
import jax
import jax.numpy as jnp
from jax.experimental import pallas as pl
from jax.experimental.pallas import tpu as pltpu


# --------------------------------------------------------------------------
# Conv block: (Cout, 9*Cin) @ (9*Cin, B*H*W) + bias + ReLU + BN affine + MaxPool2.
# Patch columns are laid out batch-major and pool-interleaved:
#   col = b*HW + (h%2*2 + w%2)*Q + (h//2)*(W//2) + (w//2),  Q = (H//2)*(W//2)
# so the 2x2 max-pool is an elementwise max over four aligned lane-quarters per
# batch block, and the pooled output comes out row-major (h//2, w//2).
# --------------------------------------------------------------------------
def _make_conv_block_kernel(B, HW, Q):
    def kernel(p_ref, w_ref, b_ref, s_ref, t_ref, o_ref):
        y = jnp.dot(w_ref[...], p_ref[...],
                    preferred_element_type=jnp.float32)       # (Cout, B*HW) f32
        y = jnp.maximum(y + b_ref[...], 0.0)                  # conv bias + ReLU
        y = y * s_ref[...] + t_ref[...]                       # BatchNorm2d (inference affine)
        for b in range(B):                                    # B is tiny & static
            yb = y[:, b * HW:(b + 1) * HW]
            o_ref[b] = jnp.maximum(                           # fused MaxPool2d(2)
                jnp.maximum(yb[:, 0:Q], yb[:, Q:2 * Q]),
                jnp.maximum(yb[:, 2 * Q:3 * Q], yb[:, 3 * Q:4 * Q]),
            ).astype(o_ref.dtype)
    return kernel


def conv_block(patches, w, b, s, t, B):
    # patches: (9*Cin, B*HW) bf16, w: (Cout, 9*Cin) bf16, b/s/t: (Cout, 1) f32
    K, BHW = patches.shape
    HW = BHW // B
    Q = HW // 4
    Cout = w.shape[0]
    return pl.pallas_call(
        _make_conv_block_kernel(B, HW, Q),
        out_shape=jax.ShapeDtypeStruct((B, Cout, Q), jnp.bfloat16),
        grid=(1,),
        in_specs=[
            pl.BlockSpec((K, BHW), lambda i: (0, 0)),
            pl.BlockSpec((Cout, K), lambda i: (0, 0)),
            pl.BlockSpec((Cout, 1), lambda i: (0, 0)),
            pl.BlockSpec((Cout, 1), lambda i: (0, 0)),
            pl.BlockSpec((Cout, 1), lambda i: (0, 0)),
        ],
        out_specs=pl.BlockSpec((B, Cout, Q), lambda i: (0, 0, 0)),
        compiler_params=pltpu.CompilerParams(dimension_semantics=("arbitrary",)),
    )(patches, w, b, s, t)


def make_patches(x):
    """x: (B, C, H, W) bf16 -> (9*C, B*H*W) im2col patches (3x3, pad=1).
    Row = tap*C + c with tap = dh*3 + dw; columns batch-major & pool-interleaved
    (see _make_conv_block_kernel)."""
    # TODO(synk): im2col is still XLA glue (9x expansion in HBM, though now bf16);
    # doing the 9 shifted taps inside the kernel would need masked lane-rolls.
    B, C, H, W = x.shape
    xp = jnp.pad(x, ((0, 0), (0, 0), (1, 1), (1, 1)))
    taps = [xp[:, :, dh:dh + H, dw:dw + W] for dh in range(3) for dw in range(3)]
    p = jnp.concatenate(taps, axis=1)                      # (B, 9C, H, W)
    p = p.reshape(B, 9 * C, H // 2, 2, W // 2, 2)          # (B, 9C, h2, hr, w2, wr)
    p = jnp.transpose(p, (1, 0, 3, 5, 2, 4))               # (9C, B, hr, wr, h2, w2)
    return p.reshape(9 * C, B * H * W)


# --------------------------------------------------------------------------
# Fused bidirectional LSTM layer.
# Gate layout (after prepare_params reorder): within each direction's 4H block
# the columns are (i, f, o, g); the combined 8H space is [fwd 4H | rev 4H].
# Recurrent weight is a bf16 block-diagonal (2H, 8H): [[whh_f, 0], [0, whh_r]].
# Input/output rows are flattened time-major: row = t*B + b.
# --------------------------------------------------------------------------
def _lstm_cell(gates, c, H):
    # gates: (B, 4H) in (i, f, o, g) order -> 2 activation slices.
    sig = jax.nn.sigmoid(gates[:, 0:3 * H])
    g_g = jnp.tanh(gates[:, 3 * H:4 * H])
    i_g = sig[:, 0:H]
    f_g = sig[:, H:2 * H]
    o_g = sig[:, 2 * H:3 * H]
    c_new = f_g * c + i_g * g_g
    h_new = o_g * jnp.tanh(c_new)
    return h_new, c_new


def _bilstm_recurrence(xg, whh_blk, T, B, H):
    # xg: (T*B, 8H) f32 hoisted input projection + bias; whh_blk: (2H, 8H) bf16.
    h_f = jnp.zeros((B, H), jnp.float32)
    c_f = jnp.zeros((B, H), jnp.float32)
    h_r = jnp.zeros((B, H), jnp.float32)
    c_r = jnp.zeros((B, H), jnp.float32)
    hs_f = [None] * T
    hs_r = [None] * T
    for s in range(T):                      # T is small & static -> fully unrolled
        tr = T - 1 - s
        h_cat = jnp.concatenate([h_f, h_r], axis=-1).astype(jnp.bfloat16)  # (B, 2H)
        rec = jnp.dot(h_cat, whh_blk, preferred_element_type=jnp.float32)  # (B, 8H)
        g_f = xg[s * B:(s + 1) * B, 0:4 * H] + rec[:, 0:4 * H]
        g_r = xg[tr * B:(tr + 1) * B, 4 * H:8 * H] + rec[:, 4 * H:8 * H]
        h_f, c_f = _lstm_cell(g_f, c_f, H)
        h_r, c_r = _lstm_cell(g_r, c_r, H)
        hs_f[s] = h_f
        hs_r[tr] = h_r                      # reverse output belongs to time tr
    return hs_f, hs_r


def _make_bilstm_seq_kernel(T, B, H):
    def kernel(x_ref, wih_ref, whh_ref, b_ref, o_ref, xg_ref):
        k = pl.program_id(0)

        @pl.when(k == 0)
        def _():
            xg_ref[...] = jnp.broadcast_to(b_ref[...], xg_ref.shape)

        # Pipelined, K-chunked input projection (bf16 MXU, f32 accumulation).
        xg_ref[...] += jnp.dot(x_ref[...].astype(jnp.bfloat16), wih_ref[...],
                               preferred_element_type=jnp.float32)

        @pl.when(k == pl.num_programs(0) - 1)
        def _():
            hs_f, hs_r = _bilstm_recurrence(xg_ref[...], whh_ref[...], T, B, H)
            rows = [jnp.concatenate([hs_f[t], hs_r[t]], axis=-1) for t in range(T)]
            o_ref[...] = jnp.concatenate(rows, axis=0)        # one dense (T*B, 2H) store
    return kernel


def _make_bilstm_head_kernel(T, B, H):
    def kernel(x_ref, wih_ref, whh_ref, b_ref,
               w1_ref, b1_ref, w2_ref, b2_ref, o_ref, xg_ref):
        k = pl.program_id(0)

        @pl.when(k == 0)
        def _():
            xg_ref[...] = jnp.broadcast_to(b_ref[...], xg_ref.shape)

        xg_ref[...] += jnp.dot(x_ref[...].astype(jnp.bfloat16), wih_ref[...],
                               preferred_element_type=jnp.float32)

        @pl.when(k == pl.num_programs(0) - 1)
        def _():
            hs_f, hs_r = _bilstm_recurrence(xg_ref[...], whh_ref[...], T, B, H)
            # torch x[:, -1, :] = [fwd state after T steps, rev state after 1 step]
            last = jnp.concatenate([hs_f[T - 1], hs_r[T - 1]], axis=-1)       # (B, 2H)
            z = jnp.dot(last, w1_ref[...], preferred_element_type=jnp.float32) + b1_ref[...]
            z = jnp.maximum(z, 0.0)
            # Dropout(p=0.4): inference-mode identity.
            y = jnp.sum(z * w2_ref[...], axis=1, keepdims=True) + b2_ref[...]
            o_ref[...] = jax.nn.sigmoid(y)
    return kernel


def _d_chunk(D):
    return 512 if (D >= 512 and D % 512 == 0) else D


def bilstm_seq_layer(x2d, T, B, wih, whh_blk, bias):
    TB, D = x2d.shape
    H = whh_blk.shape[0] // 2
    H8 = 8 * H
    dc = _d_chunk(D)
    nk = D // dc
    return pl.pallas_call(
        _make_bilstm_seq_kernel(T, B, H),
        out_shape=jax.ShapeDtypeStruct((TB, 2 * H), jnp.float32),
        grid=(nk,),
        in_specs=[
            pl.BlockSpec((TB, dc), lambda k: (0, k)),
            pl.BlockSpec((dc, H8), lambda k: (k, 0)),
            pl.BlockSpec((2 * H, H8), lambda k: (0, 0)),
            pl.BlockSpec((1, H8), lambda k: (0, 0)),
        ],
        out_specs=pl.BlockSpec((TB, 2 * H), lambda k: (0, 0)),
        scratch_shapes=[pltpu.VMEM((TB, H8), jnp.float32)],
        compiler_params=pltpu.CompilerParams(
            dimension_semantics=("arbitrary",),
            vmem_limit_bytes=12 << 20),
    )(x2d, wih, whh_blk, bias)


def bilstm_head_layer(x2d, T, B, wih, whh_blk, bias, w1t, b1, w2, b2):
    TB, D = x2d.shape
    H = whh_blk.shape[0] // 2
    H8 = 8 * H
    F = w1t.shape[1]
    dc = _d_chunk(D)
    nk = D // dc
    return pl.pallas_call(
        _make_bilstm_head_kernel(T, B, H),
        out_shape=jax.ShapeDtypeStruct((B, 1), jnp.float32),
        grid=(nk,),
        in_specs=[
            pl.BlockSpec((TB, dc), lambda k: (0, k)),
            pl.BlockSpec((dc, H8), lambda k: (k, 0)),
            pl.BlockSpec((2 * H, H8), lambda k: (0, 0)),
            pl.BlockSpec((1, H8), lambda k: (0, 0)),
            pl.BlockSpec((2 * H, F), lambda k: (0, 0)),
            pl.BlockSpec((1, F), lambda k: (0, 0)),
            pl.BlockSpec((1, F), lambda k: (0, 0)),
            pl.BlockSpec((1, 1), lambda k: (0, 0)),
        ],
        out_specs=pl.BlockSpec((B, 1), lambda k: (0, 0)),
        scratch_shapes=[pltpu.VMEM((TB, H8), jnp.float32)],
        compiler_params=pltpu.CompilerParams(
            dimension_semantics=("arbitrary",),
            vmem_limit_bytes=12 << 20),
    )(x2d, wih, whh_blk, bias, w1t, b1, w2, b2)


# --------------------------------------------------------------------------
# Parameters: raw PyTorch-shaped synthetic init + one-time preprocessing.
# --------------------------------------------------------------------------
def init_params(key):
    keys = iter(jax.random.split(key, 32))

    def nrm(shape, scale=0.05):
        return scale * jax.random.normal(next(keys), shape, dtype=jnp.float32)

    p = {}
    p["conv1_w"] = nrm((32, 1, 3, 3)); p["conv1_b"] = nrm((32,))
    p["bn1_gamma"] = 1.0 + nrm((32,)); p["bn1_beta"] = nrm((32,))
    p["bn1_mean"] = nrm((32,));        p["bn1_var"] = 1.0 + jnp.abs(nrm((32,)))
    p["conv2_w"] = nrm((64, 32, 3, 3)); p["conv2_b"] = nrm((64,))
    p["bn2_gamma"] = 1.0 + nrm((64,));  p["bn2_beta"] = nrm((64,))
    p["bn2_mean"] = nrm((64,));         p["bn2_var"] = 1.0 + jnp.abs(nrm((64,)))
    H = 128
    for layer, din in ((0, 2048), (1, 2 * H)):
        for d in ("fwd", "rev"):
            p[f"lstm{layer}_{d}_wih"] = nrm((4 * H, din))
            p[f"lstm{layer}_{d}_whh"] = nrm((4 * H, H))
            p[f"lstm{layer}_{d}_bih"] = nrm((4 * H,))
            p[f"lstm{layer}_{d}_bhh"] = nrm((4 * H,))
    p["fc1_w"] = nrm((256, 256)); p["fc1_b"] = nrm((256,))
    p["fc2_w"] = nrm((1, 256));   p["fc2_b"] = nrm((1,))
    return p


def _reorder_gates_ifog(a, H):
    """Rows in torch gate order (i, f, g, o) -> (i, f, o, g). Works for 1-D/2-D."""
    return jnp.concatenate([a[0:H], a[H:2 * H], a[3 * H:4 * H], a[2 * H:3 * H]], axis=0)


def prepare_params(p, eps=1e-5):
    """One-time weight reshapes / transposes / BN folding / gate reorder /
    block-diagonal recurrent weight / bf16 casts (all outside jit)."""
    q = {}
    # Conv blocks: weight -> (Cout, 9*Cin) bf16 with column = (kh*3+kw)*Cin + cin.
    for n, cout, cin in (("1", 32, 1), ("2", 64, 32)):
        q[f"c{n}_w"] = jnp.transpose(p[f"conv{n}_w"], (0, 2, 3, 1)) \
            .reshape(cout, 9 * cin).astype(jnp.bfloat16)
        q[f"c{n}_b"] = p[f"conv{n}_b"].reshape(cout, 1)
        s = p[f"bn{n}_gamma"] / jnp.sqrt(p[f"bn{n}_var"] + eps)
        q[f"c{n}_s"] = s.reshape(cout, 1)
        q[f"c{n}_t"] = (p[f"bn{n}_beta"] - p[f"bn{n}_mean"] * s).reshape(cout, 1)
    # BiLSTM layers: gate-reordered W_ih for both directions stacked to (D, 8H) bf16,
    # block-diagonal recurrent weight (2H, 8H) bf16, fused bias (1, 8H) f32.
    H = 128
    for layer in (0, 1):
        wih_f = _reorder_gates_ifog(p[f"lstm{layer}_fwd_wih"], H)   # (4H, D)
        wih_r = _reorder_gates_ifog(p[f"lstm{layer}_rev_wih"], H)
        q[f"l{layer}_wih"] = jnp.concatenate([wih_f.T, wih_r.T],
                                             axis=1).astype(jnp.bfloat16)  # (D, 8H)
        whh_f = _reorder_gates_ifog(p[f"lstm{layer}_fwd_whh"], H).T        # (H, 4H)
        whh_r = _reorder_gates_ifog(p[f"lstm{layer}_rev_whh"], H).T
        z = jnp.zeros((H, 4 * H), jnp.float32)
        q[f"l{layer}_whh"] = jnp.concatenate(
            [jnp.concatenate([whh_f, z], axis=1),
             jnp.concatenate([z, whh_r], axis=1)], axis=0).astype(jnp.bfloat16)  # (2H, 8H)
        b_f = _reorder_gates_ifog(p[f"lstm{layer}_fwd_bih"] + p[f"lstm{layer}_fwd_bhh"], H)
        b_r = _reorder_gates_ifog(p[f"lstm{layer}_rev_bih"] + p[f"lstm{layer}_rev_bhh"], H)
        q[f"l{layer}_b"] = jnp.concatenate([b_f, b_r]).reshape(1, 8 * H)
    # Head.
    q["fc1_wT"] = p["fc1_w"].T
    q["fc1_b"] = p["fc1_b"].reshape(1, 256)
    q["fc2_w"] = p["fc2_w"].reshape(1, 256)
    q["fc2_b"] = p["fc2_b"].reshape(1, 1)
    return q


# --------------------------------------------------------------------------
# Full forward pass
# --------------------------------------------------------------------------
def cnn_bilstm_forward(x_nchw, q):
    B, _, H0, W0 = x_nchw.shape
    x = x_nchw.astype(jnp.bfloat16)                                     # (B, 1, H0, W0)

    # conv block 1: Conv(1->32) + ReLU + BN + MaxPool(2), fused in one kernel.
    p1 = make_patches(x)                                                # (9, B*H0*W0)
    y1 = conv_block(p1, q["c1_w"], q["c1_b"], q["c1_s"], q["c1_t"], B)  # (B,32,H0*W0/4)
    y1 = y1.reshape(B, 32, H0 // 2, W0 // 2)

    # conv block 2: Conv(32->64) + ReLU + BN + MaxPool(2).
    p2 = make_patches(y1)                                               # (288, B*H0*W0/4)
    y2 = conv_block(p2, q["c2_w"], q["c2_b"], q["c2_s"], q["c2_t"], B)  # (B,64,H0*W0/16)
    Hc, Wc = H0 // 4, W0 // 4
    y2 = y2.reshape(B, 64, Hc, Wc)

    # permute(0,3,2,1).view(B, W, Hc*64): feature = h*64 + c; then time-major flatten.
    # TODO(synk): fold this layout change into the conv2 kernel epilogue.
    seq = jnp.transpose(y2, (0, 3, 2, 1)).reshape(B, Wc, Hc * 64)       # (B, T, 2048) bf16
    T = Wc
    x2d = jnp.transpose(seq, (1, 0, 2)).reshape(T * B, Hc * 64)         # row = t*B + b

    # 2-layer bidirectional LSTM (hidden=128); layer 1 has fc1/fc2/sigmoid fused.
    h2d = bilstm_seq_layer(x2d, T, B, q["l0_wih"], q["l0_whh"], q["l0_b"])
    out = bilstm_head_layer(h2d, T, B, q["l1_wih"], q["l1_whh"], q["l1_b"],
                            q["fc1_wT"], q["fc1_b"], q["fc2_w"], q["fc2_b"])
    return out                                                           # (B, 1)


if __name__ == "__main__":
    key = jax.random.PRNGKey(0)
    pkey, xkey = jax.random.split(key)
    params = prepare_params(init_params(pkey))
    # Input (batch=2, channels=1, height=128, width=16): height must be 128 so
    # that after two MaxPool2d(2) stages (128/4 = 32) * 64 channels == 2048,
    # matching the module's hard-coded LSTM input size / .view(B, W, 2048).
    x = jax.random.normal(xkey, (2, 1, 128, 16), dtype=jnp.float32)
    out = jax.jit(cnn_bilstm_forward)(x, params)
    out = jax.block_until_ready(out)
    assert out.shape == (2, 1)
    assert bool(jnp.all(jnp.isfinite(out)))
    print("KERNEL_OK")
</pallas_src>

<mosaic_0001>
module attributes {stable_mosaic.version = 11 : i64} {
  func.func @kernel(%arg0: i32, %arg1: memref<9x4096xbf16, #tpu.memory_space<vmem>>, %arg2: memref<32x9xbf16, #tpu.memory_space<vmem>>, %arg3: memref<32x1xf32, #tpu.memory_space<vmem>>, %arg4: memref<32x1xf32, #tpu.memory_space<vmem>>, %arg5: memref<32x1xf32, #tpu.memory_space<vmem>>, %arg6: memref<2x32x512xbf16, #tpu.memory_space<vmem>>) attributes {dimension_semantics = [#tpu.dimension_semantics<arbitrary>], iteration_bounds = array<i64: 1>, scalar_prefetch = 0 : i64, scratch_operands = 0 : i64, tpu.core_type = #tpu.core_type<tc>, window_params = [{pipeline_mode = #tpu.pipeline_mode<synchronous>, transform_indices = @transform_0, window_bounds = array<i64: 9, 4096>}, {pipeline_mode = #tpu.pipeline_mode<synchronous>, transform_indices = @transform_1, window_bounds = array<i64: 32, 9>}, {pipeline_mode = #tpu.pipeline_mode<synchronous>, transform_indices = @transform_2, window_bounds = array<i64: 32, 1>}, {pipeline_mode = #tpu.pipeline_mode<synchronous>, transform_indices = @transform_3, window_bounds = array<i64: 32, 1>}, {pipeline_mode = #tpu.pipeline_mode<synchronous>, transform_indices = @transform_4, window_bounds = array<i64: 32, 1>}, {pipeline_mode = #tpu.pipeline_mode<synchronous>, transform_indices = @transform_5, window_bounds = array<i64: 2, 32, 512>}]} {
    %c0 = arith.constant 0 : index
    %c0_0 = arith.constant 0 : index
    %0 = vector.load %arg2[%c0, %c0_0] : memref<32x9xbf16, #tpu.memory_space<vmem>>, vector<32x9xbf16>
    %c0_1 = arith.constant 0 : index
    %c0_2 = arith.constant 0 : index
    %1 = vector.load %arg1[%c0_1, %c0_2] : memref<9x4096xbf16, #tpu.memory_space<vmem>>, vector<9x4096xbf16>
    %cst = arith.constant dense<0.000000e+00> : vector<32x4096xf32>
    %2 = tpu.matmul %0, %1, %cst {dimension_numbers = #tpu.dot_dimension_numbers<[1], [0], [0], [1], [0, 0, 1, 1], [], []>} : vector<32x9xbf16>, vector<9x4096xbf16>, vector<32x4096xf32> -> vector<32x4096xf32>
    %c0_3 = arith.constant 0 : index
    %c0_4 = arith.constant 0 : index
    %3 = vector.load %arg3[%c0_3, %c0_4] : memref<32x1xf32, #tpu.memory_space<vmem>>, vector<32x1xf32>
    %4 = vector.broadcast %3 : vector<32x1xf32> to vector<32x4096xf32>
    %5 = arith.addf %2, %4 : vector<32x4096xf32>
    %cst_5 = arith.constant 0.000000e+00 : f32
    %6 = vector.broadcast %cst_5 : f32 to vector<32x4096xf32>
    %7 = arith.maximumf %5, %6 : vector<32x4096xf32>
    %c0_6 = arith.constant 0 : index
    %c0_7 = arith.constant 0 : index
    %8 = vector.load %arg4[%c0_6, %c0_7] : memref<32x1xf32, #tpu.memory_space<vmem>>, vector<32x1xf32>
    %9 = vector.broadcast %8 : vector<32x1xf32> to vector<32x4096xf32>
    %10 = arith.mulf %7, %9 : vector<32x4096xf32>
    %c0_8 = arith.constant 0 : index
    %c0_9 = arith.constant 0 : index
    %11 = vector.load %arg5[%c0_8, %c0_9] : memref<32x1xf32, #tpu.memory_space<vmem>>, vector<32x1xf32>
    %12 = vector.broadcast %11 : vector<32x1xf32> to vector<32x4096xf32>
    %13 = arith.addf %10, %12 : vector<32x4096xf32>
    %14 = vector.extract_strided_slice %13 {offsets = [0, 0], sizes = [32, 2048], strides = [1, 1]} : vector<32x4096xf32> to vector<32x2048xf32>
    %15 = vector.extract_strided_slice %14 {offsets = [0, 0], sizes = [32, 512], strides = [1, 1]} : vector<32x2048xf32> to vector<32x512xf32>
    %16 = vector.extract_strided_slice %14 {offsets = [0, 512], sizes = [32, 512], strides = [1, 1]} : vector<32x2048xf32> to vector<32x512xf32>
    %17 = arith.maximumf %15, %16 : vector<32x512xf32>
    %18 = vector.extract_strided_slice %14 {offsets = [0, 1024], sizes = [32, 512], strides = [1, 1]} : vector<32x2048xf32> to vector<32x512xf32>
    %19 = vector.extract_strided_slice %14 {offsets = [0, 1536], sizes = [32, 512], strides = [1, 1]} : vector<32x2048xf32> to vector<32x512xf32>
    %20 = arith.maximumf %18, %19 : vector<32x512xf32>
    %21 = arith.maximumf %17, %20 : vector<32x512xf32>
    %22 = arith.truncf %21 : vector<32x512xf32> to vector<32x512xbf16>
    %c0_10 = arith.constant 0 : index
    %c0_11 = arith.constant 0 : index
    %c0_12 = arith.constant 0 : index
    %23 = vector.load %arg6[%c0_10, %c0_11, %c0_12] : memref<2x32x512xbf16, #tpu.memory_space<vmem>>, vector<1x32x512xbf16>
    %24 = vector.shape_cast %23 : vector<1x32x512xbf16> to vector<32x512xbf16>
    %25 = vector.shape_cast %22 : vector<32x512xbf16> to vector<1x32x512xbf16>
    tpu.vector_store %arg6[%c0_10, %c0_11, %c0_12], %25 {strides = array<i32>} : memref<2x32x512xbf16, #tpu.memory_space<vmem>>, vector<1x32x512xbf16>,
    %26 = vector.extract_strided_slice %13 {offsets = [0, 2048], sizes = [32, 2048], strides = [1, 1]} : vector<32x4096xf32> to vector<32x2048xf32>
    %27 = vector.extract_strided_slice %26 {offsets = [0, 0], sizes = [32, 512], strides = [1, 1]} : vector<32x2048xf32> to vector<32x512xf32>
    %28 = vector.extract_strided_slice %26 {offsets = [0, 512], sizes = [32, 512], strides = [1, 1]} : vector<32x2048xf32> to vector<32x512xf32>
    %29 = arith.maximumf %27, %28 : vector<32x512xf32>
    %30 = vector.extract_strided_slice %26 {offsets = [0, 1024], sizes = [32, 512], strides = [1, 1]} : vector<32x2048xf32> to vector<32x512xf32>
    %31 = vector.extract_strided_slice %26 {offsets = [0, 1536], sizes = [32, 512], strides = [1, 1]} : vector<32x2048xf32> to vector<32x512xf32>
    %32 = arith.maximumf %30, %31 : vector<32x512xf32>
    %33 = arith.maximumf %29, %32 : vector<32x512xf32>
    %34 = arith.truncf %33 : vector<32x512xf32> to vector<32x512xbf16>
    %c1 = arith.constant 1 : index
    %c0_13 = arith.constant 0 : index
    %c0_14 = arith.constant 0 : index
    %35 = vector.load %arg6[%c1, %c0_13, %c0_14] : memref<2x32x512xbf16, #tpu.memory_space<vmem>>, vector<1x32x512xbf16>
    %36 = vector.shape_cast %35 : vector<1x32x512xbf16> to vector<32x512xbf16>
    %37 = vector.shape_cast %34 : vector<32x512xbf16> to vector<1x32x512xbf16>
    tpu.vector_store %arg6[%c1, %c0_13, %c0_14], %37 {strides = array<i32>} : memref<2x32x512xbf16, #tpu.memory_space<vmem>>, vector<1x32x512xbf16>,
    return
  }
  func.func @transform_0(%arg0: i32) -> (i32, i32) {
    %c0_i32 = arith.constant 0 : i32
    %c0_i32_0 = arith.constant 0 : i32
    %c0_i32_1 = arith.constant 0 : i32
    return %c0_i32, %c0_i32_0 : i32, i32
  }
  func.func @transform_1(%arg0: i32) -> (i32, i32) {
    %c0_i32 = arith.constant 0 : i32
    %c0_i32_0 = arith.constant 0 : i32
    %c0_i32_1 = arith.constant 0 : i32
    return %c0_i32, %c0_i32_0 : i32, i32
  }
  func.func @transform_2(%arg0: i32) -> (i32, i32) {
    %c0_i32 = arith.constant 0 : i32
    %c0_i32_0 = arith.constant 0 : i32
    %c0_i32_1 = arith.constant 0 : i32
    return %c0_i32, %c0_i32_0 : i32, i32
  }
  func.func @transform_3(%arg0: i32) -> (i32, i32) {
    %c0_i32 = arith.constant 0 : i32
    %c0_i32_0 = arith.constant 0 : i32
    %c0_i32_1 = arith.constant 0 : i32
    return %c0_i32, %c0_i32_0 : i32, i32
  }
  func.func @transform_4(%arg0: i32) -> (i32, i32) {
    %c0_i32 = arith.constant 0 : i32
    %c0_i32_0 = arith.constant 0 : i32
    %c0_i32_1 = arith.constant 0 : i32
    return %c0_i32, %c0_i32_0 : i32, i32
  }
  func.func @transform_5(%arg0: i32) -> (i32, i32, i32) {
    %c0_i32 = arith.constant 0 : i32
    %c0_i32_0 = arith.constant 0 : i32
    %c0_i32_1 = arith.constant 0 : i32
    %c0_i32_2 = arith.constant 0 : i32
    return %c0_i32, %c0_i32_0, %c0_i32_1 : i32, i32, i32
  }
}

module attributes {stable_mosaic.version = 11 : i64} {
  func.func @kernel(%arg0: i32, %arg1: memref<288x1024xbf16, #tpu.memory_space<vmem>>, %arg2: memref<64x288xbf16, #tpu.memory_space<vmem>>, %arg3: memref<64x1xf32, #tpu.memory_space<vmem>>, %arg4: memref<64x1xf32, #tpu.memory_space<vmem>>, %arg5: memref<64x1xf32, #tpu.memory_space<vmem>>, %arg6: memref<2x64x128xbf16, #tpu.memory_space<vmem>>) attributes {dimension_semantics = [#tpu.dimension_semantics<arbitrary>], iteration_bounds = array<i64: 1>, scalar_prefetch = 0 : i64, scratch_operands = 0 : i64, tpu.core_type = #tpu.core_type<tc>, window_params = [{pipeline_mode = #tpu.pipeline_mode<synchronous>, transform_indices = @transform_0, window_bounds = array<i64: 288, 1024>}, {pipeline_mode = #tpu.pipeline_mode<synchronous>, transform_indices = @transform_1, window_bounds = array<i64: 64, 288>}, {pipeline_mode = #tpu.pipeline_mode<synchronous>, transform_indices = @transform_2, window_bounds = array<i64: 64, 1>}, {pipeline_mode = #tpu.pipeline_mode<synchronous>, transform_indices = @transform_3, window_bounds = array<i64: 64, 1>}, {pipeline_mode = #tpu.pipeline_mode<synchronous>, transform_indices = @transform_4, window_bounds = array<i64: 64, 1>}, {pipeline_mode = #tpu.pipeline_mode<synchronous>, transform_indices = @transform_5, window_bounds = array<i64: 2, 64, 128>}]} {
    %c0 = arith.constant 0 : index
    %c0_0 = arith.constant 0 : index
    %0 = vector.load %arg2[%c0, %c0_0] : memref<64x288xbf16, #tpu.memory_space<vmem>>, vector<64x288xbf16>
    %c0_1 = arith.constant 0 : index
    %c0_2 = arith.constant 0 : index
    %1 = vector.load %arg1[%c0_1, %c0_2] : memref<288x1024xbf16, #tpu.memory_space<vmem>>, vector<288x1024xbf16>
    %cst = arith.constant dense<0.000000e+00> : vector<64x1024xf32>
    %2 = tpu.matmul %0, %1, %cst {dimension_numbers = #tpu.dot_dimension_numbers<[1], [0], [0], [1], [0, 0, 1, 1], [], []>} : vector<64x288xbf16>, vector<288x1024xbf16>, vector<64x1024xf32> -> vector<64x1024xf32>
    %c0_3 = arith.constant 0 : index
    %c0_4 = arith.constant 0 : index
    %3 = vector.load %arg3[%c0_3, %c0_4] : memref<64x1xf32, #tpu.memory_space<vmem>>, vector<64x1xf32>
    %4 = vector.broadcast %3 : vector<64x1xf32> to vector<64x1024xf32>
    %5 = arith.addf %2, %4 : vector<64x1024xf32>
    %cst_5 = arith.constant 0.000000e+00 : f32
    %6 = vector.broadcast %cst_5 : f32 to vector<64x1024xf32>
    %7 = arith.maximumf %5, %6 : vector<64x1024xf32>
    %c0_6 = arith.constant 0 : index
    %c0_7 = arith.constant 0 : index
    %8 = vector.load %arg4[%c0_6, %c0_7] : memref<64x1xf32, #tpu.memory_space<vmem>>, vector<64x1xf32>
    %9 = vector.broadcast %8 : vector<64x1xf32> to vector<64x1024xf32>
    %10 = arith.mulf %7, %9 : vector<64x1024xf32>
    %c0_8 = arith.constant 0 : index
    %c0_9 = arith.constant 0 : index
    %11 = vector.load %arg5[%c0_8, %c0_9] : memref<64x1xf32, #tpu.memory_space<vmem>>, vector<64x1xf32>
    %12 = vector.broadcast %11 : vector<64x1xf32> to vector<64x1024xf32>
    %13 = arith.addf %10, %12 : vector<64x1024xf32>
    %14 = vector.extract_strided_slice %13 {offsets = [0, 0], sizes = [64, 512], strides = [1, 1]} : vector<64x1024xf32> to vector<64x512xf32>
    %15 = vector.extract_strided_slice %14 {offsets = [0, 0], sizes = [64, 128], strides = [1, 1]} : vector<64x512xf32> to vector<64x128xf32>
    %16 = vector.extract_strided_slice %14 {offsets = [0, 128], sizes = [64, 128], strides = [1, 1]} : vector<64x512xf32> to vector<64x128xf32>
    %17 = arith.maximumf %15, %16 : vector<64x128xf32>
    %18 = vector.extract_strided_slice %14 {offsets = [0, 256], sizes = [64, 128], strides = [1, 1]} : vector<64x512xf32> to vector<64x128xf32>
    %19 = vector.extract_strided_slice %14 {offsets = [0, 384], sizes = [64, 128], strides = [1, 1]} : vector<64x512xf32> to vector<64x128xf32>
    %20 = arith.maximumf %18, %19 : vector<64x128xf32>
    %21 = arith.maximumf %17, %20 : vector<64x128xf32>
    %22 = arith.truncf %21 : vector<64x128xf32> to vector<64x128xbf16>
    %c0_10 = arith.constant 0 : index
    %c0_11 = arith.constant 0 : index
    %c0_12 = arith.constant 0 : index
    %23 = vector.load %arg6[%c0_10, %c0_11, %c0_12] : memref<2x64x128xbf16, #tpu.memory_space<vmem>>, vector<1x64x128xbf16>
    %24 = vector.shape_cast %23 : vector<1x64x128xbf16> to vector<64x128xbf16>
    %25 = vector.shape_cast %22 : vector<64x128xbf16> to vector<1x64x128xbf16>
    tpu.vector_store %arg6[%c0_10, %c0_11, %c0_12], %25 {strides = array<i32>} : memref<2x64x128xbf16, #tpu.memory_space<vmem>>, vector<1x64x128xbf16>,
    %26 = vector.extract_strided_slice %13 {offsets = [0, 512], sizes = [64, 512], strides = [1, 1]} : vector<64x1024xf32> to vector<64x512xf32>
    %27 = vector.extract_strided_slice %26 {offsets = [0, 0], sizes = [64, 128], strides = [1, 1]} : vector<64x512xf32> to vector<64x128xf32>
    %28 = vector.extract_strided_slice %26 {offsets = [0, 128], sizes = [64, 128], strides = [1, 1]} : vector<64x512xf32> to vector<64x128xf32>
    %29 = arith.maximumf %27, %28 : vector<64x128xf32>
    %30 = vector.extract_strided_slice %26 {offsets = [0, 256], sizes = [64, 128], strides = [1, 1]} : vector<64x512xf32> to vector<64x128xf32>
    %31 = vector.extract_strided_slice %26 {offsets = [0, 384], sizes = [64, 128], strides = [1, 1]} : vector<64x512xf32> to vector<64x128xf32>
    %32 = arith.maximumf %30, %31 : vector<64x128xf32>
    %33 = arith.maximumf %29, %32 : vector<64x128xf32>
    %34 = arith.truncf %33 : vector<64x128xf32> to vector<64x128xbf16>
    %c1 = arith.constant 1 : index
    %c0_13 = arith.constant 0 : index
    %c0_14 = arith.constant 0 : index
    %35 = vector.load %arg6[%c1, %c0_13, %c0_14] : memref<2x64x128xbf16, #tpu.memory_space<vmem>>, vector<1x64x128xbf16>
    %36 = vector.shape_cast %35 : vector<1x64x128xbf16> to vector<64x128xbf16>
    %37 = vector.shape_cast %34 : vector<64x128xbf16> to vector<1x64x128xbf16>
    tpu.vector_store %arg6[%c1, %c0_13, %c0_14], %37 {strides = array<i32>} : memref<2x64x128xbf16, #tpu.memory_space<vmem>>, vector<1x64x128xbf16>,
    return
  }
  func.func @transform_0(%arg0: i32) -> (i32, i32) {
    %c0_i32 = arith.constant 0 : i32
    %c0_i32_0 = arith.constant 0 : i32
    %c0_i32_1 = arith.constant 0 : i32
    return %c0_i32, %c0_i32_0 : i32, i32
  }
  func.func @transform_1(%arg0: i32) -> (i32, i32) {
    %c0_i32 = arith.constant 0 : i32
    %c0_i32_0 = arith.constant 0 : i32
    %c0_i32_1 = arith.constant 0 : i32
    return %c0_i32, %c0_i32_0 : i32, i32
  }
  func.func @transform_2(%arg0: i32) -> (i32, i32) {
    %c0_i32 = arith.constant 0 : i32
    %c0_i32_0 = arith.constant 0 : i32
    %c0_i32_1 = arith.constant 0 : i32
    return %c0_i32, %c0_i32_0 : i32, i32
  }
  func.func @transform_3(%arg0: i32) -> (i32, i32) {
    %c0_i32 = arith.constant 0 : i32
    %c0_i32_0 = arith.constant 0 : i32
    %c0_i32_1 = arith.constant 0 : i32
    return %c0_i32, %c0_i32_0 : i32, i32
  }
  func.func @transform_4(%arg0: i32) -> (i32, i32) {
    %c0_i32 = arith.constant 0 : i32
    %c0_i32_0 = arith.constant 0 : i32
    %c0_i32_1 = arith.constant 0 : i32
    return %c0_i32, %c0_i32_0 : i32, i32
  }
  func.func @transform_5(%arg0: i32) -> (i32, i32, i32) {
    %c0_i32 = arith.constant 0 : i32
    %c0_i32_0 = arith.constant 0 : i32
    %c0_i32_1 = arith.constant 0 : i32
    %c0_i32_2 = arith.constant 0 : i32
    return %c0_i32, %c0_i32_0, %c0_i32_1 : i32, i32, i32
  }
}

module attributes {stable_mosaic.version = 11 : i64} {
  func.func @kernel(%arg0: i32, %arg1: memref<8x512xbf16, #tpu.memory_space<vmem>>, %arg2: memref<512x1024xbf16, #tpu.memory_space<vmem>>, %arg3: memref<256x1024xbf16, #tpu.memory_space<vmem>>, %arg4: memref<1x1024xf32, #tpu.memory_space<vmem>>, %arg5: memref<8x256xf32, #tpu.memory_space<vmem>>, %arg6: memref<8x1024xf32, #tpu.memory_space<vmem>>) attributes {dimension_semantics = [#tpu.dimension_semantics<arbitrary>], iteration_bounds = array<i64: 4>, scalar_prefetch = 0 : i64, scratch_operands = 1 : i64, tpu.core_type = #tpu.core_type<tc>, window_params = [{transform_indices = @transform_0, window_bounds = array<i64: 8, 512>}, {transform_indices = @transform_1, window_bounds = array<i64: 512, 1024>}, {pipeline_mode = #tpu.pipeline_mode<synchronous>, transform_indices = @transform_2, window_bounds = array<i64: 256, 1024>}, {pipeline_mode = #tpu.pipeline_mode<synchronous>, transform_indices = @transform_3, window_bounds = array<i64: 1, 1024>}, {pipeline_mode = #tpu.pipeline_mode<synchronous>, transform_indices = @transform_4, window_bounds = array<i64: 8, 256>}]} {
    %c0_i32 = arith.constant 0 : i32
    %0 = arith.cmpi eq, %arg0, %c0_i32 : i32
    %1 = arith.extui %0 : i1 to i32
    %c0_i32_0 = arith.constant 0 : i32
    %2 = arith.cmpi ne, %1, %c0_i32_0 : i32
    scf.if %2 {
      %c0_9 = arith.constant 0 : index
      %c0_10 = arith.constant 0 : index
      %12 = vector.load %arg4[%c0_9, %c0_10] : memref<1x1024xf32, #tpu.memory_space<vmem>>, vector<1x1024xf32>
      %13 = vector.shape_cast %12 : vector<1x1024xf32> to vector<1x1024xf32>
      %14 = vector.broadcast %13 : vector<1x1024xf32> to vector<8x1024xf32>
      %c0_11 = arith.constant 0 : index
      %c0_12 = arith.constant 0 : index
      %15 = vector.load %arg6[%c0_11, %c0_12] : memref<8x1024xf32, #tpu.memory_space<vmem>>, vector<8x1024xf32>
      tpu.vector_store %arg6[%c0_11, %c0_12], %14 {strides = array<i32>} : memref<8x1024xf32, #tpu.memory_space<vmem>>, vector<8x1024xf32>,
    } else {
    }
    %c0 = arith.constant 0 : index
    %c0_1 = arith.constant 0 : index
    %3 = vector.load %arg6[%c0, %c0_1] : memref<8x1024xf32, #tpu.memory_space<vmem>>, vector<8x1024xf32>
    %c0_2 = arith.constant 0 : index
    %c0_3 = arith.constant 0 : index
    %4 = vector.load %arg1[%c0_2, %c0_3] : memref<8x512xbf16, #tpu.memory_space<vmem>>, vector<8x512xbf16>
    %c0_4 = arith.constant 0 : index
    %c0_5 = arith.constant 0 : index
    %5 = vector.load %arg2[%c0_4, %c0_5] : memref<512x1024xbf16, #tpu.memory_space<vmem>>, vector<512x1024xbf16>
    %cst = arith.constant dense<0.000000e+00> : vector<8x1024xf32>
    %6 = tpu.matmul %4, %5, %cst {dimension_numbers = #tpu.dot_dimension_numbers<[1], [0], [0], [1], [0, 0, 1, 1], [], []>} : vector<8x512xbf16>, vector<512x1024xbf16>, vector<8x1024xf32> -> vector<8x1024xf32>
    %7 = arith.addf %3, %6 : vector<8x1024xf32>
    %c0_6 = arith.constant 0 : index
    %c0_7 = arith.constant 0 : index
    %8 = vector.load %arg6[%c0_6, %c0_7] : memref<8x1024xf32, #tpu.memory_space<vmem>>, vector<8x1024xf32>
    tpu.vector_store %arg6[%c0_6, %c0_7], %7 {strides = array<i32>} : memref<8x1024xf32, #tpu.memory_space<vmem>>, vector<8x1024xf32>,
    %c3_i32 = arith.constant 3 : i32
    %9 = arith.cmpi eq, %arg0, %c3_i32 : i32
    %10 = arith.extui %9 : i1 to i32
    %c0_i32_8 = arith.constant 0 : i32
    %11 = arith.cmpi ne, %10, %c0_i32_8 : i32
    scf.if %11 {
      %c0_9 = arith.constant 0 : index
      %c0_10 = arith.constant 0 : index
      %12 = vector.load %arg6[%c0_9, %c0_10] : memref<8x1024xf32, #tpu.memory_space<vmem>>, vector<8x1024xf32>
      %c0_11 = arith.constant 0 : index
      %c0_12 = arith.constant 0 : index
      %13 = vector.load %arg3[%c0_11, %c0_12] : memref<256x1024xbf16, #tpu.memory_space<vmem>>, vector<256x1024xbf16>
      %cst_13 = arith.constant 0.000000e+00 : f32
      %14 = vector.broadcast %cst_13 : f32 to vector<2x128xf32>
      %cst_14 = arith.constant 0.000000e+00 : f32
      %15 = vector.broadcast %cst_14 : f32 to vector<2x128xf32>
      %cst_15 = arith.constant 0.000000e+00 : f32
      %16 = vector.broadcast %cst_15 : f32 to vector<2x128xf32>
      %cst_16 = arith.constant 0.000000e+00 : f32
      %17 = vector.broadcast %cst_16 : f32 to vector<2x128xf32>
      %18 = tpu.concatenate %14, %16 in 1 : vector<2x128xf32>, vector<2x128xf32> -> vector<2x256xf32>
      %19 = arith.truncf %18 : vector<2x256xf32> to vector<2x256xbf16>
      %cst_17 = arith.constant dense<0.000000e+00> : vector<2x1024xf32>
      %20 = tpu.matmul %19, %13, %cst_17 {dimension_numbers = #tpu.dot_dimension_numbers<[1], [0], [0], [1], [0, 0, 1, 1], [], []>} : vector<2x256xbf16>, vector<256x1024xbf16>, vector<2x1024xf32> -> vector<2x1024xf32>
      %21 = vector.extract_strided_slice %12 {offsets = [0, 0], sizes = [2, 512], strides = [1, 1]} : vector<8x1024xf32> to vector<2x512xf32>
      %22 = vector.extract_strided_slice %20 {offsets = [0, 0], sizes = [2, 512], strides = [1, 1]} : vector<2x1024xf32> to vector<2x512xf32>
      %23 = arith.addf %21, %22 : vector<2x512xf32>
      %24 = vector.extract_strided_slice %12 {offsets = [6, 512], sizes = [2, 512], strides = [1, 1]} : vector<8x1024xf32> to vector<2x512xf32>
      %25 = vector.extract_strided_slice %20 {offsets = [0, 512], sizes = [2, 512], strides = [1, 1]} : vector<2x1024xf32> to vector<2x512xf32>
      %26 = arith.addf %24, %25 : vector<2x512xf32>
      %27 = vector.extract_strided_slice %23 {offsets = [0, 0], sizes = [2, 384], strides = [1, 1]} : vector<2x512xf32> to vector<2x384xf32>
      %28 = arith.negf %27 : vector<2x384xf32>
      %29 = math.exp %28 : vector<2x384xf32>
      %cst_18 = arith.constant 1.000000e+00 : f32
      %30 = vector.broadcast %cst_18 : f32 to vector<2x384xf32>
      %31 = arith.addf %30, %29 : vector<2x384xf32>
      %32 = arith.divf %30, %31 : vector<2x384xf32>
      %33 = vector.extract_strided_slice %23 {offsets = [0, 384], sizes = [2, 128], strides = [1, 1]} : vector<2x512xf32> to vector<2x128xf32>
      %34 = math.tanh %33 : vector<2x128xf32>
      %35 = vector.extract_strided_slice %32 {offsets = [0, 0], sizes = [2, 128], strides = [1, 1]} : vector<2x384xf32> to vector<2x128xf32>
      %36 = vector.extract_strided_slice %32 {offsets = [0, 128], sizes = [2, 128], strides = [1, 1]} : vector<2x384xf32> to vector<2x128xf32>
      %37 = vector.extract_strided_slice %32 {offsets = [0, 256], sizes = [2, 128], strides = [1, 1]} : vector<2x384xf32> to vector<2x128xf32>
      %38 = arith.mulf %36, %15 : vector<2x128xf32>
      %39 = arith.mulf %35, %34 : vector<2x128xf32>
      %40 = arith.addf %38, %39 : vector<2x128xf32>
      %41 = math.tanh %40 : vector<2x128xf32>
      %42 = arith.mulf %37, %41 : vector<2x128xf32>
      %43 = vector.extract_strided_slice %26 {offsets = [0, 0], sizes = [2, 384], strides = [1, 1]} : vector<2x512xf32> to vector<2x384xf32>
      %44 = arith.negf %43 : vector<2x384xf32>
      %45 = math.exp %44 : vector<2x384xf32>
      %cst_19 = arith.constant 1.000000e+00 : f32
      %46 = vector.broadcast %cst_19 : f32 to vector<2x384xf32>
      %47 = arith.addf %46, %45 : vector<2x384xf32>
      %48 = arith.divf %46, %47 : vector<2x384xf32>
      %49 = vector.extract_strided_slice %26 {offsets = [0, 384], sizes = [2, 128], strides = [1, 1]} : vector<2x512xf32> to vector<2x128xf32>
      %50 = math.tanh %49 : vector<2x128xf32>
      %51 = vector.extract_strided_slice %48 {offsets = [0, 0], sizes = [2, 128], strides = [1, 1]} : vector<2x384xf32> to vector<2x128xf32>
      %52 = vector.extract_strided_slice %48 {offsets = [0, 128], sizes = [2, 128], strides = [1, 1]} : vector<2x384xf32> to vector<2x128xf32>
      %53 = vector.extract_strided_slice %48 {offsets = [0, 256], sizes = [2, 128], strides = [1, 1]} : vector<2x384xf32> to vector<2x128xf32>
      %54 = arith.mulf %52, %17 : vector<2x128xf32>
      %55 = arith.mulf %51, %50 : vector<2x128xf32>
      %56 = arith.addf %54, %55 : vector<2x128xf32>
      %57 = math.tanh %56 : vector<2x128xf32>
      %58 = arith.mulf %53, %57 : vector<2x128xf32>
      %59 = tpu.concatenate %42, %58 in 1 : vector<2x128xf32>, vector<2x128xf32> -> vector<2x256xf32>
      %60 = arith.truncf %59 : vector<2x256xf32> to vector<2x256xbf16>
      %cst_20 = arith.constant dense<0.000000e+00> : vector<2x1024xf32>
      %61 = tpu.matmul %60, %13, %cst_20 {dimension_numbers = #tpu.dot_dimension_numbers<[1], [0], [0], [1], [0, 0, 1, 1], [], []>} : vector<2x256xbf16>, vector<256x1024xbf16>, vector<2x1024xf32> -> vector<2x1024xf32>
      %62 = vector.extract_strided_slice %12 {offsets = [2, 0], sizes = [2, 512], strides = [1, 1]} : vector<8x1024xf32> to vector<2x512xf32>
      %63 = vector.extract_strided_slice %61 {offsets = [0, 0], sizes = [2, 512], strides = [1, 1]} : vector<2x1024xf32> to vector<2x512xf32>
      %64 = arith.addf %62, %63 : vector<2x512xf32>
      %65 = vector.extract_strided_slice %12 {offsets = [4, 512], sizes = [2, 512], strides = [1, 1]} : vector<8x1024xf32> to vector<2x512xf32>
      %66 = vector.extract_strided_slice %61 {offsets = [0, 512], sizes = [2, 512], strides = [1, 1]} : vector<2x1024xf32> to vector<2x512xf32>
      %67 = arith.addf %65, %66 : vector<2x512xf32>
      %68 = vector.extract_strided_slice %64 {offsets = [0, 0], sizes = [2, 384], strides = [1, 1]} : vector<2x512xf32> to vector<2x384xf32>
      %69 = arith.negf %68 : vector<2x384xf32>
      %70 = math.exp %69 : vector<2x384xf32>
      %cst_21 = arith.constant 1.000000e+00 : f32
      %71 = vector.broadcast %cst_21 : f32 to vector<2x384xf32>
      %72 = arith.addf %71, %70 : vector<2x384xf32>
      %73 = arith.divf %71, %72 : vector<2x384xf32>
      %74 = vector.extract_strided_slice %64 {offsets = [0, 384], sizes = [2, 128], strides = [1, 1]} : vector<2x512xf32> to vector<2x128xf32>
      %75 = math.tanh %74 : vector<2x128xf32>
      %76 = vector.extract_strided_slice %73 {offsets = [0, 0], sizes = [2, 128], strides = [1, 1]} : vector<2x384xf32> to vector<2x128xf32>
      %77 = vector.extract_strided_slice %73 {offsets = [0, 128], sizes = [2, 128], strides = [1, 1]} : vector<2x384xf32> to vector<2x128xf32>
      %78 = vector.extract_strided_slice %73 {offsets = [0, 256], sizes = [2, 128], strides = [1, 1]} : vector<2x384xf32> to vector<2x128xf32>
      %79 = arith.mulf %77, %40 : vector<2x128xf32>
      %80 = arith.mulf %76, %75 : vector<2x128xf32>
      %81 = arith.addf %79, %80 : vector<2x128xf32>
      %82 = math.tanh %81 : vector<2x128xf32>
      %83 = arith.mulf %78, %82 : vector<2x128xf32>
      %84 = vector.extract_strided_slice %67 {offsets = [0, 0], sizes = [2, 384], strides = [1, 1]} : vector<2x512xf32> to vector<2x384xf32>
      %85 = arith.negf %84 : vector<2x384xf32>
      %86 = math.exp %85 : vector<2x384xf32>
      %cst_22 = arith.constant 1.000000e+00 : f32
      %87 = vector.broadcast %cst_22 : f32 to vector<2x384xf32>
      %88 = arith.addf %87, %86 : vector<2x384xf32>
      %89 = arith.divf %87, %88 : vector<2x384xf32>
      %90 = vector.extract_strided_slice %67 {offsets = [0, 384], sizes = [2, 128], strides = [1, 1]} : vector<2x512xf32> to vector<2x128xf32>
      %91 = math.tanh %90 : vector<2x128xf32>
      %92 = vector.extract_strided_slice %89 {offsets = [0, 0], sizes = [2, 128], strides = [1, 1]} : vector<2x384xf32> to vector<2x128xf32>
      %93 = vector.extract_strided_slice %89 {offsets = [0, 128], sizes = [2, 128], strides = [1, 1]} : vector<2x384xf32> to vector<2x128xf32>
      %94 = vector.extract_strided_slice %89 {offsets = [0, 256], sizes = [2, 128], strides = [1, 1]} : vector<2x384xf32> to vector<2x128xf32>
      %95 = arith.mulf %93, %56 : vector<2x128xf32>
      %96 = arith.mulf %92, %91 : vector<2x128xf32>
      %97 = arith.addf %95, %96 : vector<2x128xf32>
      %98 = math.tanh %97 : vector<2x128xf32>
      %99 = arith.mulf %94, %98 : vector<2x128xf32>
      %100 = tpu.concatenate %83, %99 in 1 : vector<2x128xf32>, vector<2x128xf32> -> vector<2x256xf32>
      %101 = arith.truncf %100 : vector<2x256xf32> to vector<2x256xbf16>
      %cst_23 = arith.constant dense<0.000000e+00> : vector<2x1024xf32>
      %102 = tpu.matmul %101, %13, %cst_23 {dimension_numbers = #tpu.dot_dimension_numbers<[1], [0], [0], [1], [0, 0, 1, 1], [], []>} : vector<2x256xbf16>, vector<256x1024xbf16>, vector<2x1024xf32> -> vector<2x1024xf32>
      %103 = vector.extract_strided_slice %12 {offsets = [4, 0], sizes = [2, 512], strides = [1, 1]} : vector<8x1024xf32> to vector<2x512xf32>
      %104 = vector.extract_strided_slice %102 {offsets = [0, 0], sizes = [2, 512], strides = [1, 1]} : vector<2x1024xf32> to vector<2x512xf32>
      %105 = arith.addf %103, %104 : vector<2x512xf32>
      %106 = vector.extract_strided_slice %12 {offsets = [2, 512], sizes = [2, 512], strides = [1, 1]} : vector<8x1024xf32> to vector<2x512xf32>
      %107 = vector.extract_strided_slice %102 {offsets = [0, 512], sizes = [2, 512], strides = [1, 1]} : vector<2x1024xf32> to vector<2x512xf32>
      %108 = arith.addf %106, %107 : vector<2x512xf32>
      %109 = vector.extract_strided_slice %105 {offsets = [0, 0], sizes = [2, 384], strides = [1, 1]} : vector<2x512xf32> to vector<2x384xf32>
      %110 = arith.negf %109 : vector<2x384xf32>
      %111 = math.exp %110 : vector<2x384xf32>
      %cst_24 = arith.constant 1.000000e+00 : f32
      %112 = vector.broadcast %cst_24 : f32 to vector<2x384xf32>
      %113 = arith.addf %112, %111 : vector<2x384xf32>
      %114 = arith.divf %112, %113 : vector<2x384xf32>
      %115 = vector.extract_strided_slice %105 {offsets = [0, 384], sizes = [2, 128], strides = [1, 1]} : vector<2x512xf32> to vector<2x128xf32>
      %116 = math.tanh %115 : vector<2x128xf32>
      %117 = vector.extract_strided_slice %114 {offsets = [0, 0], sizes = [2, 128], strides = [1, 1]} : vector<2x384xf32> to vector<2x128xf32>
      %118 = vector.extract_strided_slice %114 {offsets = [0, 128], sizes = [2, 128], strides = [1, 1]} : vector<2x384xf32> to vector<2x128xf32>
      %119 = vector.extract_strided_slice %114 {offsets = [0, 256], sizes = [2, 128], strides = [1, 1]} : vector<2x384xf32> to vector<2x128xf32>
      %120 = arith.mulf %118, %81 : vector<2x128xf32>
      %121 = arith.mulf %117, %116 : vector<2x128xf32>
      %122 = arith.addf %120, %121 : vector<2x128xf32>
      %123 = math.tanh %122 : vector<2x128xf32>
      %124 = arith.mulf %119, %123 : vector<2x128xf32>
      %125 = vector.extract_strided_slice %108 {offsets = [0, 0], sizes = [2, 384], strides = [1, 1]} : vector<2x512xf32> to vector<2x384xf32>
      %126 = arith.negf %125 : vector<2x384xf32>
      %127 = math.exp %126 : vector<2x384xf32>
      %cst_25 = arith.constant 1.000000e+00 : f32
      %128 = vector.broadcast %cst_25 : f32 to vector<2x384xf32>
      %129 = arith.addf %128, %127 : vector<2x384xf32>
      %130 = arith.divf %128, %129 : vector<2x384xf32>
      %131 = vector.extract_strided_slice %108 {offsets = [0, 384], sizes = [2, 128], strides = [1, 1]} : vector<2x512xf32> to vector<2x128xf32>
      %132 = math.tanh %131 : vector<2x128xf32>
      %133 = vector.extract_strided_slice %130 {offsets = [0, 0], sizes = [2, 128], strides = [1, 1]} : vector<2x384xf32> to vector<2x128xf32>
      %134 = vector.extract_strided_slice %130 {offsets = [0, 128], sizes = [2, 128], strides = [1, 1]} : vector<2x384xf32> to vector<2x128xf32>
      %135 = vector.extract_strided_slice %130 {offsets = [0, 256], sizes = [2, 128], strides = [1, 1]} : vector<2x384xf32> to vector<2x128xf32>
      %136 = arith.mulf %134, %97 : vector<2x128xf32>
      %137 = arith.mulf %133, %132 : vector<2x128xf32>
      %138 = arith.addf %136, %137 : vector<2x128xf32>
      %139 = math.tanh %138 : vector<2x128xf32>
      %140 = arith.mulf %135, %139 : vector<2x128xf32>
      %141 = tpu.concatenate %124, %140 in 1 : vector<2x128xf32>, vector<2x128xf32> -> vector<2x256xf32>
      %142 = arith.truncf %141 : vector<2x256xf32> to vector<2x256xbf16>
      %cst_26 = arith.constant dense<0.000000e+00> : vector<2x1024xf32>
      %143 = tpu.matmul %142, %13, %cst_26 {dimension_numbers = #tpu.dot_dimension_numbers<[1], [0], [0], [1], [0, 0, 1, 1], [], []>} : vector<2x256xbf16>, vector<256x1024xbf16>, vector<2x1024xf32> -> vector<2x1024xf32>
      %144 = vector.extract_strided_slice %12 {offsets = [6, 0], sizes = [2, 512], strides = [1, 1]} : vector<8x1024xf32> to vector<2x512xf32>
      %145 = vector.extract_strided_slice %143 {offsets = [0, 0], sizes = [2, 512], strides = [1, 1]} : vector<2x1024xf32> to vector<2x512xf32>
      %146 = arith.addf %144, %145 : vector<2x512xf32>
      %147 = vector.extract_strided_slice %12 {offsets = [0, 512], sizes = [2, 512], strides = [1, 1]} : vector<8x1024xf32> to vector<2x512xf32>
      %148 = vector.extract_strided_slice %143 {offsets = [0, 512], sizes = [2, 512], strides = [1, 1]} : vector<2x1024xf32> to vector<2x512xf32>
      %149 = arith.addf %147, %148 : vector<2x512xf32>
      %150 = vector.extract_strided_slice %146 {offsets = [0, 0], sizes = [2, 384], strides = [1, 1]} : vector<2x512xf32> to vector<2x384xf32>
      %151 = arith.negf %150 : vector<2x384xf32>
      %152 = math.exp %151 : vector<2x384xf32>
      %cst_27 = arith.constant 1.000000e+00 : f32
      %153 = vector.broadcast %cst_27 : f32 to vector<2x384xf32>
      %154 = arith.addf %153, %152 : vector<2x384xf32>
      %155 = arith.divf %153, %154 : vector<2x384xf32>
      %156 = vector.extract_strided_slice %146 {offsets = [0, 384], sizes = [2, 128], strides = [1, 1]} : vector<2x512xf32> to vector<2x128xf32>
      %157 = math.tanh %156 : vector<2x128xf32>
      %158 = vector.extract_strided_slice %155 {offsets = [0, 0], sizes = [2, 128], strides = [1, 1]} : vector<2x384xf32> to vector<2x128xf32>
      %159 = vector.extract_strided_slice %155 {offsets = [0, 128], sizes = [2, 128], strides = [1, 1]} : vector<2x384xf32> to vector<2x128xf32>
      %160 = vector.extract_strided_slice %155 {offsets = [0, 256], sizes = [2, 128], strides = [1, 1]} : vector<2x384xf32> to vector<2x128xf32>
      %161 = arith.mulf %159, %122 : vector<2x128xf32>
      %162 = arith.mulf %158, %157 : vector<2x128xf32>
      %163 = arith.addf %161, %162 : vector<2x128xf32>
      %164 = math.tanh %163 : vector<2x128xf32>
      %165 = arith.mulf %160, %164 : vector<2x128xf32>
      %166 = vector.extract_strided_slice %149 {offsets = [0, 0], sizes = [2, 384], strides = [1, 1]} : vector<2x512xf32> to vector<2x384xf32>
      %167 = arith.negf %166 : vector<2x384xf32>
      %168 = math.exp %167 : vector<2x384xf32>
      %cst_28 = arith.constant 1.000000e+00 : f32
      %169 = vector.broadcast %cst_28 : f32 to vector<2x384xf32>
      %170 = arith.addf %169, %168 : vector<2x384xf32>
      %171 = arith.divf %169, %170 : vector<2x384xf32>
      %172 = vector.extract_strided_slice %149 {offsets = [0, 384], sizes = [2, 128], strides = [1, 1]} : vector<2x512xf32> to vector<2x128xf32>
      %173 = math.tanh %172 : vector<2x128xf32>
      %174 = vector.extract_strided_slice %171 {offsets = [0, 0], sizes = [2, 128], strides = [1, 1]} : vector<2x384xf32> to vector<2x128xf32>
      %175 = vector.extract_strided_slice %171 {offsets = [0, 128], sizes = [2, 128], strides = [1, 1]} : vector<2x384xf32> to vector<2x128xf32>
      %176 = vector.extract_strided_slice %171 {offsets = [0, 256], sizes = [2, 128], strides = [1, 1]} : vector<2x384xf32> to vector<2x128xf32>
      %177 = arith.mulf %175, %138 : vector<2x128xf32>
      %178 = arith.mulf %174, %173 : vector<2x128xf32>
      %179 = arith.addf %177, %178 : vector<2x128xf32>
      %180 = math.tanh %179 : vector<2x128xf32>
      %181 = arith.mulf %176, %180 : vector<2x128xf32>
      %182 = tpu.concatenate %42, %181 in 1 : vector<2x128xf32>, vector<2x128xf32> -> vector<2x256xf32>
      %183 = tpu.concatenate %83, %140 in 1 : vector<2x128xf32>, vector<2x128xf32> -> vector<2x256xf32>
      %184 = tpu.concatenate %124, %99 in 1 : vector<2x128xf32>, vector<2x128xf32> -> vector<2x256xf32>
      %185 = tpu.concatenate %165, %58 in 1 : vector<2x128xf32>, vector<2x128xf32> -> vector<2x256xf32>
      %186 = tpu.concatenate %182, %183, %184, %185 in 0 : vector<2x256xf32>, vector<2x256xf32>, vector<2x256xf32>, vector<2x256xf32> -> vector<8x256xf32>
      %c0_29 = arith.constant 0 : index
      %c0_30 = arith.constant 0 : index
      %187 = vector.load %arg5[%c0_29, %c0_30] : memref<8x256xf32, #tpu.memory_space<vmem>>, vector<8x256xf32>
      tpu.vector_store %arg5[%c0_29, %c0_30], %186 {strides = array<i32>} : memref<8x256xf32, #tpu.memory_space<vmem>>, vector<8x256xf32>,
    } else {
    }
    return
  }
  func.func @transform_0(%arg0: i32) -> (i32, i32) {
    %c0_i32 = arith.constant 0 : i32
    %c0_i32_0 = arith.constant 0 : i32
    return %c0_i32, %arg0 : i32, i32
  }
  func.func @transform_1(%arg0: i32) -> (i32, i32) {
    %c0_i32 = arith.constant 0 : i32
    %c0_i32_0 = arith.constant 0 : i32
    return %arg0, %c0_i32 : i32, i32
  }
  func.func @transform_2(%arg0: i32) -> (i32, i32) {
    %c0_i32 = arith.constant 0 : i32
    %c0_i32_0 = arith.constant 0 : i32
    %c0_i32_1 = arith.constant 0 : i32
    return %c0_i32, %c0_i32_0 : i32, i32
  }
  func.func @transform_3(%arg0: i32) -> (i32, i32) {
    %c0_i32 = arith.constant 0 : i32
    %c0_i32_0 = arith.constant 0 : i32
    %c0_i32_1 = arith.constant 0 : i32
    return %c0_i32, %c0_i32_0 : i32, i32
  }
  func.func @transform_4(%arg0: i32) -> (i32, i32) {
    %c0_i32 = arith.constant 0 : i32
    %c0_i32_0 = arith.constant 0 : i32
    %c0_i32_1 = arith.constant 0 : i32
    return %c0_i32, %c0_i32_0 : i32, i32
  }
}

module attributes {stable_mosaic.version = 11 : i64} {
  func.func @kernel(%arg0: i32, %arg1: memref<8x256xf32, #tpu.memory_space<vmem>>, %arg2: memref<256x1024xbf16, #tpu.memory_space<vmem>>, %arg3: memref<256x1024xbf16, #tpu.memory_space<vmem>>, %arg4: memref<1x1024xf32, #tpu.memory_space<vmem>>, %arg5: memref<256x256xf32, #tpu.memory_space<vmem>>, %arg6: memref<1x256xf32, #tpu.memory_space<vmem>>, %arg7: memref<1x256xf32, #tpu.memory_space<vmem>>, %arg8: memref<1x1xf32, #tpu.memory_space<vmem>>, %arg9: memref<2x1xf32, #tpu.memory_space<vmem>>, %arg10: memref<8x1024xf32, #tpu.memory_space<vmem>>) attributes {dimension_semantics = [#tpu.dimension_semantics<arbitrary>], iteration_bounds = array<i64: 1>, scalar_prefetch = 0 : i64, scratch_operands = 1 : i64, tpu.core_type = #tpu.core_type<tc>, window_params = [{transform_indices = @transform_0, window_bounds = array<i64: 8, 256>}, {transform_indices = @transform_1, window_bounds = array<i64: 256, 1024>}, {pipeline_mode = #tpu.pipeline_mode<synchronous>, transform_indices = @transform_2, window_bounds = array<i64: 256, 1024>}, {pipeline_mode = #tpu.pipeline_mode<synchronous>, transform_indices = @transform_3, window_bounds = array<i64: 1, 1024>}, {pipeline_mode = #tpu.pipeline_mode<synchronous>, transform_indices = @transform_4, window_bounds = array<i64: 256, 256>}, {pipeline_mode = #tpu.pipeline_mode<synchronous>, transform_indices = @transform_5, window_bounds = array<i64: 1, 256>}, {pipeline_mode = #tpu.pipeline_mode<synchronous>, transform_indices = @transform_6, window_bounds = array<i64: 1, 256>}, {pipeline_mode = #tpu.pipeline_mode<synchronous>, transform_indices = @transform_7, window_bounds = array<i64: 1, 1>}, {pipeline_mode = #tpu.pipeline_mode<synchronous>, transform_indices = @transform_8, window_bounds = array<i64: 2, 1>}]} {
    %c0_i32 = arith.constant 0 : i32
    %0 = arith.cmpi eq, %arg0, %c0_i32 : i32
    %1 = arith.extui %0 : i1 to i32
    %c0_i32_0 = arith.constant 0 : i32
    %2 = arith.cmpi ne, %1, %c0_i32_0 : i32
    scf.if %2 {
      %c0_10 = arith.constant 0 : index
      %c0_11 = arith.constant 0 : index
      %13 = vector.load %arg4[%c0_10, %c0_11] : memref<1x1024xf32, #tpu.memory_space<vmem>>, vector<1x1024xf32>
      %14 = vector.shape_cast %13 : vector<1x1024xf32> to vector<1x1024xf32>
      %15 = vector.broadcast %14 : vector<1x1024xf32> to vector<8x1024xf32>
      %c0_12 = arith.constant 0 : index
      %c0_13 = arith.constant 0 : index
      %16 = vector.load %arg10[%c0_12, %c0_13] : memref<8x1024xf32, #tpu.memory_space<vmem>>, vector<8x1024xf32>
      tpu.vector_store %arg10[%c0_12, %c0_13], %15 {strides = array<i32>} : memref<8x1024xf32, #tpu.memory_space<vmem>>, vector<8x1024xf32>,
    } else {
    }
    %c0 = arith.constant 0 : index
    %c0_1 = arith.constant 0 : index
    %3 = vector.load %arg10[%c0, %c0_1] : memref<8x1024xf32, #tpu.memory_space<vmem>>, vector<8x1024xf32>
    %c0_2 = arith.constant 0 : index
    %c0_3 = arith.constant 0 : index
    %4 = vector.load %arg1[%c0_2, %c0_3] : memref<8x256xf32, #tpu.memory_space<vmem>>, vector<8x256xf32>
    %5 = arith.truncf %4 : vector<8x256xf32> to vector<8x256xbf16>
    %c0_4 = arith.constant 0 : index
    %c0_5 = arith.constant 0 : index
    %6 = vector.load %arg2[%c0_4, %c0_5] : memref<256x1024xbf16, #tpu.memory_space<vmem>>, vector<256x1024xbf16>
    %cst = arith.constant dense<0.000000e+00> : vector<8x1024xf32>
    %7 = tpu.matmul %5, %6, %cst {dimension_numbers = #tpu.dot_dimension_numbers<[1], [0], [0], [1], [0, 0, 1, 1], [], []>} : vector<8x256xbf16>, vector<256x1024xbf16>, vector<8x1024xf32> -> vector<8x1024xf32>
    %8 = arith.addf %3, %7 : vector<8x1024xf32>
    %c0_6 = arith.constant 0 : index
    %c0_7 = arith.constant 0 : index
    %9 = vector.load %arg10[%c0_6, %c0_7] : memref<8x1024xf32, #tpu.memory_space<vmem>>, vector<8x1024xf32>
    tpu.vector_store %arg10[%c0_6, %c0_7], %8 {strides = array<i32>} : memref<8x1024xf32, #tpu.memory_space<vmem>>, vector<8x1024xf32>,
    %c0_i32_8 = arith.constant 0 : i32
    %10 = arith.cmpi eq, %arg0, %c0_i32_8 : i32
    %11 = arith.extui %10 : i1 to i32
    %c0_i32_9 = arith.constant 0 : i32
    %12 = arith.cmpi ne, %11, %c0_i32_9 : i32
    scf.if %12 {
      %c0_10 = arith.constant 0 : index
      %c0_11 = arith.constant 0 : index
      %13 = vector.load %arg10[%c0_10, %c0_11] : memref<8x1024xf32, #tpu.memory_space<vmem>>, vector<8x1024xf32>
      %c0_12 = arith.constant 0 : index
      %c0_13 = arith.constant 0 : index
      %14 = vector.load %arg3[%c0_12, %c0_13] : memref<256x1024xbf16, #tpu.memory_space<vmem>>, vector<256x1024xbf16>
      %cst_14 = arith.constant 0.000000e+00 : f32
      %15 = vector.broadcast %cst_14 : f32 to vector<2x128xf32>
      %cst_15 = arith.constant 0.000000e+00 : f32
      %16 = vector.broadcast %cst_15 : f32 to vector<2x128xf32>
      %cst_16 = arith.constant 0.000000e+00 : f32
      %17 = vector.broadcast %cst_16 : f32 to vector<2x128xf32>
      %cst_17 = arith.constant 0.000000e+00 : f32
      %18 = vector.broadcast %cst_17 : f32 to vector<2x128xf32>
      %19 = tpu.concatenate %15, %17 in 1 : vector<2x128xf32>, vector<2x128xf32> -> vector<2x256xf32>
      %20 = arith.truncf %19 : vector<2x256xf32> to vector<2x256xbf16>
      %cst_18 = arith.constant dense<0.000000e+00> : vector<2x1024xf32>
      %21 = tpu.matmul %20, %14, %cst_18 {dimension_numbers = #tpu.dot_dimension_numbers<[1], [0], [0], [1], [0, 0, 1, 1], [], []>} : vector<2x256xbf16>, vector<256x1024xbf16>, vector<2x1024xf32> -> vector<2x1024xf32>
      %22 = vector.extract_strided_slice %13 {offsets = [0, 0], sizes = [2, 512], strides = [1, 1]} : vector<8x1024xf32> to vector<2x512xf32>
      %23 = vector.extract_strided_slice %21 {offsets = [0, 0], sizes = [2, 512], strides = [1, 1]} : vector<2x1024xf32> to vector<2x512xf32>
      %24 = arith.addf %22, %23 : vector<2x512xf32>
      %25 = vector.extract_strided_slice %13 {offsets = [6, 512], sizes = [2, 512], strides = [1, 1]} : vector<8x1024xf32> to vector<2x512xf32>
      %26 = vector.extract_strided_slice %21 {offsets = [0, 512], sizes = [2, 512], strides = [1, 1]} : vector<2x1024xf32> to vector<2x512xf32>
      %27 = arith.addf %25, %26 : vector<2x512xf32>
      %28 = vector.extract_strided_slice %24 {offsets = [0, 0], sizes = [2, 384], strides = [1, 1]} : vector<2x512xf32> to vector<2x384xf32>
      %29 = arith.negf %28 : vector<2x384xf32>
      %30 = math.exp %29 : vector<2x384xf32>
      %cst_19 = arith.constant 1.000000e+00 : f32
      %31 = vector.broadcast %cst_19 : f32 to vector<2x384xf32>
      %32 = arith.addf %31, %30 : vector<2x384xf32>
      %33 = arith.divf %31, %32 : vector<2x384xf32>
      %34 = vector.extract_strided_slice %24 {offsets = [0, 384], sizes = [2, 128], strides = [1, 1]} : vector<2x512xf32> to vector<2x128xf32>
      %35 = math.tanh %34 : vector<2x128xf32>
      %36 = vector.extract_strided_slice %33 {offsets = [0, 0], sizes = [2, 128], strides = [1, 1]} : vector<2x384xf32> to vector<2x128xf32>
      %37 = vector.extract_strided_slice %33 {offsets = [0, 128], sizes = [2, 128], strides = [1, 1]} : vector<2x384xf32> to vector<2x128xf32>
      %38 = vector.extract_strided_slice %33 {offsets = [0, 256], sizes = [2, 128], strides = [1, 1]} : vector<2x384xf32> to vector<2x128xf32>
      %39 = arith.mulf %37, %16 : vector<2x128xf32>
      %40 = arith.mulf %36, %35 : vector<2x128xf32>
      %41 = arith.addf %39, %40 : vector<2x128xf32>
      %42 = math.tanh %41 : vector<2x128xf32>
      %43 = arith.mulf %38, %42 : vector<2x128xf32>
      %44 = vector.extract_strided_slice %27 {offsets = [0, 0], sizes = [2, 384], strides = [1, 1]} : vector<2x512xf32> to vector<2x384xf32>
      %45 = arith.negf %44 : vector<2x384xf32>
      %46 = math.exp %45 : vector<2x384xf32>
      %cst_20 = arith.constant 1.000000e+00 : f32
      %47 = vector.broadcast %cst_20 : f32 to vector<2x384xf32>
      %48 = arith.addf %47, %46 : vector<2x384xf32>
      %49 = arith.divf %47, %48 : vector<2x384xf32>
      %50 = vector.extract_strided_slice %27 {offsets = [0, 384], sizes = [2, 128], strides = [1, 1]} : vector<2x512xf32> to vector<2x128xf32>
      %51 = math.tanh %50 : vector<2x128xf32>
      %52 = vector.extract_strided_slice %49 {offsets = [0, 0], sizes = [2, 128], strides = [1, 1]} : vector<2x384xf32> to vector<2x128xf32>
      %53 = vector.extract_strided_slice %49 {offsets = [0, 128], sizes = [2, 128], strides = [1, 1]} : vector<2x384xf32> to vector<2x128xf32>
      %54 = vector.extract_strided_slice %49 {offsets = [0, 256], sizes = [2, 128], strides = [1, 1]} : vector<2x384xf32> to vector<2x128xf32>
      %55 = arith.mulf %53, %18 : vector<2x128xf32>
      %56 = arith.mulf %52, %51 : vector<2x128xf32>
      %57 = arith.addf %55, %56 : vector<2x128xf32>
      %58 = math.tanh %57 : vector<2x128xf32>
      %59 = arith.mulf %54, %58 : vector<2x128xf32>
      %60 = tpu.concatenate %43, %59 in 1 : vector<2x128xf32>, vector<2x128xf32> -> vector<2x256xf32>
      %61 = arith.truncf %60 : vector<2x256xf32> to vector<2x256xbf16>
      %cst_21 = arith.constant dense<0.000000e+00> : vector<2x1024xf32>
      %62 = tpu.matmul %61, %14, %cst_21 {dimension_numbers = #tpu.dot_dimension_numbers<[1], [0], [0], [1], [0, 0, 1, 1], [], []>} : vector<2x256xbf16>, vector<256x1024xbf16>, vector<2x1024xf32> -> vector<2x1024xf32>
      %63 = vector.extract_strided_slice %13 {offsets = [2, 0], sizes = [2, 512], strides = [1, 1]} : vector<8x1024xf32> to vector<2x512xf32>
      %64 = vector.extract_strided_slice %62 {offsets = [0, 0], sizes = [2, 512], strides = [1, 1]} : vector<2x1024xf32> to vector<2x512xf32>
      %65 = arith.addf %63, %64 : vector<2x512xf32>
      %66 = vector.extract_strided_slice %13 {offsets = [4, 512], sizes = [2, 512], strides = [1, 1]} : vector<8x1024xf32> to vector<2x512xf32>
      %67 = vector.extract_strided_slice %62 {offsets = [0, 512], sizes = [2, 512], strides = [1, 1]} : vector<2x1024xf32> to vector<2x512xf32>
      %68 = arith.addf %66, %67 : vector<2x512xf32>
      %69 = vector.extract_strided_slice %65 {offsets = [0, 0], sizes = [2, 384], strides = [1, 1]} : vector<2x512xf32> to vector<2x384xf32>
      %70 = arith.negf %69 : vector<2x384xf32>
      %71 = math.exp %70 : vector<2x384xf32>
      %cst_22 = arith.constant 1.000000e+00 : f32
      %72 = vector.broadcast %cst_22 : f32 to vector<2x384xf32>
      %73 = arith.addf %72, %71 : vector<2x384xf32>
      %74 = arith.divf %72, %73 : vector<2x384xf32>
      %75 = vector.extract_strided_slice %65 {offsets = [0, 384], sizes = [2, 128], strides = [1, 1]} : vector<2x512xf32> to vector<2x128xf32>
      %76 = math.tanh %75 : vector<2x128xf32>
      %77 = vector.extract_strided_slice %74 {offsets = [0, 0], sizes = [2, 128], strides = [1, 1]} : vector<2x384xf32> to vector<2x128xf32>
      %78 = vector.extract_strided_slice %74 {offsets = [0, 128], sizes = [2, 128], strides = [1, 1]} : vector<2x384xf32> to vector<2x128xf32>
      %79 = vector.extract_strided_slice %74 {offsets = [0, 256], sizes = [2, 128], strides = [1, 1]} : vector<2x384xf32> to vector<2x128xf32>
      %80 = arith.mulf %78, %41 : vector<2x128xf32>
      %81 = arith.mulf %77, %76 : vector<2x128xf32>
      %82 = arith.addf %80, %81 : vector<2x128xf32>
      %83 = math.tanh %82 : vector<2x128xf32>
      %84 = arith.mulf %79, %83 : vector<2x128xf32>
      %85 = vector.extract_strided_slice %68 {offsets = [0, 0], sizes = [2, 384], strides = [1, 1]} : vector<2x512xf32> to vector<2x384xf32>
      %86 = arith.negf %85 : vector<2x384xf32>
      %87 = math.exp %86 : vector<2x384xf32>
      %cst_23 = arith.constant 1.000000e+00 : f32
      %88 = vector.broadcast %cst_23 : f32 to vector<2x384xf32>
      %89 = arith.addf %88, %87 : vector<2x384xf32>
      %90 = arith.divf %88, %89 : vector<2x384xf32>
      %91 = vector.extract_strided_slice %68 {offsets = [0, 384], sizes = [2, 128], strides = [1, 1]} : vector<2x512xf32> to vector<2x128xf32>
      %92 = math.tanh %91 : vector<2x128xf32>
      %93 = vector.extract_strided_slice %90 {offsets = [0, 0], sizes = [2, 128], strides = [1, 1]} : vector<2x384xf32> to vector<2x128xf32>
      %94 = vector.extract_strided_slice %90 {offsets = [0, 128], sizes = [2, 128], strides = [1, 1]} : vector<2x384xf32> to vector<2x128xf32>
      %95 = vector.extract_strided_slice %90 {offsets = [0, 256], sizes = [2, 128], strides = [1, 1]} : vector<2x384xf32> to vector<2x128xf32>
      %96 = arith.mulf %94, %57 : vector<2x128xf32>
      %97 = arith.mulf %93, %92 : vector<2x128xf32>
      %98 = arith.addf %96, %97 : vector<2x128xf32>
      %99 = math.tanh %98 : vector<2x128xf32>
      %100 = arith.mulf %95, %99 : vector<2x128xf32>
      %101 = tpu.concatenate %84, %100 in 1 : vector<2x128xf32>, vector<2x128xf32> -> vector<2x256xf32>
      %102 = arith.truncf %101 : vector<2x256xf32> to vector<2x256xbf16>
      %cst_24 = arith.constant dense<0.000000e+00> : vector<2x1024xf32>
      %103 = tpu.matmul %102, %14, %cst_24 {dimension_numbers = #tpu.dot_dimension_numbers<[1], [0], [0], [1], [0, 0, 1, 1], [], []>} : vector<2x256xbf16>, vector<256x1024xbf16>, vector<2x1024xf32> -> vector<2x1024xf32>
      %104 = vector.extract_strided_slice %13 {offsets = [4, 0], sizes = [2, 512], strides = [1, 1]} : vector<8x1024xf32> to vector<2x512xf32>
      %105 = vector.extract_strided_slice %103 {offsets = [0, 0], sizes = [2, 512], strides = [1, 1]} : vector<2x1024xf32> to vector<2x512xf32>
      %106 = arith.addf %104, %105 : vector<2x512xf32>
      %107 = vector.extract_strided_slice %13 {offsets = [2, 512], sizes = [2, 512], strides = [1, 1]} : vector<8x1024xf32> to vector<2x512xf32>
      %108 = vector.extract_strided_slice %103 {offsets = [0, 512], sizes = [2, 512], strides = [1, 1]} : vector<2x1024xf32> to vector<2x512xf32>
      %109 = arith.addf %107, %108 : vector<2x512xf32>
      %110 = vector.extract_strided_slice %106 {offsets = [0, 0], sizes = [2, 384], strides = [1, 1]} : vector<2x512xf32> to vector<2x384xf32>
      %111 = arith.negf %110 : vector<2x384xf32>
      %112 = math.exp %111 : vector<2x384xf32>
      %cst_25 = arith.constant 1.000000e+00 : f32
      %113 = vector.broadcast %cst_25 : f32 to vector<2x384xf32>
      %114 = arith.addf %113, %112 : vector<2x384xf32>
      %115 = arith.divf %113, %114 : vector<2x384xf32>
      %116 = vector.extract_strided_slice %106 {offsets = [0, 384], sizes = [2, 128], strides = [1, 1]} : vector<2x512xf32> to vector<2x128xf32>
      %117 = math.tanh %116 : vector<2x128xf32>
      %118 = vector.extract_strided_slice %115 {offsets = [0, 0], sizes = [2, 128], strides = [1, 1]} : vector<2x384xf32> to vector<2x128xf32>
      %119 = vector.extract_strided_slice %115 {offsets = [0, 128], sizes = [2, 128], strides = [1, 1]} : vector<2x384xf32> to vector<2x128xf32>
      %120 = vector.extract_strided_slice %115 {offsets = [0, 256], sizes = [2, 128], strides = [1, 1]} : vector<2x384xf32> to vector<2x128xf32>
      %121 = arith.mulf %119, %82 : vector<2x128xf32>
      %122 = arith.mulf %118, %117 : vector<2x128xf32>
      %123 = arith.addf %121, %122 : vector<2x128xf32>
      %124 = math.tanh %123 : vector<2x128xf32>
      %125 = arith.mulf %120, %124 : vector<2x128xf32>
      %126 = vector.extract_strided_slice %109 {offsets = [0, 0], sizes = [2, 384], strides = [1, 1]} : vector<2x512xf32> to vector<2x384xf32>
      %127 = arith.negf %126 : vector<2x384xf32>
      %128 = math.exp %127 : vector<2x384xf32>
      %cst_26 = arith.constant 1.000000e+00 : f32
      %129 = vector.broadcast %cst_26 : f32 to vector<2x384xf32>
      %130 = arith.addf %129, %128 : vector<2x384xf32>
      %131 = arith.divf %129, %130 : vector<2x384xf32>
      %132 = vector.extract_strided_slice %109 {offsets = [0, 384], sizes = [2, 128], strides = [1, 1]} : vector<2x512xf32> to vector<2x128xf32>
      %133 = math.tanh %132 : vector<2x128xf32>
      %134 = vector.extract_strided_slice %131 {offsets = [0, 0], sizes = [2, 128], strides = [1, 1]} : vector<2x384xf32> to vector<2x128xf32>
      %135 = vector.extract_strided_slice %131 {offsets = [0, 128], sizes = [2, 128], strides = [1, 1]} : vector<2x384xf32> to vector<2x128xf32>
      %136 = vector.extract_strided_slice %131 {offsets = [0, 256], sizes = [2, 128], strides = [1, 1]} : vector<2x384xf32> to vector<2x128xf32>
      %137 = arith.mulf %135, %98 : vector<2x128xf32>
      %138 = arith.mulf %134, %133 : vector<2x128xf32>
      %139 = arith.addf %137, %138 : vector<2x128xf32>
      %140 = math.tanh %139 : vector<2x128xf32>
      %141 = arith.mulf %136, %140 : vector<2x128xf32>
      %142 = tpu.concatenate %125, %141 in 1 : vector<2x128xf32>, vector<2x128xf32> -> vector<2x256xf32>
      %143 = arith.truncf %142 : vector<2x256xf32> to vector<2x256xbf16>
      %cst_27 = arith.constant dense<0.000000e+00> : vector<2x1024xf32>
      %144 = tpu.matmul %143, %14, %cst_27 {dimension_numbers = #tpu.dot_dimension_numbers<[1], [0], [0], [1], [0, 0, 1, 1], [], []>} : vector<2x256xbf16>, vector<256x1024xbf16>, vector<2x1024xf32> -> vector<2x1024xf32>
      %145 = vector.extract_strided_slice %13 {offsets = [6, 0], sizes = [2, 512], strides = [1, 1]} : vector<8x1024xf32> to vector<2x512xf32>
      %146 = vector.extract_strided_slice %144 {offsets = [0, 0], sizes = [2, 512], strides = [1, 1]} : vector<2x1024xf32> to vector<2x512xf32>
      %147 = arith.addf %145, %146 : vector<2x512xf32>
      %148 = vector.extract_strided_slice %147 {offsets = [0, 0], sizes = [2, 384], strides = [1, 1]} : vector<2x512xf32> to vector<2x384xf32>
      %149 = arith.negf %148 : vector<2x384xf32>
      %150 = math.exp %149 : vector<2x384xf32>
      %cst_28 = arith.constant 1.000000e+00 : f32
      %151 = vector.broadcast %cst_28 : f32 to vector<2x384xf32>
      %152 = arith.addf %151, %150 : vector<2x384xf32>
      %153 = arith.divf %151, %152 : vector<2x384xf32>
      %154 = vector.extract_strided_slice %147 {offsets = [0, 384], sizes = [2, 128], strides = [1, 1]} : vector<2x512xf32> to vector<2x128xf32>
      %155 = math.tanh %154 : vector<2x128xf32>
      %156 = vector.extract_strided_slice %153 {offsets = [0, 0], sizes = [2, 128], strides = [1, 1]} : vector<2x384xf32> to vector<2x128xf32>
      %157 = vector.extract_strided_slice %153 {offsets = [0, 128], sizes = [2, 128], strides = [1, 1]} : vector<2x384xf32> to vector<2x128xf32>
      %158 = vector.extract_strided_slice %153 {offsets = [0, 256], sizes = [2, 128], strides = [1, 1]} : vector<2x384xf32> to vector<2x128xf32>
      %159 = arith.mulf %157, %123 : vector<2x128xf32>
      %160 = arith.mulf %156, %155 : vector<2x128xf32>
      %161 = arith.addf %159, %160 : vector<2x128xf32>
      %162 = math.tanh %161 : vector<2x128xf32>
      %163 = arith.mulf %158, %162 : vector<2x128xf32>
      %164 = tpu.concatenate %163, %59 in 1 : vector<2x128xf32>, vector<2x128xf32> -> vector<2x256xf32>
      %c0_29 = arith.constant 0 : index
      %c0_30 = arith.constant 0 : index
      %165 = vector.load %arg5[%c0_29, %c0_30] : memref<256x256xf32, #tpu.memory_space<vmem>>, vector<256x256xf32>
      %cst_31 = arith.constant dense<0.000000e+00> : vector<2x256xf32>
      %166 = tpu.matmul %164, %165, %cst_31 {dimension_numbers = #tpu.dot_dimension_numbers<[1], [0], [0], [1], [0, 0, 1, 1], [], []>} : vector<2x256xf32>, vector<256x256xf32>, vector<2x256xf32> -> vector<2x256xf32>
      %c0_32 = arith.constant 0 : index
      %c0_33 = arith.constant 0 : index
      %167 = vector.load %arg6[%c0_32, %c0_33] : memref<1x256xf32, #tpu.memory_space<vmem>>, vector<1x256xf32>
      %168 = vector.broadcast %167 : vector<1x256xf32> to vector<2x256xf32>
      %169 = arith.addf %166, %168 : vector<2x256xf32>
      %cst_34 = arith.constant 0.000000e+00 : f32
      %170 = vector.broadcast %cst_34 : f32 to vector<2x256xf32>
      %171 = arith.maximumf %169, %170 : vector<2x256xf32>
      %c0_35 = arith.constant 0 : index
      %c0_36 = arith.constant 0 : index
      %172 = vector.load %arg7[%c0_35, %c0_36] : memref<1x256xf32, #tpu.memory_space<vmem>>, vector<1x256xf32>
      %173 = vector.broadcast %172 : vector<1x256xf32> to vector<2x256xf32>
      %174 = arith.mulf %171, %173 : vector<2x256xf32>
      %cst_37 = arith.constant dense<0.000000e+00> : vector<2xf32>
      %175 = vector.multi_reduction <add>, %174, %cst_37 [1] : vector<2x256xf32> to vector<2xf32>
      %176 = vector.shape_cast %175 : vector<2xf32> to vector<2x1xf32>
      %c0_38 = arith.constant 0 : index
      %c0_39 = arith.constant 0 : index
      %177 = vector.load %arg8[%c0_38, %c0_39] : memref<1x1xf32, #tpu.memory_space<vmem>>, vector<1x1xf32>
      %178 = vector.broadcast %177 : vector<1x1xf32> to vector<2x1xf32>
      %179 = arith.addf %176, %178 : vector<2x1xf32>
      %180 = arith.negf %179 : vector<2x1xf32>
      %181 = math.exp %180 : vector<2x1xf32>
      %cst_40 = arith.constant 1.000000e+00 : f32
      %182 = vector.broadcast %cst_40 : f32 to vector<2x1xf32>
      %183 = arith.addf %182, %181 : vector<2x1xf32>
      %184 = arith.divf %182, %183 : vector<2x1xf32>
      %c0_41 = arith.constant 0 : index
      %c0_42 = arith.constant 0 : index
      %185 = vector.load %arg9[%c0_41, %c0_42] : memref<2x1xf32, #tpu.memory_space<vmem>>, vector<2x1xf32>
      tpu.vector_store %arg9[%c0_41, %c0_42], %184 {strides = array<i32>} : memref<2x1xf32, #tpu.memory_space<vmem>>, vector<2x1xf32>,
    } else {
    }
    return
  }
  func.func @transform_0(%arg0: i32) -> (i32, i32) {
    %c0_i32 = arith.constant 0 : i32
    %c0_i32_0 = arith.constant 0 : i32
    return %c0_i32, %arg0 : i32, i32
  }
  func.func @transform_1(%arg0: i32) -> (i32, i32) {
    %c0_i32 = arith.constant 0 : i32
    %c0_i32_0 = arith.constant 0 : i32
    return %arg0, %c0_i32 : i32, i32
  }
  func.func @transform_2(%arg0: i32) -> (i32, i32) {
    %c0_i32 = arith.constant 0 : i32
    %c0_i32_0 = arith.constant 0 : i32
    %c0_i32_1 = arith.constant 0 : i32
    return %c0_i32, %c0_i32_0 : i32, i32
  }
  func.func @transform_3(%arg0: i32) -> (i32, i32) {
    %c0_i32 = arith.constant 0 : i32
    %c0_i32_0 = arith.constant 0 : i32
    %c0_i32_1 = arith.constant 0 : i32
    return %c0_i32, %c0_i32_0 : i32, i32
  }
  func.func @transform_4(%arg0: i32) -> (i32, i32) {
    %c0_i32 = arith.constant 0 : i32
    %c0_i32_0 = arith.constant 0 : i32
    %c0_i32_1 = arith.constant 0 : i32
    return %c0_i32, %c0_i32_0 : i32, i32
  }
  func.func @transform_5(%arg0: i32) -> (i32, i32) {
    %c0_i32 = arith.constant 0 : i32
    %c0_i32_0 = arith.constant 0 : i32
    %c0_i32_1 = arith.constant 0 : i32
    return %c0_i32, %c0_i32_0 : i32, i32
  }
  func.func @transform_6(%arg0: i32) -> (i32, i32) {
    %c0_i32 = arith.constant 0 : i32
    %c0_i32_0 = arith.constant 0 : i32
    %c0_i32_1 = arith.constant 0 : i32
    return %c0_i32, %c0_i32_0 : i32, i32
  }
  func.func @transform_7(%arg0: i32) -> (i32, i32) {
    %c0_i32 = arith.constant 0 : i32
    %c0_i32_0 = arith.constant 0 : i32
    %c0_i32_1 = arith.constant 0 : i32
    return %c0_i32, %c0_i32_0 : i32, i32
  }
  func.func @transform_8(%arg0: i32) -> (i32, i32) {
    %c0_i32 = arith.constant 0 : i32
    %c0_i32_0 = arith.constant 0 : i32
    %c0_i32_1 = arith.constant 0 : i32
    return %c0_i32, %c0_i32_0 : i32, i32
  }
}

</mosaic_0001>

<llo_original>
// kernel: cnn_bilstm_forward.4
$region0: #{cnn_bilstm_forward.4}
  #allocation0 [shape = 'u32[]', space=smem, size = 0x4, offset = 0x4, fixed_abs, tag = 'smem constant byte address 0x4 - core index']
  #allocation1 [shape = 'u32[144,128]{1,0:T(1,128)}', space=vmem, size = 0x12000, scoped, tag = 'internal scratch']
  %s0 = inlined_call_operand.vmem [shape: bf16[9,4096], index: 0, kind: input, shape index: {}]
  %s1 = inlined_call_operand.vmem [shape: bf16[32,9], index: 1, kind: input, shape index: {}]
  %s2 = inlined_call_operand.vmem [shape: f32[32,1], index: 2, kind: input, shape index: {}]
  %s3 = inlined_call_operand.vmem [shape: f32[32,1], index: 3, kind: input, shape index: {}]
  %s4 = inlined_call_operand.vmem [shape: f32[32,1], index: 4, kind: input, shape index: {}]
  %s5 = inlined_call_operand.vmem [shape: bf16[2,32,512], index: 5, kind: output, shape index: {}]
  %s6 = sld [smem:[#allocation0]]
  $region30: #{cnn_bilstm_forward.4} parent=0
    _
  %s8 = ssub.s32 1, %s6
  %s9 = scalar_select 0, %s8, %s6
  // Predicated region
  $region2: #{cnn_bilstm_forward.4} parent=0 // pred_check
    _
  $region3: #{cnn_bilstm_forward.4} parent=0 // pred_check_branch
    %11 = sbr.rel (0) target = $region5
  $region4: #{cnn_bilstm_forward.4} parent=0 // pred_region
    _
  $region5: #{cnn_bilstm_forward.4} parent=0 // pred_fallthru
    _
  // Predicated region
  $region6: #{cnn_bilstm_forward.4} parent=0 // pred_check
    _
  $region7: #{cnn_bilstm_forward.4} parent=0 // pred_check_branch
    %13 = sbr.rel (0) target = $region9
  $region8: #{cnn_bilstm_forward.4} parent=0 // pred_region
    _
  $region9: #{cnn_bilstm_forward.4} parent=0 // pred_fallthru
    _
  // Predicated region
  $region10: #{cnn_bilstm_forward.4} parent=0 // pred_check
    _
  $region11: #{cnn_bilstm_forward.4} parent=0 // pred_check_branch
    %15 = sbr.rel (0) target = $region13
  $region12: #{cnn_bilstm_forward.4} parent=0 // pred_region
    _
  $region13: #{cnn_bilstm_forward.4} parent=0 // pred_fallthru
    _
  // Predicated region
  $region14: #{cnn_bilstm_forward.4} parent=0 // pred_check
    _
  $region15: #{cnn_bilstm_forward.4} parent=0 // pred_check_branch
    %17 = sbr.rel (0) target = $region17
  $region16: #{cnn_bilstm_forward.4} parent=0 // pred_region
    _
  $region17: #{cnn_bilstm_forward.4} parent=0 // pred_fallthru
    _
  // Predicated region
  $region18: #{cnn_bilstm_forward.4} parent=0 // pred_check
    _
  $region19: #{cnn_bilstm_forward.4} parent=0 // pred_check_branch
    %19 = sbr.rel (0) target = $region21
  $region20: #{cnn_bilstm_forward.4} parent=0 // pred_region
    _
  $region21: #{cnn_bilstm_forward.4} parent=0 // pred_fallthru
    _
  %v21 = vld [vmem:[%s1] sm:$0xf]
  %v22 = vld [vmem:[%s1 + $0x4] sm:$0xf]
  %v23 = vld [vmem:[%s1 + $0x8] sm:$0xf]
  %v24 = vld [vmem:[%s1 + $0xc] sm:$0xf]
  %v25 = vld [vmem:[%s0] sm:$0xff]
  %v26 = vld [vmem:[%s0 + $0x8] sm:$0xff]
  %v27 = vld [vmem:[%s0 + $0x10] sm:$0xff]
  %v28 = vld [vmem:[%s0 + $0x18] sm:$0xff]
  %v29 = vld [vmem:[%s0 + $0x20] sm:$0xff]
  %v30 = vld [vmem:[%s0 + $0x28] sm:$0xff]
  %v31 = vld [vmem:[%s0 + $0x30] sm:$0xff]
  %v32 = vld [vmem:[%s0 + $0x38] sm:$0xff]
  %v33 = vld [vmem:[%s0 + $0x40] sm:$0xff]
  %v34 = vld [vmem:[%s0 + $0x48] sm:$0xff]
  %v35 = vld [vmem:[%s0 + $0x50] sm:$0xff]
  %v36 = vld [vmem:[%s0 + $0x58] sm:$0xff]
  %v37 = vld [vmem:[%s0 + $0x60] sm:$0xff]
  %v38 = vld [vmem:[%s0 + $0x68] sm:$0xff]
  %v39 = vld [vmem:[%s0 + $0x70] sm:$0xff]
  %v40 = vld [vmem:[%s0 + $0x78] sm:$0xff]
  %v41 = vld [vmem:[%s0 + $0x80] sm:$0x11]
  %v42 = vld [vmem:[%s0 + $0x88] sm:$0x11]
  %v43 = vld [vmem:[%s0 + $0x90] sm:$0x11]
  %v44 = vld [vmem:[%s0 + $0x98] sm:$0x11]
  %v45 = vld [vmem:[%s0 + $0xa0] sm:$0x11]
  %v46 = vld [vmem:[%s0 + $0xa8] sm:$0x11]
  %v47 = vld [vmem:[%s0 + $0xb0] sm:$0x11]
  %v48 = vld [vmem:[%s0 + $0xb8] sm:$0x11]
  %v49 = vld [vmem:[%s0 + $0xc0] sm:$0x11]
  %v50 = vld [vmem:[%s0 + $0xc8] sm:$0x11]
  %v51 = vld [vmem:[%s0 + $0xd0] sm:$0x11]
  %v52 = vld [vmem:[%s0 + $0xd8] sm:$0x11]
  %v53 = vld [vmem:[%s0 + $0xe0] sm:$0x11]
  %v54 = vld [vmem:[%s0 + $0xe8] sm:$0x11]
  %v55 = vld [vmem:[%s0 + $0xf0] sm:$0x11]
  %v56 = vld [vmem:[%s0 + $0xf8] sm:$0x11]
  %v57 = vld [vmem:[%s2] sm:$0xff]
  %v58 = vld [vmem:[%s2 + $0x8] sm:$0xff]
  %v59 = vld [vmem:[%s2 + $0x10] sm:$0xff]
  %v60 = vld [vmem:[%s2 + $0x18] sm:$0xff]
  %62 = vset.pattern.permute.xlu0 0
  %63 = vperm.xlu0 %62, %v57
  %v64 = vpop.permute.xlu0 %63
  %67 = vset.pattern.permute.xlu0 0
  %68 = vperm.xlu0 %67, %v58
  %v69 = vpop.permute.xlu0 %68
  %72 = vset.pattern.permute.xlu0 0
  %73 = vperm.xlu0 %72, %v59
  %v74 = vpop.permute.xlu0 %73
  %77 = vset.pattern.permute.xlu0 0
  %78 = vperm.xlu0 %77, %v60
  %v79 = vpop.permute.xlu0 %78
  %v85 = vunpack.c.l.b16 %v21
  %v86 = vunpack.c.l.b16 %v22
  %v87 = vunpack.c.l.b16 %v23
  %v88 = vunpack.c.l.b16 %v24
  %v89 = vpack.c.b16 %v86, %v85
  %v90 = vpack.c.b16 %v88, %v87
  %v123 = vunpack.c.l.b16 %v25
  %v124 = vunpack.c.h.b16 %v25
  %v125 = vunpack.c.l.b16 %v26
  %v126 = vunpack.c.h.b16 %v26
  %v127 = vunpack.c.l.b16 %v27
  %v128 = vunpack.c.h.b16 %v27
  %v129 = vunpack.c.l.b16 %v28
  %v130 = vunpack.c.h.b16 %v28
  %v131 = vunpack.c.l.b16 %v29
  %v132 = vunpack.c.h.b16 %v29
  %v133 = vunpack.c.l.b16 %v30
  %v134 = vunpack.c.h.b16 %v30
  %v135 = vunpack.c.l.b16 %v31
  %v136 = vunpack.c.h.b16 %v31
  %v137 = vunpack.c.l.b16 %v32
  %v138 = vunpack.c.h.b16 %v32
  %v139 = vunpack.c.l.b16 %v33
  %v140 = vunpack.c.h.b16 %v33
  %v141 = vunpack.c.l.b16 %v34
  %v142 = vunpack.c.h.b16 %v34
  %v143 = vunpack.c.l.b16 %v35
  %v144 = vunpack.c.h.b16 %v35
  %v145 = vunpack.c.l.b16 %v36
  %v146 = vunpack.c.h.b16 %v36
  %v147 = vunpack.c.l.b16 %v37
  %v148 = vunpack.c.h.b16 %v37
  %v149 = vunpack.c.l.b16 %v38
  %v150 = vunpack.c.h.b16 %v38
  %v151 = vunpack.c.l.b16 %v39
  %v152 = vunpack.c.h.b16 %v39
  %v153 = vunpack.c.l.b16 %v40
  %v154 = vunpack.c.h.b16 %v40
  %v155 = vunpack.c.l.b16 %v41
  %v156 = vunpack.c.h.b16 %v41
  %v157 = vunpack.c.l.b16 %v42
  %v158 = vunpack.c.h.b16 %v42
  %v159 = vunpack.c.l.b16 %v43
  %v160 = vunpack.c.h.b16 %v43
  %v161 = vunpack.c.l.b16 %v44
  %v162 = vunpack.c.h.b16 %v44
  %v163 = vunpack.c.l.b16 %v45
  %v164 = vunpack.c.h.b16 %v45
  %v165 = vunpack.c.l.b16 %v46
  %v166 = vunpack.c.h.b16 %v46
  %v167 = vunpack.c.l.b16 %v47
  %v168 = vunpack.c.h.b16 %v47
  %v169 = vunpack.c.l.b16 %v48
  %v170 = vunpack.c.h.b16 %v48
  %v171 = vunpack.c.l.b16 %v49
  %v172 = vunpack.c.h.b16 %v49
  %v173 = vunpack.c.l.b16 %v50
  %v174 = vunpack.c.h.b16 %v50
  %v175 = vunpack.c.l.b16 %v51
  %v176 = vunpack.c.h.b16 %v51
  %v177 = vunpack.c.l.b16 %v52
  %v178 = vunpack.c.h.b16 %v52
  %v179 = vunpack.c.l.b16 %v53
  %v180 = vunpack.c.h.b16 %v53
  %v181 = vunpack.c.l.b16 %v54
  %v182 = vunpack.c.h.b16 %v54
  %v183 = vunpack.c.l.b16 %v55
  %v184 = vunpack.c.h.b16 %v55
  %v185 = vunpack.c.l.b16 %v56
  %v186 = vunpack.c.h.b16 %v56
  %v187 = vpack.c.b16 %v155, %v123
  %v188 = vpack.c.b16 %v156, %v124
  %v189 = vpack.c.b16 %v157, %v125
  %v190 = vpack.c.b16 %v158, %v126
  %v191 = vpack.c.b16 %v159, %v127
  %v192 = vpack.c.b16 %v160, %v128
  %v193 = vpack.c.b16 %v161, %v129
  %v194 = vpack.c.b16 %v162, %v130
  %v195 = vpack.c.b16 %v163, %v131
  %v196 = vpack.c.b16 %v164, %v132
  %v197 = vpack.c.b16 %v165, %v133
  %v198 = vpack.c.b16 %v166, %v134
  %v199 = vpack.c.b16 %v167, %v135
  %v200 = vpack.c.b16 %v168, %v136
  %v201 = vpack.c.b16 %v169, %v137
  %v202 = vpack.c.b16 %v170, %v138
  %v203 = vpack.c.b16 %v171, %v139
  %v204 = vpack.c.b16 %v172, %v140
  %v205 = vpack.c.b16 %v173, %v141
  %v206 = vpack.c.b16 %v174, %v142
  %v207 = vpack.c.b16 %v175, %v143
  %v208 = vpack.c.b16 %v176, %v144
  %v209 = vpack.c.b16 %v177, %v145
  %v210 = vpack.c.b16 %v178, %v146
  %v211 = vpack.c.b16 %v179, %v147
  %v212 = vpack.c.b16 %v180, %v148
  %v213 = vpack.c.b16 %v181, %v149
  %v214 = vpack.c.b16 %v182, %v150
  %v215 = vpack.c.b16 %v183, %v151
  %v216 = vpack.c.b16 %v184, %v152
  %v217 = vpack.c.b16 %v185, %v153
  %v218 = vpack.c.b16 %v186, %v154
  %vm219 = vcmask 72704
  %v221 = vsel %vm219, %v89, 0
  %v224 = vsel %vm219, %v90, 0
  %vm226 = vcmask 1043456
  %vm227 = vcmask 1044480
  %v228 = vsel %vm226, 4294967295, 65535
  %v229 = vsel %vm227, %v228, 0
  %v231 = vand.u32 %v187, %v229
  %v234 = vand.u32 %v188, %v229
  %v237 = vand.u32 %v189, %v229
  %v240 = vand.u32 %v190, %v229
  %v243 = vand.u32 %v191, %v229
  %v246 = vand.u32 %v192, %v229
  %v249 = vand.u32 %v193, %v229
  %v252 = vand.u32 %v194, %v229
  %v255 = vand.u32 %v195, %v229
  %v258 = vand.u32 %v196, %v229
  %v261 = vand.u32 %v197, %v229
  %v264 = vand.u32 %v198, %v229
  %v267 = vand.u32 %v199, %v229
  %v270 = vand.u32 %v200, %v229
  %v273 = vand.u32 %v201, %v229
  %v276 = vand.u32 %v202, %v229
  %v279 = vand.u32 %v203, %v229
  %v282 = vand.u32 %v204, %v229
  %v285 = vand.u32 %v205, %v229
  %v288 = vand.u32 %v206, %v229
  %v291 = vand.u32 %v207, %v229
  %v294 = vand.u32 %v208, %v229
  %v297 = vand.u32 %v209, %v229
  %v300 = vand.u32 %v210, %v229
  %v303 = vand.u32 %v211, %v229
  %v306 = vand.u32 %v212, %v229
  %v309 = vand.u32 %v213, %v229
  %v312 = vand.u32 %v214, %v229
  %v315 = vand.u32 %v215, %v229
  %v318 = vand.u32 %v216, %v229
  %v321 = vand.u32 %v217, %v229
  %v324 = vand.u32 %v218, %v229
  %326 = vmatprep.subr.bf16.mxu0 %v234
  %327 = vmatpush1.bf16.msra.mxu0 %v231
  %328 = vmatprep.subr.bf16.mxu0 0
  %329 = vmatpush1.bf16.msra.mxu0 0
  %330 = vmatprep.subr.bf16.mxu0 0
  %331 = vmatpush1.bf16.msra.mxu0 0
  %332 = vmatprep.subr.bf16.mxu0 0
  %333 = vmatpush1.bf16.msra.mxu0 0
  %334 = vmatprep.subr.bf16.mxu0 0
  %335 = vmatpush1.bf16.msra.mxu0 0
  %336 = vmatprep.subr.bf16.mxu0 0
  %337 = vmatpush1.bf16.msra.mxu0 0
  %338 = vmatprep.subr.bf16.mxu0 0
  %339 = vmatpush1.bf16.msra.mxu0 0
  %340 = vmatprep.subr.bf16.mxu0 0
  %341 = vmatpush1.bf16.msra.mxu0 0
  %342 = vmatprep.subr.bf16.mxu0 0
  %343 = vmatpush1.bf16.msra.mxu0 0
  %344 = vmatprep.subr.bf16.mxu0 0
  %345 = vmatpush1.bf16.msra.mxu0 0
  %346 = vmatprep.subr.bf16.mxu0 0
  %347 = vmatpush1.bf16.msra.mxu0 0
  %348 = vmatprep.subr.bf16.mxu0 0
  %349 = vmatpush1.bf16.msra.mxu0 0
  %350 = vmatprep.subr.bf16.mxu0 0
  %351 = vmatpush1.bf16.msra.mxu0 0
  %352 = vmatprep.subr.bf16.mxu0 0
  %353 = vmatpush1.bf16.msra.mxu0 0
  %354 = vmatprep.subr.bf16.mxu0 0
  %355 = vmatpush1.bf16.msra.mxu0 0
  %356 = vmatprep.subr.bf16.mxu0 0
  %357 = vmatpush1.bf16.msra.mxu0 0
  %358 = vmatprep.mubr.bf16.mxu0 0
  %359 = vmatmul.mubr.bf16.gmra.mrb[0].mxu0 %v221
  %v360 = vpop.f32.mrb[0].mxu0
  %v361 = vadd.f32 %v64, %v360
  %v362 = vpop.f32.mrb[0].mxu0
  %v363 = vadd.f32 %v64, %v362
  %v364 = vpop.f32.mrb[0].mxu0
  %v365 = vadd.f32 %v69, %v364
  %v366 = vpop.f32.mrb[0].mxu0
  %v367 = vadd.f32 %v69, %v366
  %368 = vmatprep.mubr.bf16.mxu0 0
  %369 = vmatmul.mubr.bf16.gmra.mrb[0].mxu0 %v224
  %v370 = vpop.f32.mrb[0].mxu0
  %v371 = vadd.f32 %v74, %v370
  %v372 = vpop.f32.mrb[0].mxu0
  %v373 = vadd.f32 %v74, %v372
  %v374 = vpop.f32.mrb[0].mxu0
  %v375 = vadd.f32 %v79, %v374
  %v376 = vpop.f32.mrb[0].mxu0
  %v377 = vadd.f32 %v79, %v376
  %378 = vdwg.mxu0
  %379 = vmatprep.subr.bf16.mxu0 %v240
  %380 = vmatpush1.bf16.msra.mxu0 %v237
  %381 = vmatprep.subr.bf16.mxu0 0
  %382 = vmatpush1.bf16.msra.mxu0 0
  %383 = vmatprep.subr.bf16.mxu0 0
  %384 = vmatpush1.bf16.msra.mxu0 0
  %385 = vmatprep.subr.bf16.mxu0 0
  %386 = vmatpush1.bf16.msra.mxu0 0
  %387 = vmatprep.subr.bf16.mxu0 0
  %388 = vmatpush1.bf16.msra.mxu0 0
  %389 = vmatprep.subr.bf16.mxu0 0
  %390 = vmatpush1.bf16.msra.mxu0 0
  %391 = vmatprep.subr.bf16.mxu0 0
  %392 = vmatpush1.bf16.msra.mxu0 0
  %393 = vmatprep.subr.bf16.mxu0 0
  %394 = vmatpush1.bf16.msra.mxu0 0
  %395 = vmatprep.subr.bf16.mxu0 0
  %396 = vmatpush1.bf16.msra.mxu0 0
  %397 = vmatprep.subr.bf16.mxu0 0
  %398 = vmatpush1.bf16.msra.mxu0 0
  %399 = vmatprep.subr.bf16.mxu0 0
  %400 = vmatpush1.bf16.msra.mxu0 0
  %401 = vmatprep.subr.bf16.mxu0 0
  %402 = vmatpush1.bf16.msra.mxu0 0
  %403 = vmatprep.subr.bf16.mxu0 0
  %404 = vmatpush1.bf16.msra.mxu0 0
  %405 = vmatprep.subr.bf16.mxu0 0
  %406 = vmatpush1.bf16.msra.mxu0 0
  %407 = vmatprep.subr.bf16.mxu0 0
  %408 = vmatpush1.bf16.msra.mxu0 0
  %409 = vmatprep.subr.bf16.mxu0 0
  %410 = vmatpush1.bf16.msra.mxu0 0
  %411 = vmatprep.mubr.bf16.mxu0 0
  %412 = vmatmul.mubr.bf16.gmra.mrb[0].mxu0 %v221
  %v413 = vpop.f32.mrb[0].mxu0
  %v414 = vadd.f32 %v64, %v413
  %v415 = vpop.f32.mrb[0].mxu0
  %v416 = vadd.f32 %v64, %v415
  %v417 = vpop.f32.mrb[0].mxu0
  %v418 = vadd.f32 %v69, %v417
  %v419 = vpop.f32.mrb[0].mxu0
  %v420 = vadd.f32 %v69, %v419
  %421 = vmatprep.mubr.bf16.mxu0 0
  %422 = vmatmul.mubr.bf16.gmra.mrb[0].mxu0 %v224
  %v423 = vpop.f32.mrb[0].mxu0
  %v424 = vadd.f32 %v74, %v423
  %v425 = vpop.f32.mrb[0].mxu0
  %v426 = vadd.f32 %v74, %v425
  %v427 = vpop.f32.mrb[0].mxu0
  %v428 = vadd.f32 %v79, %v427
  %v429 = vpop.f32.mrb[0].mxu0
  %v430 = vadd.f32 %v79, %v429
  %431 = vdwg.mxu0
  %432 = vmatprep.subr.bf16.mxu0 %v246
  %433 = vmatpush1.bf16.msra.mxu0 %v243
  %434 = vmatprep.subr.bf16.mxu0 0
  %435 = vmatpush1.bf16.msra.mxu0 0
  %436 = vmatprep.subr.bf16.mxu0 0
  %437 = vmatpush1.bf16.msra.mxu0 0
  %438 = vmatprep.subr.bf16.mxu0 0
  %439 = vmatpush1.bf16.msra.mxu0 0
  %440 = vmatprep.subr.bf16.mxu0 0
  %441 = vmatpush1.bf16.msra.mxu0 0
  %442 = vmatprep.subr.bf16.mxu0 0
  %443 = vmatpush1.bf16.msra.mxu0 0
  %444 = vmatprep.subr.bf16.mxu0 0
  %445 = vmatpush1.bf16.msra.mxu0 0
  %446 = vmatprep.subr.bf16.mxu0 0
  %447 = vmatpush1.bf16.msra.mxu0 0
  %448 = vmatprep.subr.bf16.mxu0 0
  %449 = vmatpush1.bf16.msra.mxu0 0
  %450 = vmatprep.subr.bf16.mxu0 0
  %451 = vmatpush1.bf16.msra.mxu0 0
  %452 = vmatprep.subr.bf16.mxu0 0
  %453 = vmatpush1.bf16.msra.mxu0 0
  %454 = vmatprep.subr.bf16.mxu0 0
  %455 = vmatpush1.bf16.msra.mxu0 0
  %456 = vmatprep.subr.bf16.mxu0 0
  %457 = vmatpush1.bf16.msra.mxu0 0
  %458 = vmatprep.subr.bf16.mxu0 0
  %459 = vmatpush1.bf16.msra.mxu0 0
  %460 = vmatprep.subr.bf16.mxu0 0
  %461 = vmatpush1.bf16.msra.mxu0 0
  %462 = vmatprep.subr.bf16.mxu0 0
  %463 = vmatpush1.bf16.msra.mxu0 0
  %464 = vmatprep.mubr.bf16.mxu0 0
  %465 = vmatmul.mubr.bf16.gmra.mrb[0].mxu0 %v221
  %v466 = vpop.f32.mrb[0].mxu0
  %v467 = vadd.f32 %v64, %v466
  %v468 = vpop.f32.mrb[0].mxu0
  %v469 = vadd.f32 %v64, %v468
  %v470 = vpop.f32.mrb[0].mxu0
  %v471 = vadd.f32 %v69, %v470
  %v472 = vpop.f32.mrb[0].mxu0
  %v473 = vadd.f32 %v69, %v472
  %474 = vmatprep.mubr.bf16.mxu0 0
  %475 = vmatmul.mubr.bf16.gmra.mrb[0].mxu0 %v224
  %v476 = vpop.f32.mrb[0].mxu0
  %v477 = vadd.f32 %v74, %v476
  %v478 = vpop.f32.mrb[0].mxu0
  %v479 = vadd.f32 %v74, %v478
  %v480 = vpop.f32.mrb[0].mxu0
  %v481 = vadd.f32 %v79, %v480
  %v482 = vpop.f32.mrb[0].mxu0
  %v483 = vadd.f32 %v79, %v482
  %484 = vdwg.mxu0
  %485 = vmatprep.subr.bf16.mxu0 %v252
  %486 = vmatpush1.bf16.msra.mxu0 %v249
  %487 = vmatprep.subr.bf16.mxu0 0
  %488 = vmatpush1.bf16.msra.mxu0 0
  %489 = vmatprep.subr.bf16.mxu0 0
  %490 = vmatpush1.bf16.msra.mxu0 0
  %491 = vmatprep.subr.bf16.mxu0 0
  %492 = vmatpush1.bf16.msra.mxu0 0
  %493 = vmatprep.subr.bf16.mxu0 0
  %494 = vmatpush1.bf16.msra.mxu0 0
  %495 = vmatprep.subr.bf16.mxu0 0
  %496 = vmatpush1.bf16.msra.mxu0 0
  %497 = vmatprep.subr.bf16.mxu0 0
  %498 = vmatpush1.bf16.msra.mxu0 0
  %499 = vmatprep.subr.bf16.mxu0 0
  %500 = vmatpush1.bf16.msra.mxu0 0
  %501 = vmatprep.subr.bf16.mxu0 0
  %502 = vmatpush1.bf16.msra.mxu0 0
  %503 = vmatprep.subr.bf16.mxu0 0
  %504 = vmatpush1.bf16.msra.mxu0 0
  %505 = vmatprep.subr.bf16.mxu0 0
  %506 = vmatpush1.bf16.msra.mxu0 0
  %507 = vmatprep.subr.bf16.mxu0 0
  %508 = vmatpush1.bf16.msra.mxu0 0
  %509 = vmatprep.subr.bf16.mxu0 0
  %510 = vmatpush1.bf16.msra.mxu0 0
  %511 = vmatprep.subr.bf16.mxu0 0
  %512 = vmatpush1.bf16.msra.mxu0 0
  %513 = vmatprep.subr.bf16.mxu0 0
  %514 = vmatpush1.bf16.msra.mxu0 0
  %515 = vmatprep.subr.bf16.mxu0 0
  %516 = vmatpush1.bf16.msra.mxu0 0
  %517 = vmatprep.mubr.bf16.mxu0 0
  %518 = vmatmul.mubr.bf16.gmra.mrb[0].mxu0 %v221
  %v519 = vpop.f32.mrb[0].mxu0
  %v520 = vadd.f32 %v64, %v519
  %v521 = vpop.f32.mrb[0].mxu0
  %v522 = vadd.f32 %v64, %v521
  %v523 = vpop.f32.mrb[0].mxu0
  %v524 = vadd.f32 %v69, %v523
  %v525 = vpop.f32.mrb[0].mxu0
  %v526 = vadd.f32 %v69, %v525
  %527 = vmatprep.mubr.bf16.mxu0 0
  %528 = vmatmul.mubr.bf16.gmra.mrb[0].mxu0 %v224
  %v529 = vpop.f32.mrb[0].mxu0
  %v530 = vadd.f32 %v74, %v529
  %v531 = vpop.f32.mrb[0].mxu0
  %v532 = vadd.f32 %v74, %v531
  %v533 = vpop.f32.mrb[0].mxu0
  %v534 = vadd.f32 %v79, %v533
  %v535 = vpop.f32.mrb[0].mxu0
  %v536 = vadd.f32 %v79, %v535
  %537 = vdwg.mxu0
  %538 = vmatprep.subr.bf16.mxu0 %v258
  %539 = vmatpush1.bf16.msra.mxu0 %v255
  %540 = vmatprep.subr.bf16.mxu0 0
  %541 = vmatpush1.bf16.msra.mxu0 0
  %542 = vmatprep.subr.bf16.mxu0 0
  %543 = vmatpush1.bf16.msra.mxu0 0
  %544 = vmatprep.subr.bf16.mxu0 0
  %545 = vmatpush1.bf16.msra.mxu0 0
  %546 = vmatprep.subr.bf16.mxu0 0
  %547 = vmatpush1.bf16.msra.mxu0 0
  %548 = vmatprep.subr.bf16.mxu0 0
  %549 = vmatpush1.bf16.msra.mxu0 0
  %550 = vmatprep.subr.bf16.mxu0 0
  %551 = vmatpush1.bf16.msra.mxu0 0
  %552 = vmatprep.subr.bf16.mxu0 0
  %553 = vmatpush1.bf16.msra.mxu0 0
  %554 = vmatprep.subr.bf16.mxu0 0
  %555 = vmatpush1.bf16.msra.mxu0 0
  %556 = vmatprep.subr.bf16.mxu0 0
  %557 = vmatpush1.bf16.msra.mxu0 0
  %558 = vmatprep.subr.bf16.mxu0 0
  %559 = vmatpush1.bf16.msra.mxu0 0
  %560 = vmatprep.subr.bf16.mxu0 0
  %561 = vmatpush1.bf16.msra.mxu0 0
  %562 = vmatprep.subr.bf16.mxu0 0
  %563 = vmatpush1.bf16.msra.mxu0 0
  %564 = vmatprep.subr.bf16.mxu0 0
  %565 = vmatpush1.bf16.msra.mxu0 0
  %566 = vmatprep.subr.bf16.mxu0 0
  %567 = vmatpush1.bf16.msra.mxu0 0
  %568 = vmatprep.subr.bf16.mxu0 0
  %569 = vmatpush1.bf16.msra.mxu0 0
  %570 = vmatprep.mubr.bf16.mxu0 0
  %571 = vmatmul.mubr.bf16.gmra.mrb[0].mxu0 %v221
  %v572 = vpop.f32.mrb[0].mxu0
  %v573 = vadd.f32 %v64, %v572
  %v574 = vpop.f32.mrb[0].mxu0
  %v575 = vadd.f32 %v64, %v574
  %v576 = vpop.f32.mrb[0].mxu0
  %v577 = vadd.f32 %v69, %v576
  %v578 = vpop.f32.mrb[0].mxu0
  %v579 = vadd.f32 %v69, %v578
  %580 = vmatprep.mubr.bf16.mxu0 0
  %581 = vmatmul.mubr.bf16.gmra.mrb[0].mxu0 %v224
  %v582 = vpop.f32.mrb[0].mxu0
  %v583 = vadd.f32 %v74, %v582
  %v584 = vpop.f32.mrb[0].mxu0
  %v585 = vadd.f32 %v74, %v584
  %v586 = vpop.f32.mrb[0].mxu0
  %v587 = vadd.f32 %v79, %v586
  %v588 = vpop.f32.mrb[0].mxu0
  %v589 = vadd.f32 %v79, %v588
  %590 = vdwg.mxu0
  %591 = vmatprep.subr.bf16.mxu0 %v264
  %592 = vmatpush1.bf16.msra.mxu0 %v261
  %593 = vmatprep.subr.bf16.mxu0 0
  %594 = vmatpush1.bf16.msra.mxu0 0
  %595 = vmatprep.subr.bf16.mxu0 0
  %596 = vmatpush1.bf16.msra.mxu0 0
  %597 = vmatprep.subr.bf16.mxu0 0
  %598 = vmatpush1.bf16.msra.mxu0 0
  %599 = vmatprep.subr.bf16.mxu0 0
  %600 = vmatpush1.bf16.msra.mxu0 0
  %601 = vmatprep.subr.bf16.mxu0 0
  %602 = vmatpush1.bf16.msra.mxu0 0
  %603 = vmatprep.subr.bf16.mxu0 0
  %604 = vmatpush1.bf16.msra.mxu0 0
  %605 = vmatprep.subr.bf16.mxu0 0
  %606 = vmatpush1.bf16.msra.mxu0 0
  %607 = vmatprep.subr.bf16.mxu0 0
  %608 = vmatpush1.bf16.msra.mxu0 0
  %609 = vmatprep.subr.bf16.mxu0 0
  %610 = vmatpush1.bf16.msra.mxu0 0
  %611 = vmatprep.subr.bf16.mxu0 0
  %612 = vmatpush1.bf16.msra.mxu0 0
  %613 = vmatprep.subr.bf16.mxu0 0
  %614 = vmatpush1.bf16.msra.mxu0 0
  %615 = vmatprep.subr.bf16.mxu0 0
  %616 = vmatpush1.bf16.msra.mxu0 0
  %617 = vmatprep.subr.bf16.mxu0 0
  %618 = vmatpush1.bf16.msra.mxu0 0
  %619 = vmatprep.subr.bf16.mxu0 0
  %620 = vmatpush1.bf16.msra.mxu0 0
  %621 = vmatprep.subr.bf16.mxu0 0
  %622 = vmatpush1.bf16.msra.mxu0 0
  %623 = vmatprep.mubr.bf16.mxu0 0
  %624 = vmatmul.mubr.bf16.gmra.mrb[0].mxu0 %v221
  %v625 = vpop.f32.mrb[0].mxu0
  %v626 = vadd.f32 %v64, %v625
  %v627 = vpop.f32.mrb[0].mxu0
  %v628 = vadd.f32 %v64, %v627
  %v629 = vpop.f32.mrb[0].mxu0
  %v630 = vadd.f32 %v69, %v629
  %v631 = vpop.f32.mrb[0].mxu0
  %v632 = vadd.f32 %v69, %v631
  %633 = vmatprep.mubr.bf16.mxu0 0
  %634 = vmatmul.mubr.bf16.gmra.mrb[0].mxu0 %v224
  %v635 = vpop.f32.mrb[0].mxu0
  %v636 = vadd.f32 %v74, %v635
  %v637 = vpop.f32.mrb[0].mxu0
  %v638 = vadd.f32 %v74, %v637
  %v639 = vpop.f32.mrb[0].mxu0
  %v640 = vadd.f32 %v79, %v639
  %v641 = vpop.f32.mrb[0].mxu0
  %v642 = vadd.f32 %v79, %v641
  %643 = vdwg.mxu0
  %644 = vmatprep.subr.bf16.mxu0 %v270
  %645 = vmatpush1.bf16.msra.mxu0 %v267
  %646 = vmatprep.subr.bf16.mxu0 0
  %647 = vmatpush1.bf16.msra.mxu0 0
  %648 = vmatprep.subr.bf16.mxu0 0
  %649 = vmatpush1.bf16.msra.mxu0 0
  %650 = vmatprep.subr.bf16.mxu0 0
  %651 = vmatpush1.bf16.msra.mxu0 0
  %652 = vmatprep.subr.bf16.mxu0 0
  %653 = vmatpush1.bf16.msra.mxu0 0
  %654 = vmatprep.subr.bf16.mxu0 0
  %655 = vmatpush1.bf16.msra.mxu0 0
  %656 = vmatprep.subr.bf16.mxu0 0
  %657 = vmatpush1.bf16.msra.mxu0 0
  %658 = vmatprep.subr.bf16.mxu0 0
  %659 = vmatpush1.bf16.msra.mxu0 0
  %660 = vmatprep.subr.bf16.mxu0 0
  %661 = vmatpush1.bf16.msra.mxu0 0
  %662 = vmatprep.subr.bf16.mxu0 0
  %663 = vmatpush1.bf16.msra.mxu0 0
  %664 = vmatprep.subr.bf16.mxu0 0
  %665 = vmatpush1.bf16.msra.mxu0 0
  %666 = vmatprep.subr.bf16.mxu0 0
  %667 = vmatpush1.bf16.msra.mxu0 0
  %668 = vmatprep.subr.bf16.mxu0 0
  %669 = vmatpush1.bf16.msra.mxu0 0
  %670 = vmatprep.subr.bf16.mxu0 0
  %671 = vmatpush1.bf16.msra.mxu0 0
  %672 = vmatprep.subr.bf16.mxu0 0
  %673 = vmatpush1.bf16.msra.mxu0 0
  %674 = vmatprep.subr.bf16.mxu0 0
  %675 = vmatpush1.bf16.msra.mxu0 0
  %676 = vmatprep.mubr.bf16.mxu0 0
  %677 = vmatmul.mubr.bf16.gmra.mrb[0].mxu0 %v221
  %v678 = vpop.f32.mrb[0].mxu0
  %v679 = vadd.f32 %v64, %v678
  %v680 = vpop.f32.mrb[0].mxu0
  %v681 = vadd.f32 %v64, %v680
  %v682 = vpop.f32.mrb[0].mxu0
  %v683 = vadd.f32 %v69, %v682
  %v684 = vpop.f32.mrb[0].mxu0
  %v685 = vadd.f32 %v69, %v684
  %686 = vmatprep.mubr.bf16.mxu0 0
  %687 = vmatmul.mubr.bf16.gmra.mrb[0].mxu0 %v224
  %v688 = vpop.f32.mrb[0].mxu0
  %v689 = vadd.f32 %v74, %v688
  %v690 = vpop.f32.mrb[0].mxu0
  %v691 = vadd.f32 %v74, %v690
  %v692 = vpop.f32.mrb[0].mxu0
  %v693 = vadd.f32 %v79, %v692
  %v694 = vpop.f32.mrb[0].mxu0
  %v695 = vadd.f32 %v79, %v694
  %696 = vdwg.mxu0
  %697 = vmatprep.subr.bf16.mxu0 %v276
  %698 = vmatpush1.bf16.msra.mxu0 %v273
  %699 = vmatprep.subr.bf16.mxu0 0
  %700 = vmatpush1.bf16.msra.mxu0 0
  %701 = vmatprep.subr.bf16.mxu0 0
  %702 = vmatpush1.bf16.msra.mxu0 0
  %703 = vmatprep.subr.bf16.mxu0 0
  %704 = vmatpush1.bf16.msra.mxu0 0
  %705 = vmatprep.subr.bf16.mxu0 0
  %706 = vmatpush1.bf16.msra.mxu0 0
  %707 = vmatprep.subr.bf16.mxu0 0
  %708 = vmatpush1.bf16.msra.mxu0 0
  %709 = vmatprep.subr.bf16.mxu0 0
  %710 = vmatpush1.bf16.msra.mxu0 0
  %711 = vmatprep.subr.bf16.mxu0 0
  %712 = vmatpush1.bf16.msra.mxu0 0
  %713 = vmatprep.subr.bf16.mxu0 0
  %714 = vmatpush1.bf16.msra.mxu0 0
  %715 = vmatprep.subr.bf16.mxu0 0
  %716 = vmatpush1.bf16.msra.mxu0 0
  %717 = vmatprep.subr.bf16.mxu0 0
  %718 = vmatpush1.bf16.msra.mxu0 0
  %719 = vmatprep.subr.bf16.mxu0 0
  %720 = vmatpush1.bf16.msra.mxu0 0
  %721 = vmatprep.subr.bf16.mxu0 0
  %722 = vmatpush1.bf16.msra.mxu0 0
  %723 = vmatprep.subr.bf16.mxu0 0
  %724 = vmatpush1.bf16.msra.mxu0 0
  %725 = vmatprep.subr.bf16.mxu0 0
  %726 = vmatpush1.bf16.msra.mxu0 0
  %727 = vmatprep.subr.bf16.mxu0 0
  %728 = vmatpush1.bf16.msra.mxu0 0
  %729 = vmatprep.mubr.bf16.mxu0 0
  %730 = vmatmul.mubr.bf16.gmra.mrb[0].mxu0 %v221
  %v731 = vpop.f32.mrb[0].mxu0
  %v732 = vadd.f32 %v64, %v731
  %v733 = vpop.f32.mrb[0].mxu0
  %v734 = vadd.f32 %v64, %v733
  %v735 = vpop.f32.mrb[0].mxu0
  %v736 = vadd.f32 %v69, %v735
  %v737 = vpop.f32.mrb[0].mxu0
  %v738 = vadd.f32 %v69, %v737
  %739 = vmatprep.mubr.bf16.mxu0 0
  %740 = vmatmul.mubr.bf16.gmra.mrb[0].mxu0 %v224
  %v741 = vpop.f32.mrb[0].mxu0
  %v742 = vadd.f32 %v74, %v741
  %v743 = vpop.f32.mrb[0].mxu0
  %v744 = vadd.f32 %v74, %v743
  %v745 = vpop.f32.mrb[0].mxu0
  %v746 = vadd.f32 %v79, %v745
  %v747 = vpop.f32.mrb[0].mxu0
  %v748 = vadd.f32 %v79, %v747
  %749 = vdwg.mxu0
  %750 = vmatprep.subr.bf16.mxu0 %v282
  %751 = vmatpush1.bf16.msra.mxu0 %v279
  %752 = vmatprep.subr.bf16.mxu0 0
  %753 = vmatpush1.bf16.msra.mxu0 0
  %754 = vmatprep.subr.bf16.mxu0 0
  %755 = vmatpush1.bf16.msra.mxu0 0
  %756 = vmatprep.subr.bf16.mxu0 0
  %757 = vmatpush1.bf16.msra.mxu0 0
  %758 = vmatprep.subr.bf16.mxu0 0
  %759 = vmatpush1.bf16.msra.mxu0 0
  %760 = vmatprep.subr.bf16.mxu0 0
  %761 = vmatpush1.bf16.msra.mxu0 0
  %762 = vmatprep.subr.bf16.mxu0 0
  %763 = vmatpush1.bf16.msra.mxu0 0
  %764 = vmatprep.subr.bf16.mxu0 0
  %765 = vmatpush1.bf16.msra.mxu0 0
  %766 = vmatprep.subr.bf16.mxu0 0
  %767 = vmatpush1.bf16.msra.mxu0 0
  %768 = vmatprep.subr.bf16.mxu0 0
  %769 = vmatpush1.bf16.msra.mxu0 0
  %770 = vmatprep.subr.bf16.mxu0 0
  %771 = vmatpush1.bf16.msra.mxu0 0
  %772 = vmatprep.subr.bf16.mxu0 0
  %773 = vmatpush1.bf16.msra.mxu0 0
  %774 = vmatprep.subr.bf16.mxu0 0
  %775 = vmatpush1.bf16.msra.mxu0 0
  %776 = vmatprep.subr.bf16.mxu0 0
  %777 = vmatpush1.bf16.msra.mxu0 0
  %778 = vmatprep.subr.bf16.mxu0 0
  %779 = vmatpush1.bf16.msra.mxu0 0
  %780 = vmatprep.subr.bf16.mxu0 0
  %781 = vmatpush1.bf16.msra.mxu0 0
  %782 = vmatprep.mubr.bf16.mxu0 0
  %783 = vmatmul.mubr.bf16.gmra.mrb[0].mxu0 %v221
  %v784 = vpop.f32.mrb[0].mxu0
  %v785 = vadd.f32 %v64, %v784
  %v786 = vpop.f32.mrb[0].mxu0
  %v787 = vadd.f32 %v64, %v786
  %v788 = vpop.f32.mrb[0].mxu0
  %v789 = vadd.f32 %v69, %v788
  %v790 = vpop.f32.mrb[0].mxu0
  %v791 = vadd.f32 %v69, %v790
  %792 = vmatprep.mubr.bf16.mxu0 0
  %793 = vmatmul.mubr.bf16.gmra.mrb[0].mxu0 %v224
  %v794 = vpop.f32.mrb[0].mxu0
  %v795 = vadd.f32 %v74, %v794
  %v796 = vpop.f32.mrb[0].mxu0
  %v797 = vadd.f32 %v74, %v796
  %v798 = vpop.f32.mrb[0].mxu0
  %v799 = vadd.f32 %v79, %v798
  %v800 = vpop.f32.mrb[0].mxu0
  %v801 = vadd.f32 %v79, %v800
  %802 = vdwg.mxu0
  %803 = vmatprep.subr.bf16.mxu0 %v288
  %804 = vmatpush1.bf16.msra.mxu0 %v285
  %805 = vmatprep.subr.bf16.mxu0 0
  %806 = vmatpush1.bf16.msra.mxu0 0
  %807 = vmatprep.subr.bf16.mxu0 0
  %808 = vmatpush1.bf16.msra.mxu0 0
  %809 = vmatprep.subr.bf16.mxu0 0
  %810 = vmatpush1.bf16.msra.mxu0 0
  %811 = vmatprep.subr.bf16.mxu0 0
  %812 = vmatpush1.bf16.msra.mxu0 0
  %813 = vmatprep.subr.bf16.mxu0 0
  %814 = vmatpush1.bf16.msra.mxu0 0
  %815 = vmatprep.subr.bf16.mxu0 0
  %816 = vmatpush1.bf16.msra.mxu0 0
  %817 = vmatprep.subr.bf16.mxu0 0
  %818 = vmatpush1.bf16.msra.mxu0 0
  %819 = vmatprep.subr.bf16.mxu0 0
  %820 = vmatpush1.bf16.msra.mxu0 0
  %821 = vmatprep.subr.bf16.mxu0 0
  %822 = vmatpush1.bf16.msra.mxu0 0
  %823 = vmatprep.subr.bf16.mxu0 0
  %824 = vmatpush1.bf16.msra.mxu0 0
  %825 = vmatprep.subr.bf16.mxu0 0
  %826 = vmatpush1.bf16.msra.mxu0 0
  %827 = vmatprep.subr.bf16.mxu0 0
  %828 = vmatpush1.bf16.msra.mxu0 0
  %829 = vmatprep.subr.bf16.mxu0 0
  %830 = vmatpush1.bf16.msra.mxu0 0
  %831 = vmatprep.subr.bf16.mxu0 0
  %832 = vmatpush1.bf16.msra.mxu0 0
  %833 = vmatprep.subr.bf16.mxu0 0
  %834 = vmatpush1.bf16.msra.mxu0 0
  %835 = vmatprep.mubr.bf16.mxu0 0
  %836 = vmatmul.mubr.bf16.gmra.mrb[0].mxu0 %v221
  %v837 = vpop.f32.mrb[0].mxu0
  %v838 = vadd.f32 %v64, %v837
  %v839 = vpop.f32.mrb[0].mxu0
  %v840 = vadd.f32 %v64, %v839
  %v841 = vpop.f32.mrb[0].mxu0
  %v842 = vadd.f32 %v69, %v841
  %v843 = vpop.f32.mrb[0].mxu0
  %v844 = vadd.f32 %v69, %v843
  %845 = vmatprep.mubr.bf16.mxu0 0
  %846 = vmatmul.mubr.bf16.gmra.mrb[0].mxu0 %v224
  %v847 = vpop.f32.mrb[0].mxu0
  %v848 = vadd.f32 %v74, %v847
  %v849 = vpop.f32.mrb[0].mxu0
  %v850 = vadd.f32 %v74, %v849
  %v851 = vpop.f32.mrb[0].mxu0
  %v852 = vadd.f32 %v79, %v851
  %v853 = vpop.f32.mrb[0].mxu0
  %v854 = vadd.f32 %v79, %v853
  %855 = vdwg.mxu0
  %856 = vmatprep.subr.bf16.mxu0 %v294
  %857 = vmatpush1.bf16.msra.mxu0 %v291
  %858 = vmatprep.subr.bf16.mxu0 0
  %859 = vmatpush1.bf16.msra.mxu0 0
  %860 = vmatprep.subr.bf16.mxu0 0
  %861 = vmatpush1.bf16.msra.mxu0 0
  %862 = vmatprep.subr.bf16.mxu0 0
  %863 = vmatpush1.bf16.msra.mxu0 0
  %864 = vmatprep.subr.bf16.mxu0 0
  %865 = vmatpush1.bf16.msra.mxu0 0
  %866 = vmatprep.subr.bf16.mxu0 0
  %867 = vmatpush1.bf16.msra.mxu0 0
  %868 = vmatprep.subr.bf16.mxu0 0
  %869 = vmatpush1.bf16.msra.mxu0 0
  %870 = vmatprep.subr.bf16.mxu0 0
  %871 = vmatpush1.bf16.msra.mxu0 0
  %872 = vmatprep.subr.bf16.mxu0 0
  %873 = vmatpush1.bf16.msra.mxu0 0
  %874 = vmatprep.subr.bf16.mxu0 0
  %875 = vmatpush1.bf16.msra.mxu0 0
  %876 = vmatprep.subr.bf16.mxu0 0
  %877 = vmatpush1.bf16.msra.mxu0 0
  %878 = vmatprep.subr.bf16.mxu0 0
  %879 = vmatpush1.bf16.msra.mxu0 0
  %880 = vmatprep.subr.bf16.mxu0 0
  %881 = vmatpush1.bf16.msra.mxu0 0
  %882 = vmatprep.subr.bf16.mxu0 0
  %883 = vmatpush1.bf16.msra.mxu0 0
  %884 = vmatprep.subr.bf16.mxu0 0
  %885 = vmatpush1.bf16.msra.mxu0 0
  %886 = vmatprep.subr.bf16.mxu0 0
  %887 = vmatpush1.bf16.msra.mxu0 0
  %888 = vmatprep.mubr.bf16.mxu0 0
  %889 = vmatmul.mubr.bf16.gmra.mrb[0].mxu0 %v221
  %v890 = vpop.f32.mrb[0].mxu0
  %v891 = vadd.f32 %v64, %v890
  %v892 = vpop.f32.mrb[0].mxu0
  %v893 = vadd.f32 %v64, %v892
  %v894 = vpop.f32.mrb[0].mxu0
  %v895 = vadd.f32 %v69, %v894
  %v896 = vpop.f32.mrb[0].mxu0
  %v897 = vadd.f32 %v69, %v896
  %898 = vmatprep.mubr.bf16.mxu0 0
  %899 = vmatmul.mubr.bf16.gmra.mrb[0].mxu0 %v224
  %v900 = vpop.f32.mrb[0].mxu0
  %v901 = vadd.f32 %v74, %v900
  %v902 = vpop.f32.mrb[0].mxu0
  %v903 = vadd.f32 %v74, %v902
  %v904 = vpop.f32.mrb[0].mxu0
  %v905 = vadd.f32 %v79, %v904
  %v906 = vpop.f32.mrb[0].mxu0
  %v907 = vadd.f32 %v79, %v906
  %908 = vdwg.mxu0
  %909 = vmatprep.subr.bf16.mxu0 %v300
  %910 = vmatpush1.bf16.msra.mxu0 %v297
  %911 = vmatprep.subr.bf16.mxu0 0
  %912 = vmatpush1.bf16.msra.mxu0 0
  %913 = vmatprep.subr.bf16.mxu0 0
  %914 = vmatpush1.bf16.msra.mxu0 0
  %915 = vmatprep.subr.bf16.mxu0 0
  %916 = vmatpush1.bf16.msra.mxu0 0
  %917 = vmatprep.subr.bf16.mxu0 0
  %918 = vmatpush1.bf16.msra.mxu0 0
  %919 = vmatprep.subr.bf16.mxu0 0
  %920 = vmatpush1.bf16.msra.mxu0 0
  %921 = vmatprep.subr.bf16.mxu0 0
  %922 = vmatpush1.bf16.msra.mxu0 0
  %923 = vmatprep.subr.bf16.mxu0 0
  %924 = vmatpush1.bf16.msra.mxu0 0
  %925 = vmatprep.subr.bf16.mxu0 0
  %926 = vmatpush1.bf16.msra.mxu0 0
  %927 = vmatprep.subr.bf16.mxu0 0
  %928 = vmatpush1.bf16.msra.mxu0 0
  %929 = vmatprep.subr.bf16.mxu0 0
  %930 = vmatpush1.bf16.msra.mxu0 0
  %931 = vmatprep.subr.bf16.mxu0 0
  %932 = vmatpush1.bf16.msra.mxu0 0
  %933 = vmatprep.subr.bf16.mxu0 0
  %934 = vmatpush1.bf16.msra.mxu0 0
  %935 = vmatprep.subr.bf16.mxu0 0
  %936 = vmatpush1.bf16.msra.mxu0 0
  %937 = vmatprep.subr.bf16.mxu0 0
  %938 = vmatpush1.bf16.msra.mxu0 0
  %939 = vmatprep.subr.bf16.mxu0 0
  %940 = vmatpush1.bf16.msra.mxu0 0
  %941 = vmatprep.mubr.bf16.mxu0 0
  %942 = vmatmul.mubr.bf16.gmra.mrb[0].mxu0 %v221
  %v943 = vpop.f32.mrb[0].mxu0
  %v944 = vadd.f32 %v64, %v943
  %v945 = vpop.f32.mrb[0].mxu0
  %v946 = vadd.f32 %v64, %v945
  %v947 = vpop.f32.mrb[0].mxu0
  %v948 = vadd.f32 %v69, %v947
  %v949 = vpop.f32.mrb[0].mxu0
  %v950 = vadd.f32 %v69, %v949
  %951 = vmatprep.mubr.bf16.mxu0 0
  %952 = vmatmul.mubr.bf16.gmra.mrb[0].mxu0 %v224
  %v953 = vpop.f32.mrb[0].mxu0
  %v954 = vadd.f32 %v74, %v953
  %v955 = vpop.f32.mrb[0].mxu0
  %v956 = vadd.f32 %v74, %v955
  %v957 = vpop.f32.mrb[0].mxu0
  %v958 = vadd.f32 %v79, %v957
  %v959 = vpop.f32.mrb[0].mxu0
  %v960 = vadd.f32 %v79, %v959
  %961 = vdwg.mxu0
  %962 = vmatprep.subr.bf16.mxu0 %v306
  %963 = vmatpush1.bf16.msra.mxu0 %v303
  %964 = vmatprep.subr.bf16.mxu0 0
  %965 = vmatpush1.bf16.msra.mxu0 0
  %966 = vmatprep.subr.bf16.mxu0 0
  %967 = vmatpush1.bf16.msra.mxu0 0
  %968 = vmatprep.subr.bf16.mxu0 0
  %969 = vmatpush1.bf16.msra.mxu0 0
  %970 = vmatprep.subr.bf16.mxu0 0
  %971 = vmatpush1.bf16.msra.mxu0 0
  %972 = vmatprep.subr.bf16.mxu0 0
  %973 = vmatpush1.bf16.msra.mxu0 0
  %974 = vmatprep.subr.bf16.mxu0 0
  %975 = vmatpush1.bf16.msra.mxu0 0
  %976 = vmatprep.subr.bf16.mxu0 0
  %977 = vmatpush1.bf16.msra.mxu0 0
  %978 = vmatprep.subr.bf16.mxu0 0
  %979 = vmatpush1.bf16.msra.mxu0 0
  %980 = vmatprep.subr.bf16.mxu0 0
  %981 = vmatpush1.bf16.msra.mxu0 0
  %982 = vmatprep.subr.bf16.mxu0 0
  %983 = vmatpush1.bf16.msra.mxu0 0
  %984 = vmatprep.subr.bf16.mxu0 0
  %985 = vmatpush1.bf16.msra.mxu0 0
  %986 = vmatprep.subr.bf16.mxu0 0
  %987 = vmatpush1.bf16.msra.mxu0 0
  %988 = vmatprep.subr.bf16.mxu0 0
  %989 = vmatpush1.bf16.msra.mxu0 0
  %990 = vmatprep.subr.bf16.mxu0 0
  %991 = vmatpush1.bf16.msra.mxu0 0
  %992 = vmatprep.subr.bf16.mxu0 0
  %993 = vmatpush1.bf16.msra.mxu0 0
  %994 = vmatprep.mubr.bf16.mxu0 0
  %995 = vmatmul.mubr.bf16.gmra.mrb[0].mxu0 %v221
  %v996 = vpop.f32.mrb[0].mxu0
  %v997 = vadd.f32 %v64, %v996
  %v998 = vpop.f32.mrb[0].mxu0
  %v999 = vadd.f32 %v64, %v998
  %v1000 = vpop.f32.mrb[0].mxu0
  %v1001 = vadd.f32 %v69, %v1000
  %v1002 = vpop.f32.mrb[0].mxu0
  %v1003 = vadd.f32 %v69, %v1002
  %1004 = vmatprep.mubr.bf16.mxu0 0
  %1005 = vmatmul.mubr.bf16.gmra.mrb[0].mxu0 %v224
  %v1006 = vpop.f32.mrb[0].mxu0
  %v1007 = vadd.f32 %v74, %v1006
  %v1008 = vpop.f32.mrb[0].mxu0
  %v1009 = vadd.f32 %v74, %v1008
  %v1010 = vpop.f32.mrb[0].mxu0
  %v1011 = vadd.f32 %v79, %v1010
  %v1012 = vpop.f32.mrb[0].mxu0
  %v1013 = vadd.f32 %v79, %v1012
  %1014 = vdwg.mxu0
  %1015 = vmatprep.subr.bf16.mxu0 %v312
  %1016 = vmatpush1.bf16.msra.mxu0 %v309
  %1017 = vmatprep.subr.bf16.mxu0 0
  %1018 = vmatpush1.bf16.msra.mxu0 0
  %1019 = vmatprep.subr.bf16.mxu0 0
  %1020 = vmatpush1.bf16.msra.mxu0 0
  %1021 = vmatprep.subr.bf16.mxu0 0
  %1022 = vmatpush1.bf16.msra.mxu0 0
  %1023 = vmatprep.subr.bf16.mxu0 0
  %1024 = vmatpush1.bf16.msra.mxu0 0
  %1025 = vmatprep.subr.bf16.mxu0 0
  %1026 = vmatpush1.bf16.msra.mxu0 0
  %1027 = vmatprep.subr.bf16.mxu0 0
  %1028 = vmatpush1.bf16.msra.mxu0 0
  %1029 = vmatprep.subr.bf16.mxu0 0
  %1030 = vmatpush1.bf16.msra.mxu0 0
  %1031 = vmatprep.subr.bf16.mxu0 0
  %1032 = vmatpush1.bf16.msra.mxu0 0
  %1033 = vmatprep.subr.bf16.mxu0 0
  %1034 = vmatpush1.bf16.msra.mxu0 0
  %1035 = vmatprep.subr.bf16.mxu0 0
  %1036 = vmatpush1.bf16.msra.mxu0 0
  %1037 = vmatprep.subr.bf16.mxu0 0
  %1038 = vmatpush1.bf16.msra.mxu0 0
  %1039 = vmatprep.subr.bf16.mxu0 0
  %1040 = vmatpush1.bf16.msra.mxu0 0
  %1041 = vmatprep.subr.bf16.mxu0 0
  %1042 = vmatpush1.bf16.msra.mxu0 0
  %1043 = vmatprep.subr.bf16.mxu0 0
  %1044 = vmatpush1.bf16.msra.mxu0 0
  %1045 = vmatprep.subr.bf16.mxu0 0
  %1046 = vmatpush1.bf16.msra.mxu0 0
  %1047 = vmatprep.mubr.bf16.mxu0 0
  %1048 = vmatmul.mubr.bf16.gmra.mrb[0].mxu0 %v221
  %v1049 = vpop.f32.mrb[0].mxu0
  %v1050 = vadd.f32 %v64, %v1049
  %v1051 = vpop.f32.mrb[0].mxu0
  %v1052 = vadd.f32 %v64, %v1051
  %v1053 = vpop.f32.mrb[0].mxu0
  %v1054 = vadd.f32 %v69, %v1053
  %v1055 = vpop.f32.mrb[0].mxu0
  %v1056 = vadd.f32 %v69, %v1055
  %1057 = vmatprep.mubr.bf16.mxu0 0
  %1058 = vmatmul.mubr.bf16.gmra.mrb[0].mxu0 %v224
  %v1059 = vpop.f32.mrb[0].mxu0
  %v1060 = vadd.f32 %v74, %v1059
  %v1061 = vpop.f32.mrb[0].mxu0
  %v1062 = vadd.f32 %v74, %v1061
  %v1063 = vpop.f32.mrb[0].mxu0
  %v1064 = vadd.f32 %v79, %v1063
  %v1065 = vpop.f32.mrb[0].mxu0
  %v1066 = vadd.f32 %v79, %v1065
  %1067 = vdwg.mxu0
  %1068 = vmatprep.subr.bf16.mxu0 %v318
  %1069 = vmatpush1.bf16.msra.mxu0 %v315
  %1070 = vmatprep.subr.bf16.mxu0 0
  %1071 = vmatpush1.bf16.msra.mxu0 0
  %1072 = vmatprep.subr.bf16.mxu0 0
  %1073 = vmatpush1.bf16.msra.mxu0 0
  %1074 = vmatprep.subr.bf16.mxu0 0
  %1075 = vmatpush1.bf16.msra.mxu0 0
  %1076 = vmatprep.subr.bf16.mxu0 0
  %1077 = vmatpush1.bf16.msra.mxu0 0
  %1078 = vmatprep.subr.bf16.mxu0 0
  %1079 = vmatpush1.bf16.msra.mxu0 0
  %1080 = vmatprep.subr.bf16.mxu0 0
  %1081 = vmatpush1.bf16.msra.mxu0 0
  %1082 = vmatprep.subr.bf16.mxu0 0
  %1083 = vmatpush1.bf16.msra.mxu0 0
  %1084 = vmatprep.subr.bf16.mxu0 0
  %1085 = vmatpush1.bf16.msra.mxu0 0
  %1086 = vmatprep.subr.bf16.mxu0 0
  %1087 = vmatpush1.bf16.msra.mxu0 0
  %1088 = vmatprep.subr.bf16.mxu0 0
  %1089 = vmatpush1.bf16.msra.mxu0 0
  %1090 = vmatprep.subr.bf16.mxu0 0
  %1091 = vmatpush1.bf16.msra.mxu0 0
  %1092 = vmatprep.subr.bf16.mxu0 0
  %1093 = vmatpush1.bf16.msra.mxu0 0
  %1094 = vmatprep.subr.bf16.mxu0 0
  %1095 = vmatpush1.bf16.msra.mxu0 0
  %1096 = vmatprep.subr.bf16.mxu0 0
  %1097 = vmatpush1.bf16.msra.mxu0 0
  %1098 = vmatprep.subr.bf16.mxu0 0
  %1099 = vmatpush1.bf16.msra.mxu0 0
  %1100 = vmatprep.mubr.bf16.mxu0 0
  %1101 = vmatmul.mubr.bf16.gmra.mrb[0].mxu0 %v221
  %v1102 = vpop.f32.mrb[0].mxu0
  %v1103 = vadd.f32 %v64, %v1102
  %v1104 = vpop.f32.mrb[0].mxu0
  %v1105 = vadd.f32 %v64, %v1104
  %v1106 = vpop.f32.mrb[0].mxu0
  %v1107 = vadd.f32 %v69, %v1106
  %v1108 = vpop.f32.mrb[0].mxu0
  %v1109 = vadd.f32 %v69, %v1108
  %1110 = vmatprep.mubr.bf16.mxu0 0
  %1111 = vmatmul.mubr.bf16.gmra.mrb[0].mxu0 %v224
  %v1112 = vpop.f32.mrb[0].mxu0
  %v1113 = vadd.f32 %v74, %v1112
  %v1114 = vpop.f32.mrb[0].mxu0
  %v1115 = vadd.f32 %v74, %v1114
  %v1116 = vpop.f32.mrb[0].mxu0
  %v1117 = vadd.f32 %v79, %v1116
  %v1118 = vpop.f32.mrb[0].mxu0
  %v1119 = vadd.f32 %v79, %v1118
  %1120 = vdwg.mxu0
  %1121 = vmatprep.subr.bf16.mxu0 %v324
  %1122 = vmatpush1.bf16.msra.mxu0 %v321
  %1123 = vmatprep.subr.bf16.mxu0 0
  %1124 = vmatpush1.bf16.msra.mxu0 0
  %1125 = vmatprep.subr.bf16.mxu0 0
  %1126 = vmatpush1.bf16.msra.mxu0 0
  %1127 = vmatprep.subr.bf16.mxu0 0
  %1128 = vmatpush1.bf16.msra.mxu0 0
  %1129 = vmatprep.subr.bf16.mxu0 0
  %1130 = vmatpush1.bf16.msra.mxu0 0
  %1131 = vmatprep.subr.bf16.mxu0 0
  %1132 = vmatpush1.bf16.msra.mxu0 0
  %1133 = vmatprep.subr.bf16.mxu0 0
  %1134 = vmatpush1.bf16.msra.mxu0 0
  %1135 = vmatprep.subr.bf16.mxu0 0
  %1136 = vmatpush1.bf16.msra.mxu0 0
  %1137 = vmatprep.subr.bf16.mxu0 0
  %1138 = vmatpush1.bf16.msra.mxu0 0
  %1139 = vmatprep.subr.bf16.mxu0 0
  %1140 = vmatpush1.bf16.msra.mxu0 0
  %1141 = vmatprep.subr.bf16.mxu0 0
  %1142 = vmatpush1.bf16.msra.mxu0 0
  %1143 = vmatprep.subr.bf16.mxu0 0
  %1144 = vmatpush1.bf16.msra.mxu0 0
  %1145 = vmatprep.subr.bf16.mxu0 0
  %1146 = vmatpush1.bf16.msra.mxu0 0
  %1147 = vmatprep.subr.bf16.mxu0 0
  %1148 = vmatpush1.bf16.msra.mxu0 0
  %1149 = vmatprep.subr.bf16.mxu0 0
  %1150 = vmatpush1.bf16.msra.mxu0 0
  %1151 = vmatprep.subr.bf16.mxu0 0
  %1152 = vmatpush1.bf16.msra.mxu0 0
  %1153 = vmatprep.mubr.bf16.mxu0 0
  %1154 = vmatmul.mubr.bf16.gmra.mrb[0].mxu0 %v221
  %v1155 = vpop.f32.mrb[0].mxu0
  %v1156 = vadd.f32 %v64, %v1155
  %v1157 = vpop.f32.mrb[0].mxu0
  %v1158 = vadd.f32 %v64, %v1157
  %v1159 = vpop.f32.mrb[0].mxu0
  %v1160 = vadd.f32 %v69, %v1159
  %v1161 = vpop.f32.mrb[0].mxu0
  %v1162 = vadd.f32 %v69, %v1161
  %1163 = vmatprep.mubr.bf16.mxu0 0
  %1164 = vmatmul.mubr.bf16.gmra.mrb[0].mxu0 %v224
  %v1165 = vpop.f32.mrb[0].mxu0
  %v1166 = vadd.f32 %v74, %v1165
  %v1167 = vpop.f32.mrb[0].mxu0
  %v1168 = vadd.f32 %v74, %v1167
  %v1169 = vpop.f32.mrb[0].mxu0
  %v1170 = vadd.f32 %v79, %v1169
  %v1171 = vpop.f32.mrb[0].mxu0
  %v1172 = vadd.f32 %v79, %v1171
  %1173 = vdwg.mxu0
  %v1174 = vmax.f32 %v361, 0.0
  %v1175 = vmax.f32 %v363, 0.0
  %v1176 = vmax.f32 %v414, 0.0
  %v1177 = vmax.f32 %v416, 0.0
  %v1178 = vmax.f32 %v467, 0.0
  %v1179 = vmax.f32 %v469, 0.0
  %v1180 = vmax.f32 %v520, 0.0
  %v1181 = vmax.f32 %v522, 0.0
  %v1182 = vmax.f32 %v573, 0.0
  %v1183 = vmax.f32 %v575, 0.0
  %v1184 = vmax.f32 %v626, 0.0
  %v1185 = vmax.f32 %v628, 0.0
  %v1186 = vmax.f32 %v679, 0.0
  %v1187 = vmax.f32 %v681, 0.0
  %v1188 = vmax.f32 %v732, 0.0
  %v1189 = vmax.f32 %v734, 0.0
  %v1190 = vmax.f32 %v785, 0.0
  %v1191 = vmax.f32 %v787, 0.0
  %v1192 = vmax.f32 %v838, 0.0
  %v1193 = vmax.f32 %v840, 0.0
  %v1194 = vmax.f32 %v891, 0.0
  %v1195 = vmax.f32 %v893, 0.0
  %v1196 = vmax.f32 %v944, 0.0
  %v1197 = vmax.f32 %v946, 0.0
  %v1198 = vmax.f32 %v997, 0.0
  %v1199 = vmax.f32 %v999, 0.0
  %v1200 = vmax.f32 %v1050, 0.0
  %v1201 = vmax.f32 %v1052, 0.0
  %v1202 = vmax.f32 %v1103, 0.0
  %v1203 = vmax.f32 %v1105, 0.0
  %v1204 = vmax.f32 %v1156, 0.0
  %v1205 = vmax.f32 %v1158, 0.0
  %v1206 = vmax.f32 %v365, 0.0
  %v1207 = vmax.f32 %v367, 0.0
  %v1208 = vmax.f32 %v418, 0.0
  %v1209 = vmax.f32 %v420, 0.0
  %v1210 = vmax.f32 %v471, 0.0
  %v1211 = vmax.f32 %v473, 0.0
  %v1212 = vmax.f32 %v524, 0.0
  %v1213 = vmax.f32 %v526, 0.0
  %v1214 = vmax.f32 %v577, 0.0
  %v1215 = vmax.f32 %v579, 0.0
  %v1216 = vmax.f32 %v630, 0.0
  %v1217 = vmax.f32 %v632, 0.0
  %v1218 = vmax.f32 %v683, 0.0
  %v1219 = vmax.f32 %v685, 0.0
  %v1220 = vmax.f32 %v736, 0.0
  %v1221 = vmax.f32 %v738, 0.0
  %v1222 = vmax.f32 %v789, 0.0
  %v1223 = vmax.f32 %v791, 0.0
  %v1224 = vmax.f32 %v842, 0.0
  %v1225 = vmax.f32 %v844, 0.0
  %v1226 = vmax.f32 %v895, 0.0
  %v1227 = vmax.f32 %v897, 0.0
  %v1228 = vmax.f32 %v948, 0.0
  %v1229 = vmax.f32 %v950, 0.0
  %v1230 = vmax.f32 %v1001, 0.0
  %v1231 = vmax.f32 %v1003, 0.0
  %v1232 = vmax.f32 %v1054, 0.0
  %v1233 = vmax.f32 %v1056, 0.0
  %v1234 = vmax.f32 %v1107, 0.0
  %v1235 = vmax.f32 %v1109, 0.0
  %v1236 = vmax.f32 %v1160, 0.0
  %v1237 = vmax.f32 %v1162, 0.0
  %v1238 = vmax.f32 %v371, 0.0
  %v1239 = vmax.f32 %v373, 0.0
  %v1240 = vmax.f32 %v424, 0.0
  %v1241 = vmax.f32 %v426, 0.0
  %v1242 = vmax.f32 %v477, 0.0
  %v1243 = vmax.f32 %v479, 0.0
  %v1244 = vmax.f32 %v530, 0.0
  %v1245 = vmax.f32 %v532, 0.0
  %v1246 = vmax.f32 %v583, 0.0
  %v1247 = vmax.f32 %v585, 0.0
  %v1248 = vmax.f32 %v636, 0.0
  %v1249 = vmax.f32 %v638, 0.0
  %v1250 = vmax.f32 %v689, 0.0
  %v1251 = vmax.f32 %v691, 0.0
  %v1252 = vmax.f32 %v742, 0.0
  %v1253 = vmax.f32 %v744, 0.0
  %v1254 = vmax.f32 %v795, 0.0
  %v1255 = vmax.f32 %v797, 0.0
  %v1256 = vmax.f32 %v848, 0.0
  %v1257 = vmax.f32 %v850, 0.0
  %v1258 = vmax.f32 %v901, 0.0
  %v1259 = vmax.f32 %v903, 0.0
  %v1260 = vmax.f32 %v954, 0.0
  %v1261 = vmax.f32 %v956, 0.0
  %v1262 = vmax.f32 %v1007, 0.0
  %v1263 = vmax.f32 %v1009, 0.0
  %v1264 = vmax.f32 %v1060, 0.0
  %v1265 = vmax.f32 %v1062, 0.0
  %v1266 = vmax.f32 %v1113, 0.0
  %v1267 = vmax.f32 %v1115, 0.0
  %v1268 = vmax.f32 %v1166, 0.0
  %v1269 = vmax.f32 %v1168, 0.0
  %v1270 = vmax.f32 %v375, 0.0
  %v1271 = vmax.f32 %v377, 0.0
  %v1272 = vmax.f32 %v428, 0.0
  %v1273 = vmax.f32 %v430, 0.0
  %v1274 = vmax.f32 %v481, 0.0
  %v1275 = vmax.f32 %v483, 0.0
  %v1276 = vmax.f32 %v534, 0.0
  %v1277 = vmax.f32 %v536, 0.0
  %v1278 = vmax.f32 %v587, 0.0
  %v1279 = vmax.f32 %v589, 0.0
  %v1280 = vmax.f32 %v640, 0.0
  %v1281 = vmax.f32 %v642, 0.0
  %v1282 = vmax.f32 %v693, 0.0
  %v1283 = vmax.f32 %v695, 0.0
  %v1284 = vmax.f32 %v746, 0.0
  %v1285 = vmax.f32 %v748, 0.0
  %v1286 = vmax.f32 %v799, 0.0
  %v1287 = vmax.f32 %v801, 0.0
  %v1288 = vmax.f32 %v852, 0.0
  %v1289 = vmax.f32 %v854, 0.0
  %v1290 = vmax.f32 %v905, 0.0
  %v1291 = vmax.f32 %v907, 0.0
  %v1292 = vmax.f32 %v958, 0.0
  %v1293 = vmax.f32 %v960, 0.0
  %v1294 = vmax.f32 %v1011, 0.0
  %v1295 = vmax.f32 %v1013, 0.0
  %v1296 = vmax.f32 %v1064, 0.0
  %v1297 = vmax.f32 %v1066, 0.0
  %v1298 = vmax.f32 %v1117, 0.0
  %v1299 = vmax.f32 %v1119, 0.0
  %v1300 = vmax.f32 %v1170, 0.0
  %v1301 = vmax.f32 %v1172, 0.0
  %v1302 = vld [vmem:[%s3] sm:$0xff]
  %v1303 = vld [vmem:[%s3 + $0x8] sm:$0xff]
  %v1304 = vld [vmem:[%s3 + $0x10] sm:$0xff]
  %v1305 = vld [vmem:[%s3 + $0x18] sm:$0xff]
  %1307 = vset.pattern.permute.xlu0 0
  %1308 = vperm.xlu0 %1307, %v1302
  %v1309 = vpop.permute.xlu0 %1308
  %1312 = vset.pattern.permute.xlu0 0
  %1313 = vperm.xlu0 %1312, %v1303
  %v1314 = vpop.permute.xlu0 %1313
  %1317 = vset.pattern.permute.xlu0 0
  %1318 = vperm.xlu0 %1317, %v1304
  %v1319 = vpop.permute.xlu0 %1318
  %1322 = vset.pattern.permute.xlu0 0
  %1323 = vperm.xlu0 %1322, %v1305
  %v1324 = vpop.permute.xlu0 %1323
  %v1326 = vmul.f32 %v1174, %v1309
  %v1327 = vmul.f32 %v1175, %v1309
  %v1328 = vmul.f32 %v1176, %v1309
  %v1329 = vmul.f32 %v1177, %v1309
  %v1330 = vmul.f32 %v1178, %v1309
  %v1331 = vmul.f32 %v1179, %v1309
  %v1332 = vmul.f32 %v1180, %v1309
  %v1333 = vmul.f32 %v1181, %v1309
  %v1334 = vmul.f32 %v1182, %v1309
  %v1335 = vmul.f32 %v1183, %v1309
  %v1336 = vmul.f32 %v1184, %v1309
  %v1337 = vmul.f32 %v1185, %v1309
  %v1338 = vmul.f32 %v1186, %v1309
  %v1339 = vmul.f32 %v1187, %v1309
  %v1340 = vmul.f32 %v1188, %v1309
  %v1341 = vmul.f32 %v1189, %v1309
  %v1342 = vmul.f32 %v1190, %v1309
  %v1343 = vmul.f32 %v1191, %v1309
  %v1344 = vmul.f32 %v1192, %v1309
  %v1345 = vmul.f32 %v1193, %v1309
  %v1346 = vmul.f32 %v1194, %v1309
  %v1347 = vmul.f32 %v1195, %v1309
  %v1348 = vmul.f32 %v1196, %v1309
  %v1349 = vmul.f32 %v1197, %v1309
  %v1350 = vmul.f32 %v1198, %v1309
  %v1351 = vmul.f32 %v1199, %v1309
  %v1352 = vmul.f32 %v1200, %v1309
  %v1353 = vmul.f32 %v1201, %v1309
  %v1354 = vmul.f32 %v1202, %v1309
  %v1355 = vmul.f32 %v1203, %v1309
  %v1356 = vmul.f32 %v1204, %v1309
  %v1357 = vmul.f32 %v1205, %v1309
  %v1358 = vmul.f32 %v1206, %v1314
  %v1359 = vmul.f32 %v1207, %v1314
  %v1360 = vmul.f32 %v1208, %v1314
  %v1361 = vmul.f32 %v1209, %v1314
  %v1362 = vmul.f32 %v1210, %v1314
  %v1363 = vmul.f32 %v1211, %v1314
  %v1364 = vmul.f32 %v1212, %v1314
  %v1365 = vmul.f32 %v1213, %v1314
  %v1366 = vmul.f32 %v1214, %v1314
  %v1367 = vmul.f32 %v1215, %v1314
  %v1368 = vmul.f32 %v1216, %v1314
  %v1369 = vmul.f32 %v1217, %v1314
  %v1370 = vmul.f32 %v1218, %v1314
  %v1371 = vmul.f32 %v1219, %v1314
  %v1372 = vmul.f32 %v1220, %v1314
  %v1373 = vmul.f32 %v1221, %v1314
  %v1374 = vmul.f32 %v1222, %v1314
  %v1375 = vmul.f32 %v1223, %v1314
  %v1376 = vmul.f32 %v1224, %v1314
  %v1377 = vmul.f32 %v1225, %v1314
  %v1378 = vmul.f32 %v1226, %v1314
  %v1379 = vmul.f32 %v1227, %v1314
  %v1380 = vmul.f32 %v1228, %v1314
  %v1381 = vmul.f32 %v1229, %v1314
  %v1382 = vmul.f32 %v1230, %v1314
  %v1383 = vmul.f32 %v1231, %v1314
  %v1384 = vmul.f32 %v1232, %v1314
  %v1385 = vmul.f32 %v1233, %v1314
  %v1386 = vmul.f32 %v1234, %v1314
  %v1387 = vmul.f32 %v1235, %v1314
  %v1388 = vmul.f32 %v1236, %v1314
  %v1389 = vmul.f32 %v1237, %v1314
  %v1390 = vmul.f32 %v1238, %v1319
  %v1391 = vmul.f32 %v1239, %v1319
  %v1392 = vmul.f32 %v1240, %v1319
  %v1393 = vmul.f32 %v1241, %v1319
  %v1394 = vmul.f32 %v1242, %v1319
  %v1395 = vmul.f32 %v1243, %v1319
  %v1396 = vmul.f32 %v1244, %v1319
  %v1397 = vmul.f32 %v1245, %v1319
  %v1398 = vmul.f32 %v1246, %v1319
  %v1399 = vmul.f32 %v1247, %v1319
  %v1400 = vmul.f32 %v1248, %v1319
  %v1401 = vmul.f32 %v1249, %v1319
  %v1402 = vmul.f32 %v1250, %v1319
  %v1403 = vmul.f32 %v1251, %v1319
  %v1404 = vmul.f32 %v1252, %v1319
  %v1405 = vmul.f32 %v1253, %v1319
  %v1406 = vmul.f32 %v1254, %v1319
  %v1407 = vmul.f32 %v1255, %v1319
  %v1408 = vmul.f32 %v1256, %v1319
  %v1409 = vmul.f32 %v1257, %v1319
  %v1410 = vmul.f32 %v1258, %v1319
  %v1411 = vmul.f32 %v1259, %v1319
  %v1412 = vmul.f32 %v1260, %v1319
  %v1413 = vmul.f32 %v1261, %v1319
  %v1414 = vmul.f32 %v1262, %v1319
  %v1415 = vmul.f32 %v1263, %v1319
  %v1416 = vmul.f32 %v1264, %v1319
  %v1417 = vmul.f32 %v1265, %v1319
  %v1418 = vmul.f32 %v1266, %v1319
  %v1419 = vmul.f32 %v1267, %v1319
  %v1420 = vmul.f32 %v1268, %v1319
  %v1421 = vmul.f32 %v1269, %v1319
  %v1422 = vmul.f32 %v1270, %v1324
  %v1423 = vmul.f32 %v1271, %v1324
  %v1424 = vmul.f32 %v1272, %v1324
  %v1425 = vmul.f32 %v1273, %v1324
  %v1426 = vmul.f32 %v1274, %v1324
  %v1427 = vmul.f32 %v1275, %v1324
  %v1428 = vmul.f32 %v1276, %v1324
  %v1429 = vmul.f32 %v1277, %v1324
  %v1430 = vmul.f32 %v1278, %v1324
  %v1431 = vmul.f32 %v1279, %v1324
  %v1432 = vmul.f32 %v1280, %v1324
  %v1433 = vmul.f32 %v1281, %v1324
  %v1434 = vmul.f32 %v1282, %v1324
  %v1435 = vmul.f32 %v1283, %v1324
  %v1436 = vmul.f32 %v1284, %v1324
  %v1437 = vmul.f32 %v1285, %v1324
  %v1438 = vmul.f32 %v1286, %v1324
  %v1439 = vmul.f32 %v1287, %v1324
  %v1440 = vmul.f32 %v1288, %v1324
  %v1441 = vmul.f32 %v1289, %v1324
  %v1442 = vmul.f32 %v1290, %v1324
  %v1443 = vmul.f32 %v1291, %v1324
  %v1444 = vmul.f32 %v1292, %v1324
  %v1445 = vmul.f32 %v1293, %v1324
  %v1446 = vmul.f32 %v1294, %v1324
  %v1447 = vmul.f32 %v1295, %v1324
  %v1448 = vmul.f32 %v1296, %v1324
  %v1449 = vmul.f32 %v1297, %v1324
  %v1450 = vmul.f32 %v1298, %v1324
  %v1451 = vmul.f32 %v1299, %v1324
  %v1452 = vmul.f32 %v1300, %v1324
  %v1453 = vmul.f32 %v1301, %v1324
  %v1454 = vld [vmem:[%s4] sm:$0xff]
  %v1455 = vld [vmem:[%s4 + $0x8] sm:$0xff]
  %v1456 = vld [vmem:[%s4 + $0x10] sm:$0xff]
  %v1457 = vld [vmem:[%s4 + $0x18] sm:$0xff]
  %1459 = vset.pattern.permute.xlu0 0
  %1460 = vperm.xlu0 %1459, %v1454
  %v1461 = vpop.permute.xlu0 %1460
  %1464 = vset.pattern.permute.xlu0 0
  %1465 = vperm.xlu0 %1464, %v1455
  %v1466 = vpop.permute.xlu0 %1465
  %1469 = vset.pattern.permute.xlu0 0
  %1470 = vperm.xlu0 %1469, %v1456
  %v1471 = vpop.permute.xlu0 %1470
  %1474 = vset.pattern.permute.xlu0 0
  %1475 = vperm.xlu0 %1474, %v1457
  %v1476 = vpop.permute.xlu0 %1475
  %v1478 = vadd.f32 %v1326, %v1461
  %v1479 = vadd.f32 %v1327, %v1461
  %v1480 = vadd.f32 %v1328, %v1461
  %v1481 = vadd.f32 %v1329, %v1461
  %v1482 = vadd.f32 %v1330, %v1461
  %v1483 = vadd.f32 %v1331, %v1461
  %v1484 = vadd.f32 %v1332, %v1461
  %v1485 = vadd.f32 %v1333, %v1461
  %v1486 = vadd.f32 %v1334, %v1461
  %v1487 = vadd.f32 %v1335, %v1461
  %v1488 = vadd.f32 %v1336, %v1461
  %v1489 = vadd.f32 %v1337, %v1461
  %v1490 = vadd.f32 %v1338, %v1461
  %v1491 = vadd.f32 %v1339, %v1461
  %v1492 = vadd.f32 %v1340, %v1461
  %v1493 = vadd.f32 %v1341, %v1461
  %v1494 = vadd.f32 %v1342, %v1461
  %v1495 = vadd.f32 %v1343, %v1461
  %v1496 = vadd.f32 %v1344, %v1461
  %v1497 = vadd.f32 %v1345, %v1461
  %v1498 = vadd.f32 %v1346, %v1461
  %v1499 = vadd.f32 %v1347, %v1461
  %v1500 = vadd.f32 %v1348, %v1461
  %v1501 = vadd.f32 %v1349, %v1461
  %v1502 = vadd.f32 %v1350, %v1461
  %v1503 = vadd.f32 %v1351, %v1461
  %v1504 = vadd.f32 %v1352, %v1461
  %v1505 = vadd.f32 %v1353, %v1461
  %v1506 = vadd.f32 %v1354, %v1461
  %v1507 = vadd.f32 %v1355, %v1461
  %v1508 = vadd.f32 %v1356, %v1461
  %v1509 = vadd.f32 %v1357, %v1461
  %v1510 = vadd.f32 %v1358, %v1466
  %v1511 = vadd.f32 %v1359, %v1466
  %v1512 = vadd.f32 %v1360, %v1466
  %v1513 = vadd.f32 %v1361, %v1466
  %v1514 = vadd.f32 %v1362, %v1466
  %v1515 = vadd.f32 %v1363, %v1466
  %v1516 = vadd.f32 %v1364, %v1466
  %v1517 = vadd.f32 %v1365, %v1466
  %v1518 = vadd.f32 %v1366, %v1466
  %v1519 = vadd.f32 %v1367, %v1466
  %v1520 = vadd.f32 %v1368, %v1466
  %v1521 = vadd.f32 %v1369, %v1466
  %v1522 = vadd.f32 %v1370, %v1466
  %v1523 = vadd.f32 %v1371, %v1466
  %v1524 = vadd.f32 %v1372, %v1466
  %v1525 = vadd.f32 %v1373, %v1466
  %v1526 = vadd.f32 %v1374, %v1466
  %v1527 = vadd.f32 %v1375, %v1466
  %v1528 = vadd.f32 %v1376, %v1466
  %v1529 = vadd.f32 %v1377, %v1466
  %v1530 = vadd.f32 %v1378, %v1466
  %v1531 = vadd.f32 %v1379, %v1466
  %v1532 = vadd.f32 %v1380, %v1466
  %v1533 = vadd.f32 %v1381, %v1466
  %v1534 = vadd.f32 %v1382, %v1466
  %v1535 = vadd.f32 %v1383, %v1466
  %v1536 = vadd.f32 %v1384, %v1466
  %v1537 = vadd.f32 %v1385, %v1466
  %v1538 = vadd.f32 %v1386, %v1466
  %v1539 = vadd.f32 %v1387, %v1466
  %v1540 = vadd.f32 %v1388, %v1466
  %v1541 = vadd.f32 %v1389, %v1466
  %v1542 = vadd.f32 %v1390, %v1471
  %v1543 = vadd.f32 %v1391, %v1471
  %v1544 = vadd.f32 %v1392, %v1471
  %v1545 = vadd.f32 %v1393, %v1471
  %v1546 = vadd.f32 %v1394, %v1471
  %v1547 = vadd.f32 %v1395, %v1471
  %v1548 = vadd.f32 %v1396, %v1471
  %v1549 = vadd.f32 %v1397, %v1471
  %v1550 = vadd.f32 %v1398, %v1471
  %v1551 = vadd.f32 %v1399, %v1471
  %v1552 = vadd.f32 %v1400, %v1471
  %v1553 = vadd.f32 %v1401, %v1471
  %v1554 = vadd.f32 %v1402, %v1471
  %v1555 = vadd.f32 %v1403, %v1471
  %v1556 = vadd.f32 %v1404, %v1471
  %v1557 = vadd.f32 %v1405, %v1471
  %v1558 = vadd.f32 %v1406, %v1471
  %v1559 = vadd.f32 %v1407, %v1471
  %v1560 = vadd.f32 %v1408, %v1471
  %v1561 = vadd.f32 %v1409, %v1471
  %v1562 = vadd.f32 %v1410, %v1471
  %v1563 = vadd.f32 %v1411, %v1471
  %v1564 = vadd.f32 %v1412, %v1471
  %v1565 = vadd.f32 %v1413, %v1471
  %v1566 = vadd.f32 %v1414, %v1471
  %v1567 = vadd.f32 %v1415, %v1471
  %v1568 = vadd.f32 %v1416, %v1471
  %v1569 = vadd.f32 %v1417, %v1471
  %v1570 = vadd.f32 %v1418, %v1471
  %v1571 = vadd.f32 %v1419, %v1471
  %v1572 = vadd.f32 %v1420, %v1471
  %v1573 = vadd.f32 %v1421, %v1471
  %v1574 = vadd.f32 %v1422, %v1476
  %v1575 = vadd.f32 %v1423, %v1476
  %v1576 = vadd.f32 %v1424, %v1476
  %v1577 = vadd.f32 %v1425, %v1476
  %v1578 = vadd.f32 %v1426, %v1476
  %v1579 = vadd.f32 %v1427, %v1476
  %v1580 = vadd.f32 %v1428, %v1476
  %v1581 = vadd.f32 %v1429, %v1476
  %v1582 = vadd.f32 %v1430, %v1476
  %v1583 = vadd.f32 %v1431, %v1476
  %v1584 = vadd.f32 %v1432, %v1476
  %v1585 = vadd.f32 %v1433, %v1476
  %v1586 = vadd.f32 %v1434, %v1476
  %v1587 = vadd.f32 %v1435, %v1476
  %v1588 = vadd.f32 %v1436, %v1476
  %v1589 = vadd.f32 %v1437, %v1476
  %v1590 = vadd.f32 %v1438, %v1476
  %v1591 = vadd.f32 %v1439, %v1476
  %v1592 = vadd.f32 %v1440, %v1476
  %v1593 = vadd.f32 %v1441, %v1476
  %v1594 = vadd.f32 %v1442, %v1476
  %v1595 = vadd.f32 %v1443, %v1476
  %v1596 = vadd.f32 %v1444, %v1476
  %v1597 = vadd.f32 %v1445, %v1476
  %v1598 = vadd.f32 %v1446, %v1476
  %v1599 = vadd.f32 %v1447, %v1476
  %v1600 = vadd.f32 %v1448, %v1476
  %v1601 = vadd.f32 %v1449, %v1476
  %v1602 = vadd.f32 %v1450, %v1476
  %v1603 = vadd.f32 %v1451, %v1476
  %v1604 = vadd.f32 %v1452, %v1476
  %v1605 = vadd.f32 %v1453, %v1476
  %v1606 = vmax.f32 %v1478, %v1482
  %v1607 = vmax.f32 %v1479, %v1483
  %v1608 = vmax.f32 %v1480, %v1484
  %v1609 = vmax.f32 %v1481, %v1485
  %v1610 = vmax.f32 %v1510, %v1514
  %v1611 = vmax.f32 %v1511, %v1515
  %v1612 = vmax.f32 %v1512, %v1516
  %v1613 = vmax.f32 %v1513, %v1517
  %v1614 = vmax.f32 %v1542, %v1546
  %v1615 = vmax.f32 %v1543, %v1547
  %v1616 = vmax.f32 %v1544, %v1548
  %v1617 = vmax.f32 %v1545, %v1549
  %v1618 = vmax.f32 %v1574, %v1578
  %v1619 = vmax.f32 %v1575, %v1579
  %v1620 = vmax.f32 %v1576, %v1580
  %v1621 = vmax.f32 %v1577, %v1581
  %v1622 = vmax.f32 %v1486, %v1490
  %v1623 = vmax.f32 %v1487, %v1491
  %v1624 = vmax.f32 %v1488, %v1492
  %v1625 = vmax.f32 %v1489, %v1493
  %v1626 = vmax.f32 %v1518, %v1522
  %v1627 = vmax.f32 %v1519, %v1523
  %v1628 = vmax.f32 %v1520, %v1524
  %v1629 = vmax.f32 %v1521, %v1525
  %v1630 = vmax.f32 %v1550, %v1554
  %v1631 = vmax.f32 %v1551, %v1555
  %v1632 = vmax.f32 %v1552, %v1556
  %v1633 = vmax.f32 %v1553, %v1557
  %v1634 = vmax.f32 %v1582, %v1586
  %v1635 = vmax.f32 %v1583, %v1587
  %v1636 = vmax.f32 %v1584, %v1588
  %v1637 = vmax.f32 %v1585, %v1589
  %v1638 = vmax.f32 %v1606, %v1622
  %v1639 = vmax.f32 %v1607, %v1623
  %v1640 = vmax.f32 %v1608, %v1624
  %v1641 = vmax.f32 %v1609, %v1625
  %v1642 = vmax.f32 %v1610, %v1626
  %v1643 = vmax.f32 %v1611, %v1627
  %v1644 = vmax.f32 %v1612, %v1628
  %v1645 = vmax.f32 %v1613, %v1629
  %v1646 = vmax.f32 %v1614, %v1630
  %v1647 = vmax.f32 %v1615, %v1631
  %v1648 = vmax.f32 %v1616, %v1632
  %v1649 = vmax.f32 %v1617, %v1633
  %v1650 = vmax.f32 %v1618, %v1634
  %v1651 = vmax.f32 %v1619, %v1635
  %v1652 = vmax.f32 %v1620, %v1636
  %v1653 = vmax.f32 %v1621, %v1637
  %v1654 = vpack.c.bf16 %v1642, %v1638
  %v1655 = vpack.c.bf16 %v1643, %v1639
  %v1656 = vpack.c.bf16 %v1644, %v1640
  %v1657 = vpack.c.bf16 %v1645, %v1641
  %v1658 = vpack.c.bf16 %v1650, %v1646
  %v1659 = vpack.c.bf16 %v1651, %v1647
  %v1660 = vpack.c.bf16 %v1652, %v1648
  %v1661 = vpack.c.bf16 %v1653, %v1649
  %v1670 = vunpack.c.l.b16 %v1654
  %v1671 = vunpack.c.l.b16 %v1655
  %v1672 = vunpack.c.l.b16 %v1656
  %v1673 = vunpack.c.l.b16 %v1657
  %v1674 = vunpack.c.h.b16 %v1654
  %v1675 = vunpack.c.h.b16 %v1655
  %v1676 = vunpack.c.h.b16 %v1656
  %v1677 = vunpack.c.h.b16 %v1657
  %v1678 = vunpack.c.l.b16 %v1658
  %v1679 = vunpack.c.l.b16 %v1659
  %v1680 = vunpack.c.l.b16 %v1660
  %v1681 = vunpack.c.l.b16 %v1661
  %v1682 = vunpack.c.h.b16 %v1658
  %v1683 = vunpack.c.h.b16 %v1659
  %v1684 = vunpack.c.h.b16 %v1660
  %v1685 = vunpack.c.h.b16 %v1661
  %v1686 = vpack.c.b16 %v1671, %v1670
  %v1687 = vpack.c.b16 %v1673, %v1672
  %v1688 = vpack.c.b16 %v1675, %v1674
  %v1689 = vpack.c.b16 %v1677, %v1676
  %v1690 = vpack.c.b16 %v1679, %v1678
  %v1691 = vpack.c.b16 %v1681, %v1680
  %v1692 = vpack.c.b16 %v1683, %v1682
  %v1693 = vpack.c.b16 %v1685, %v1684
  %1702 = vst [vmem:[%s5] sm:$0xff] %v1686
  %1703 = vst [vmem:[%s5 + $0x8] sm:$0xff] %v1687
  %1704 = vst [vmem:[%s5 + $0x10] sm:$0xff] %v1688
  %1705 = vst [vmem:[%s5 + $0x18] sm:$0xff] %v1689
  %1706 = vst [vmem:[%s5 + $0x20] sm:$0xff] %v1690
  %1707 = vst [vmem:[%s5 + $0x28] sm:$0xff] %v1691
  %1708 = vst [vmem:[%s5 + $0x30] sm:$0xff] %v1692
  %1709 = vst [vmem:[%s5 + $0x38] sm:$0xff] %v1693
  %v1710 = vmax.f32 %v1494, %v1498
  %v1711 = vmax.f32 %v1495, %v1499
  %v1712 = vmax.f32 %v1496, %v1500
  %v1713 = vmax.f32 %v1497, %v1501
  %v1714 = vmax.f32 %v1526, %v1530
  %v1715 = vmax.f32 %v1527, %v1531
  %v1716 = vmax.f32 %v1528, %v1532
  %v1717 = vmax.f32 %v1529, %v1533
  %v1718 = vmax.f32 %v1558, %v1562
  %v1719 = vmax.f32 %v1559, %v1563
  %v1720 = vmax.f32 %v1560, %v1564
  %v1721 = vmax.f32 %v1561, %v1565
  %v1722 = vmax.f32 %v1590, %v1594
  %v1723 = vmax.f32 %v1591, %v1595
  %v1724 = vmax.f32 %v1592, %v1596
  %v1725 = vmax.f32 %v1593, %v1597
  %v1726 = vmax.f32 %v1502, %v1506
  %v1727 = vmax.f32 %v1503, %v1507
  %v1728 = vmax.f32 %v1504, %v1508
  %v1729 = vmax.f32 %v1505, %v1509
  %v1730 = vmax.f32 %v1534, %v1538
  %v1731 = vmax.f32 %v1535, %v1539
  %v1732 = vmax.f32 %v1536, %v1540
  %v1733 = vmax.f32 %v1537, %v1541
  %v1734 = vmax.f32 %v1566, %v1570
  %v1735 = vmax.f32 %v1567, %v1571
  %v1736 = vmax.f32 %v1568, %v1572
  %v1737 = vmax.f32 %v1569, %v1573
  %v1738 = vmax.f32 %v1598, %v1602
  %v1739 = vmax.f32 %v1599, %v1603
  %v1740 = vmax.f32 %v1600, %v1604
  %v1741 = vmax.f32 %v1601, %v1605
  %v1742 = vmax.f32 %v1710, %v1726
  %v1743 = vmax.f32 %v1711, %v1727
  %v1744 = vmax.f32 %v1712, %v1728
  %v1745 = vmax.f32 %v1713, %v1729
  %v1746 = vmax.f32 %v1714, %v1730
  %v1747 = vmax.f32 %v1715, %v1731
  %v1748 = vmax.f32 %v1716, %v1732
  %v1749 = vmax.f32 %v1717, %v1733
  %v1750 = vmax.f32 %v1718, %v1734
  %v1751 = vmax.f32 %v1719, %v1735
  %v1752 = vmax.f32 %v1720, %v1736
  %v1753 = vmax.f32 %v1721, %v1737
  %v1754 = vmax.f32 %v1722, %v1738
  %v1755 = vmax.f32 %v1723, %v1739
  %v1756 = vmax.f32 %v1724, %v1740
  %v1757 = vmax.f32 %v1725, %v1741
  %v1758 = vpack.c.bf16 %v1746, %v1742
  %v1759 = vpack.c.bf16 %v1747, %v1743
  %v1760 = vpack.c.bf16 %v1748, %v1744
  %v1761 = vpack.c.bf16 %v1749, %v1745
  %v1762 = vpack.c.bf16 %v1754, %v1750
  %v1763 = vpack.c.bf16 %v1755, %v1751
  %v1764 = vpack.c.bf16 %v1756, %v1752
  %v1765 = vpack.c.bf16 %v1757, %v1753
  %v1774 = vunpack.c.l.b16 %v1758
  %v1775 = vunpack.c.l.b16 %v1759
  %v1776 = vunpack.c.l.b16 %v1760
  %v1777 = vunpack.c.l.b16 %v1761
  %v1778 = vunpack.c.h.b16 %v1758
  %v1779 = vunpack.c.h.b16 %v1759
  %v1780 = vunpack.c.h.b16 %v1760
  %v1781 = vunpack.c.h.b16 %v1761
  %v1782 = vunpack.c.l.b16 %v1762
  %v1783 = vunpack.c.l.b16 %v1763
  %v1784 = vunpack.c.l.b16 %v1764
  %v1785 = vunpack.c.l.b16 %v1765
  %v1786 = vunpack.c.h.b16 %v1762
  %v1787 = vunpack.c.h.b16 %v1763
  %v1788 = vunpack.c.h.b16 %v1764
  %v1789 = vunpack.c.h.b16 %v1765
  %v1790 = vpack.c.b16 %v1775, %v1774
  %v1791 = vpack.c.b16 %v1777, %v1776
  %v1792 = vpack.c.b16 %v1779, %v1778
  %v1793 = vpack.c.b16 %v1781, %v1780
  %v1794 = vpack.c.b16 %v1783, %v1782
  %v1795 = vpack.c.b16 %v1785, %v1784
  %v1796 = vpack.c.b16 %v1787, %v1786
  %v1797 = vpack.c.b16 %v1789, %v1788
  %s1806 = scalar_lea.vmem %s5, 64
  %1807 = vst [vmem:[%s1806] sm:$0xff] %v1790
  %1808 = vst [vmem:[%s1806 + $0x8] sm:$0xff] %v1791
  %1809 = vst [vmem:[%s1806 + $0x10] sm:$0xff] %v1792
  %1810 = vst [vmem:[%s1806 + $0x18] sm:$0xff] %v1793
  %1811 = vst [vmem:[%s1806 + $0x20] sm:$0xff] %v1794
  %1812 = vst [vmem:[%s1806 + $0x28] sm:$0xff] %v1795
  %1813 = vst [vmem:[%s1806 + $0x30] sm:$0xff] %v1796
  %1814 = vst [vmem:[%s1806 + $0x38] sm:$0xff] %v1797
  // Predicated region
  $region22: #{cnn_bilstm_forward.4} parent=0 // pred_check
    _
  $region23: #{cnn_bilstm_forward.4} parent=0 // pred_check_branch
    %1816 = sbr.rel (0) target = $region25
  $region24: #{cnn_bilstm_forward.4} parent=0 // pred_region
    _
  $region25: #{cnn_bilstm_forward.4} parent=0 // pred_fallthru
    _
  // Predicated region
  $region26: #{cnn_bilstm_forward.4} parent=0 // pred_check
    _
  $region27: #{cnn_bilstm_forward.4} parent=0 // pred_check_branch
    %1818 = sbr.rel (0) target = $region29
  $region28: #{cnn_bilstm_forward.4} parent=0 // pred_region
    _
  $region29: #{cnn_bilstm_forward.4} parent=0 // pred_fallthru
    _

// kernel: cnn_bilstm_forward.5
$region0: #{cnn_bilstm_forward.5}
  #allocation0 [shape = 'u32[]', space=smem, size = 0x4, offset = 0x4, fixed_abs, tag = 'smem constant byte address 0x4 - core index']
  #allocation1 [shape = 'u32[144,128]{1,0:T(1,128)}', space=vmem, size = 0x12000, scoped, tag = 'internal scratch']
  %s0 = inlined_call_operand.vmem [shape: bf16[288,1024], index: 0, kind: input, shape index: {}]
  %s1 = inlined_call_operand.vmem [shape: bf16[64,288], index: 1, kind: input, shape index: {}]
  %s2 = inlined_call_operand.vmem [shape: f32[64,1], index: 2, kind: input, shape index: {}]
  %s3 = inlined_call_operand.vmem [shape: f32[64,1], index: 3, kind: input, shape index: {}]
  %s4 = inlined_call_operand.vmem [shape: f32[64,1], index: 4, kind: input, shape index: {}]
  %s5 = inlined_call_operand.vmem [shape: bf16[2,64,128], index: 5, kind: output, shape index: {}]
  %s6 = sld [smem:[#allocation0]]
  $region30: #{cnn_bilstm_forward.5} parent=0
    _
  %s8 = ssub.s32 1, %s6
  %s9 = scalar_select 0, %s8, %s6
  // Predicated region
  $region2: #{cnn_bilstm_forward.5} parent=0 // pred_check
    _
  $region3: #{cnn_bilstm_forward.5} parent=0 // pred_check_branch
    %11 = sbr.rel (0) target = $region5
  $region4: #{cnn_bilstm_forward.5} parent=0 // pred_region
    _
  $region5: #{cnn_bilstm_forward.5} parent=0 // pred_fallthru
    _
  // Predicated region
  $region6: #{cnn_bilstm_forward.5} parent=0 // pred_check
    _
  $region7: #{cnn_bilstm_forward.5} parent=0 // pred_check_branch
    %13 = sbr.rel (0) target = $region9
  $region8: #{cnn_bilstm_forward.5} parent=0 // pred_region
    _
  $region9: #{cnn_bilstm_forward.5} parent=0 // pred_fallthru
    _
  // Predicated region
  $region10: #{cnn_bilstm_forward.5} parent=0 // pred_check
    _
  $region11: #{cnn_bilstm_forward.5} parent=0 // pred_check_branch
    %15 = sbr.rel (0) target = $region13
  $region12: #{cnn_bilstm_forward.5} parent=0 // pred_region
    _
  $region13: #{cnn_bilstm_forward.5} parent=0 // pred_fallthru
    _
  // Predicated region
  $region14: #{cnn_bilstm_forward.5} parent=0 // pred_check
    _
  $region15: #{cnn_bilstm_forward.5} parent=0 // pred_check_branch
    %17 = sbr.rel (0) target = $region17
  $region16: #{cnn_bilstm_forward.5} parent=0 // pred_region
    _
  $region17: #{cnn_bilstm_forward.5} parent=0 // pred_fallthru
    _
  // Predicated region
  $region18: #{cnn_bilstm_forward.5} parent=0 // pred_check
    _
  $region19: #{cnn_bilstm_forward.5} parent=0 // pred_check_branch
    %19 = sbr.rel (0) target = $region21
  $region20: #{cnn_bilstm_forward.5} parent=0 // pred_region
    _
  $region21: #{cnn_bilstm_forward.5} parent=0 // pred_fallthru
    _
  %v21 = vld [vmem:[%s1] sm:$0xff]
  %v22 = vld [vmem:[%s1 + $0x8] sm:$0xf]
  %v23 = vld [vmem:[%s1 + $0xc] sm:$0xff]
  %v24 = vld [vmem:[%s1 + $0x14] sm:$0xf]
  %v25 = vld [vmem:[%s1 + $0x18] sm:$0xff]
  %v26 = vld [vmem:[%s1 + $0x20] sm:$0xf]
  %v27 = vld [vmem:[%s1 + $0x24] sm:$0xff]
  %v28 = vld [vmem:[%s1 + $0x2c] sm:$0xf]
  %v29 = vld [vmem:[%s1 + $0x30] sm:$0xff]
  %v30 = vld [vmem:[%s1 + $0x38] sm:$0xf]
  %v31 = vld [vmem:[%s1 + $0x3c] sm:$0xff]
  %v32 = vld [vmem:[%s1 + $0x44] sm:$0xf]
  %v33 = vld [vmem:[%s1 + $0x48] sm:$0xff]
  %v34 = vld [vmem:[%s1 + $0x50] sm:$0xf]
  %v35 = vld [vmem:[%s1 + $0x54] sm:$0xff]
  %v36 = vld [vmem:[%s1 + $0x5c] sm:$0xf]
  %v37 = vld [vmem:[%s0] sm:$0xff]
  %v38 = vld [vmem:[%s0 + $0x8] sm:$0xff]
  %v39 = vld [vmem:[%s0 + $0x10] sm:$0xff]
  %v40 = vld [vmem:[%s0 + $0x18] sm:$0xff]
  %v41 = vld [vmem:[%s0 + $0x20] sm:$0xff]
  %v42 = vld [vmem:[%s0 + $0x28] sm:$0xff]
  %v43 = vld [vmem:[%s0 + $0x30] sm:$0xff]
  %v44 = vld [vmem:[%s0 + $0x38] sm:$0xff]
  %v45 = vld [vmem:[%s0 + $0x40] sm:$0xff]
  %v46 = vld [vmem:[%s0 + $0x48] sm:$0xff]
  %v47 = vld [vmem:[%s0 + $0x50] sm:$0xff]
  %v48 = vld [vmem:[%s0 + $0x58] sm:$0xff]
  %v49 = vld [vmem:[%s0 + $0x60] sm:$0xff]
  %v50 = vld [vmem:[%s0 + $0x68] sm:$0xff]
  %v51 = vld [vmem:[%s0 + $0x70] sm:$0xff]
  %v52 = vld [vmem:[%s0 + $0x78] sm:$0xff]
  %v53 = vld [vmem:[%s0 + $0x80] sm:$0xff]
  %v54 = vld [vmem:[%s0 + $0x88] sm:$0xff]
  %v55 = vld [vmem:[%s0 + $0x90] sm:$0xff]
  %v56 = vld [vmem:[%s0 + $0x98] sm:$0xff]
  %v57 = vld [vmem:[%s0 + $0xa0] sm:$0xff]
  %v58 = vld [vmem:[%s0 + $0xa8] sm:$0xff]
  %v59 = vld [vmem:[%s0 + $0xb0] sm:$0xff]
  %v60 = vld [vmem:[%s0 + $0xb8] sm:$0xff]
  %v61 = vld [vmem:[%s0 + $0xc0] sm:$0xff]
  %v62 = vld [vmem:[%s0 + $0xc8] sm:$0xff]
  %v63 = vld [vmem:[%s0 + $0xd0] sm:$0xff]
  %v64 = vld [vmem:[%s0 + $0xd8] sm:$0xff]
  %v65 = vld [vmem:[%s0 + $0xe0] sm:$0xff]
  %v66 = vld [vmem:[%s0 + $0xe8] sm:$0xff]
  %v67 = vld [vmem:[%s0 + $0xf0] sm:$0xff]
  %v68 = vld [vmem:[%s0 + $0xf8] sm:$0xff]
  %v69 = vld [vmem:[%s0 + $0x100] sm:$0xff]
  %v70 = vld [vmem:[%s0 + $0x108] sm:$0xff]
  %v71 = vld [vmem:[%s0 + $0x110] sm:$0xff]
  %v72 = vld [vmem:[%s0 + $0x118] sm:$0xff]
  %v73 = vld [vmem:[%s0 + $0x120] sm:$0xff]
  %v74 = vld [vmem:[%s0 + $0x128] sm:$0xff]
  %v75 = vld [vmem:[%s0 + $0x130] sm:$0xff]
  %v76 = vld [vmem:[%s0 + $0x138] sm:$0xff]
  %v77 = vld [vmem:[%s0 + $0x140] sm:$0xff]
  %v78 = vld [vmem:[%s0 + $0x148] sm:$0xff]
  %v79 = vld [vmem:[%s0 + $0x150] sm:$0xff]
  %v80 = vld [vmem:[%s0 + $0x158] sm:$0xff]
  %v81 = vld [vmem:[%s0 + $0x160] sm:$0xff]
  %v82 = vld [vmem:[%s0 + $0x168] sm:$0xff]
  %v83 = vld [vmem:[%s0 + $0x170] sm:$0xff]
  %v84 = vld [vmem:[%s0 + $0x178] sm:$0xff]
  %v85 = vld [vmem:[%s0 + $0x180] sm:$0xff]
  %v86 = vld [vmem:[%s0 + $0x188] sm:$0xff]
  %v87 = vld [vmem:[%s0 + $0x190] sm:$0xff]
  %v88 = vld [vmem:[%s0 + $0x198] sm:$0xff]
  %v89 = vld [vmem:[%s0 + $0x1a0] sm:$0xff]
  %v90 = vld [vmem:[%s0 + $0x1a8] sm:$0xff]
  %v91 = vld [vmem:[%s0 + $0x1b0] sm:$0xff]
  %v92 = vld [vmem:[%s0 + $0x1b8] sm:$0xff]
  %v93 = vld [vmem:[%s0 + $0x1c0] sm:$0xff]
  %v94 = vld [vmem:[%s0 + $0x1c8] sm:$0xff]
  %v95 = vld [vmem:[%s0 + $0x1d0] sm:$0xff]
  %v96 = vld [vmem:[%s0 + $0x1d8] sm:$0xff]
  %v97 = vld [vmem:[%s0 + $0x1e0] sm:$0xff]
  %v98 = vld [vmem:[%s0 + $0x1e8] sm:$0xff]
  %v99 = vld [vmem:[%s0 + $0x1f0] sm:$0xff]
  %v100 = vld [vmem:[%s0 + $0x1f8] sm:$0xff]
  %v101 = vld [vmem:[%s0 + $0x200] sm:$0xff]
  %v102 = vld [vmem:[%s0 + $0x208] sm:$0xff]
  %v103 = vld [vmem:[%s0 + $0x210] sm:$0xff]
  %v104 = vld [vmem:[%s0 + $0x218] sm:$0xff]
  %v105 = vld [vmem:[%s0 + $0x220] sm:$0xff]
  %v106 = vld [vmem:[%s0 + $0x228] sm:$0xff]
  %v107 = vld [vmem:[%s0 + $0x230] sm:$0xff]
  %v108 = vld [vmem:[%s0 + $0x238] sm:$0xff]
  %v109 = vld [vmem:[%s0 + $0x240] sm:$0xff]
  %v110 = vld [vmem:[%s0 + $0x248] sm:$0xff]
  %v111 = vld [vmem:[%s0 + $0x250] sm:$0xff]
  %v112 = vld [vmem:[%s0 + $0x258] sm:$0xff]
  %v113 = vld [vmem:[%s0 + $0x260] sm:$0xff]
  %v114 = vld [vmem:[%s0 + $0x268] sm:$0xff]
  %v115 = vld [vmem:[%s0 + $0x270] sm:$0xff]
  %v116 = vld [vmem:[%s0 + $0x278] sm:$0xff]
  %v117 = vld [vmem:[%s0 + $0x280] sm:$0xff]
  %v118 = vld [vmem:[%s0 + $0x288] sm:$0xff]
  %v119 = vld [vmem:[%s0 + $0x290] sm:$0xff]
  %v120 = vld [vmem:[%s0 + $0x298] sm:$0xff]
  %v121 = vld [vmem:[%s0 + $0x2a0] sm:$0xff]
  %v122 = vld [vmem:[%s0 + $0x2a8] sm:$0xff]
  %v123 = vld [vmem:[%s0 + $0x2b0] sm:$0xff]
  %v124 = vld [vmem:[%s0 + $0x2b8] sm:$0xff]
  %v125 = vld [vmem:[%s0 + $0x2c0] sm:$0xff]
  %v126 = vld [vmem:[%s0 + $0x2c8] sm:$0xff]
  %v127 = vld [vmem:[%s0 + $0x2d0] sm:$0xff]
  %v128 = vld [vmem:[%s0 + $0x2d8] sm:$0xff]
  %v129 = vld [vmem:[%s0 + $0x2e0] sm:$0xff]
  %v130 = vld [vmem:[%s0 + $0x2e8] sm:$0xff]
  %v131 = vld [vmem:[%s0 + $0x2f0] sm:$0xff]
  %v132 = vld [vmem:[%s0 + $0x2f8] sm:$0xff]
  %v133 = vld [vmem:[%s0 + $0x300] sm:$0xff]
  %v134 = vld [vmem:[%s0 + $0x308] sm:$0xff]
  %v135 = vld [vmem:[%s0 + $0x310] sm:$0xff]
  %v136 = vld [vmem:[%s0 + $0x318] sm:$0xff]
  %v137 = vld [vmem:[%s0 + $0x320] sm:$0xff]
  %v138 = vld [vmem:[%s0 + $0x328] sm:$0xff]
  %v139 = vld [vmem:[%s0 + $0x330] sm:$0xff]
  %v140 = vld [vmem:[%s0 + $0x338] sm:$0xff]
  %v141 = vld [vmem:[%s0 + $0x340] sm:$0xff]
  %v142 = vld [vmem:[%s0 + $0x348] sm:$0xff]
  %v143 = vld [vmem:[%s0 + $0x350] sm:$0xff]
  %v144 = vld [vmem:[%s0 + $0x358] sm:$0xff]
  %v145 = vld [vmem:[%s0 + $0x360] sm:$0xff]
  %v146 = vld [vmem:[%s0 + $0x368] sm:$0xff]
  %v147 = vld [vmem:[%s0 + $0x370] sm:$0xff]
  %v148 = vld [vmem:[%s0 + $0x378] sm:$0xff]
  %v149 = vld [vmem:[%s0 + $0x380] sm:$0xff]
  %v150 = vld [vmem:[%s0 + $0x388] sm:$0xff]
  %v151 = vld [vmem:[%s0 + $0x390] sm:$0xff]
  %v152 = vld [vmem:[%s0 + $0x398] sm:$0xff]
  %v153 = vld [vmem:[%s0 + $0x3a0] sm:$0xff]
  %v154 = vld [vmem:[%s0 + $0x3a8] sm:$0xff]
  %v155 = vld [vmem:[%s0 + $0x3b0] sm:$0xff]
  %v156 = vld [vmem:[%s0 + $0x3b8] sm:$0xff]
  %v157 = vld [vmem:[%s0 + $0x3c0] sm:$0xff]
  %v158 = vld [vmem:[%s0 + $0x3c8] sm:$0xff]
  %v159 = vld [vmem:[%s0 + $0x3d0] sm:$0xff]
  %v160 = vld [vmem:[%s0 + $0x3d8] sm:$0xff]
  %v161 = vld [vmem:[%s0 + $0x3e0] sm:$0xff]
  %v162 = vld [vmem:[%s0 + $0x3e8] sm:$0xff]
  %v163 = vld [vmem:[%s0 + $0x3f0] sm:$0xff]
  %v164 = vld [vmem:[%s0 + $0x3f8] sm:$0xff]
  %v165 = vld [vmem:[%s0 + $0x400] sm:$0xff]
  %v166 = vld [vmem:[%s0 + $0x408] sm:$0xff]
  %v167 = vld [vmem:[%s0 + $0x410] sm:$0xff]
  %v168 = vld [vmem:[%s0 + $0x418] sm:$0xff]
  %v169 = vld [vmem:[%s0 + $0x420] sm:$0xff]
  %v170 = vld [vmem:[%s0 + $0x428] sm:$0xff]
  %v171 = vld [vmem:[%s0 + $0x430] sm:$0xff]
  %v172 = vld [vmem:[%s0 + $0x438] sm:$0xff]
  %v173 = vld [vmem:[%s0 + $0x440] sm:$0xff]
  %v174 = vld [vmem:[%s0 + $0x448] sm:$0xff]
  %v175 = vld [vmem:[%s0 + $0x450] sm:$0xff]
  %v176 = vld [vmem:[%s0 + $0x458] sm:$0xff]
  %v177 = vld [vmem:[%s0 + $0x460] sm:$0xff]
  %v178 = vld [vmem:[%s0 + $0x468] sm:$0xff]
  %v179 = vld [vmem:[%s0 + $0x470] sm:$0xff]
  %v180 = vld [vmem:[%s0 + $0x478] sm:$0xff]
  %v181 = vld [vmem:[%s2] sm:$0xff]
  %v182 = vld [vmem:[%s2 + $0x8] sm:$0xff]
  %v183 = vld [vmem:[%s2 + $0x10] sm:$0xff]
  %v184 = vld [vmem:[%s2 + $0x18] sm:$0xff]
  %v185 = vld [vmem:[%s2 + $0x20] sm:$0xff]
  %v186 = vld [vmem:[%s2 + $0x28] sm:$0xff]
  %v187 = vld [vmem:[%s2 + $0x30] sm:$0xff]
  %v188 = vld [vmem:[%s2 + $0x38] sm:$0xff]
  %190 = vset.pattern.permute.xlu0 0
  %191 = vperm.xlu0 %190, %v181
  %v192 = vpop.permute.xlu0 %191
  %195 = vset.pattern.permute.xlu0 0
  %196 = vperm.xlu0 %195, %v182
  %v197 = vpop.permute.xlu0 %196
  %200 = vset.pattern.permute.xlu0 0
  %201 = vperm.xlu0 %200, %v183
  %v202 = vpop.permute.xlu0 %201
  %205 = vset.pattern.permute.xlu0 0
  %206 = vperm.xlu0 %205, %v184
  %v207 = vpop.permute.xlu0 %206
  %210 = vset.pattern.permute.xlu0 0
  %211 = vperm.xlu0 %210, %v185
  %v212 = vpop.permute.xlu0 %211
  %215 = vset.pattern.permute.xlu0 0
  %216 = vperm.xlu0 %215, %v186
  %v217 = vpop.permute.xlu0 %216
  %220 = vset.pattern.permute.xlu0 0
  %221 = vperm.xlu0 %220, %v187
  %v222 = vpop.permute.xlu0 %221
  %225 = vset.pattern.permute.xlu0 0
  %226 = vperm.xlu0 %225, %v188
  %v227 = vpop.permute.xlu0 %226
  %v245 = vunpack.c.l.b16 %v21
  %v246 = vunpack.c.h.b16 %v21
  %v247 = vunpack.c.l.b16 %v22
  %v248 = vunpack.c.l.b16 %v23
  %v249 = vunpack.c.h.b16 %v23
  %v250 = vunpack.c.l.b16 %v24
  %v251 = vunpack.c.l.b16 %v25
  %v252 = vunpack.c.h.b16 %v25
  %v253 = vunpack.c.l.b16 %v26
  %v254 = vunpack.c.l.b16 %v27
  %v255 = vunpack.c.h.b16 %v27
  %v256 = vunpack.c.l.b16 %v28
  %v257 = vunpack.c.l.b16 %v29
  %v258 = vunpack.c.h.b16 %v29
  %v259 = vunpack.c.l.b16 %v30
  %v260 = vunpack.c.l.b16 %v31
  %v261 = vunpack.c.h.b16 %v31
  %v262 = vunpack.c.l.b16 %v32
  %v263 = vunpack.c.l.b16 %v33
  %v264 = vunpack.c.h.b16 %v33
  %v265 = vunpack.c.l.b16 %v34
  %v266 = vunpack.c.l.b16 %v35
  %v267 = vunpack.c.h.b16 %v35
  %v268 = vunpack.c.l.b16 %v36
  %v269 = vpack.c.b16 %v248, %v245
  %v270 = vpack.c.b16 %v249, %v246
  %v271 = vpack.c.b16 %v250, %v247
  %v272 = vpack.c.b16 %v254, %v251
  %v273 = vpack.c.b16 %v255, %v252
  %v274 = vpack.c.b16 %v256, %v253
  %v275 = vpack.c.b16 %v260, %v257
  %v276 = vpack.c.b16 %v261, %v258
  %v277 = vpack.c.b16 %v262, %v259
  %v278 = vpack.c.b16 %v266, %v263
  %v279 = vpack.c.b16 %v267, %v264
  %v280 = vpack.c.b16 %v268, %v265
  %v433 = vunpack.c.l.b16 %v37
  %v434 = vunpack.c.h.b16 %v37
  %v435 = vunpack.c.l.b16 %v38
  %v436 = vunpack.c.h.b16 %v38
  %v437 = vunpack.c.l.b16 %v39
  %v438 = vunpack.c.h.b16 %v39
  %v439 = vunpack.c.l.b16 %v40
  %v440 = vunpack.c.h.b16 %v40
  %v441 = vunpack.c.l.b16 %v41
  %v442 = vunpack.c.h.b16 %v41
  %v443 = vunpack.c.l.b16 %v42
  %v444 = vunpack.c.h.b16 %v42
  %v445 = vunpack.c.l.b16 %v43
  %v446 = vunpack.c.h.b16 %v43
  %v447 = vunpack.c.l.b16 %v44
  %v448 = vunpack.c.h.b16 %v44
  %v449 = vunpack.c.l.b16 %v45
  %v450 = vunpack.c.h.b16 %v45
  %v451 = vunpack.c.l.b16 %v46
  %v452 = vunpack.c.h.b16 %v46
  %v453 = vunpack.c.l.b16 %v47
  %v454 = vunpack.c.h.b16 %v47
  %v455 = vunpack.c.l.b16 %v48
  %v456 = vunpack.c.h.b16 %v48
  %v457 = vunpack.c.l.b16 %v49
  %v458 = vunpack.c.h.b16 %v49
  %v459 = vunpack.c.l.b16 %v50
  %v460 = vunpack.c.h.b16 %v50
  %v461 = vunpack.c.l.b16 %v51
  %v462 = vunpack.c.h.b16 %v51
  %v463 = vunpack.c.l.b16 %v52
  %v464 = vunpack.c.h.b16 %v52
  %v465 = vunpack.c.l.b16 %v53
  %v466 = vunpack.c.h.b16 %v53
  %v467 = vunpack.c.l.b16 %v54
  %v468 = vunpack.c.h.b16 %v54
  %v469 = vunpack.c.l.b16 %v55
  %v470 = vunpack.c.h.b16 %v55
  %v471 = vunpack.c.l.b16 %v56
  %v472 = vunpack.c.h.b16 %v56
  %v473 = vunpack.c.l.b16 %v57
  %v474 = vunpack.c.h.b16 %v57
  %v475 = vunpack.c.l.b16 %v58
  %v476 = vunpack.c.h.b16 %v58
  %v477 = vunpack.c.l.b16 %v59
  %v478 = vunpack.c.h.b16 %v59
  %v479 = vunpack.c.l.b16 %v60
  %v480 = vunpack.c.h.b16 %v60
  %v481 = vunpack.c.l.b16 %v61
  %v482 = vunpack.c.h.b16 %v61
  %v483 = vunpack.c.l.b16 %v62
  %v484 = vunpack.c.h.b16 %v62
  %v485 = vunpack.c.l.b16 %v63
  %v486 = vunpack.c.h.b16 %v63
  %v487 = vunpack.c.l.b16 %v64
  %v488 = vunpack.c.h.b16 %v64
  %v489 = vunpack.c.l.b16 %v65
  %v490 = vunpack.c.h.b16 %v65
  %v491 = vunpack.c.l.b16 %v66
  %v492 = vunpack.c.h.b16 %v66
  %v493 = vunpack.c.l.b16 %v67
  %v494 = vunpack.c.h.b16 %v67
  %v495 = vunpack.c.l.b16 %v68
  %v496 = vunpack.c.h.b16 %v68
  %v497 = vunpack.c.l.b16 %v69
  %v498 = vunpack.c.h.b16 %v69
  %v499 = vunpack.c.l.b16 %v70
  %v500 = vunpack.c.h.b16 %v70
  %v501 = vunpack.c.l.b16 %v71
  %v502 = vunpack.c.h.b16 %v71
  %v503 = vunpack.c.l.b16 %v72
  %v504 = vunpack.c.h.b16 %v72
  %v505 = vunpack.c.l.b16 %v73
  %v506 = vunpack.c.h.b16 %v73
  %v507 = vunpack.c.l.b16 %v74
  %v508 = vunpack.c.h.b16 %v74
  %v509 = vunpack.c.l.b16 %v75
  %v510 = vunpack.c.h.b16 %v75
  %v511 = vunpack.c.l.b16 %v76
  %v512 = vunpack.c.h.b16 %v76
  %v513 = vunpack.c.l.b16 %v77
  %v514 = vunpack.c.h.b16 %v77
  %v515 = vunpack.c.l.b16 %v78
  %v516 = vunpack.c.h.b16 %v78
  %v517 = vunpack.c.l.b16 %v79
  %v518 = vunpack.c.h.b16 %v79
  %v519 = vunpack.c.l.b16 %v80
  %v520 = vunpack.c.h.b16 %v80
  %v521 = vunpack.c.l.b16 %v81
  %v522 = vunpack.c.h.b16 %v81
  %v523 = vunpack.c.l.b16 %v82
  %v524 = vunpack.c.h.b16 %v82
  %v525 = vunpack.c.l.b16 %v83
  %v526 = vunpack.c.h.b16 %v83
  %v527 = vunpack.c.l.b16 %v84
  %v528 = vunpack.c.h.b16 %v84
  %v529 = vunpack.c.l.b16 %v85
  %v530 = vunpack.c.h.b16 %v85
  %v531 = vunpack.c.l.b16 %v86
  %v532 = vunpack.c.h.b16 %v86
  %v533 = vunpack.c.l.b16 %v87
  %v534 = vunpack.c.h.b16 %v87
  %v535 = vunpack.c.l.b16 %v88
  %v536 = vunpack.c.h.b16 %v88
  %v537 = vunpack.c.l.b16 %v89
  %v538 = vunpack.c.h.b16 %v89
  %v539 = vunpack.c.l.b16 %v90
  %v540 = vunpack.c.h.b16 %v90
  %v541 = vunpack.c.l.b16 %v91
  %v542 = vunpack.c.h.b16 %v91
  %v543 = vunpack.c.l.b16 %v92
  %v544 = vunpack.c.h.b16 %v92
  %v545 = vunpack.c.l.b16 %v93
  %v546 = vunpack.c.h.b16 %v93
  %v547 = vunpack.c.l.b16 %v94
  %v548 = vunpack.c.h.b16 %v94
  %v549 = vunpack.c.l.b16 %v95
  %v550 = vunpack.c.h.b16 %v95
  %v551 = vunpack.c.l.b16 %v96
  %v552 = vunpack.c.h.b16 %v96
  %v553 = vunpack.c.l.b16 %v97
  %v554 = vunpack.c.h.b16 %v97
  %v555 = vunpack.c.l.b16 %v98
  %v556 = vunpack.c.h.b16 %v98
  %v557 = vunpack.c.l.b16 %v99
  %v558 = vunpack.c.h.b16 %v99
  %v559 = vunpack.c.l.b16 %v100
  %v560 = vunpack.c.h.b16 %v100
  %v561 = vunpack.c.l.b16 %v101
  %v562 = vunpack.c.h.b16 %v101
  %v563 = vunpack.c.l.b16 %v102
  %v564 = vunpack.c.h.b16 %v102
  %v565 = vunpack.c.l.b16 %v103
  %v566 = vunpack.c.h.b16 %v103
  %v567 = vunpack.c.l.b16 %v104
  %v568 = vunpack.c.h.b16 %v104
  %v569 = vunpack.c.l.b16 %v105
  %v570 = vunpack.c.h.b16 %v105
  %v571 = vunpack.c.l.b16 %v106
  %v572 = vunpack.c.h.b16 %v106
  %v573 = vunpack.c.l.b16 %v107
  %v574 = vunpack.c.h.b16 %v107
  %v575 = vunpack.c.l.b16 %v108
  %v576 = vunpack.c.h.b16 %v108
  %v577 = vunpack.c.l.b16 %v109
  %v578 = vunpack.c.h.b16 %v109
  %v579 = vunpack.c.l.b16 %v110
  %v580 = vunpack.c.h.b16 %v110
  %v581 = vunpack.c.l.b16 %v111
  %v582 = vunpack.c.h.b16 %v111
  %v583 = vunpack.c.l.b16 %v112
  %v584 = vunpack.c.h.b16 %v112
  %v585 = vunpack.c.l.b16 %v113
  %v586 = vunpack.c.h.b16 %v113
  %v587 = vunpack.c.l.b16 %v114
  %v588 = vunpack.c.h.b16 %v114
  %v589 = vunpack.c.l.b16 %v115
  %v590 = vunpack.c.h.b16 %v115
  %v591 = vunpack.c.l.b16 %v116
  %v592 = vunpack.c.h.b16 %v116
  %v593 = vunpack.c.l.b16 %v117
  %v594 = vunpack.c.h.b16 %v117
  %v595 = vunpack.c.l.b16 %v118
  %v596 = vunpack.c.h.b16 %v118
  %v597 = vunpack.c.l.b16 %v119
  %v598 = vunpack.c.h.b16 %v119
  %v599 = vunpack.c.l.b16 %v120
  %v600 = vunpack.c.h.b16 %v120
  %v601 = vunpack.c.l.b16 %v121
  %v602 = vunpack.c.h.b16 %v121
  %v603 = vunpack.c.l.b16 %v122
  %v604 = vunpack.c.h.b16 %v122
  %v605 = vunpack.c.l.b16 %v123
  %v606 = vunpack.c.h.b16 %v123
  %v607 = vunpack.c.l.b16 %v124
  %v608 = vunpack.c.h.b16 %v124
  %v609 = vunpack.c.l.b16 %v125
  %v610 = vunpack.c.h.b16 %v125
  %v611 = vunpack.c.l.b16 %v126
  %v612 = vunpack.c.h.b16 %v126
  %v613 = vunpack.c.l.b16 %v127
  %v614 = vunpack.c.h.b16 %v127
  %v615 = vunpack.c.l.b16 %v128
  %v616 = vunpack.c.h.b16 %v128
  %v617 = vunpack.c.l.b16 %v129
  %v618 = vunpack.c.h.b16 %v129
  %v619 = vunpack.c.l.b16 %v130
  %v620 = vunpack.c.h.b16 %v130
  %v621 = vunpack.c.l.b16 %v131
  %v622 = vunpack.c.h.b16 %v131
  %v623 = vunpack.c.l.b16 %v132
  %v624 = vunpack.c.h.b16 %v132
  %v625 = vunpack.c.l.b16 %v133
  %v626 = vunpack.c.h.b16 %v133
  %v627 = vunpack.c.l.b16 %v134
  %v628 = vunpack.c.h.b16 %v134
  %v629 = vunpack.c.l.b16 %v135
  %v630 = vunpack.c.h.b16 %v135
  %v631 = vunpack.c.l.b16 %v136
  %v632 = vunpack.c.h.b16 %v136
  %v633 = vunpack.c.l.b16 %v137
  %v634 = vunpack.c.h.b16 %v137
  %v635 = vunpack.c.l.b16 %v138
  %v636 = vunpack.c.h.b16 %v138
  %v637 = vunpack.c.l.b16 %v139
  %v638 = vunpack.c.h.b16 %v139
  %v639 = vunpack.c.l.b16 %v140
  %v640 = vunpack.c.h.b16 %v140
  %v641 = vunpack.c.l.b16 %v141
  %v642 = vunpack.c.h.b16 %v141
  %v643 = vunpack.c.l.b16 %v142
  %v644 = vunpack.c.h.b16 %v142
  %v645 = vunpack.c.l.b16 %v143
  %v646 = vunpack.c.h.b16 %v143
  %v647 = vunpack.c.l.b16 %v144
  %v648 = vunpack.c.h.b16 %v144
  %v649 = vunpack.c.l.b16 %v145
  %v650 = vunpack.c.h.b16 %v145
  %v651 = vunpack.c.l.b16 %v146
  %v652 = vunpack.c.h.b16 %v146
  %v653 = vunpack.c.l.b16 %v147
  %v654 = vunpack.c.h.b16 %v147
  %v655 = vunpack.c.l.b16 %v148
  %v656 = vunpack.c.h.b16 %v148
  %v657 = vunpack.c.l.b16 %v149
  %v658 = vunpack.c.h.b16 %v149
  %v659 = vunpack.c.l.b16 %v150
  %v660 = vunpack.c.h.b16 %v150
  %v661 = vunpack.c.l.b16 %v151
  %v662 = vunpack.c.h.b16 %v151
  %v663 = vunpack.c.l.b16 %v152
  %v664 = vunpack.c.h.b16 %v152
  %v665 = vunpack.c.l.b16 %v153
  %v666 = vunpack.c.h.b16 %v153
  %v667 = vunpack.c.l.b16 %v154
  %v668 = vunpack.c.h.b16 %v154
  %v669 = vunpack.c.l.b16 %v155
  %v670 = vunpack.c.h.b16 %v155
  %v671 = vunpack.c.l.b16 %v156
  %v672 = vunpack.c.h.b16 %v156
  %v673 = vunpack.c.l.b16 %v157
  %v674 = vunpack.c.h.b16 %v157
  %v675 = vunpack.c.l.b16 %v158
  %v676 = vunpack.c.h.b16 %v158
  %v677 = vunpack.c.l.b16 %v159
  %v678 = vunpack.c.h.b16 %v159
  %v679 = vunpack.c.l.b16 %v160
  %v680 = vunpack.c.h.b16 %v160
  %v681 = vunpack.c.l.b16 %v161
  %v682 = vunpack.c.h.b16 %v161
  %v683 = vunpack.c.l.b16 %v162
  %v684 = vunpack.c.h.b16 %v162
  %v685 = vunpack.c.l.b16 %v163
  %v686 = vunpack.c.h.b16 %v163
  %v687 = vunpack.c.l.b16 %v164
  %v688 = vunpack.c.h.b16 %v164
  %v689 = vunpack.c.l.b16 %v165
  %v690 = vunpack.c.h.b16 %v165
  %v691 = vunpack.c.l.b16 %v166
  %v692 = vunpack.c.h.b16 %v166
  %v693 = vunpack.c.l.b16 %v167
  %v694 = vunpack.c.h.b16 %v167
  %v695 = vunpack.c.l.b16 %v168
  %v696 = vunpack.c.h.b16 %v168
  %v697 = vunpack.c.l.b16 %v169
  %v698 = vunpack.c.h.b16 %v169
  %v699 = vunpack.c.l.b16 %v170
  %v700 = vunpack.c.h.b16 %v170
  %v701 = vunpack.c.l.b16 %v171
  %v702 = vunpack.c.h.b16 %v171
  %v703 = vunpack.c.l.b16 %v172
  %v704 = vunpack.c.h.b16 %v172
  %v705 = vunpack.c.l.b16 %v173
  %v706 = vunpack.c.h.b16 %v173
  %v707 = vunpack.c.l.b16 %v174
  %v708 = vunpack.c.h.b16 %v174
  %v709 = vunpack.c.l.b16 %v175
  %v710 = vunpack.c.h.b16 %v175
  %v711 = vunpack.c.l.b16 %v176
  %v712 = vunpack.c.h.b16 %v176
  %v713 = vunpack.c.l.b16 %v177
  %v714 = vunpack.c.h.b16 %v177
  %v715 = vunpack.c.l.b16 %v178
  %v716 = vunpack.c.h.b16 %v178
  %v717 = vunpack.c.l.b16 %v179
  %v718 = vunpack.c.h.b16 %v179
  %v719 = vunpack.c.l.b16 %v180
  %v720 = vunpack.c.h.b16 %v180
  %v721 = vpack.c.b16 %v441, %v433
  %v722 = vpack.c.b16 %v442, %v434
  %v723 = vpack.c.b16 %v443, %v435
  %v724 = vpack.c.b16 %v444, %v436
  %v725 = vpack.c.b16 %v445, %v437
  %v726 = vpack.c.b16 %v446, %v438
  %v727 = vpack.c.b16 %v447, %v439
  %v728 = vpack.c.b16 %v448, %v440
  %v729 = vpack.c.b16 %v457, %v449
  %v730 = vpack.c.b16 %v458, %v450
  %v731 = vpack.c.b16 %v459, %v451
  %v732 = vpack.c.b16 %v460, %v452
  %v733 = vpack.c.b16 %v461, %v453
  %v734 = vpack.c.b16 %v462, %v454
  %v735 = vpack.c.b16 %v463, %v455
  %v736 = vpack.c.b16 %v464, %v456
  %v737 = vpack.c.b16 %v473, %v465
  %v738 = vpack.c.b16 %v474, %v466
  %v739 = vpack.c.b16 %v475, %v467
  %v740 = vpack.c.b16 %v476, %v468
  %v741 = vpack.c.b16 %v477, %v469
  %v742 = vpack.c.b16 %v478, %v470
  %v743 = vpack.c.b16 %v479, %v471
  %v744 = vpack.c.b16 %v480, %v472
  %v745 = vpack.c.b16 %v489, %v481
  %v746 = vpack.c.b16 %v490, %v482
  %v747 = vpack.c.b16 %v491, %v483
  %v748 = vpack.c.b16 %v492, %v484
  %v749 = vpack.c.b16 %v493, %v485
  %v750 = vpack.c.b16 %v494, %v486
  %v751 = vpack.c.b16 %v495, %v487
  %v752 = vpack.c.b16 %v496, %v488
  %v753 = vpack.c.b16 %v505, %v497
  %v754 = vpack.c.b16 %v506, %v498
  %v755 = vpack.c.b16 %v507, %v499
  %v756 = vpack.c.b16 %v508, %v500
  %v757 = vpack.c.b16 %v509, %v501
  %v758 = vpack.c.b16 %v510, %v502
  %v759 = vpack.c.b16 %v511, %v503
  %v760 = vpack.c.b16 %v512, %v504
  %v761 = vpack.c.b16 %v521, %v513
  %v762 = vpack.c.b16 %v522, %v514
  %v763 = vpack.c.b16 %v523, %v515
  %v764 = vpack.c.b16 %v524, %v516
  %v765 = vpack.c.b16 %v525, %v517
  %v766 = vpack.c.b16 %v526, %v518
  %v767 = vpack.c.b16 %v527, %v519
  %v768 = vpack.c.b16 %v528, %v520
  %v769 = vpack.c.b16 %v537, %v529
  %v770 = vpack.c.b16 %v538, %v530
  %v771 = vpack.c.b16 %v539, %v531
  %v772 = vpack.c.b16 %v540, %v532
  %v773 = vpack.c.b16 %v541, %v533
  %v774 = vpack.c.b16 %v542, %v534
  %v775 = vpack.c.b16 %v543, %v535
  %v776 = vpack.c.b16 %v544, %v536
  %v777 = vpack.c.b16 %v553, %v545
  %v778 = vpack.c.b16 %v554, %v546
  %v779 = vpack.c.b16 %v555, %v547
  %v780 = vpack.c.b16 %v556, %v548
  %v781 = vpack.c.b16 %v557, %v549
  %v782 = vpack.c.b16 %v558, %v550
  %v783 = vpack.c.b16 %v559, %v551
  %v784 = vpack.c.b16 %v560, %v552
  %v785 = vpack.c.b16 %v569, %v561
  %v786 = vpack.c.b16 %v570, %v562
  %v787 = vpack.c.b16 %v571, %v563
  %v788 = vpack.c.b16 %v572, %v564
  %v789 = vpack.c.b16 %v573, %v565
  %v790 = vpack.c.b16 %v574, %v566
  %v791 = vpack.c.b16 %v575, %v567
  %v792 = vpack.c.b16 %v576, %v568
  %v793 = vpack.c.b16 %v585, %v577
  %v794 = vpack.c.b16 %v586, %v578
  %v795 = vpack.c.b16 %v587, %v579
  %v796 = vpack.c.b16 %v588, %v580
  %v797 = vpack.c.b16 %v589, %v581
  %v798 = vpack.c.b16 %v590, %v582
  %v799 = vpack.c.b16 %v591, %v583
  %v800 = vpack.c.b16 %v592, %v584
  %v801 = vpack.c.b16 %v601, %v593
  %v802 = vpack.c.b16 %v602, %v594
  %v803 = vpack.c.b16 %v603, %v595
  %v804 = vpack.c.b16 %v604, %v596
  %v805 = vpack.c.b16 %v605, %v597
  %v806 = vpack.c.b16 %v606, %v598
  %v807 = vpack.c.b16 %v607, %v599
  %v808 = vpack.c.b16 %v608, %v600
  %v809 = vpack.c.b16 %v617, %v609
  %v810 = vpack.c.b16 %v618, %v610
  %v811 = vpack.c.b16 %v619, %v611
  %v812 = vpack.c.b16 %v620, %v612
  %v813 = vpack.c.b16 %v621, %v613
  %v814 = vpack.c.b16 %v622, %v614
  %v815 = vpack.c.b16 %v623, %v615
  %v816 = vpack.c.b16 %v624, %v616
  %v817 = vpack.c.b16 %v633, %v625
  %v818 = vpack.c.b16 %v634, %v626
  %v819 = vpack.c.b16 %v635, %v627
  %v820 = vpack.c.b16 %v636, %v628
  %v821 = vpack.c.b16 %v637, %v629
  %v822 = vpack.c.b16 %v638, %v630
  %v823 = vpack.c.b16 %v639, %v631
  %v824 = vpack.c.b16 %v640, %v632
  %v825 = vpack.c.b16 %v649, %v641
  %v826 = vpack.c.b16 %v650, %v642
  %v827 = vpack.c.b16 %v651, %v643
  %v828 = vpack.c.b16 %v652, %v644
  %v829 = vpack.c.b16 %v653, %v645
  %v830 = vpack.c.b16 %v654, %v646
  %v831 = vpack.c.b16 %v655, %v647
  %v832 = vpack.c.b16 %v656, %v648
  %v833 = vpack.c.b16 %v665, %v657
  %v834 = vpack.c.b16 %v666, %v658
  %v835 = vpack.c.b16 %v667, %v659
  %v836 = vpack.c.b16 %v668, %v660
  %v837 = vpack.c.b16 %v669, %v661
  %v838 = vpack.c.b16 %v670, %v662
  %v839 = vpack.c.b16 %v671, %v663
  %v840 = vpack.c.b16 %v672, %v664
  %v841 = vpack.c.b16 %v681, %v673
  %v842 = vpack.c.b16 %v682, %v674
  %v843 = vpack.c.b16 %v683, %v675
  %v844 = vpack.c.b16 %v684, %v676
  %v845 = vpack.c.b16 %v685, %v677
  %v846 = vpack.c.b16 %v686, %v678
  %v847 = vpack.c.b16 %v687, %v679
  %v848 = vpack.c.b16 %v688, %v680
  %v849 = vpack.c.b16 %v697, %v689
  %v850 = vpack.c.b16 %v698, %v690
  %v851 = vpack.c.b16 %v699, %v691
  %v852 = vpack.c.b16 %v700, %v692
  %v853 = vpack.c.b16 %v701, %v693
  %v854 = vpack.c.b16 %v702, %v694
  %v855 = vpack.c.b16 %v703, %v695
  %v856 = vpack.c.b16 %v704, %v696
  %v857 = vpack.c.b16 %v713, %v705
  %v858 = vpack.c.b16 %v714, %v706
  %v859 = vpack.c.b16 %v715, %v707
  %v860 = vpack.c.b16 %v716, %v708
  %v861 = vpack.c.b16 %v717, %v709
  %v862 = vpack.c.b16 %v718, %v710
  %v863 = vpack.c.b16 %v719, %v711
  %v864 = vpack.c.b16 %v720, %v712
  %vm1009 = vcmask 261120
  %v1011 = vsel %vm1009, %v271, 0
  %v1014 = vsel %vm1009, %v274, 0
  %v1017 = vsel %vm1009, %v277, 0
  %v1020 = vsel %vm1009, %v280, 0
  %1022 = vmatprep.subr.bf16.mxu0 %v722
  %1023 = vmatpush1.bf16.msra.mxu0 %v721
  %1024 = vmatprep.subr.bf16.mxu0 %v730
  %1025 = vmatpush1.bf16.msra.mxu0 %v729
  %1026 = vmatprep.subr.bf16.mxu0 %v738
  %1027 = vmatpush1.bf16.msra.mxu0 %v737
  %1028 = vmatprep.subr.bf16.mxu0 %v746
  %1029 = vmatpush1.bf16.msra.mxu0 %v745
  %1030 = vmatprep.subr.bf16.mxu0 %v754
  %1031 = vmatpush1.bf16.msra.mxu0 %v753
  %1032 = vmatprep.subr.bf16.mxu0 %v762
  %1033 = vmatpush1.bf16.msra.mxu0 %v761
  %1034 = vmatprep.subr.bf16.mxu0 %v770
  %1035 = vmatpush1.bf16.msra.mxu0 %v769
  %1036 = vmatprep.subr.bf16.mxu0 %v778
  %1037 = vmatpush1.bf16.msra.mxu0 %v777
  %1038 = vmatprep.subr.bf16.mxu0 %v786
  %1039 = vmatpush1.bf16.msra.mxu0 %v785
  %1040 = vmatprep.subr.bf16.mxu0 %v794
  %1041 = vmatpush1.bf16.msra.mxu0 %v793
  %1042 = vmatprep.subr.bf16.mxu0 %v802
  %1043 = vmatpush1.bf16.msra.mxu0 %v801
  %1044 = vmatprep.subr.bf16.mxu0 %v810
  %1045 = vmatpush1.bf16.msra.mxu0 %v809
  %1046 = vmatprep.subr.bf16.mxu0 %v818
  %1047 = vmatpush1.bf16.msra.mxu0 %v817
  %1048 = vmatprep.subr.bf16.mxu0 %v826
  %1049 = vmatpush1.bf16.msra.mxu0 %v825
  %1050 = vmatprep.subr.bf16.mxu0 %v834
  %1051 = vmatpush1.bf16.msra.mxu0 %v833
  %1052 = vmatprep.subr.bf16.mxu0 %v842
  %1053 = vmatpush1.bf16.msra.mxu0 %v841
  %1054 = vmatprep.mubr.bf16.mxu0 %v270
  %1055 = vmatmul.mubr.bf16.gmra.mrb[0].mxu0 %v269
  %v1056 = vpop.f32.mrb[0].mxu0
  %v1057 = vadd.f32 %v192, %v1056
  %v1058 = vpop.f32.mrb[0].mxu0
  %v1059 = vadd.f32 %v192, %v1058
  %v1060 = vpop.f32.mrb[0].mxu0
  %v1061 = vadd.f32 %v197, %v1060
  %v1062 = vpop.f32.mrb[0].mxu0
  %v1063 = vadd.f32 %v197, %v1062
  %1064 = vmatprep.mubr.bf16.mxu0 %v273
  %1065 = vmatmul.mubr.bf16.gmra.mrb[0].mxu0 %v272
  %v1066 = vpop.f32.mrb[0].mxu0
  %v1067 = vadd.f32 %v202, %v1066
  %v1068 = vpop.f32.mrb[0].mxu0
  %v1069 = vadd.f32 %v202, %v1068
  %v1070 = vpop.f32.mrb[0].mxu0
  %v1071 = vadd.f32 %v207, %v1070
  %v1072 = vpop.f32.mrb[0].mxu0
  %v1073 = vadd.f32 %v207, %v1072
  %1074 = vmatprep.mubr.bf16.mxu0 %v276
  %1075 = vmatmul.mubr.bf16.gmra.mrb[0].mxu0 %v275
  %v1076 = vpop.f32.mrb[0].mxu0
  %v1077 = vadd.f32 %v212, %v1076
  %v1078 = vpop.f32.mrb[0].mxu0
  %v1079 = vadd.f32 %v212, %v1078
  %v1080 = vpop.f32.mrb[0].mxu0
  %v1081 = vadd.f32 %v217, %v1080
  %v1082 = vpop.f32.mrb[0].mxu0
  %v1083 = vadd.f32 %v217, %v1082
  %1084 = vmatprep.mubr.bf16.mxu0 %v279
  %1085 = vmatmul.mubr.bf16.gmra.mrb[0].mxu0 %v278
  %v1086 = vpop.f32.mrb[0].mxu0
  %v1087 = vadd.f32 %v222, %v1086
  %v1088 = vpop.f32.mrb[0].mxu0
  %v1089 = vadd.f32 %v222, %v1088
  %v1090 = vpop.f32.mrb[0].mxu0
  %v1091 = vadd.f32 %v227, %v1090
  %v1092 = vpop.f32.mrb[0].mxu0
  %v1093 = vadd.f32 %v227, %v1092
  %1094 = vdwg.mxu0
  %1095 = vmatprep.subr.bf16.mxu0 %v850
  %1096 = vmatpush1.bf16.msra.mxu0 %v849
  %1097 = vmatprep.subr.bf16.mxu0 %v858
  %1098 = vmatpush1.bf16.msra.mxu0 %v857
  %1099 = vmatprep.subr.bf16.mxu0 0
  %1100 = vmatpush1.bf16.msra.mxu0 0
  %1101 = vmatprep.subr.bf16.mxu0 0
  %1102 = vmatpush1.bf16.msra.mxu0 0
  %1103 = vmatprep.subr.bf16.mxu0 0
  %1104 = vmatpush1.bf16.msra.mxu0 0
  %1105 = vmatprep.subr.bf16.mxu0 0
  %1106 = vmatpush1.bf16.msra.mxu0 0
  %1107 = vmatprep.subr.bf16.mxu0 0
  %1108 = vmatpush1.bf16.msra.mxu0 0
  %1109 = vmatprep.subr.bf16.mxu0 0
  %1110 = vmatpush1.bf16.msra.mxu0 0
  %1111 = vmatprep.subr.bf16.mxu0 0
  %1112 = vmatpush1.bf16.msra.mxu0 0
  %1113 = vmatprep.subr.bf16.mxu0 0
  %1114 = vmatpush1.bf16.msra.mxu0 0
  %1115 = vmatprep.subr.bf16.mxu0 0
  %1116 = vmatpush1.bf16.msra.mxu0 0
  %1117 = vmatprep.subr.bf16.mxu0 0
  %1118 = vmatpush1.bf16.msra.mxu0 0
  %1119 = vmatprep.subr.bf16.mxu0 0
  %1120 = vmatpush1.bf16.msra.mxu0 0
  %1121 = vmatprep.subr.bf16.mxu0 0
  %1122 = vmatpush1.bf16.msra.mxu0 0
  %1123 = vmatprep.subr.bf16.mxu0 0
  %1124 = vmatpush1.bf16.msra.mxu0 0
  %1125 = vmatprep.subr.bf16.mxu0 0
  %1126 = vmatpush1.bf16.msra.mxu0 0
  %1127 = vmatprep.mubr.bf16.mxu0 0
  %1128 = vmatmul.mubr.bf16.gmra.mrb[0].mxu0 %v1011
  %v1129 = vpop.f32.mrb[0].mxu0
  %v1130 = vadd.f32 %v1057, %v1129
  %v1131 = vpop.f32.mrb[0].mxu0
  %v1132 = vadd.f32 %v1059, %v1131
  %v1133 = vpop.f32.mrb[0].mxu0
  %v1134 = vadd.f32 %v1061, %v1133
  %v1135 = vpop.f32.mrb[0].mxu0
  %v1136 = vadd.f32 %v1063, %v1135
  %1137 = vmatprep.mubr.bf16.mxu0 0
  %1138 = vmatmul.mubr.bf16.gmra.mrb[0].mxu0 %v1014
  %v1139 = vpop.f32.mrb[0].mxu0
  %v1140 = vadd.f32 %v1067, %v1139
  %v1141 = vpop.f32.mrb[0].mxu0
  %v1142 = vadd.f32 %v1069, %v1141
  %v1143 = vpop.f32.mrb[0].mxu0
  %v1144 = vadd.f32 %v1071, %v1143
  %v1145 = vpop.f32.mrb[0].mxu0
  %v1146 = vadd.f32 %v1073, %v1145
  %1147 = vmatprep.mubr.bf16.mxu0 0
  %1148 = vmatmul.mubr.bf16.gmra.mrb[0].mxu0 %v1017
  %v1149 = vpop.f32.mrb[0].mxu0
  %v1150 = vadd.f32 %v1077, %v1149
  %v1151 = vpop.f32.mrb[0].mxu0
  %v1152 = vadd.f32 %v1079, %v1151
  %v1153 = vpop.f32.mrb[0].mxu0
  %v1154 = vadd.f32 %v1081, %v1153
  %v1155 = vpop.f32.mrb[0].mxu0
  %v1156 = vadd.f32 %v1083, %v1155
  %1157 = vmatprep.mubr.bf16.mxu0 0
  %1158 = vmatmul.mubr.bf16.gmra.mrb[0].mxu0 %v1020
  %v1159 = vpop.f32.mrb[0].mxu0
  %v1160 = vadd.f32 %v1087, %v1159
  %v1161 = vpop.f32.mrb[0].mxu0
  %v1162 = vadd.f32 %v1089, %v1161
  %v1163 = vpop.f32.mrb[0].mxu0
  %v1164 = vadd.f32 %v1091, %v1163
  %v1165 = vpop.f32.mrb[0].mxu0
  %v1166 = vadd.f32 %v1093, %v1165
  %1167 = vdwg.mxu0
  %1168 = vmatprep.subr.bf16.mxu0 %v724
  %1169 = vmatpush1.bf16.msra.mxu0 %v723
  %1170 = vmatprep.subr.bf16.mxu0 %v732
  %1171 = vmatpush1.bf16.msra.mxu0 %v731
  %1172 = vmatprep.subr.bf16.mxu0 %v740
  %1173 = vmatpush1.bf16.msra.mxu0 %v739
  %1174 = vmatprep.subr.bf16.mxu0 %v748
  %1175 = vmatpush1.bf16.msra.mxu0 %v747
  %1176 = vmatprep.subr.bf16.mxu0 %v756
  %1177 = vmatpush1.bf16.msra.mxu0 %v755
  %1178 = vmatprep.subr.bf16.mxu0 %v764
  %1179 = vmatpush1.bf16.msra.mxu0 %v763
  %1180 = vmatprep.subr.bf16.mxu0 %v772
  %1181 = vmatpush1.bf16.msra.mxu0 %v771
  %1182 = vmatprep.subr.bf16.mxu0 %v780
  %1183 = vmatpush1.bf16.msra.mxu0 %v779
  %1184 = vmatprep.subr.bf16.mxu0 %v788
  %1185 = vmatpush1.bf16.msra.mxu0 %v787
  %1186 = vmatprep.subr.bf16.mxu0 %v796
  %1187 = vmatpush1.bf16.msra.mxu0 %v795
  %1188 = vmatprep.subr.bf16.mxu0 %v804
  %1189 = vmatpush1.bf16.msra.mxu0 %v803
  %1190 = vmatprep.subr.bf16.mxu0 %v812
  %1191 = vmatpush1.bf16.msra.mxu0 %v811
  %1192 = vmatprep.subr.bf16.mxu0 %v820
  %1193 = vmatpush1.bf16.msra.mxu0 %v819
  %1194 = vmatprep.subr.bf16.mxu0 %v828
  %1195 = vmatpush1.bf16.msra.mxu0 %v827
  %1196 = vmatprep.subr.bf16.mxu0 %v836
  %1197 = vmatpush1.bf16.msra.mxu0 %v835
  %1198 = vmatprep.subr.bf16.mxu0 %v844
  %1199 = vmatpush1.bf16.msra.mxu0 %v843
  %1200 = vmatprep.mubr.bf16.mxu0 %v270
  %1201 = vmatmul.mubr.bf16.gmra.mrb[0].mxu0 %v269
  %v1202 = vpop.f32.mrb[0].mxu0
  %v1203 = vadd.f32 %v192, %v1202
  %v1204 = vpop.f32.mrb[0].mxu0
  %v1205 = vadd.f32 %v192, %v1204
  %v1206 = vpop.f32.mrb[0].mxu0
  %v1207 = vadd.f32 %v197, %v1206
  %v1208 = vpop.f32.mrb[0].mxu0
  %v1209 = vadd.f32 %v197, %v1208
  %1210 = vmatprep.mubr.bf16.mxu0 %v273
  %1211 = vmatmul.mubr.bf16.gmra.mrb[0].mxu0 %v272
  %v1212 = vpop.f32.mrb[0].mxu0
  %v1213 = vadd.f32 %v202, %v1212
  %v1214 = vpop.f32.mrb[0].mxu0
  %v1215 = vadd.f32 %v202, %v1214
  %v1216 = vpop.f32.mrb[0].mxu0
  %v1217 = vadd.f32 %v207, %v1216
  %v1218 = vpop.f32.mrb[0].mxu0
  %v1219 = vadd.f32 %v207, %v1218
  %1220 = vmatprep.mubr.bf16.mxu0 %v276
  %1221 = vmatmul.mubr.bf16.gmra.mrb[0].mxu0 %v275
  %v1222 = vpop.f32.mrb[0].mxu0
  %v1223 = vadd.f32 %v212, %v1222
  %v1224 = vpop.f32.mrb[0].mxu0
  %v1225 = vadd.f32 %v212, %v1224
  %v1226 = vpop.f32.mrb[0].mxu0
  %v1227 = vadd.f32 %v217, %v1226
  %v1228 = vpop.f32.mrb[0].mxu0
  %v1229 = vadd.f32 %v217, %v1228
  %1230 = vmatprep.mubr.bf16.mxu0 %v279
  %1231 = vmatmul.mubr.bf16.gmra.mrb[0].mxu0 %v278
  %v1232 = vpop.f32.mrb[0].mxu0
  %v1233 = vadd.f32 %v222, %v1232
  %v1234 = vpop.f32.mrb[0].mxu0
  %v1235 = vadd.f32 %v222, %v1234
  %v1236 = vpop.f32.mrb[0].mxu0
  %v1237 = vadd.f32 %v227, %v1236
  %v1238 = vpop.f32.mrb[0].mxu0
  %v1239 = vadd.f32 %v227, %v1238
  %1240 = vdwg.mxu0
  %1241 = vmatprep.subr.bf16.mxu0 %v852
  %1242 = vmatpush1.bf16.msra.mxu0 %v851
  %1243 = vmatprep.subr.bf16.mxu0 %v860
  %1244 = vmatpush1.bf16.msra.mxu0 %v859
  %1245 = vmatprep.subr.bf16.mxu0 0
  %1246 = vmatpush1.bf16.msra.mxu0 0
  %1247 = vmatprep.subr.bf16.mxu0 0
  %1248 = vmatpush1.bf16.msra.mxu0 0
  %1249 = vmatprep.subr.bf16.mxu0 0
  %1250 = vmatpush1.bf16.msra.mxu0 0
  %1251 = vmatprep.subr.bf16.mxu0 0
  %1252 = vmatpush1.bf16.msra.mxu0 0
  %1253 = vmatprep.subr.bf16.mxu0 0
  %1254 = vmatpush1.bf16.msra.mxu0 0
  %1255 = vmatprep.subr.bf16.mxu0 0
  %1256 = vmatpush1.bf16.msra.mxu0 0
  %1257 = vmatprep.subr.bf16.mxu0 0
  %1258 = vmatpush1.bf16.msra.mxu0 0
  %1259 = vmatprep.subr.bf16.mxu0 0
  %1260 = vmatpush1.bf16.msra.mxu0 0
  %1261 = vmatprep.subr.bf16.mxu0 0
  %1262 = vmatpush1.bf16.msra.mxu0 0
  %1263 = vmatprep.subr.bf16.mxu0 0
  %1264 = vmatpush1.bf16.msra.mxu0 0
  %1265 = vmatprep.subr.bf16.mxu0 0
  %1266 = vmatpush1.bf16.msra.mxu0 0
  %1267 = vmatprep.subr.bf16.mxu0 0
  %1268 = vmatpush1.bf16.msra.mxu0 0
  %1269 = vmatprep.subr.bf16.mxu0 0
  %1270 = vmatpush1.bf16.msra.mxu0 0
  %1271 = vmatprep.subr.bf16.mxu0 0
  %1272 = vmatpush1.bf16.msra.mxu0 0
  %1273 = vmatprep.mubr.bf16.mxu0 0
  %1274 = vmatmul.mubr.bf16.gmra.mrb[0].mxu0 %v1011
  %v1275 = vpop.f32.mrb[0].mxu0
  %v1276 = vadd.f32 %v1203, %v1275
  %v1277 = vpop.f32.mrb[0].mxu0
  %v1278 = vadd.f32 %v1205, %v1277
  %v1279 = vpop.f32.mrb[0].mxu0
  %v1280 = vadd.f32 %v1207, %v1279
  %v1281 = vpop.f32.mrb[0].mxu0
  %v1282 = vadd.f32 %v1209, %v1281
  %1283 = vmatprep.mubr.bf16.mxu0 0
  %1284 = vmatmul.mubr.bf16.gmra.mrb[0].mxu0 %v1014
  %v1285 = vpop.f32.mrb[0].mxu0
  %v1286 = vadd.f32 %v1213, %v1285
  %v1287 = vpop.f32.mrb[0].mxu0
  %v1288 = vadd.f32 %v1215, %v1287
  %v1289 = vpop.f32.mrb[0].mxu0
  %v1290 = vadd.f32 %v1217, %v1289
  %v1291 = vpop.f32.mrb[0].mxu0
  %v1292 = vadd.f32 %v1219, %v1291
  %1293 = vmatprep.mubr.bf16.mxu0 0
  %1294 = vmatmul.mubr.bf16.gmra.mrb[0].mxu0 %v1017
  %v1295 = vpop.f32.mrb[0].mxu0
  %v1296 = vadd.f32 %v1223, %v1295
  %v1297 = vpop.f32.mrb[0].mxu0
  %v1298 = vadd.f32 %v1225, %v1297
  %v1299 = vpop.f32.mrb[0].mxu0
  %v1300 = vadd.f32 %v1227, %v1299
  %v1301 = vpop.f32.mrb[0].mxu0
  %v1302 = vadd.f32 %v1229, %v1301
  %1303 = vmatprep.mubr.bf16.mxu0 0
  %1304 = vmatmul.mubr.bf16.gmra.mrb[0].mxu0 %v1020
  %v1305 = vpop.f32.mrb[0].mxu0
  %v1306 = vadd.f32 %v1233, %v1305
  %v1307 = vpop.f32.mrb[0].mxu0
  %v1308 = vadd.f32 %v1235, %v1307
  %v1309 = vpop.f32.mrb[0].mxu0
  %v1310 = vadd.f32 %v1237, %v1309
  %v1311 = vpop.f32.mrb[0].mxu0
  %v1312 = vadd.f32 %v1239, %v1311
  %1313 = vdwg.mxu0
  %1314 = vmatprep.subr.bf16.mxu0 %v726
  %1315 = vmatpush1.bf16.msra.mxu0 %v725
  %1316 = vmatprep.subr.bf16.mxu0 %v734
  %1317 = vmatpush1.bf16.msra.mxu0 %v733
  %1318 = vmatprep.subr.bf16.mxu0 %v742
  %1319 = vmatpush1.bf16.msra.mxu0 %v741
  %1320 = vmatprep.subr.bf16.mxu0 %v750
  %1321 = vmatpush1.bf16.msra.mxu0 %v749
  %1322 = vmatprep.subr.bf16.mxu0 %v758
  %1323 = vmatpush1.bf16.msra.mxu0 %v757
  %1324 = vmatprep.subr.bf16.mxu0 %v766
  %1325 = vmatpush1.bf16.msra.mxu0 %v765
  %1326 = vmatprep.subr.bf16.mxu0 %v774
  %1327 = vmatpush1.bf16.msra.mxu0 %v773
  %1328 = vmatprep.subr.bf16.mxu0 %v782
  %1329 = vmatpush1.bf16.msra.mxu0 %v781
  %1330 = vmatprep.subr.bf16.mxu0 %v790
  %1331 = vmatpush1.bf16.msra.mxu0 %v789
  %1332 = vmatprep.subr.bf16.mxu0 %v798
  %1333 = vmatpush1.bf16.msra.mxu0 %v797
  %1334 = vmatprep.subr.bf16.mxu0 %v806
  %1335 = vmatpush1.bf16.msra.mxu0 %v805
  %1336 = vmatprep.subr.bf16.mxu0 %v814
  %1337 = vmatpush1.bf16.msra.mxu0 %v813
  %1338 = vmatprep.subr.bf16.mxu0 %v822
  %1339 = vmatpush1.bf16.msra.mxu0 %v821
  %1340 = vmatprep.subr.bf16.mxu0 %v830
  %1341 = vmatpush1.bf16.msra.mxu0 %v829
  %1342 = vmatprep.subr.bf16.mxu0 %v838
  %1343 = vmatpush1.bf16.msra.mxu0 %v837
  %1344 = vmatprep.subr.bf16.mxu0 %v846
  %1345 = vmatpush1.bf16.msra.mxu0 %v845
  %1346 = vmatprep.mubr.bf16.mxu0 %v270
  %1347 = vmatmul.mubr.bf16.gmra.mrb[0].mxu0 %v269
  %v1348 = vpop.f32.mrb[0].mxu0
  %v1349 = vadd.f32 %v192, %v1348
  %v1350 = vpop.f32.mrb[0].mxu0
  %v1351 = vadd.f32 %v192, %v1350
  %v1352 = vpop.f32.mrb[0].mxu0
  %v1353 = vadd.f32 %v197, %v1352
  %v1354 = vpop.f32.mrb[0].mxu0
  %v1355 = vadd.f32 %v197, %v1354
  %1356 = vmatprep.mubr.bf16.mxu0 %v273
  %1357 = vmatmul.mubr.bf16.gmra.mrb[0].mxu0 %v272
  %v1358 = vpop.f32.mrb[0].mxu0
  %v1359 = vadd.f32 %v202, %v1358
  %v1360 = vpop.f32.mrb[0].mxu0
  %v1361 = vadd.f32 %v202, %v1360
  %v1362 = vpop.f32.mrb[0].mxu0
  %v1363 = vadd.f32 %v207, %v1362
  %v1364 = vpop.f32.mrb[0].mxu0
  %v1365 = vadd.f32 %v207, %v1364
  %1366 = vmatprep.mubr.bf16.mxu0 %v276
  %1367 = vmatmul.mubr.bf16.gmra.mrb[0].mxu0 %v275
  %v1368 = vpop.f32.mrb[0].mxu0
  %v1369 = vadd.f32 %v212, %v1368
  %v1370 = vpop.f32.mrb[0].mxu0
  %v1371 = vadd.f32 %v212, %v1370
  %v1372 = vpop.f32.mrb[0].mxu0
  %v1373 = vadd.f32 %v217, %v1372
  %v1374 = vpop.f32.mrb[0].mxu0
  %v1375 = vadd.f32 %v217, %v1374
  %1376 = vmatprep.mubr.bf16.mxu0 %v279
  %1377 = vmatmul.mubr.bf16.gmra.mrb[0].mxu0 %v278
  %v1378 = vpop.f32.mrb[0].mxu0
  %v1379 = vadd.f32 %v222, %v1378
  %v1380 = vpop.f32.mrb[0].mxu0
  %v1381 = vadd.f32 %v222, %v1380
  %v1382 = vpop.f32.mrb[0].mxu0
  %v1383 = vadd.f32 %v227, %v1382
  %v1384 = vpop.f32.mrb[0].mxu0
  %v1385 = vadd.f32 %v227, %v1384
  %1386 = vdwg.mxu0
  %1387 = vmatprep.subr.bf16.mxu0 %v854
  %1388 = vmatpush1.bf16.msra.mxu0 %v853
  %1389 = vmatprep.subr.bf16.mxu0 %v862
  %1390 = vmatpush1.bf16.msra.mxu0 %v861
  %1391 = vmatprep.subr.bf16.mxu0 0
  %1392 = vmatpush1.bf16.msra.mxu0 0
  %1393 = vmatprep.subr.bf16.mxu0 0
  %1394 = vmatpush1.bf16.msra.mxu0 0
  %1395 = vmatprep.subr.bf16.mxu0 0
  %1396 = vmatpush1.bf16.msra.mxu0 0
  %1397 = vmatprep.subr.bf16.mxu0 0
  %1398 = vmatpush1.bf16.msra.mxu0 0
  %1399 = vmatprep.subr.bf16.mxu0 0
  %1400 = vmatpush1.bf16.msra.mxu0 0
  %1401 = vmatprep.subr.bf16.mxu0 0
  %1402 = vmatpush1.bf16.msra.mxu0 0
  %1403 = vmatprep.subr.bf16.mxu0 0
  %1404 = vmatpush1.bf16.msra.mxu0 0
  %1405 = vmatprep.subr.bf16.mxu0 0
  %1406 = vmatpush1.bf16.msra.mxu0 0
  %1407 = vmatprep.subr.bf16.mxu0 0
  %1408 = vmatpush1.bf16.msra.mxu0 0
  %1409 = vmatprep.subr.bf16.mxu0 0
  %1410 = vmatpush1.bf16.msra.mxu0 0
  %1411 = vmatprep.subr.bf16.mxu0 0
  %1412 = vmatpush1.bf16.msra.mxu0 0
  %1413 = vmatprep.subr.bf16.mxu0 0
  %1414 = vmatpush1.bf16.msra.mxu0 0
  %1415 = vmatprep.subr.bf16.mxu0 0
  %1416 = vmatpush1.bf16.msra.mxu0 0
  %1417 = vmatprep.subr.bf16.mxu0 0
  %1418 = vmatpush1.bf16.msra.mxu0 0
  %1419 = vmatprep.mubr.bf16.mxu0 0
  %1420 = vmatmul.mubr.bf16.gmra.mrb[0].mxu0 %v1011
  %v1421 = vpop.f32.mrb[0].mxu0
  %v1422 = vadd.f32 %v1349, %v1421
  %v1423 = vpop.f32.mrb[0].mxu0
  %v1424 = vadd.f32 %v1351, %v1423
  %v1425 = vpop.f32.mrb[0].mxu0
  %v1426 = vadd.f32 %v1353, %v1425
  %v1427 = vpop.f32.mrb[0].mxu0
  %v1428 = vadd.f32 %v1355, %v1427
  %1429 = vmatprep.mubr.bf16.mxu0 0
  %1430 = vmatmul.mubr.bf16.gmra.mrb[0].mxu0 %v1014
  %v1431 = vpop.f32.mrb[0].mxu0
  %v1432 = vadd.f32 %v1359, %v1431
  %v1433 = vpop.f32.mrb[0].mxu0
  %v1434 = vadd.f32 %v1361, %v1433
  %v1435 = vpop.f32.mrb[0].mxu0
  %v1436 = vadd.f32 %v1363, %v1435
  %v1437 = vpop.f32.mrb[0].mxu0
  %v1438 = vadd.f32 %v1365, %v1437
  %1439 = vmatprep.mubr.bf16.mxu0 0
  %1440 = vmatmul.mubr.bf16.gmra.mrb[0].mxu0 %v1017
  %v1441 = vpop.f32.mrb[0].mxu0
  %v1442 = vadd.f32 %v1369, %v1441
  %v1443 = vpop.f32.mrb[0].mxu0
  %v1444 = vadd.f32 %v1371, %v1443
  %v1445 = vpop.f32.mrb[0].mxu0
  %v1446 = vadd.f32 %v1373, %v1445
  %v1447 = vpop.f32.mrb[0].mxu0
  %v1448 = vadd.f32 %v1375, %v1447
  %1449 = vmatprep.mubr.bf16.mxu0 0
  %1450 = vmatmul.mubr.bf16.gmra.mrb[0].mxu0 %v1020
  %v1451 = vpop.f32.mrb[0].mxu0
  %v1452 = vadd.f32 %v1379, %v1451
  %v1453 = vpop.f32.mrb[0].mxu0
  %v1454 = vadd.f32 %v1381, %v1453
  %v1455 = vpop.f32.mrb[0].mxu0
  %v1456 = vadd.f32 %v1383, %v1455
  %v1457 = vpop.f32.mrb[0].mxu0
  %v1458 = vadd.f32 %v1385, %v1457
  %1459 = vdwg.mxu0
  %1460 = vmatprep.subr.bf16.mxu0 %v728
  %1461 = vmatpush1.bf16.msra.mxu0 %v727
  %1462 = vmatprep.subr.bf16.mxu0 %v736
  %1463 = vmatpush1.bf16.msra.mxu0 %v735
  %1464 = vmatprep.subr.bf16.mxu0 %v744
  %1465 = vmatpush1.bf16.msra.mxu0 %v743
  %1466 = vmatprep.subr.bf16.mxu0 %v752
  %1467 = vmatpush1.bf16.msra.mxu0 %v751
  %1468 = vmatprep.subr.bf16.mxu0 %v760
  %1469 = vmatpush1.bf16.msra.mxu0 %v759
  %1470 = vmatprep.subr.bf16.mxu0 %v768
  %1471 = vmatpush1.bf16.msra.mxu0 %v767
  %1472 = vmatprep.subr.bf16.mxu0 %v776
  %1473 = vmatpush1.bf16.msra.mxu0 %v775
  %1474 = vmatprep.subr.bf16.mxu0 %v784
  %1475 = vmatpush1.bf16.msra.mxu0 %v783
  %1476 = vmatprep.subr.bf16.mxu0 %v792
  %1477 = vmatpush1.bf16.msra.mxu0 %v791
  %1478 = vmatprep.subr.bf16.mxu0 %v800
  %1479 = vmatpush1.bf16.msra.mxu0 %v799
  %1480 = vmatprep.subr.bf16.mxu0 %v808
  %1481 = vmatpush1.bf16.msra.mxu0 %v807
  %1482 = vmatprep.subr.bf16.mxu0 %v816
  %1483 = vmatpush1.bf16.msra.mxu0 %v815
  %1484 = vmatprep.subr.bf16.mxu0 %v824
  %1485 = vmatpush1.bf16.msra.mxu0 %v823
  %1486 = vmatprep.subr.bf16.mxu0 %v832
  %1487 = vmatpush1.bf16.msra.mxu0 %v831
  %1488 = vmatprep.subr.bf16.mxu0 %v840
  %1489 = vmatpush1.bf16.msra.mxu0 %v839
  %1490 = vmatprep.subr.bf16.mxu0 %v848
  %1491 = vmatpush1.bf16.msra.mxu0 %v847
  %1492 = vmatprep.mubr.bf16.mxu0 %v270
  %1493 = vmatmul.mubr.bf16.gmra.mrb[0].mxu0 %v269
  %v1494 = vpop.f32.mrb[0].mxu0
  %v1495 = vadd.f32 %v192, %v1494
  %v1496 = vpop.f32.mrb[0].mxu0
  %v1497 = vadd.f32 %v192, %v1496
  %v1498 = vpop.f32.mrb[0].mxu0
  %v1499 = vadd.f32 %v197, %v1498
  %v1500 = vpop.f32.mrb[0].mxu0
  %v1501 = vadd.f32 %v197, %v1500
  %1502 = vmatprep.mubr.bf16.mxu0 %v273
  %1503 = vmatmul.mubr.bf16.gmra.mrb[0].mxu0 %v272
  %v1504 = vpop.f32.mrb[0].mxu0
  %v1505 = vadd.f32 %v202, %v1504
  %v1506 = vpop.f32.mrb[0].mxu0
  %v1507 = vadd.f32 %v202, %v1506
  %v1508 = vpop.f32.mrb[0].mxu0
  %v1509 = vadd.f32 %v207, %v1508
  %v1510 = vpop.f32.mrb[0].mxu0
  %v1511 = vadd.f32 %v207, %v1510
  %1512 = vmatprep.mubr.bf16.mxu0 %v276
  %1513 = vmatmul.mubr.bf16.gmra.mrb[0].mxu0 %v275
  %v1514 = vpop.f32.mrb[0].mxu0
  %v1515 = vadd.f32 %v212, %v1514
  %v1516 = vpop.f32.mrb[0].mxu0
  %v1517 = vadd.f32 %v212, %v1516
  %v1518 = vpop.f32.mrb[0].mxu0
  %v1519 = vadd.f32 %v217, %v1518
  %v1520 = vpop.f32.mrb[0].mxu0
  %v1521 = vadd.f32 %v217, %v1520
  %1522 = vmatprep.mubr.bf16.mxu0 %v279
  %1523 = vmatmul.mubr.bf16.gmra.mrb[0].mxu0 %v278
  %v1524 = vpop.f32.mrb[0].mxu0
  %v1525 = vadd.f32 %v222, %v1524
  %v1526 = vpop.f32.mrb[0].mxu0
  %v1527 = vadd.f32 %v222, %v1526
  %v1528 = vpop.f32.mrb[0].mxu0
  %v1529 = vadd.f32 %v227, %v1528
  %v1530 = vpop.f32.mrb[0].mxu0
  %v1531 = vadd.f32 %v227, %v1530
  %1532 = vdwg.mxu0
  %1533 = vmatprep.subr.bf16.mxu0 %v856
  %1534 = vmatpush1.bf16.msra.mxu0 %v855
  %1535 = vmatprep.subr.bf16.mxu0 %v864
  %1536 = vmatpush1.bf16.msra.mxu0 %v863
  %1537 = vmatprep.subr.bf16.mxu0 0
  %1538 = vmatpush1.bf16.msra.mxu0 0
  %1539 = vmatprep.subr.bf16.mxu0 0
  %1540 = vmatpush1.bf16.msra.mxu0 0
  %1541 = vmatprep.subr.bf16.mxu0 0
  %1542 = vmatpush1.bf16.msra.mxu0 0
  %1543 = vmatprep.subr.bf16.mxu0 0
  %1544 = vmatpush1.bf16.msra.mxu0 0
  %1545 = vmatprep.subr.bf16.mxu0 0
  %1546 = vmatpush1.bf16.msra.mxu0 0
  %1547 = vmatprep.subr.bf16.mxu0 0
  %1548 = vmatpush1.bf16.msra.mxu0 0
  %1549 = vmatprep.subr.bf16.mxu0 0
  %1550 = vmatpush1.bf16.msra.mxu0 0
  %1551 = vmatprep.subr.bf16.mxu0 0
  %1552 = vmatpush1.bf16.msra.mxu0 0
  %1553 = vmatprep.subr.bf16.mxu0 0
  %1554 = vmatpush1.bf16.msra.mxu0 0
  %1555 = vmatprep.subr.bf16.mxu0 0
  %1556 = vmatpush1.bf16.msra.mxu0 0
  %1557 = vmatprep.subr.bf16.mxu0 0
  %1558 = vmatpush1.bf16.msra.mxu0 0
  %1559 = vmatprep.subr.bf16.mxu0 0
  %1560 = vmatpush1.bf16.msra.mxu0 0
  %1561 = vmatprep.subr.bf16.mxu0 0
  %1562 = vmatpush1.bf16.msra.mxu0 0
  %1563 = vmatprep.subr.bf16.mxu0 0
  %1564 = vmatpush1.bf16.msra.mxu0 0
  %1565 = vmatprep.mubr.bf16.mxu0 0
  %1566 = vmatmul.mubr.bf16.gmra.mrb[0].mxu0 %v1011
  %v1567 = vpop.f32.mrb[0].mxu0
  %v1568 = vadd.f32 %v1495, %v1567
  %v1569 = vpop.f32.mrb[0].mxu0
  %v1570 = vadd.f32 %v1497, %v1569
  %v1571 = vpop.f32.mrb[0].mxu0
  %v1572 = vadd.f32 %v1499, %v1571
  %v1573 = vpop.f32.mrb[0].mxu0
  %v1574 = vadd.f32 %v1501, %v1573
  %1575 = vmatprep.mubr.bf16.mxu0 0
  %1576 = vmatmul.mubr.bf16.gmra.mrb[0].mxu0 %v1014
  %v1577 = vpop.f32.mrb[0].mxu0
  %v1578 = vadd.f32 %v1505, %v1577
  %v1579 = vpop.f32.mrb[0].mxu0
  %v1580 = vadd.f32 %v1507, %v1579
  %v1581 = vpop.f32.mrb[0].mxu0
  %v1582 = vadd.f32 %v1509, %v1581
  %v1583 = vpop.f32.mrb[0].mxu0
  %v1584 = vadd.f32 %v1511, %v1583
  %1585 = vmatprep.mubr.bf16.mxu0 0
  %1586 = vmatmul.mubr.bf16.gmra.mrb[0].mxu0 %v1017
  %v1587 = vpop.f32.mrb[0].mxu0
  %v1588 = vadd.f32 %v1515, %v1587
  %v1589 = vpop.f32.mrb[0].mxu0
  %v1590 = vadd.f32 %v1517, %v1589
  %v1591 = vpop.f32.mrb[0].mxu0
  %v1592 = vadd.f32 %v1519, %v1591
  %v1593 = vpop.f32.mrb[0].mxu0
  %v1594 = vadd.f32 %v1521, %v1593
  %1595 = vmatprep.mubr.bf16.mxu0 0
  %1596 = vmatmul.mubr.bf16.gmra.mrb[0].mxu0 %v1020
  %v1597 = vpop.f32.mrb[0].mxu0
  %v1598 = vadd.f32 %v1525, %v1597
  %v1599 = vpop.f32.mrb[0].mxu0
  %v1600 = vadd.f32 %v1527, %v1599
  %v1601 = vpop.f32.mrb[0].mxu0
  %v1602 = vadd.f32 %v1529, %v1601
  %v1603 = vpop.f32.mrb[0].mxu0
  %v1604 = vadd.f32 %v1531, %v1603
  %1605 = vdwg.mxu0
  %v1606 = vmax.f32 %v1130, 0.0
  %v1607 = vmax.f32 %v1132, 0.0
  %v1608 = vmax.f32 %v1276, 0.0
  %v1609 = vmax.f32 %v1278, 0.0
  %v1610 = vmax.f32 %v1422, 0.0
  %v1611 = vmax.f32 %v1424, 0.0
  %v1612 = vmax.f32 %v1568, 0.0
  %v1613 = vmax.f32 %v1570, 0.0
  %v1614 = vmax.f32 %v1134, 0.0
  %v1615 = vmax.f32 %v1136, 0.0
  %v1616 = vmax.f32 %v1280, 0.0
  %v1617 = vmax.f32 %v1282, 0.0
  %v1618 = vmax.f32 %v1426, 0.0
  %v1619 = vmax.f32 %v1428, 0.0
  %v1620 = vmax.f32 %v1572, 0.0
  %v1621 = vmax.f32 %v1574, 0.0
  %v1622 = vmax.f32 %v1140, 0.0
  %v1623 = vmax.f32 %v1142, 0.0
  %v1624 = vmax.f32 %v1286, 0.0
  %v1625 = vmax.f32 %v1288, 0.0
  %v1626 = vmax.f32 %v1432, 0.0
  %v1627 = vmax.f32 %v1434, 0.0
  %v1628 = vmax.f32 %v1578, 0.0
  %v1629 = vmax.f32 %v1580, 0.0
  %v1630 = vmax.f32 %v1144, 0.0
  %v1631 = vmax.f32 %v1146, 0.0
  %v1632 = vmax.f32 %v1290, 0.0
  %v1633 = vmax.f32 %v1292, 0.0
  %v1634 = vmax.f32 %v1436, 0.0
  %v1635 = vmax.f32 %v1438, 0.0
  %v1636 = vmax.f32 %v1582, 0.0
  %v1637 = vmax.f32 %v1584, 0.0
  %v1638 = vmax.f32 %v1150, 0.0
  %v1639 = vmax.f32 %v1152, 0.0
  %v1640 = vmax.f32 %v1296, 0.0
  %v1641 = vmax.f32 %v1298, 0.0
  %v1642 = vmax.f32 %v1442, 0.0
  %v1643 = vmax.f32 %v1444, 0.0
  %v1644 = vmax.f32 %v1588, 0.0
  %v1645 = vmax.f32 %v1590, 0.0
  %v1646 = vmax.f32 %v1154, 0.0
  %v1647 = vmax.f32 %v1156, 0.0
  %v1648 = vmax.f32 %v1300, 0.0
  %v1649 = vmax.f32 %v1302, 0.0
  %v1650 = vmax.f32 %v1446, 0.0
  %v1651 = vmax.f32 %v1448, 0.0
  %v1652 = vmax.f32 %v1592, 0.0
  %v1653 = vmax.f32 %v1594, 0.0
  %v1654 = vmax.f32 %v1160, 0.0
  %v1655 = vmax.f32 %v1162, 0.0
  %v1656 = vmax.f32 %v1306, 0.0
  %v1657 = vmax.f32 %v1308, 0.0
  %v1658 = vmax.f32 %v1452, 0.0
  %v1659 = vmax.f32 %v1454, 0.0
  %v1660 = vmax.f32 %v1598, 0.0
  %v1661 = vmax.f32 %v1600, 0.0
  %v1662 = vmax.f32 %v1164, 0.0
  %v1663 = vmax.f32 %v1166, 0.0
  %v1664 = vmax.f32 %v1310, 0.0
  %v1665 = vmax.f32 %v1312, 0.0
  %v1666 = vmax.f32 %v1456, 0.0
  %v1667 = vmax.f32 %v1458, 0.0
  %v1668 = vmax.f32 %v1602, 0.0
  %v1669 = vmax.f32 %v1604, 0.0
  %v1670 = vld [vmem:[%s3] sm:$0xff]
  %v1671 = vld [vmem:[%s3 + $0x8] sm:$0xff]
  %v1672 = vld [vmem:[%s3 + $0x10] sm:$0xff]
  %v1673 = vld [vmem:[%s3 + $0x18] sm:$0xff]
  %v1674 = vld [vmem:[%s3 + $0x20] sm:$0xff]
  %v1675 = vld [vmem:[%s3 + $0x28] sm:$0xff]
  %v1676 = vld [vmem:[%s3 + $0x30] sm:$0xff]
  %v1677 = vld [vmem:[%s3 + $0x38] sm:$0xff]
  %1679 = vset.pattern.permute.xlu0 0
  %1680 = vperm.xlu0 %1679, %v1670
  %v1681 = vpop.permute.xlu0 %1680
  %1684 = vset.pattern.permute.xlu0 0
  %1685 = vperm.xlu0 %1684, %v1671
  %v1686 = vpop.permute.xlu0 %1685
  %1689 = vset.pattern.permute.xlu0 0
  %1690 = vperm.xlu0 %1689, %v1672
  %v1691 = vpop.permute.xlu0 %1690
  %1694 = vset.pattern.permute.xlu0 0
  %1695 = vperm.xlu0 %1694, %v1673
  %v1696 = vpop.permute.xlu0 %1695
  %1699 = vset.pattern.permute.xlu0 0
  %1700 = vperm.xlu0 %1699, %v1674
  %v1701 = vpop.permute.xlu0 %1700
  %1704 = vset.pattern.permute.xlu0 0
  %1705 = vperm.xlu0 %1704, %v1675
  %v1706 = vpop.permute.xlu0 %1705
  %1709 = vset.pattern.permute.xlu0 0
  %1710 = vperm.xlu0 %1709, %v1676
  %v1711 = vpop.permute.xlu0 %1710
  %1714 = vset.pattern.permute.xlu0 0
  %1715 = vperm.xlu0 %1714, %v1677
  %v1716 = vpop.permute.xlu0 %1715
  %v1718 = vmul.f32 %v1606, %v1681
  %v1719 = vmul.f32 %v1607, %v1681
  %v1720 = vmul.f32 %v1608, %v1681
  %v1721 = vmul.f32 %v1609, %v1681
  %v1722 = vmul.f32 %v1610, %v1681
  %v1723 = vmul.f32 %v1611, %v1681
  %v1724 = vmul.f32 %v1612, %v1681
  %v1725 = vmul.f32 %v1613, %v1681
  %v1726 = vmul.f32 %v1614, %v1686
  %v1727 = vmul.f32 %v1615, %v1686
  %v1728 = vmul.f32 %v1616, %v1686
  %v1729 = vmul.f32 %v1617, %v1686
  %v1730 = vmul.f32 %v1618, %v1686
  %v1731 = vmul.f32 %v1619, %v1686
  %v1732 = vmul.f32 %v1620, %v1686
  %v1733 = vmul.f32 %v1621, %v1686
  %v1734 = vmul.f32 %v1622, %v1691
  %v1735 = vmul.f32 %v1623, %v1691
  %v1736 = vmul.f32 %v1624, %v1691
  %v1737 = vmul.f32 %v1625, %v1691
  %v1738 = vmul.f32 %v1626, %v1691
  %v1739 = vmul.f32 %v1627, %v1691
  %v1740 = vmul.f32 %v1628, %v1691
  %v1741 = vmul.f32 %v1629, %v1691
  %v1742 = vmul.f32 %v1630, %v1696
  %v1743 = vmul.f32 %v1631, %v1696
  %v1744 = vmul.f32 %v1632, %v1696
  %v1745 = vmul.f32 %v1633, %v1696
  %v1746 = vmul.f32 %v1634, %v1696
  %v1747 = vmul.f32 %v1635, %v1696
  %v1748 = vmul.f32 %v1636, %v1696
  %v1749 = vmul.f32 %v1637, %v1696
  %v1750 = vmul.f32 %v1638, %v1701
  %v1751 = vmul.f32 %v1639, %v1701
  %v1752 = vmul.f32 %v1640, %v1701
  %v1753 = vmul.f32 %v1641, %v1701
  %v1754 = vmul.f32 %v1642, %v1701
  %v1755 = vmul.f32 %v1643, %v1701
  %v1756 = vmul.f32 %v1644, %v1701
  %v1757 = vmul.f32 %v1645, %v1701
  %v1758 = vmul.f32 %v1646, %v1706
  %v1759 = vmul.f32 %v1647, %v1706
  %v1760 = vmul.f32 %v1648, %v1706
  %v1761 = vmul.f32 %v1649, %v1706
  %v1762 = vmul.f32 %v1650, %v1706
  %v1763 = vmul.f32 %v1651, %v1706
  %v1764 = vmul.f32 %v1652, %v1706
  %v1765 = vmul.f32 %v1653, %v1706
  %v1766 = vmul.f32 %v1654, %v1711
  %v1767 = vmul.f32 %v1655, %v1711
  %v1768 = vmul.f32 %v1656, %v1711
  %v1769 = vmul.f32 %v1657, %v1711
  %v1770 = vmul.f32 %v1658, %v1711
  %v1771 = vmul.f32 %v1659, %v1711
  %v1772 = vmul.f32 %v1660, %v1711
  %v1773 = vmul.f32 %v1661, %v1711
  %v1774 = vmul.f32 %v1662, %v1716
  %v1775 = vmul.f32 %v1663, %v1716
  %v1776 = vmul.f32 %v1664, %v1716
  %v1777 = vmul.f32 %v1665, %v1716
  %v1778 = vmul.f32 %v1666, %v1716
  %v1779 = vmul.f32 %v1667, %v1716
  %v1780 = vmul.f32 %v1668, %v1716
  %v1781 = vmul.f32 %v1669, %v1716
  %v1782 = vld [vmem:[%s4] sm:$0xff]
  %v1783 = vld [vmem:[%s4 + $0x8] sm:$0xff]
  %v1784 = vld [vmem:[%s4 + $0x10] sm:$0xff]
  %v1785 = vld [vmem:[%s4 + $0x18] sm:$0xff]
  %v1786 = vld [vmem:[%s4 + $0x20] sm:$0xff]
  %v1787 = vld [vmem:[%s4 + $0x28] sm:$0xff]
  %v1788 = vld [vmem:[%s4 + $0x30] sm:$0xff]
  %v1789 = vld [vmem:[%s4 + $0x38] sm:$0xff]
  %1791 = vset.pattern.permute.xlu0 0
  %1792 = vperm.xlu0 %1791, %v1782
  %v1793 = vpop.permute.xlu0 %1792
  %1796 = vset.pattern.permute.xlu0 0
  %1797 = vperm.xlu0 %1796, %v1783
  %v1798 = vpop.permute.xlu0 %1797
  %1801 = vset.pattern.permute.xlu0 0
  %1802 = vperm.xlu0 %1801, %v1784
  %v1803 = vpop.permute.xlu0 %1802
  %1806 = vset.pattern.permute.xlu0 0
  %1807 = vperm.xlu0 %1806, %v1785
  %v1808 = vpop.permute.xlu0 %1807
  %1811 = vset.pattern.permute.xlu0 0
  %1812 = vperm.xlu0 %1811, %v1786
  %v1813 = vpop.permute.xlu0 %1812
  %1816 = vset.pattern.permute.xlu0 0
  %1817 = vperm.xlu0 %1816, %v1787
  %v1818 = vpop.permute.xlu0 %1817
  %1821 = vset.pattern.permute.xlu0 0
  %1822 = vperm.xlu0 %1821, %v1788
  %v1823 = vpop.permute.xlu0 %1822
  %1826 = vset.pattern.permute.xlu0 0
  %1827 = vperm.xlu0 %1826, %v1789
  %v1828 = vpop.permute.xlu0 %1827
  %v1830 = vadd.f32 %v1718, %v1793
  %v1831 = vadd.f32 %v1719, %v1793
  %v1832 = vadd.f32 %v1720, %v1793
  %v1833 = vadd.f32 %v1721, %v1793
  %v1834 = vadd.f32 %v1722, %v1793
  %v1835 = vadd.f32 %v1723, %v1793
  %v1836 = vadd.f32 %v1724, %v1793
  %v1837 = vadd.f32 %v1725, %v1793
  %v1838 = vadd.f32 %v1726, %v1798
  %v1839 = vadd.f32 %v1727, %v1798
  %v1840 = vadd.f32 %v1728, %v1798
  %v1841 = vadd.f32 %v1729, %v1798
  %v1842 = vadd.f32 %v1730, %v1798
  %v1843 = vadd.f32 %v1731, %v1798
  %v1844 = vadd.f32 %v1732, %v1798
  %v1845 = vadd.f32 %v1733, %v1798
  %v1846 = vadd.f32 %v1734, %v1803
  %v1847 = vadd.f32 %v1735, %v1803
  %v1848 = vadd.f32 %v1736, %v1803
  %v1849 = vadd.f32 %v1737, %v1803
  %v1850 = vadd.f32 %v1738, %v1803
  %v1851 = vadd.f32 %v1739, %v1803
  %v1852 = vadd.f32 %v1740, %v1803
  %v1853 = vadd.f32 %v1741, %v1803
  %v1854 = vadd.f32 %v1742, %v1808
  %v1855 = vadd.f32 %v1743, %v1808
  %v1856 = vadd.f32 %v1744, %v1808
  %v1857 = vadd.f32 %v1745, %v1808
  %v1858 = vadd.f32 %v1746, %v1808
  %v1859 = vadd.f32 %v1747, %v1808
  %v1860 = vadd.f32 %v1748, %v1808
  %v1861 = vadd.f32 %v1749, %v1808
  %v1862 = vadd.f32 %v1750, %v1813
  %v1863 = vadd.f32 %v1751, %v1813
  %v1864 = vadd.f32 %v1752, %v1813
  %v1865 = vadd.f32 %v1753, %v1813
  %v1866 = vadd.f32 %v1754, %v1813
  %v1867 = vadd.f32 %v1755, %v1813
  %v1868 = vadd.f32 %v1756, %v1813
  %v1869 = vadd.f32 %v1757, %v1813
  %v1870 = vadd.f32 %v1758, %v1818
  %v1871 = vadd.f32 %v1759, %v1818
  %v1872 = vadd.f32 %v1760, %v1818
  %v1873 = vadd.f32 %v1761, %v1818
  %v1874 = vadd.f32 %v1762, %v1818
  %v1875 = vadd.f32 %v1763, %v1818
  %v1876 = vadd.f32 %v1764, %v1818
  %v1877 = vadd.f32 %v1765, %v1818
  %v1878 = vadd.f32 %v1766, %v1823
  %v1879 = vadd.f32 %v1767, %v1823
  %v1880 = vadd.f32 %v1768, %v1823
  %v1881 = vadd.f32 %v1769, %v1823
  %v1882 = vadd.f32 %v1770, %v1823
  %v1883 = vadd.f32 %v1771, %v1823
  %v1884 = vadd.f32 %v1772, %v1823
  %v1885 = vadd.f32 %v1773, %v1823
  %v1886 = vadd.f32 %v1774, %v1828
  %v1887 = vadd.f32 %v1775, %v1828
  %v1888 = vadd.f32 %v1776, %v1828
  %v1889 = vadd.f32 %v1777, %v1828
  %v1890 = vadd.f32 %v1778, %v1828
  %v1891 = vadd.f32 %v1779, %v1828
  %v1892 = vadd.f32 %v1780, %v1828
  %v1893 = vadd.f32 %v1781, %v1828
  %v1894 = vmax.f32 %v1830, %v1831
  %v1895 = vmax.f32 %v1838, %v1839
  %v1896 = vmax.f32 %v1846, %v1847
  %v1897 = vmax.f32 %v1854, %v1855
  %v1898 = vmax.f32 %v1862, %v1863
  %v1899 = vmax.f32 %v1870, %v1871
  %v1900 = vmax.f32 %v1878, %v1879
  %v1901 = vmax.f32 %v1886, %v1887
  %v1902 = vmax.f32 %v1832, %v1833
  %v1903 = vmax.f32 %v1840, %v1841
  %v1904 = vmax.f32 %v1848, %v1849
  %v1905 = vmax.f32 %v1856, %v1857
  %v1906 = vmax.f32 %v1864, %v1865
  %v1907 = vmax.f32 %v1872, %v1873
  %v1908 = vmax.f32 %v1880, %v1881
  %v1909 = vmax.f32 %v1888, %v1889
  %v1910 = vmax.f32 %v1894, %v1902
  %v1911 = vmax.f32 %v1895, %v1903
  %v1912 = vmax.f32 %v1896, %v1904
  %v1913 = vmax.f32 %v1897, %v1905
  %v1914 = vmax.f32 %v1898, %v1906
  %v1915 = vmax.f32 %v1899, %v1907
  %v1916 = vmax.f32 %v1900, %v1908
  %v1917 = vmax.f32 %v1901, %v1909
  %v1918 = vpack.c.bf16 %v1911, %v1910
  %v1919 = vpack.c.bf16 %v1913, %v1912
  %v1920 = vpack.c.bf16 %v1915, %v1914
  %v1921 = vpack.c.bf16 %v1917, %v1916
  %v1926 = vunpack.c.l.b16 %v1918
  %v1927 = vunpack.c.h.b16 %v1918
  %v1928 = vunpack.c.l.b16 %v1919
  %v1929 = vunpack.c.h.b16 %v1919
  %v1930 = vunpack.c.l.b16 %v1920
  %v1931 = vunpack.c.h.b16 %v1920
  %v1932 = vunpack.c.l.b16 %v1921
  %v1933 = vunpack.c.h.b16 %v1921
  %v1934 = vpack.c.b16 %v1926, %v1926
  %v1935 = vpack.c.b16 %v1927, %v1927
  %v1936 = vpack.c.b16 %v1928, %v1928
  %v1937 = vpack.c.b16 %v1929, %v1929
  %v1938 = vpack.c.b16 %v1930, %v1930
  %v1939 = vpack.c.b16 %v1931, %v1931
  %v1940 = vpack.c.b16 %v1932, %v1932
  %v1941 = vpack.c.b16 %v1933, %v1933
  %1950 = vst [vmem:[%s5] sm:$0xf] %v1934
  %1951 = vst [vmem:[%s5 + $0x4] sm:$0xf] %v1935
  %1952 = vst [vmem:[%s5 + $0x8] sm:$0xf] %v1936
  %1953 = vst [vmem:[%s5 + $0xc] sm:$0xf] %v1937
  %1954 = vst [vmem:[%s5 + $0x10] sm:$0xf] %v1938
  %1955 = vst [vmem:[%s5 + $0x14] sm:$0xf] %v1939
  %1956 = vst [vmem:[%s5 + $0x18] sm:$0xf] %v1940
  %1957 = vst [vmem:[%s5 + $0x1c] sm:$0xf] %v1941
  %v1958 = vmax.f32 %v1834, %v1835
  %v1959 = vmax.f32 %v1842, %v1843
  %v1960 = vmax.f32 %v1850, %v1851
  %v1961 = vmax.f32 %v1858, %v1859
  %v1962 = vmax.f32 %v1866, %v1867
  %v1963 = vmax.f32 %v1874, %v1875
  %v1964 = vmax.f32 %v1882, %v1883
  %v1965 = vmax.f32 %v1890, %v1891
  %v1966 = vmax.f32 %v1836, %v1837
  %v1967 = vmax.f32 %v1844, %v1845
  %v1968 = vmax.f32 %v1852, %v1853
  %v1969 = vmax.f32 %v1860, %v1861
  %v1970 = vmax.f32 %v1868, %v1869
  %v1971 = vmax.f32 %v1876, %v1877
  %v1972 = vmax.f32 %v1884, %v1885
  %v1973 = vmax.f32 %v1892, %v1893
  %v1974 = vmax.f32 %v1958, %v1966
  %v1975 = vmax.f32 %v1959, %v1967
  %v1976 = vmax.f32 %v1960, %v1968
  %v1977 = vmax.f32 %v1961, %v1969
  %v1978 = vmax.f32 %v1962, %v1970
  %v1979 = vmax.f32 %v1963, %v1971
  %v1980 = vmax.f32 %v1964, %v1972
  %v1981 = vmax.f32 %v1965, %v1973
  %v1982 = vpack.c.bf16 %v1975, %v1974
  %v1983 = vpack.c.bf16 %v1977, %v1976
  %v1984 = vpack.c.bf16 %v1979, %v1978
  %v1985 = vpack.c.bf16 %v1981, %v1980
  %v1990 = vunpack.c.l.b16 %v1982
  %v1991 = vunpack.c.h.b16 %v1982
  %v1992 = vunpack.c.l.b16 %v1983
  %v1993 = vunpack.c.h.b16 %v1983
  %v1994 = vunpack.c.l.b16 %v1984
  %v1995 = vunpack.c.h.b16 %v1984
  %v1996 = vunpack.c.l.b16 %v1985
  %v1997 = vunpack.c.h.b16 %v1985
  %v1998 = vpack.c.b16 %v1990, %v1990
  %v1999 = vpack.c.b16 %v1991, %v1991
  %v2000 = vpack.c.b16 %v1992, %v1992
  %v2001 = vpack.c.b16 %v1993, %v1993
  %v2002 = vpack.c.b16 %v1994, %v1994
  %v2003 = vpack.c.b16 %v1995, %v1995
  %v2004 = vpack.c.b16 %v1996, %v1996
  %v2005 = vpack.c.b16 %v1997, %v1997
  %s2014 = scalar_lea.vmem %s5, 32
  %2015 = vst [vmem:[%s2014] sm:$0xf] %v1998
  %2016 = vst [vmem:[%s2014 + $0x4] sm:$0xf] %v1999
  %2017 = vst [vmem:[%s2014 + $0x8] sm:$0xf] %v2000
  %2018 = vst [vmem:[%s2014 + $0xc] sm:$0xf] %v2001
  %2019 = vst [vmem:[%s2014 + $0x10] sm:$0xf] %v2002
  %2020 = vst [vmem:[%s2014 + $0x14] sm:$0xf] %v2003
  %2021 = vst [vmem:[%s2014 + $0x18] sm:$0xf] %v2004
  %2022 = vst [vmem:[%s2014 + $0x1c] sm:$0xf] %v2005
  // Predicated region
  $region22: #{cnn_bilstm_forward.5} parent=0 // pred_check
    _
  $region23: #{cnn_bilstm_forward.5} parent=0 // pred_check_branch
    %2024 = sbr.rel (0) target = $region25
  $region24: #{cnn_bilstm_forward.5} parent=0 // pred_region
    _
  $region25: #{cnn_bilstm_forward.5} parent=0 // pred_fallthru
    _
  // Predicated region
  $region26: #{cnn_bilstm_forward.5} parent=0 // pred_check
    _
  $region27: #{cnn_bilstm_forward.5} parent=0 // pred_check_branch
    %2026 = sbr.rel (0) target = $region29
  $region28: #{cnn_bilstm_forward.5} parent=0 // pred_region
    _
  $region29: #{cnn_bilstm_forward.5} parent=0 // pred_fallthru
    _

// kernel: cnn_bilstm_forward.7
$region0: #{cnn_bilstm_forward.7}
  #allocation0 [shape = 'u32[]', space=smem, size = 0x4, offset = 0x4, fixed_abs, tag = 'smem constant byte address 0x4 - core index']
  #allocation1 [shape = 'u32[144,128]{1,0:T(1,128)}', space=vmem, size = 0x12000, scoped, tag = 'internal scratch']
  #allocation2 [shape = 'f32[8,1024]{1,0:T(8,128)}', space=vmem, size = 0x8000, scoped, tag = 'scratch operand']
  #allocation3 [shape = 'f32[1,1]{1,0:T(1,128)S(1)}', space=vmem, size = 0x200, scoped, tag = 'scoped memory for cnn_bilstm_forward.7']
  %s0 = inlined_call_operand.vmem [shape: f32[8,256], index: 0, kind: input, shape index: {}]
  %s1 = inlined_call_operand.vmem [shape: bf16[256,1024], index: 1, kind: input, shape index: {}]
  %s2 = inlined_call_operand.vmem [shape: bf16[256,1024], index: 2, kind: input, shape index: {}]
  %s3 = inlined_call_operand.vmem [shape: f32[1,1024], index: 3, kind: input, shape index: {}]
  %s4 = inlined_call_operand.vmem [shape: f32[256,256], index: 4, kind: input, shape index: {}]
  %s5 = inlined_call_operand.vmem [shape: f32[1,256], index: 5, kind: input, shape index: {}]
  %s6 = inlined_call_operand.vmem [shape: f32[1,256], index: 6, kind: input, shape index: {}]
  %s7 = inlined_call_operand.<no memory space> [shape: f32[1,1], index: 7, kind: input, shape index: {}]
  %s8 = inlined_call_operand.vmem [shape: f32[2,1], index: 8, kind: output, shape index: {}]
  %s9 = sld [smem:[#allocation0]]
  $region50: #{cnn_bilstm_forward.7} parent=0
    _
  %s11 = ssub.s32 1, %s9
  %s12 = scalar_select 0, %s11, %s9
  %v13 = vstv %s7
  %14 = vst [vmem:[#allocation3] sm:$0x1] %v13
  // Predicated region
  $region2: #{cnn_bilstm_forward.7} parent=0 // pred_check
    _
  $region3: #{cnn_bilstm_forward.7} parent=0 // pred_check_branch
    %16 = sbr.rel (0) target = $region5
  $region4: #{cnn_bilstm_forward.7} parent=0 // pred_region
    _
  $region5: #{cnn_bilstm_forward.7} parent=0 // pred_fallthru
    _
  // Predicated region
  $region6: #{cnn_bilstm_forward.7} parent=0 // pred_check
    _
  $region7: #{cnn_bilstm_forward.7} parent=0 // pred_check_branch
    %18 = sbr.rel (0) target = $region9
  $region8: #{cnn_bilstm_forward.7} parent=0 // pred_region
    _
  $region9: #{cnn_bilstm_forward.7} parent=0 // pred_fallthru
    _
  // Predicated region
  $region10: #{cnn_bilstm_forward.7} parent=0 // pred_check
    _
  $region11: #{cnn_bilstm_forward.7} parent=0 // pred_check_branch
    %20 = sbr.rel (0) target = $region13
  $region12: #{cnn_bilstm_forward.7} parent=0 // pred_region
    _
  $region13: #{cnn_bilstm_forward.7} parent=0 // pred_fallthru
    _
  // Predicated region
  $region14: #{cnn_bilstm_forward.7} parent=0 // pred_check
    _
  $region15: #{cnn_bilstm_forward.7} parent=0 // pred_check_branch
    %22 = sbr.rel (0) target = $region17
  $region16: #{cnn_bilstm_forward.7} parent=0 // pred_region
    _
  $region17: #{cnn_bilstm_forward.7} parent=0 // pred_fallthru
    _
  // Predicated region
  $region18: #{cnn_bilstm_forward.7} parent=0 // pred_check
    _
  $region19: #{cnn_bilstm_forward.7} parent=0 // pred_check_branch
    %24 = sbr.rel (0) target = $region21
  $region20: #{cnn_bilstm_forward.7} parent=0 // pred_region
    _
  $region21: #{cnn_bilstm_forward.7} parent=0 // pred_fallthru
    _
  // Predicated region
  $region22: #{cnn_bilstm_forward.7} parent=0 // pred_check
    _
  $region23: #{cnn_bilstm_forward.7} parent=0 // pred_check_branch
    %26 = sbr.rel (0) target = $region25
  $region24: #{cnn_bilstm_forward.7} parent=0 // pred_region
    _
  $region25: #{cnn_bilstm_forward.7} parent=0 // pred_fallthru
    _
  // Predicated region
  $region26: #{cnn_bilstm_forward.7} parent=0 // pred_check
    _
  $region27: #{cnn_bilstm_forward.7} parent=0 // pred_check_branch
    %28 = sbr.rel (0) target = $region29
  $region28: #{cnn_bilstm_forward.7} parent=0 // pred_region
    _
  $region29: #{cnn_bilstm_forward.7} parent=0 // pred_fallthru
    _
  // Predicated region
  $region30: #{cnn_bilstm_forward.7} parent=0 // pred_check
    _
  $region31: #{cnn_bilstm_forward.7} parent=0 // pred_check_branch
    %30 = sbr.rel (0) target = $region33
  $region32: #{cnn_bilstm_forward.7} parent=0 // pred_region
    _
  $region33: #{cnn_bilstm_forward.7} parent=0 // pred_fallthru
    _
  %p31 = scmp.eq.s32.totalorder 0, 0
  // Predicated region
  $region34: #{cnn_bilstm_forward.7} parent=0 // pred_check
    %p32 = pneg %p31
  $region35: #{cnn_bilstm_forward.7} parent=0 // pred_check_branch
    %34 = sbr.rel (%p32) target = $region37
  $region36: #{cnn_bilstm_forward.7} parent=0 // pred_region
    %v35 = vld [vmem:[%s3] sm:$0xff]
    %v37 = vlaneseq
    %v38 = vshrl.u32 %v37, 7
    %v39 = vsub.s32 0, %v38
    %v40 = vrot.slane %v35, %v39
    %v41 = vlaneseq
    %v42 = vshrl.u32 %v41, 7
    %v43 = vsub.s32 1, %v42
    %v44 = vrot.slane %v35, %v43
    %v45 = vlaneseq
    %v46 = vshrl.u32 %v45, 7
    %v47 = vsub.s32 2, %v46
    %v48 = vrot.slane %v35, %v47
    %v49 = vlaneseq
    %v50 = vshrl.u32 %v49, 7
    %v51 = vsub.s32 3, %v50
    %v52 = vrot.slane %v35, %v51
    %v53 = vlaneseq
    %v54 = vshrl.u32 %v53, 7
    %v55 = vsub.s32 4, %v54
    %v56 = vrot.slane %v35, %v55
    %v57 = vlaneseq
    %v58 = vshrl.u32 %v57, 7
    %v59 = vsub.s32 5, %v58
    %v60 = vrot.slane %v35, %v59
    %v61 = vlaneseq
    %v62 = vshrl.u32 %v61, 7
    %v63 = vsub.s32 6, %v62
    %v64 = vrot.slane %v35, %v63
    %v65 = vlaneseq
    %v66 = vshrl.u32 %v65, 7
    %v67 = vsub.s32 7, %v66
    %v68 = vrot.slane %v35, %v67
    %77 = vst [vmem:[#allocation2] sm:$0xff] %v40
    %78 = vst [vmem:[#allocation2 + $0x8] sm:$0xff] %v44
    %79 = vst [vmem:[#allocation2 + $0x10] sm:$0xff] %v48
    %80 = vst [vmem:[#allocation2 + $0x18] sm:$0xff] %v52
    %81 = vst [vmem:[#allocation2 + $0x20] sm:$0xff] %v56
    %82 = vst [vmem:[#allocation2 + $0x28] sm:$0xff] %v60
    %83 = vst [vmem:[#allocation2 + $0x30] sm:$0xff] %v64
    %84 = vst [vmem:[#allocation2 + $0x38] sm:$0xff] %v68
  $region37: #{cnn_bilstm_forward.7} parent=0 // pred_fallthru
    _
  %v85 = vld [vmem:[#allocation2] sm:$0xff]
  %v86 = vld [vmem:[#allocation2 + $0x8] sm:$0xff]
  %v87 = vld [vmem:[#allocation2 + $0x10] sm:$0xff]
  %v88 = vld [vmem:[#allocation2 + $0x18] sm:$0xff]
  %v89 = vld [vmem:[#allocation2 + $0x20] sm:$0xff]
  %v90 = vld [vmem:[#allocation2 + $0x28] sm:$0xff]
  %v91 = vld [vmem:[#allocation2 + $0x30] sm:$0xff]
  %v92 = vld [vmem:[#allocation2 + $0x38] sm:$0xff]
  %v93 = vld [vmem:[%s0] sm:$0xff]
  %v94 = vld [vmem:[%s0 + $0x8] sm:$0xff]
  %v95 = vpack.c.bf16 %v93, %v93
  %v96 = vpack.c.bf16 %v94, %v94
  %v97 = vld [vmem:[%s1] sm:$0xff]
  %v98 = vld [vmem:[%s1 + $0x8] sm:$0xff]
  %v99 = vld [vmem:[%s1 + $0x10] sm:$0xff]
  %v100 = vld [vmem:[%s1 + $0x18] sm:$0xff]
  %v101 = vld [vmem:[%s1 + $0x20] sm:$0xff]
  %v102 = vld [vmem:[%s1 + $0x28] sm:$0xff]
  %v103 = vld [vmem:[%s1 + $0x30] sm:$0xff]
  %v104 = vld [vmem:[%s1 + $0x38] sm:$0xff]
  %v105 = vld [vmem:[%s1 + $0x40] sm:$0xff]
  %v106 = vld [vmem:[%s1 + $0x48] sm:$0xff]
  %v107 = vld [vmem:[%s1 + $0x50] sm:$0xff]
  %v108 = vld [vmem:[%s1 + $0x58] sm:$0xff]
  %v109 = vld [vmem:[%s1 + $0x60] sm:$0xff]
  %v110 = vld [vmem:[%s1 + $0x68] sm:$0xff]
  %v111 = vld [vmem:[%s1 + $0x70] sm:$0xff]
  %v112 = vld [vmem:[%s1 + $0x78] sm:$0xff]
  %v113 = vld [vmem:[%s1 + $0x80] sm:$0xff]
  %v114 = vld [vmem:[%s1 + $0x88] sm:$0xff]
  %v115 = vld [vmem:[%s1 + $0x90] sm:$0xff]
  %v116 = vld [vmem:[%s1 + $0x98] sm:$0xff]
  %v117 = vld [vmem:[%s1 + $0xa0] sm:$0xff]
  %v118 = vld [vmem:[%s1 + $0xa8] sm:$0xff]
  %v119 = vld [vmem:[%s1 + $0xb0] sm:$0xff]
  %v120 = vld [vmem:[%s1 + $0xb8] sm:$0xff]
  %v121 = vld [vmem:[%s1 + $0xc0] sm:$0xff]
  %v122 = vld [vmem:[%s1 + $0xc8] sm:$0xff]
  %v123 = vld [vmem:[%s1 + $0xd0] sm:$0xff]
  %v124 = vld [vmem:[%s1 + $0xd8] sm:$0xff]
  %v125 = vld [vmem:[%s1 + $0xe0] sm:$0xff]
  %v126 = vld [vmem:[%s1 + $0xe8] sm:$0xff]
  %v127 = vld [vmem:[%s1 + $0xf0] sm:$0xff]
  %v128 = vld [vmem:[%s1 + $0xf8] sm:$0xff]
  %v129 = vld [vmem:[%s1 + $0x100] sm:$0xff]
  %v130 = vld [vmem:[%s1 + $0x108] sm:$0xff]
  %v131 = vld [vmem:[%s1 + $0x110] sm:$0xff]
  %v132 = vld [vmem:[%s1 + $0x118] sm:$0xff]
  %v133 = vld [vmem:[%s1 + $0x120] sm:$0xff]
  %v134 = vld [vmem:[%s1 + $0x128] sm:$0xff]
  %v135 = vld [vmem:[%s1 + $0x130] sm:$0xff]
  %v136 = vld [vmem:[%s1 + $0x138] sm:$0xff]
  %v137 = vld [vmem:[%s1 + $0x140] sm:$0xff]
  %v138 = vld [vmem:[%s1 + $0x148] sm:$0xff]
  %v139 = vld [vmem:[%s1 + $0x150] sm:$0xff]
  %v140 = vld [vmem:[%s1 + $0x158] sm:$0xff]
  %v141 = vld [vmem:[%s1 + $0x160] sm:$0xff]
  %v142 = vld [vmem:[%s1 + $0x168] sm:$0xff]
  %v143 = vld [vmem:[%s1 + $0x170] sm:$0xff]
  %v144 = vld [vmem:[%s1 + $0x178] sm:$0xff]
  %v145 = vld [vmem:[%s1 + $0x180] sm:$0xff]
  %v146 = vld [vmem:[%s1 + $0x188] sm:$0xff]
  %v147 = vld [vmem:[%s1 + $0x190] sm:$0xff]
  %v148 = vld [vmem:[%s1 + $0x198] sm:$0xff]
  %v149 = vld [vmem:[%s1 + $0x1a0] sm:$0xff]
  %v150 = vld [vmem:[%s1 + $0x1a8] sm:$0xff]
  %v151 = vld [vmem:[%s1 + $0x1b0] sm:$0xff]
  %v152 = vld [vmem:[%s1 + $0x1b8] sm:$0xff]
  %v153 = vld [vmem:[%s1 + $0x1c0] sm:$0xff]
  %v154 = vld [vmem:[%s1 + $0x1c8] sm:$0xff]
  %v155 = vld [vmem:[%s1 + $0x1d0] sm:$0xff]
  %v156 = vld [vmem:[%s1 + $0x1d8] sm:$0xff]
  %v157 = vld [vmem:[%s1 + $0x1e0] sm:$0xff]
  %v158 = vld [vmem:[%s1 + $0x1e8] sm:$0xff]
  %v159 = vld [vmem:[%s1 + $0x1f0] sm:$0xff]
  %v160 = vld [vmem:[%s1 + $0x1f8] sm:$0xff]
  %v161 = vld [vmem:[%s1 + $0x200] sm:$0xff]
  %v162 = vld [vmem:[%s1 + $0x208] sm:$0xff]
  %v163 = vld [vmem:[%s1 + $0x210] sm:$0xff]
  %v164 = vld [vmem:[%s1 + $0x218] sm:$0xff]
  %v165 = vld [vmem:[%s1 + $0x220] sm:$0xff]
  %v166 = vld [vmem:[%s1 + $0x228] sm:$0xff]
  %v167 = vld [vmem:[%s1 + $0x230] sm:$0xff]
  %v168 = vld [vmem:[%s1 + $0x238] sm:$0xff]
  %v169 = vld [vmem:[%s1 + $0x240] sm:$0xff]
  %v170 = vld [vmem:[%s1 + $0x248] sm:$0xff]
  %v171 = vld [vmem:[%s1 + $0x250] sm:$0xff]
  %v172 = vld [vmem:[%s1 + $0x258] sm:$0xff]
  %v173 = vld [vmem:[%s1 + $0x260] sm:$0xff]
  %v174 = vld [vmem:[%s1 + $0x268] sm:$0xff]
  %v175 = vld [vmem:[%s1 + $0x270] sm:$0xff]
  %v176 = vld [vmem:[%s1 + $0x278] sm:$0xff]
  %v177 = vld [vmem:[%s1 + $0x280] sm:$0xff]
  %v178 = vld [vmem:[%s1 + $0x288] sm:$0xff]
  %v179 = vld [vmem:[%s1 + $0x290] sm:$0xff]
  %v180 = vld [vmem:[%s1 + $0x298] sm:$0xff]
  %v181 = vld [vmem:[%s1 + $0x2a0] sm:$0xff]
  %v182 = vld [vmem:[%s1 + $0x2a8] sm:$0xff]
  %v183 = vld [vmem:[%s1 + $0x2b0] sm:$0xff]
  %v184 = vld [vmem:[%s1 + $0x2b8] sm:$0xff]
  %v185 = vld [vmem:[%s1 + $0x2c0] sm:$0xff]
  %v186 = vld [vmem:[%s1 + $0x2c8] sm:$0xff]
  %v187 = vld [vmem:[%s1 + $0x2d0] sm:$0xff]
  %v188 = vld [vmem:[%s1 + $0x2d8] sm:$0xff]
  %v189 = vld [vmem:[%s1 + $0x2e0] sm:$0xff]
  %v190 = vld [vmem:[%s1 + $0x2e8] sm:$0xff]
  %v191 = vld [vmem:[%s1 + $0x2f0] sm:$0xff]
  %v192 = vld [vmem:[%s1 + $0x2f8] sm:$0xff]
  %v193 = vld [vmem:[%s1 + $0x300] sm:$0xff]
  %v194 = vld [vmem:[%s1 + $0x308] sm:$0xff]
  %v195 = vld [vmem:[%s1 + $0x310] sm:$0xff]
  %v196 = vld [vmem:[%s1 + $0x318] sm:$0xff]
  %v197 = vld [vmem:[%s1 + $0x320] sm:$0xff]
  %v198 = vld [vmem:[%s1 + $0x328] sm:$0xff]
  %v199 = vld [vmem:[%s1 + $0x330] sm:$0xff]
  %v200 = vld [vmem:[%s1 + $0x338] sm:$0xff]
  %v201 = vld [vmem:[%s1 + $0x340] sm:$0xff]
  %v202 = vld [vmem:[%s1 + $0x348] sm:$0xff]
  %v203 = vld [vmem:[%s1 + $0x350] sm:$0xff]
  %v204 = vld [vmem:[%s1 + $0x358] sm:$0xff]
  %v205 = vld [vmem:[%s1 + $0x360] sm:$0xff]
  %v206 = vld [vmem:[%s1 + $0x368] sm:$0xff]
  %v207 = vld [vmem:[%s1 + $0x370] sm:$0xff]
  %v208 = vld [vmem:[%s1 + $0x378] sm:$0xff]
  %v209 = vld [vmem:[%s1 + $0x380] sm:$0xff]
  %v210 = vld [vmem:[%s1 + $0x388] sm:$0xff]
  %v211 = vld [vmem:[%s1 + $0x390] sm:$0xff]
  %v212 = vld [vmem:[%s1 + $0x398] sm:$0xff]
  %v213 = vld [vmem:[%s1 + $0x3a0] sm:$0xff]
  %v214 = vld [vmem:[%s1 + $0x3a8] sm:$0xff]
  %v215 = vld [vmem:[%s1 + $0x3b0] sm:$0xff]
  %v216 = vld [vmem:[%s1 + $0x3b8] sm:$0xff]
  %v217 = vld [vmem:[%s1 + $0x3c0] sm:$0xff]
  %v218 = vld [vmem:[%s1 + $0x3c8] sm:$0xff]
  %v219 = vld [vmem:[%s1 + $0x3d0] sm:$0xff]
  %v220 = vld [vmem:[%s1 + $0x3d8] sm:$0xff]
  %v221 = vld [vmem:[%s1 + $0x3e0] sm:$0xff]
  %v222 = vld [vmem:[%s1 + $0x3e8] sm:$0xff]
  %v223 = vld [vmem:[%s1 + $0x3f0] sm:$0xff]
  %v224 = vld [vmem:[%s1 + $0x3f8] sm:$0xff]
  %v353 = vunpack.c.l.b16 %v97
  %v354 = vunpack.c.h.b16 %v97
  %v355 = vunpack.c.l.b16 %v98
  %v356 = vunpack.c.h.b16 %v98
  %v357 = vunpack.c.l.b16 %v99
  %v358 = vunpack.c.h.b16 %v99
  %v359 = vunpack.c.l.b16 %v100
  %v360 = vunpack.c.h.b16 %v100
  %v361 = vunpack.c.l.b16 %v101
  %v362 = vunpack.c.h.b16 %v101
  %v363 = vunpack.c.l.b16 %v102
  %v364 = vunpack.c.h.b16 %v102
  %v365 = vunpack.c.l.b16 %v103
  %v366 = vunpack.c.h.b16 %v103
  %v367 = vunpack.c.l.b16 %v104
  %v368 = vunpack.c.h.b16 %v104
  %v369 = vunpack.c.l.b16 %v105
  %v370 = vunpack.c.h.b16 %v105
  %v371 = vunpack.c.l.b16 %v106
  %v372 = vunpack.c.h.b16 %v106
  %v373 = vunpack.c.l.b16 %v107
  %v374 = vunpack.c.h.b16 %v107
  %v375 = vunpack.c.l.b16 %v108
  %v376 = vunpack.c.h.b16 %v108
  %v377 = vunpack.c.l.b16 %v109
  %v378 = vunpack.c.h.b16 %v109
  %v379 = vunpack.c.l.b16 %v110
  %v380 = vunpack.c.h.b16 %v110
  %v381 = vunpack.c.l.b16 %v111
  %v382 = vunpack.c.h.b16 %v111
  %v383 = vunpack.c.l.b16 %v112
  %v384 = vunpack.c.h.b16 %v112
  %v385 = vunpack.c.l.b16 %v113
  %v386 = vunpack.c.h.b16 %v113
  %v387 = vunpack.c.l.b16 %v114
  %v388 = vunpack.c.h.b16 %v114
  %v389 = vunpack.c.l.b16 %v115
  %v390 = vunpack.c.h.b16 %v115
  %v391 = vunpack.c.l.b16 %v116
  %v392 = vunpack.c.h.b16 %v116
  %v393 = vunpack.c.l.b16 %v117
  %v394 = vunpack.c.h.b16 %v117
  %v395 = vunpack.c.l.b16 %v118
  %v396 = vunpack.c.h.b16 %v118
  %v397 = vunpack.c.l.b16 %v119
  %v398 = vunpack.c.h.b16 %v119
  %v399 = vunpack.c.l.b16 %v120
  %v400 = vunpack.c.h.b16 %v120
  %v401 = vunpack.c.l.b16 %v121
  %v402 = vunpack.c.h.b16 %v121
  %v403 = vunpack.c.l.b16 %v122
  %v404 = vunpack.c.h.b16 %v122
  %v405 = vunpack.c.l.b16 %v123
  %v406 = vunpack.c.h.b16 %v123
  %v407 = vunpack.c.l.b16 %v124
  %v408 = vunpack.c.h.b16 %v124
  %v409 = vunpack.c.l.b16 %v125
  %v410 = vunpack.c.h.b16 %v125
  %v411 = vunpack.c.l.b16 %v126
  %v412 = vunpack.c.h.b16 %v126
  %v413 = vunpack.c.l.b16 %v127
  %v414 = vunpack.c.h.b16 %v127
  %v415 = vunpack.c.l.b16 %v128
  %v416 = vunpack.c.h.b16 %v128
  %v417 = vunpack.c.l.b16 %v129
  %v418 = vunpack.c.h.b16 %v129
  %v419 = vunpack.c.l.b16 %v130
  %v420 = vunpack.c.h.b16 %v130
  %v421 = vunpack.c.l.b16 %v131
  %v422 = vunpack.c.h.b16 %v131
  %v423 = vunpack.c.l.b16 %v132
  %v424 = vunpack.c.h.b16 %v132
  %v425 = vunpack.c.l.b16 %v133
  %v426 = vunpack.c.h.b16 %v133
  %v427 = vunpack.c.l.b16 %v134
  %v428 = vunpack.c.h.b16 %v134
  %v429 = vunpack.c.l.b16 %v135
  %v430 = vunpack.c.h.b16 %v135
  %v431 = vunpack.c.l.b16 %v136
  %v432 = vunpack.c.h.b16 %v136
  %v433 = vunpack.c.l.b16 %v137
  %v434 = vunpack.c.h.b16 %v137
  %v435 = vunpack.c.l.b16 %v138
  %v436 = vunpack.c.h.b16 %v138
  %v437 = vunpack.c.l.b16 %v139
  %v438 = vunpack.c.h.b16 %v139
  %v439 = vunpack.c.l.b16 %v140
  %v440 = vunpack.c.h.b16 %v140
  %v441 = vunpack.c.l.b16 %v141
  %v442 = vunpack.c.h.b16 %v141
  %v443 = vunpack.c.l.b16 %v142
  %v444 = vunpack.c.h.b16 %v142
  %v445 = vunpack.c.l.b16 %v143
  %v446 = vunpack.c.h.b16 %v143
  %v447 = vunpack.c.l.b16 %v144
  %v448 = vunpack.c.h.b16 %v144
  %v449 = vunpack.c.l.b16 %v145
  %v450 = vunpack.c.h.b16 %v145
  %v451 = vunpack.c.l.b16 %v146
  %v452 = vunpack.c.h.b16 %v146
  %v453 = vunpack.c.l.b16 %v147
  %v454 = vunpack.c.h.b16 %v147
  %v455 = vunpack.c.l.b16 %v148
  %v456 = vunpack.c.h.b16 %v148
  %v457 = vunpack.c.l.b16 %v149
  %v458 = vunpack.c.h.b16 %v149
  %v459 = vunpack.c.l.b16 %v150
  %v460 = vunpack.c.h.b16 %v150
  %v461 = vunpack.c.l.b16 %v151
  %v462 = vunpack.c.h.b16 %v151
  %v463 = vunpack.c.l.b16 %v152
  %v464 = vunpack.c.h.b16 %v152
  %v465 = vunpack.c.l.b16 %v153
  %v466 = vunpack.c.h.b16 %v153
  %v467 = vunpack.c.l.b16 %v154
  %v468 = vunpack.c.h.b16 %v154
  %v469 = vunpack.c.l.b16 %v155
  %v470 = vunpack.c.h.b16 %v155
  %v471 = vunpack.c.l.b16 %v156
  %v472 = vunpack.c.h.b16 %v156
  %v473 = vunpack.c.l.b16 %v157
  %v474 = vunpack.c.h.b16 %v157
  %v475 = vunpack.c.l.b16 %v158
  %v476 = vunpack.c.h.b16 %v158
  %v477 = vunpack.c.l.b16 %v159
  %v478 = vunpack.c.h.b16 %v159
  %v479 = vunpack.c.l.b16 %v160
  %v480 = vunpack.c.h.b16 %v160
  %v481 = vunpack.c.l.b16 %v161
  %v482 = vunpack.c.h.b16 %v161
  %v483 = vunpack.c.l.b16 %v162
  %v484 = vunpack.c.h.b16 %v162
  %v485 = vunpack.c.l.b16 %v163
  %v486 = vunpack.c.h.b16 %v163
  %v487 = vunpack.c.l.b16 %v164
  %v488 = vunpack.c.h.b16 %v164
  %v489 = vunpack.c.l.b16 %v165
  %v490 = vunpack.c.h.b16 %v165
  %v491 = vunpack.c.l.b16 %v166
  %v492 = vunpack.c.h.b16 %v166
  %v493 = vunpack.c.l.b16 %v167
  %v494 = vunpack.c.h.b16 %v167
  %v495 = vunpack.c.l.b16 %v168
  %v496 = vunpack.c.h.b16 %v168
  %v497 = vunpack.c.l.b16 %v169
  %v498 = vunpack.c.h.b16 %v169
  %v499 = vunpack.c.l.b16 %v170
  %v500 = vunpack.c.h.b16 %v170
  %v501 = vunpack.c.l.b16 %v171
  %v502 = vunpack.c.h.b16 %v171
  %v503 = vunpack.c.l.b16 %v172
  %v504 = vunpack.c.h.b16 %v172
  %v505 = vunpack.c.l.b16 %v173
  %v506 = vunpack.c.h.b16 %v173
  %v507 = vunpack.c.l.b16 %v174
  %v508 = vunpack.c.h.b16 %v174
  %v509 = vunpack.c.l.b16 %v175
  %v510 = vunpack.c.h.b16 %v175
  %v511 = vunpack.c.l.b16 %v176
  %v512 = vunpack.c.h.b16 %v176
  %v513 = vunpack.c.l.b16 %v177
  %v514 = vunpack.c.h.b16 %v177
  %v515 = vunpack.c.l.b16 %v178
  %v516 = vunpack.c.h.b16 %v178
  %v517 = vunpack.c.l.b16 %v179
  %v518 = vunpack.c.h.b16 %v179
  %v519 = vunpack.c.l.b16 %v180
  %v520 = vunpack.c.h.b16 %v180
  %v521 = vunpack.c.l.b16 %v181
  %v522 = vunpack.c.h.b16 %v181
  %v523 = vunpack.c.l.b16 %v182
  %v524 = vunpack.c.h.b16 %v182
  %v525 = vunpack.c.l.b16 %v183
  %v526 = vunpack.c.h.b16 %v183
  %v527 = vunpack.c.l.b16 %v184
  %v528 = vunpack.c.h.b16 %v184
  %v529 = vunpack.c.l.b16 %v185
  %v530 = vunpack.c.h.b16 %v185
  %v531 = vunpack.c.l.b16 %v186
  %v532 = vunpack.c.h.b16 %v186
  %v533 = vunpack.c.l.b16 %v187
  %v534 = vunpack.c.h.b16 %v187
  %v535 = vunpack.c.l.b16 %v188
  %v536 = vunpack.c.h.b16 %v188
  %v537 = vunpack.c.l.b16 %v189
  %v538 = vunpack.c.h.b16 %v189
  %v539 = vunpack.c.l.b16 %v190
  %v540 = vunpack.c.h.b16 %v190
  %v541 = vunpack.c.l.b16 %v191
  %v542 = vunpack.c.h.b16 %v191
  %v543 = vunpack.c.l.b16 %v192
  %v544 = vunpack.c.h.b16 %v192
  %v545 = vunpack.c.l.b16 %v193
  %v546 = vunpack.c.h.b16 %v193
  %v547 = vunpack.c.l.b16 %v194
  %v548 = vunpack.c.h.b16 %v194
  %v549 = vunpack.c.l.b16 %v195
  %v550 = vunpack.c.h.b16 %v195
  %v551 = vunpack.c.l.b16 %v196
  %v552 = vunpack.c.h.b16 %v196
  %v553 = vunpack.c.l.b16 %v197
  %v554 = vunpack.c.h.b16 %v197
  %v555 = vunpack.c.l.b16 %v198
  %v556 = vunpack.c.h.b16 %v198
  %v557 = vunpack.c.l.b16 %v199
  %v558 = vunpack.c.h.b16 %v199
  %v559 = vunpack.c.l.b16 %v200
  %v560 = vunpack.c.h.b16 %v200
  %v561 = vunpack.c.l.b16 %v201
  %v562 = vunpack.c.h.b16 %v201
  %v563 = vunpack.c.l.b16 %v202
  %v564 = vunpack.c.h.b16 %v202
  %v565 = vunpack.c.l.b16 %v203
  %v566 = vunpack.c.h.b16 %v203
  %v567 = vunpack.c.l.b16 %v204
  %v568 = vunpack.c.h.b16 %v204
  %v569 = vunpack.c.l.b16 %v205
  %v570 = vunpack.c.h.b16 %v205
  %v571 = vunpack.c.l.b16 %v206
  %v572 = vunpack.c.h.b16 %v206
  %v573 = vunpack.c.l.b16 %v207
  %v574 = vunpack.c.h.b16 %v207
  %v575 = vunpack.c.l.b16 %v208
  %v576 = vunpack.c.h.b16 %v208
  %v577 = vunpack.c.l.b16 %v209
  %v578 = vunpack.c.h.b16 %v209
  %v579 = vunpack.c.l.b16 %v210
  %v580 = vunpack.c.h.b16 %v210
  %v581 = vunpack.c.l.b16 %v211
  %v582 = vunpack.c.h.b16 %v211
  %v583 = vunpack.c.l.b16 %v212
  %v584 = vunpack.c.h.b16 %v212
  %v585 = vunpack.c.l.b16 %v213
  %v586 = vunpack.c.h.b16 %v213
  %v587 = vunpack.c.l.b16 %v214
  %v588 = vunpack.c.h.b16 %v214
  %v589 = vunpack.c.l.b16 %v215
  %v590 = vunpack.c.h.b16 %v215
  %v591 = vunpack.c.l.b16 %v216
  %v592 = vunpack.c.h.b16 %v216
  %v593 = vunpack.c.l.b16 %v217
  %v594 = vunpack.c.h.b16 %v217
  %v595 = vunpack.c.l.b16 %v218
  %v596 = vunpack.c.h.b16 %v218
  %v597 = vunpack.c.l.b16 %v219
  %v598 = vunpack.c.h.b16 %v219
  %v599 = vunpack.c.l.b16 %v220
  %v600 = vunpack.c.h.b16 %v220
  %v601 = vunpack.c.l.b16 %v221
  %v602 = vunpack.c.h.b16 %v221
  %v603 = vunpack.c.l.b16 %v222
  %v604 = vunpack.c.h.b16 %v222
  %v605 = vunpack.c.l.b16 %v223
  %v606 = vunpack.c.h.b16 %v223
  %v607 = vunpack.c.l.b16 %v224
  %v608 = vunpack.c.h.b16 %v224
  %v609 = vpack.c.b16 %v361, %v353
  %v610 = vpack.c.b16 %v362, %v354
  %v611 = vpack.c.b16 %v363, %v355
  %v612 = vpack.c.b16 %v364, %v356
  %v613 = vpack.c.b16 %v365, %v357
  %v614 = vpack.c.b16 %v366, %v358
  %v615 = vpack.c.b16 %v367, %v359
  %v616 = vpack.c.b16 %v368, %v360
  %v617 = vpack.c.b16 %v377, %v369
  %v618 = vpack.c.b16 %v378, %v370
  %v619 = vpack.c.b16 %v379, %v371
  %v620 = vpack.c.b16 %v380, %v372
  %v621 = vpack.c.b16 %v381, %v373
  %v622 = vpack.c.b16 %v382, %v374
  %v623 = vpack.c.b16 %v383, %v375
  %v624 = vpack.c.b16 %v384, %v376
  %v625 = vpack.c.b16 %v393, %v385
  %v626 = vpack.c.b16 %v394, %v386
  %v627 = vpack.c.b16 %v395, %v387
  %v628 = vpack.c.b16 %v396, %v388
  %v629 = vpack.c.b16 %v397, %v389
  %v630 = vpack.c.b16 %v398, %v390
  %v631 = vpack.c.b16 %v399, %v391
  %v632 = vpack.c.b16 %v400, %v392
  %v633 = vpack.c.b16 %v409, %v401
  %v634 = vpack.c.b16 %v410, %v402
  %v635 = vpack.c.b16 %v411, %v403
  %v636 = vpack.c.b16 %v412, %v404
  %v637 = vpack.c.b16 %v413, %v405
  %v638 = vpack.c.b16 %v414, %v406
  %v639 = vpack.c.b16 %v415, %v407
  %v640 = vpack.c.b16 %v416, %v408
  %v641 = vpack.c.b16 %v425, %v417
  %v642 = vpack.c.b16 %v426, %v418
  %v643 = vpack.c.b16 %v427, %v419
  %v644 = vpack.c.b16 %v428, %v420
  %v645 = vpack.c.b16 %v429, %v421
  %v646 = vpack.c.b16 %v430, %v422
  %v647 = vpack.c.b16 %v431, %v423
  %v648 = vpack.c.b16 %v432, %v424
  %v649 = vpack.c.b16 %v441, %v433
  %v650 = vpack.c.b16 %v442, %v434
  %v651 = vpack.c.b16 %v443, %v435
  %v652 = vpack.c.b16 %v444, %v436
  %v653 = vpack.c.b16 %v445, %v437
  %v654 = vpack.c.b16 %v446, %v438
  %v655 = vpack.c.b16 %v447, %v439
  %v656 = vpack.c.b16 %v448, %v440
  %v657 = vpack.c.b16 %v457, %v449
  %v658 = vpack.c.b16 %v458, %v450
  %v659 = vpack.c.b16 %v459, %v451
  %v660 = vpack.c.b16 %v460, %v452
  %v661 = vpack.c.b16 %v461, %v453
  %v662 = vpack.c.b16 %v462, %v454
  %v663 = vpack.c.b16 %v463, %v455
  %v664 = vpack.c.b16 %v464, %v456
  %v665 = vpack.c.b16 %v473, %v465
  %v666 = vpack.c.b16 %v474, %v466
  %v667 = vpack.c.b16 %v475, %v467
  %v668 = vpack.c.b16 %v476, %v468
  %v669 = vpack.c.b16 %v477, %v469
  %v670 = vpack.c.b16 %v478, %v470
  %v671 = vpack.c.b16 %v479, %v471
  %v672 = vpack.c.b16 %v480, %v472
  %v673 = vpack.c.b16 %v489, %v481
  %v674 = vpack.c.b16 %v490, %v482
  %v675 = vpack.c.b16 %v491, %v483
  %v676 = vpack.c.b16 %v492, %v484
  %v677 = vpack.c.b16 %v493, %v485
  %v678 = vpack.c.b16 %v494, %v486
  %v679 = vpack.c.b16 %v495, %v487
  %v680 = vpack.c.b16 %v496, %v488
  %v681 = vpack.c.b16 %v505, %v497
  %v682 = vpack.c.b16 %v506, %v498
  %v683 = vpack.c.b16 %v507, %v499
  %v684 = vpack.c.b16 %v508, %v500
  %v685 = vpack.c.b16 %v509, %v501
  %v686 = vpack.c.b16 %v510, %v502
  %v687 = vpack.c.b16 %v511, %v503
  %v688 = vpack.c.b16 %v512, %v504
  %v689 = vpack.c.b16 %v521, %v513
  %v690 = vpack.c.b16 %v522, %v514
  %v691 = vpack.c.b16 %v523, %v515
  %v692 = vpack.c.b16 %v524, %v516
  %v693 = vpack.c.b16 %v525, %v517
  %v694 = vpack.c.b16 %v526, %v518
  %v695 = vpack.c.b16 %v527, %v519
  %v696 = vpack.c.b16 %v528, %v520
  %v697 = vpack.c.b16 %v537, %v529
  %v698 = vpack.c.b16 %v538, %v530
  %v699 = vpack.c.b16 %v539, %v531
  %v700 = vpack.c.b16 %v540, %v532
  %v701 = vpack.c.b16 %v541, %v533
  %v702 = vpack.c.b16 %v542, %v534
  %v703 = vpack.c.b16 %v543, %v535
  %v704 = vpack.c.b16 %v544, %v536
  %v705 = vpack.c.b16 %v553, %v545
  %v706 = vpack.c.b16 %v554, %v546
  %v707 = vpack.c.b16 %v555, %v547
  %v708 = vpack.c.b16 %v556, %v548
  %v709 = vpack.c.b16 %v557, %v549
  %v710 = vpack.c.b16 %v558, %v550
  %v711 = vpack.c.b16 %v559, %v551
  %v712 = vpack.c.b16 %v560, %v552
  %v713 = vpack.c.b16 %v569, %v561
  %v714 = vpack.c.b16 %v570, %v562
  %v715 = vpack.c.b16 %v571, %v563
  %v716 = vpack.c.b16 %v572, %v564
  %v717 = vpack.c.b16 %v573, %v565
  %v718 = vpack.c.b16 %v574, %v566
  %v719 = vpack.c.b16 %v575, %v567
  %v720 = vpack.c.b16 %v576, %v568
  %v721 = vpack.c.b16 %v585, %v577
  %v722 = vpack.c.b16 %v586, %v578
  %v723 = vpack.c.b16 %v587, %v579
  %v724 = vpack.c.b16 %v588, %v580
  %v725 = vpack.c.b16 %v589, %v581
  %v726 = vpack.c.b16 %v590, %v582
  %v727 = vpack.c.b16 %v591, %v583
  %v728 = vpack.c.b16 %v592, %v584
  %v729 = vpack.c.b16 %v601, %v593
  %v730 = vpack.c.b16 %v602, %v594
  %v731 = vpack.c.b16 %v603, %v595
  %v732 = vpack.c.b16 %v604, %v596
  %v733 = vpack.c.b16 %v605, %v597
  %v734 = vpack.c.b16 %v606, %v598
  %v735 = vpack.c.b16 %v607, %v599
  %v736 = vpack.c.b16 %v608, %v600
  %865 = vmatprep.subr.bf16.mxu0 %v610
  %866 = vmatpush1.bf16.msra.mxu0 %v609
  %867 = vmatprep.subr.bf16.mxu0 %v618
  %868 = vmatpush1.bf16.msra.mxu0 %v617
  %869 = vmatprep.subr.bf16.mxu0 %v626
  %870 = vmatpush1.bf16.msra.mxu0 %v625
  %871 = vmatprep.subr.bf16.mxu0 %v634
  %872 = vmatpush1.bf16.msra.mxu0 %v633
  %873 = vmatprep.subr.bf16.mxu0 %v642
  %874 = vmatpush1.bf16.msra.mxu0 %v641
  %875 = vmatprep.subr.bf16.mxu0 %v650
  %876 = vmatpush1.bf16.msra.mxu0 %v649
  %877 = vmatprep.subr.bf16.mxu0 %v658
  %878 = vmatpush1.bf16.msra.mxu0 %v657
  %879 = vmatprep.subr.bf16.mxu0 %v666
  %880 = vmatpush1.bf16.msra.mxu0 %v665
  %881 = vmatprep.subr.bf16.mxu0 %v674
  %882 = vmatpush1.bf16.msra.mxu0 %v673
  %883 = vmatprep.subr.bf16.mxu0 %v682
  %884 = vmatpush1.bf16.msra.mxu0 %v681
  %885 = vmatprep.subr.bf16.mxu0 %v690
  %886 = vmatpush1.bf16.msra.mxu0 %v689
  %887 = vmatprep.subr.bf16.mxu0 %v698
  %888 = vmatpush1.bf16.msra.mxu0 %v697
  %889 = vmatprep.subr.bf16.mxu0 %v706
  %890 = vmatpush1.bf16.msra.mxu0 %v705
  %891 = vmatprep.subr.bf16.mxu0 %v714
  %892 = vmatpush1.bf16.msra.mxu0 %v713
  %893 = vmatprep.subr.bf16.mxu0 %v722
  %894 = vmatpush1.bf16.msra.mxu0 %v721
  %895 = vmatprep.subr.bf16.mxu0 %v730
  %896 = vmatpush1.bf16.msra.mxu0 %v729
  %897 = vmatprep.mubr.bf16.mxu0 %v96
  %898 = vmatmul.mubr.bf16.gmra.mrb[0].mxu0 %v95
  %v899 = vpop.f32.mrb[0].mxu0
  %v900 = vadd.f32 0.0, %v899
  %v901 = vpop.f32.mrb[0].mxu0
  %v902 = vadd.f32 0.0, %v901
  %v903 = vpop.f32.mrb[0].mxu0
  %v904 = vpop.f32.mrb[0].mxu0
  %905 = vdwg.mxu0
  %906 = vmatprep.subr.bf16.mxu0 %v612
  %907 = vmatpush1.bf16.msra.mxu0 %v611
  %908 = vmatprep.subr.bf16.mxu0 %v620
  %909 = vmatpush1.bf16.msra.mxu0 %v619
  %910 = vmatprep.subr.bf16.mxu0 %v628
  %911 = vmatpush1.bf16.msra.mxu0 %v627
  %912 = vmatprep.subr.bf16.mxu0 %v636
  %913 = vmatpush1.bf16.msra.mxu0 %v635
  %914 = vmatprep.subr.bf16.mxu0 %v644
  %915 = vmatpush1.bf16.msra.mxu0 %v643
  %916 = vmatprep.subr.bf16.mxu0 %v652
  %917 = vmatpush1.bf16.msra.mxu0 %v651
  %918 = vmatprep.subr.bf16.mxu0 %v660
  %919 = vmatpush1.bf16.msra.mxu0 %v659
  %920 = vmatprep.subr.bf16.mxu0 %v668
  %921 = vmatpush1.bf16.msra.mxu0 %v667
  %922 = vmatprep.subr.bf16.mxu0 %v676
  %923 = vmatpush1.bf16.msra.mxu0 %v675
  %924 = vmatprep.subr.bf16.mxu0 %v684
  %925 = vmatpush1.bf16.msra.mxu0 %v683
  %926 = vmatprep.subr.bf16.mxu0 %v692
  %927 = vmatpush1.bf16.msra.mxu0 %v691
  %928 = vmatprep.subr.bf16.mxu0 %v700
  %929 = vmatpush1.bf16.msra.mxu0 %v699
  %930 = vmatprep.subr.bf16.mxu0 %v708
  %931 = vmatpush1.bf16.msra.mxu0 %v707
  %932 = vmatprep.subr.bf16.mxu0 %v716
  %933 = vmatpush1.bf16.msra.mxu0 %v715
  %934 = vmatprep.subr.bf16.mxu0 %v724
  %935 = vmatpush1.bf16.msra.mxu0 %v723
  %936 = vmatprep.subr.bf16.mxu0 %v732
  %937 = vmatpush1.bf16.msra.mxu0 %v731
  %938 = vmatprep.mubr.bf16.mxu0 %v96
  %939 = vmatmul.mubr.bf16.gmra.mrb[0].mxu0 %v95
  %v940 = vpop.f32.mrb[0].mxu0
  %v941 = vadd.f32 0.0, %v940
  %v942 = vpop.f32.mrb[0].mxu0
  %v943 = vadd.f32 0.0, %v942
  %v944 = vpop.f32.mrb[0].mxu0
  %v945 = vpop.f32.mrb[0].mxu0
  %946 = vdwg.mxu0
  %947 = vmatprep.subr.bf16.mxu0 %v614
  %948 = vmatpush1.bf16.msra.mxu0 %v613
  %949 = vmatprep.subr.bf16.mxu0 %v622
  %950 = vmatpush1.bf16.msra.mxu0 %v621
  %951 = vmatprep.subr.bf16.mxu0 %v630
  %952 = vmatpush1.bf16.msra.mxu0 %v629
  %953 = vmatprep.subr.bf16.mxu0 %v638
  %954 = vmatpush1.bf16.msra.mxu0 %v637
  %955 = vmatprep.subr.bf16.mxu0 %v646
  %956 = vmatpush1.bf16.msra.mxu0 %v645
  %957 = vmatprep.subr.bf16.mxu0 %v654
  %958 = vmatpush1.bf16.msra.mxu0 %v653
  %959 = vmatprep.subr.bf16.mxu0 %v662
  %960 = vmatpush1.bf16.msra.mxu0 %v661
  %961 = vmatprep.subr.bf16.mxu0 %v670
  %962 = vmatpush1.bf16.msra.mxu0 %v669
  %963 = vmatprep.subr.bf16.mxu0 %v678
  %964 = vmatpush1.bf16.msra.mxu0 %v677
  %965 = vmatprep.subr.bf16.mxu0 %v686
  %966 = vmatpush1.bf16.msra.mxu0 %v685
  %967 = vmatprep.subr.bf16.mxu0 %v694
  %968 = vmatpush1.bf16.msra.mxu0 %v693
  %969 = vmatprep.subr.bf16.mxu0 %v702
  %970 = vmatpush1.bf16.msra.mxu0 %v701
  %971 = vmatprep.subr.bf16.mxu0 %v710
  %972 = vmatpush1.bf16.msra.mxu0 %v709
  %973 = vmatprep.subr.bf16.mxu0 %v718
  %974 = vmatpush1.bf16.msra.mxu0 %v717
  %975 = vmatprep.subr.bf16.mxu0 %v726
  %976 = vmatpush1.bf16.msra.mxu0 %v725
  %977 = vmatprep.subr.bf16.mxu0 %v734
  %978 = vmatpush1.bf16.msra.mxu0 %v733
  %979 = vmatprep.mubr.bf16.mxu0 %v96
  %980 = vmatmul.mubr.bf16.gmra.mrb[0].mxu0 %v95
  %v981 = vpop.f32.mrb[0].mxu0
  %v982 = vadd.f32 0.0, %v981
  %v983 = vpop.f32.mrb[0].mxu0
  %v984 = vadd.f32 0.0, %v983
  %v985 = vpop.f32.mrb[0].mxu0
  %v986 = vpop.f32.mrb[0].mxu0
  %987 = vdwg.mxu0
  %988 = vmatprep.subr.bf16.mxu0 %v616
  %989 = vmatpush1.bf16.msra.mxu0 %v615
  %990 = vmatprep.subr.bf16.mxu0 %v624
  %991 = vmatpush1.bf16.msra.mxu0 %v623
  %992 = vmatprep.subr.bf16.mxu0 %v632
  %993 = vmatpush1.bf16.msra.mxu0 %v631
  %994 = vmatprep.subr.bf16.mxu0 %v640
  %995 = vmatpush1.bf16.msra.mxu0 %v639
  %996 = vmatprep.subr.bf16.mxu0 %v648
  %997 = vmatpush1.bf16.msra.mxu0 %v647
  %998 = vmatprep.subr.bf16.mxu0 %v656
  %999 = vmatpush1.bf16.msra.mxu0 %v655
  %1000 = vmatprep.subr.bf16.mxu0 %v664
  %1001 = vmatpush1.bf16.msra.mxu0 %v663
  %1002 = vmatprep.subr.bf16.mxu0 %v672
  %1003 = vmatpush1.bf16.msra.mxu0 %v671
  %1004 = vmatprep.subr.bf16.mxu0 %v680
  %1005 = vmatpush1.bf16.msra.mxu0 %v679
  %1006 = vmatprep.subr.bf16.mxu0 %v688
  %1007 = vmatpush1.bf16.msra.mxu0 %v687
  %1008 = vmatprep.subr.bf16.mxu0 %v696
  %1009 = vmatpush1.bf16.msra.mxu0 %v695
  %1010 = vmatprep.subr.bf16.mxu0 %v704
  %1011 = vmatpush1.bf16.msra.mxu0 %v703
  %1012 = vmatprep.subr.bf16.mxu0 %v712
  %1013 = vmatpush1.bf16.msra.mxu0 %v711
  %1014 = vmatprep.subr.bf16.mxu0 %v720
  %1015 = vmatpush1.bf16.msra.mxu0 %v719
  %1016 = vmatprep.subr.bf16.mxu0 %v728
  %1017 = vmatpush1.bf16.msra.mxu0 %v727
  %1018 = vmatprep.subr.bf16.mxu0 %v736
  %1019 = vmatpush1.bf16.msra.mxu0 %v735
  %1020 = vmatprep.mubr.bf16.mxu0 %v96
  %1021 = vmatmul.mubr.bf16.gmra.mrb[0].mxu0 %v95
  %v1022 = vpop.f32.mrb[0].mxu0
  %v1023 = vadd.f32 0.0, %v1022
  %v1024 = vpop.f32.mrb[0].mxu0
  %v1025 = vadd.f32 0.0, %v1024
  %v1026 = vpop.f32.mrb[0].mxu0
  %v1027 = vpop.f32.mrb[0].mxu0
  %1028 = vdwg.mxu0
  %v1029 = vadd.f32 %v85, %v900
  %v1030 = vadd.f32 %v86, %v902
  %v1031 = vadd.f32 %v87, %v941
  %v1032 = vadd.f32 %v88, %v943
  %v1033 = vadd.f32 %v89, %v982
  %v1034 = vadd.f32 %v90, %v984
  %v1035 = vadd.f32 %v91, %v1023
  %v1036 = vadd.f32 %v92, %v1025
  %1037 = vst [vmem:[#allocation2] sm:$0xff] %v1029
  %1038 = vst [vmem:[#allocation2 + $0x8] sm:$0xff] %v1030
  %1039 = vst [vmem:[#allocation2 + $0x10] sm:$0xff] %v1031
  %1040 = vst [vmem:[#allocation2 + $0x18] sm:$0xff] %v1032
  %1041 = vst [vmem:[#allocation2 + $0x20] sm:$0xff] %v1033
  %1042 = vst [vmem:[#allocation2 + $0x28] sm:$0xff] %v1034
  %1043 = vst [vmem:[#allocation2 + $0x30] sm:$0xff] %v1035
  %1044 = vst [vmem:[#allocation2 + $0x38] sm:$0xff] %v1036
  // Predicated region
  $region38: #{cnn_bilstm_forward.7} parent=0 // pred_check
    %p1045 = pneg %p31
  $region39: #{cnn_bilstm_forward.7} parent=0 // pred_check_branch
    %1047 = sbr.rel (%p1045) target = $region41
  $region40: #{cnn_bilstm_forward.7} parent=0 // pred_region
    %v1048 = vld [vmem:[#allocation2] sm:$0xff]
    %v1049 = vld [vmem:[#allocation2 + $0x8] sm:$0xff]
    %v1050 = vld [vmem:[#allocation2 + $0x10] sm:$0xff]
    %v1051 = vld [vmem:[#allocation2 + $0x18] sm:$0xff]
    %v1052 = vld [vmem:[#allocation2 + $0x20] sm:$0xff]
    %v1053 = vld [vmem:[#allocation2 + $0x28] sm:$0xff]
    %v1054 = vld [vmem:[#allocation2 + $0x30] sm:$0xff]
    %v1055 = vld [vmem:[#allocation2 + $0x38] sm:$0xff]
    %v1056 = vld [vmem:[%s2] sm:$0xff]
    %v1057 = vld [vmem:[%s2 + $0x8] sm:$0xff]
    %v1058 = vld [vmem:[%s2 + $0x10] sm:$0xff]
    %v1059 = vld [vmem:[%s2 + $0x18] sm:$0xff]
    %v1060 = vld [vmem:[%s2 + $0x20] sm:$0xff]
    %v1061 = vld [vmem:[%s2 + $0x28] sm:$0xff]
    %v1062 = vld [vmem:[%s2 + $0x30] sm:$0xff]
    %v1063 = vld [vmem:[%s2 + $0x38] sm:$0xff]
    %v1064 = vld [vmem:[%s2 + $0x40] sm:$0xff]
    %v1065 = vld [vmem:[%s2 + $0x48] sm:$0xff]
    %v1066 = vld [vmem:[%s2 + $0x50] sm:$0xff]
    %v1067 = vld [vmem:[%s2 + $0x58] sm:$0xff]
    %v1068 = vld [vmem:[%s2 + $0x60] sm:$0xff]
    %v1069 = vld [vmem:[%s2 + $0x68] sm:$0xff]
    %v1070 = vld [vmem:[%s2 + $0x70] sm:$0xff]
    %v1071 = vld [vmem:[%s2 + $0x78] sm:$0xff]
    %v1072 = vld [vmem:[%s2 + $0x80] sm:$0xff]
    %v1073 = vld [vmem:[%s2 + $0x88] sm:$0xff]
    %v1074 = vld [vmem:[%s2 + $0x90] sm:$0xff]
    %v1075 = vld [vmem:[%s2 + $0x98] sm:$0xff]
    %v1076 = vld [vmem:[%s2 + $0xa0] sm:$0xff]
    %v1077 = vld [vmem:[%s2 + $0xa8] sm:$0xff]
    %v1078 = vld [vmem:[%s2 + $0xb0] sm:$0xff]
    %v1079 = vld [vmem:[%s2 + $0xb8] sm:$0xff]
    %v1080 = vld [vmem:[%s2 + $0xc0] sm:$0xff]
    %v1081 = vld [vmem:[%s2 + $0xc8] sm:$0xff]
    %v1082 = vld [vmem:[%s2 + $0xd0] sm:$0xff]
    %v1083 = vld [vmem:[%s2 + $0xd8] sm:$0xff]
    %v1084 = vld [vmem:[%s2 + $0xe0] sm:$0xff]
    %v1085 = vld [vmem:[%s2 + $0xe8] sm:$0xff]
    %v1086 = vld [vmem:[%s2 + $0xf0] sm:$0xff]
    %v1087 = vld [vmem:[%s2 + $0xf8] sm:$0xff]
    %v1088 = vld [vmem:[%s2 + $0x100] sm:$0xff]
    %v1089 = vld [vmem:[%s2 + $0x108] sm:$0xff]
    %v1090 = vld [vmem:[%s2 + $0x110] sm:$0xff]
    %v1091 = vld [vmem:[%s2 + $0x118] sm:$0xff]
    %v1092 = vld [vmem:[%s2 + $0x120] sm:$0xff]
    %v1093 = vld [vmem:[%s2 + $0x128] sm:$0xff]
    %v1094 = vld [vmem:[%s2 + $0x130] sm:$0xff]
    %v1095 = vld [vmem:[%s2 + $0x138] sm:$0xff]
    %v1096 = vld [vmem:[%s2 + $0x140] sm:$0xff]
    %v1097 = vld [vmem:[%s2 + $0x148] sm:$0xff]
    %v1098 = vld [vmem:[%s2 + $0x150] sm:$0xff]
    %v1099 = vld [vmem:[%s2 + $0x158] sm:$0xff]
    %v1100 = vld [vmem:[%s2 + $0x160] sm:$0xff]
    %v1101 = vld [vmem:[%s2 + $0x168] sm:$0xff]
    %v1102 = vld [vmem:[%s2 + $0x170] sm:$0xff]
    %v1103 = vld [vmem:[%s2 + $0x178] sm:$0xff]
    %v1104 = vld [vmem:[%s2 + $0x180] sm:$0xff]
    %v1105 = vld [vmem:[%s2 + $0x188] sm:$0xff]
    %v1106 = vld [vmem:[%s2 + $0x190] sm:$0xff]
    %v1107 = vld [vmem:[%s2 + $0x198] sm:$0xff]
    %v1108 = vld [vmem:[%s2 + $0x1a0] sm:$0xff]
    %v1109 = vld [vmem:[%s2 + $0x1a8] sm:$0xff]
    %v1110 = vld [vmem:[%s2 + $0x1b0] sm:$0xff]
    %v1111 = vld [vmem:[%s2 + $0x1b8] sm:$0xff]
    %v1112 = vld [vmem:[%s2 + $0x1c0] sm:$0xff]
    %v1113 = vld [vmem:[%s2 + $0x1c8] sm:$0xff]
    %v1114 = vld [vmem:[%s2 + $0x1d0] sm:$0xff]
    %v1115 = vld [vmem:[%s2 + $0x1d8] sm:$0xff]
    %v1116 = vld [vmem:[%s2 + $0x1e0] sm:$0xff]
    %v1117 = vld [vmem:[%s2 + $0x1e8] sm:$0xff]
    %v1118 = vld [vmem:[%s2 + $0x1f0] sm:$0xff]
    %v1119 = vld [vmem:[%s2 + $0x1f8] sm:$0xff]
    %v1120 = vld [vmem:[%s2 + $0x200] sm:$0xff]
    %v1121 = vld [vmem:[%s2 + $0x208] sm:$0xff]
    %v1122 = vld [vmem:[%s2 + $0x210] sm:$0xff]
    %v1123 = vld [vmem:[%s2 + $0x218] sm:$0xff]
    %v1124 = vld [vmem:[%s2 + $0x220] sm:$0xff]
    %v1125 = vld [vmem:[%s2 + $0x228] sm:$0xff]
    %v1126 = vld [vmem:[%s2 + $0x230] sm:$0xff]
    %v1127 = vld [vmem:[%s2 + $0x238] sm:$0xff]
    %v1128 = vld [vmem:[%s2 + $0x240] sm:$0xff]
    %v1129 = vld [vmem:[%s2 + $0x248] sm:$0xff]
    %v1130 = vld [vmem:[%s2 + $0x250] sm:$0xff]
    %v1131 = vld [vmem:[%s2 + $0x258] sm:$0xff]
    %v1132 = vld [vmem:[%s2 + $0x260] sm:$0xff]
    %v1133 = vld [vmem:[%s2 + $0x268] sm:$0xff]
    %v1134 = vld [vmem:[%s2 + $0x270] sm:$0xff]
    %v1135 = vld [vmem:[%s2 + $0x278] sm:$0xff]
    %v1136 = vld [vmem:[%s2 + $0x280] sm:$0xff]
    %v1137 = vld [vmem:[%s2 + $0x288] sm:$0xff]
    %v1138 = vld [vmem:[%s2 + $0x290] sm:$0xff]
    %v1139 = vld [vmem:[%s2 + $0x298] sm:$0xff]
    %v1140 = vld [vmem:[%s2 + $0x2a0] sm:$0xff]
    %v1141 = vld [vmem:[%s2 + $0x2a8] sm:$0xff]
    %v1142 = vld [vmem:[%s2 + $0x2b0] sm:$0xff]
    %v1143 = vld [vmem:[%s2 + $0x2b8] sm:$0xff]
    %v1144 = vld [vmem:[%s2 + $0x2c0] sm:$0xff]
    %v1145 = vld [vmem:[%s2 + $0x2c8] sm:$0xff]
    %v1146 = vld [vmem:[%s2 + $0x2d0] sm:$0xff]
    %v1147 = vld [vmem:[%s2 + $0x2d8] sm:$0xff]
    %v1148 = vld [vmem:[%s2 + $0x2e0] sm:$0xff]
    %v1149 = vld [vmem:[%s2 + $0x2e8] sm:$0xff]
    %v1150 = vld [vmem:[%s2 + $0x2f0] sm:$0xff]
    %v1151 = vld [vmem:[%s2 + $0x2f8] sm:$0xff]
    %v1152 = vld [vmem:[%s2 + $0x300] sm:$0xff]
    %v1153 = vld [vmem:[%s2 + $0x308] sm:$0xff]
    %v1154 = vld [vmem:[%s2 + $0x310] sm:$0xff]
    %v1155 = vld [vmem:[%s2 + $0x318] sm:$0xff]
    %v1156 = vld [vmem:[%s2 + $0x320] sm:$0xff]
    %v1157 = vld [vmem:[%s2 + $0x328] sm:$0xff]
    %v1158 = vld [vmem:[%s2 + $0x330] sm:$0xff]
    %v1159 = vld [vmem:[%s2 + $0x338] sm:$0xff]
    %v1160 = vld [vmem:[%s2 + $0x340] sm:$0xff]
    %v1161 = vld [vmem:[%s2 + $0x348] sm:$0xff]
    %v1162 = vld [vmem:[%s2 + $0x350] sm:$0xff]
    %v1163 = vld [vmem:[%s2 + $0x358] sm:$0xff]
    %v1164 = vld [vmem:[%s2 + $0x360] sm:$0xff]
    %v1165 = vld [vmem:[%s2 + $0x368] sm:$0xff]
    %v1166 = vld [vmem:[%s2 + $0x370] sm:$0xff]
    %v1167 = vld [vmem:[%s2 + $0x378] sm:$0xff]
    %v1168 = vld [vmem:[%s2 + $0x380] sm:$0xff]
    %v1169 = vld [vmem:[%s2 + $0x388] sm:$0xff]
    %v1170 = vld [vmem:[%s2 + $0x390] sm:$0xff]
    %v1171 = vld [vmem:[%s2 + $0x398] sm:$0xff]
    %v1172 = vld [vmem:[%s2 + $0x3a0] sm:$0xff]
    %v1173 = vld [vmem:[%s2 + $0x3a8] sm:$0xff]
    %v1174 = vld [vmem:[%s2 + $0x3b0] sm:$0xff]
    %v1175 = vld [vmem:[%s2 + $0x3b8] sm:$0xff]
    %v1176 = vld [vmem:[%s2 + $0x3c0] sm:$0xff]
    %v1177 = vld [vmem:[%s2 + $0x3c8] sm:$0xff]
    %v1178 = vld [vmem:[%s2 + $0x3d0] sm:$0xff]
    %v1179 = vld [vmem:[%s2 + $0x3d8] sm:$0xff]
    %v1180 = vld [vmem:[%s2 + $0x3e0] sm:$0xff]
    %v1181 = vld [vmem:[%s2 + $0x3e8] sm:$0xff]
    %v1182 = vld [vmem:[%s2 + $0x3f0] sm:$0xff]
    %v1183 = vld [vmem:[%s2 + $0x3f8] sm:$0xff]
    %v1184 = vpack.c.bf16 0.0, 0.0
    %v1313 = vunpack.c.l.b16 %v1056
    %v1314 = vunpack.c.h.b16 %v1056
    %v1315 = vunpack.c.l.b16 %v1057
    %v1316 = vunpack.c.h.b16 %v1057
    %v1317 = vunpack.c.l.b16 %v1058
    %v1318 = vunpack.c.h.b16 %v1058
    %v1319 = vunpack.c.l.b16 %v1059
    %v1320 = vunpack.c.h.b16 %v1059
    %v1321 = vunpack.c.l.b16 %v1060
    %v1322 = vunpack.c.h.b16 %v1060
    %v1323 = vunpack.c.l.b16 %v1061
    %v1324 = vunpack.c.h.b16 %v1061
    %v1325 = vunpack.c.l.b16 %v1062
    %v1326 = vunpack.c.h.b16 %v1062
    %v1327 = vunpack.c.l.b16 %v1063
    %v1328 = vunpack.c.h.b16 %v1063
    %v1329 = vunpack.c.l.b16 %v1064
    %v1330 = vunpack.c.h.b16 %v1064
    %v1331 = vunpack.c.l.b16 %v1065
    %v1332 = vunpack.c.h.b16 %v1065
    %v1333 = vunpack.c.l.b16 %v1066
    %v1334 = vunpack.c.h.b16 %v1066
    %v1335 = vunpack.c.l.b16 %v1067
    %v1336 = vunpack.c.h.b16 %v1067
    %v1337 = vunpack.c.l.b16 %v1068
    %v1338 = vunpack.c.h.b16 %v1068
    %v1339 = vunpack.c.l.b16 %v1069
    %v1340 = vunpack.c.h.b16 %v1069
    %v1341 = vunpack.c.l.b16 %v1070
    %v1342 = vunpack.c.h.b16 %v1070
    %v1343 = vunpack.c.l.b16 %v1071
    %v1344 = vunpack.c.h.b16 %v1071
    %v1345 = vunpack.c.l.b16 %v1072
    %v1346 = vunpack.c.h.b16 %v1072
    %v1347 = vunpack.c.l.b16 %v1073
    %v1348 = vunpack.c.h.b16 %v1073
    %v1349 = vunpack.c.l.b16 %v1074
    %v1350 = vunpack.c.h.b16 %v1074
    %v1351 = vunpack.c.l.b16 %v1075
    %v1352 = vunpack.c.h.b16 %v1075
    %v1353 = vunpack.c.l.b16 %v1076
    %v1354 = vunpack.c.h.b16 %v1076
    %v1355 = vunpack.c.l.b16 %v1077
    %v1356 = vunpack.c.h.b16 %v1077
    %v1357 = vunpack.c.l.b16 %v1078
    %v1358 = vunpack.c.h.b16 %v1078
    %v1359 = vunpack.c.l.b16 %v1079
    %v1360 = vunpack.c.h.b16 %v1079
    %v1361 = vunpack.c.l.b16 %v1080
    %v1362 = vunpack.c.h.b16 %v1080
    %v1363 = vunpack.c.l.b16 %v1081
    %v1364 = vunpack.c.h.b16 %v1081
    %v1365 = vunpack.c.l.b16 %v1082
    %v1366 = vunpack.c.h.b16 %v1082
    %v1367 = vunpack.c.l.b16 %v1083
    %v1368 = vunpack.c.h.b16 %v1083
    %v1369 = vunpack.c.l.b16 %v1084
    %v1370 = vunpack.c.h.b16 %v1084
    %v1371 = vunpack.c.l.b16 %v1085
    %v1372 = vunpack.c.h.b16 %v1085
    %v1373 = vunpack.c.l.b16 %v1086
    %v1374 = vunpack.c.h.b16 %v1086
    %v1375 = vunpack.c.l.b16 %v1087
    %v1376 = vunpack.c.h.b16 %v1087
    %v1377 = vunpack.c.l.b16 %v1088
    %v1378 = vunpack.c.h.b16 %v1088
    %v1379 = vunpack.c.l.b16 %v1089
    %v1380 = vunpack.c.h.b16 %v1089
    %v1381 = vunpack.c.l.b16 %v1090
    %v1382 = vunpack.c.h.b16 %v1090
    %v1383 = vunpack.c.l.b16 %v1091
    %v1384 = vunpack.c.h.b16 %v1091
    %v1385 = vunpack.c.l.b16 %v1092
    %v1386 = vunpack.c.h.b16 %v1092
    %v1387 = vunpack.c.l.b16 %v1093
    %v1388 = vunpack.c.h.b16 %v1093
    %v1389 = vunpack.c.l.b16 %v1094
    %v1390 = vunpack.c.h.b16 %v1094
    %v1391 = vunpack.c.l.b16 %v1095
    %v1392 = vunpack.c.h.b16 %v1095
    %v1393 = vunpack.c.l.b16 %v1096
    %v1394 = vunpack.c.h.b16 %v1096
    %v1395 = vunpack.c.l.b16 %v1097
    %v1396 = vunpack.c.h.b16 %v1097
    %v1397 = vunpack.c.l.b16 %v1098
    %v1398 = vunpack.c.h.b16 %v1098
    %v1399 = vunpack.c.l.b16 %v1099
    %v1400 = vunpack.c.h.b16 %v1099
    %v1401 = vunpack.c.l.b16 %v1100
    %v1402 = vunpack.c.h.b16 %v1100
    %v1403 = vunpack.c.l.b16 %v1101
    %v1404 = vunpack.c.h.b16 %v1101
    %v1405 = vunpack.c.l.b16 %v1102
    %v1406 = vunpack.c.h.b16 %v1102
    %v1407 = vunpack.c.l.b16 %v1103
    %v1408 = vunpack.c.h.b16 %v1103
    %v1409 = vunpack.c.l.b16 %v1104
    %v1410 = vunpack.c.h.b16 %v1104
    %v1411 = vunpack.c.l.b16 %v1105
    %v1412 = vunpack.c.h.b16 %v1105
    %v1413 = vunpack.c.l.b16 %v1106
    %v1414 = vunpack.c.h.b16 %v1106
    %v1415 = vunpack.c.l.b16 %v1107
    %v1416 = vunpack.c.h.b16 %v1107
    %v1417 = vunpack.c.l.b16 %v1108
    %v1418 = vunpack.c.h.b16 %v1108
    %v1419 = vunpack.c.l.b16 %v1109
    %v1420 = vunpack.c.h.b16 %v1109
    %v1421 = vunpack.c.l.b16 %v1110
    %v1422 = vunpack.c.h.b16 %v1110
    %v1423 = vunpack.c.l.b16 %v1111
    %v1424 = vunpack.c.h.b16 %v1111
    %v1425 = vunpack.c.l.b16 %v1112
    %v1426 = vunpack.c.h.b16 %v1112
    %v1427 = vunpack.c.l.b16 %v1113
    %v1428 = vunpack.c.h.b16 %v1113
    %v1429 = vunpack.c.l.b16 %v1114
    %v1430 = vunpack.c.h.b16 %v1114
    %v1431 = vunpack.c.l.b16 %v1115
    %v1432 = vunpack.c.h.b16 %v1115
    %v1433 = vunpack.c.l.b16 %v1116
    %v1434 = vunpack.c.h.b16 %v1116
    %v1435 = vunpack.c.l.b16 %v1117
    %v1436 = vunpack.c.h.b16 %v1117
    %v1437 = vunpack.c.l.b16 %v1118
    %v1438 = vunpack.c.h.b16 %v1118
    %v1439 = vunpack.c.l.b16 %v1119
    %v1440 = vunpack.c.h.b16 %v1119
    %v1441 = vunpack.c.l.b16 %v1120
    %v1442 = vunpack.c.h.b16 %v1120
    %v1443 = vunpack.c.l.b16 %v1121
    %v1444 = vunpack.c.h.b16 %v1121
    %v1445 = vunpack.c.l.b16 %v1122
    %v1446 = vunpack.c.h.b16 %v1122
    %v1447 = vunpack.c.l.b16 %v1123
    %v1448 = vunpack.c.h.b16 %v1123
    %v1449 = vunpack.c.l.b16 %v1124
    %v1450 = vunpack.c.h.b16 %v1124
    %v1451 = vunpack.c.l.b16 %v1125
    %v1452 = vunpack.c.h.b16 %v1125
    %v1453 = vunpack.c.l.b16 %v1126
    %v1454 = vunpack.c.h.b16 %v1126
    %v1455 = vunpack.c.l.b16 %v1127
    %v1456 = vunpack.c.h.b16 %v1127
    %v1457 = vunpack.c.l.b16 %v1128
    %v1458 = vunpack.c.h.b16 %v1128
    %v1459 = vunpack.c.l.b16 %v1129
    %v1460 = vunpack.c.h.b16 %v1129
    %v1461 = vunpack.c.l.b16 %v1130
    %v1462 = vunpack.c.h.b16 %v1130
    %v1463 = vunpack.c.l.b16 %v1131
    %v1464 = vunpack.c.h.b16 %v1131
    %v1465 = vunpack.c.l.b16 %v1132
    %v1466 = vunpack.c.h.b16 %v1132
    %v1467 = vunpack.c.l.b16 %v1133
    %v1468 = vunpack.c.h.b16 %v1133
    %v1469 = vunpack.c.l.b16 %v1134
    %v1470 = vunpack.c.h.b16 %v1134
    %v1471 = vunpack.c.l.b16 %v1135
    %v1472 = vunpack.c.h.b16 %v1135
    %v1473 = vunpack.c.l.b16 %v1136
    %v1474 = vunpack.c.h.b16 %v1136
    %v1475 = vunpack.c.l.b16 %v1137
    %v1476 = vunpack.c.h.b16 %v1137
    %v1477 = vunpack.c.l.b16 %v1138
    %v1478 = vunpack.c.h.b16 %v1138
    %v1479 = vunpack.c.l.b16 %v1139
    %v1480 = vunpack.c.h.b16 %v1139
    %v1481 = vunpack.c.l.b16 %v1140
    %v1482 = vunpack.c.h.b16 %v1140
    %v1483 = vunpack.c.l.b16 %v1141
    %v1484 = vunpack.c.h.b16 %v1141
    %v1485 = vunpack.c.l.b16 %v1142
    %v1486 = vunpack.c.h.b16 %v1142
    %v1487 = vunpack.c.l.b16 %v1143
    %v1488 = vunpack.c.h.b16 %v1143
    %v1489 = vunpack.c.l.b16 %v1144
    %v1490 = vunpack.c.h.b16 %v1144
    %v1491 = vunpack.c.l.b16 %v1145
    %v1492 = vunpack.c.h.b16 %v1145
    %v1493 = vunpack.c.l.b16 %v1146
    %v1494 = vunpack.c.h.b16 %v1146
    %v1495 = vunpack.c.l.b16 %v1147
    %v1496 = vunpack.c.h.b16 %v1147
    %v1497 = vunpack.c.l.b16 %v1148
    %v1498 = vunpack.c.h.b16 %v1148
    %v1499 = vunpack.c.l.b16 %v1149
    %v1500 = vunpack.c.h.b16 %v1149
    %v1501 = vunpack.c.l.b16 %v1150
    %v1502 = vunpack.c.h.b16 %v1150
    %v1503 = vunpack.c.l.b16 %v1151
    %v1504 = vunpack.c.h.b16 %v1151
    %v1505 = vunpack.c.l.b16 %v1152
    %v1506 = vunpack.c.h.b16 %v1152
    %v1507 = vunpack.c.l.b16 %v1153
    %v1508 = vunpack.c.h.b16 %v1153
    %v1509 = vunpack.c.l.b16 %v1154
    %v1510 = vunpack.c.h.b16 %v1154
    %v1511 = vunpack.c.l.b16 %v1155
    %v1512 = vunpack.c.h.b16 %v1155
    %v1513 = vunpack.c.l.b16 %v1156
    %v1514 = vunpack.c.h.b16 %v1156
    %v1515 = vunpack.c.l.b16 %v1157
    %v1516 = vunpack.c.h.b16 %v1157
    %v1517 = vunpack.c.l.b16 %v1158
    %v1518 = vunpack.c.h.b16 %v1158
    %v1519 = vunpack.c.l.b16 %v1159
    %v1520 = vunpack.c.h.b16 %v1159
    %v1521 = vunpack.c.l.b16 %v1160
    %v1522 = vunpack.c.h.b16 %v1160
    %v1523 = vunpack.c.l.b16 %v1161
    %v1524 = vunpack.c.h.b16 %v1161
    %v1525 = vunpack.c.l.b16 %v1162
    %v1526 = vunpack.c.h.b16 %v1162
    %v1527 = vunpack.c.l.b16 %v1163
    %v1528 = vunpack.c.h.b16 %v1163
    %v1529 = vunpack.c.l.b16 %v1164
    %v1530 = vunpack.c.h.b16 %v1164
    %v1531 = vunpack.c.l.b16 %v1165
    %v1532 = vunpack.c.h.b16 %v1165
    %v1533 = vunpack.c.l.b16 %v1166
    %v1534 = vunpack.c.h.b16 %v1166
    %v1535 = vunpack.c.l.b16 %v1167
    %v1536 = vunpack.c.h.b16 %v1167
    %v1537 = vunpack.c.l.b16 %v1168
    %v1538 = vunpack.c.h.b16 %v1168
    %v1539 = vunpack.c.l.b16 %v1169
    %v1540 = vunpack.c.h.b16 %v1169
    %v1541 = vunpack.c.l.b16 %v1170
    %v1542 = vunpack.c.h.b16 %v1170
    %v1543 = vunpack.c.l.b16 %v1171
    %v1544 = vunpack.c.h.b16 %v1171
    %v1545 = vunpack.c.l.b16 %v1172
    %v1546 = vunpack.c.h.b16 %v1172
    %v1547 = vunpack.c.l.b16 %v1173
    %v1548 = vunpack.c.h.b16 %v1173
    %v1549 = vunpack.c.l.b16 %v1174
    %v1550 = vunpack.c.h.b16 %v1174
    %v1551 = vunpack.c.l.b16 %v1175
    %v1552 = vunpack.c.h.b16 %v1175
    %v1553 = vunpack.c.l.b16 %v1176
    %v1554 = vunpack.c.h.b16 %v1176
    %v1555 = vunpack.c.l.b16 %v1177
    %v1556 = vunpack.c.h.b16 %v1177
    %v1557 = vunpack.c.l.b16 %v1178
    %v1558 = vunpack.c.h.b16 %v1178
    %v1559 = vunpack.c.l.b16 %v1179
    %v1560 = vunpack.c.h.b16 %v1179
    %v1561 = vunpack.c.l.b16 %v1180
    %v1562 = vunpack.c.h.b16 %v1180
    %v1563 = vunpack.c.l.b16 %v1181
    %v1564 = vunpack.c.h.b16 %v1181
    %v1565 = vunpack.c.l.b16 %v1182
    %v1566 = vunpack.c.h.b16 %v1182
    %v1567 = vunpack.c.l.b16 %v1183
    %v1568 = vunpack.c.h.b16 %v1183
    %v1569 = vpack.c.b16 %v1321, %v1313
    %v1570 = vpack.c.b16 %v1322, %v1314
    %v1571 = vpack.c.b16 %v1323, %v1315
    %v1572 = vpack.c.b16 %v1324, %v1316
    %v1573 = vpack.c.b16 %v1325, %v1317
    %v1574 = vpack.c.b16 %v1326, %v1318
    %v1575 = vpack.c.b16 %v1327, %v1319
    %v1576 = vpack.c.b16 %v1328, %v1320
    %v1577 = vpack.c.b16 %v1337, %v1329
    %v1578 = vpack.c.b16 %v1338, %v1330
    %v1579 = vpack.c.b16 %v1339, %v1331
    %v1580 = vpack.c.b16 %v1340, %v1332
    %v1581 = vpack.c.b16 %v1341, %v1333
    %v1582 = vpack.c.b16 %v1342, %v1334
    %v1583 = vpack.c.b16 %v1343, %v1335
    %v1584 = vpack.c.b16 %v1344, %v1336
    %v1585 = vpack.c.b16 %v1353, %v1345
    %v1586 = vpack.c.b16 %v1354, %v1346
    %v1587 = vpack.c.b16 %v1355, %v1347
    %v1588 = vpack.c.b16 %v1356, %v1348
    %v1589 = vpack.c.b16 %v1357, %v1349
    %v1590 = vpack.c.b16 %v1358, %v1350
    %v1591 = vpack.c.b16 %v1359, %v1351
    %v1592 = vpack.c.b16 %v1360, %v1352
    %v1593 = vpack.c.b16 %v1369, %v1361
    %v1594 = vpack.c.b16 %v1370, %v1362
    %v1595 = vpack.c.b16 %v1371, %v1363
    %v1596 = vpack.c.b16 %v1372, %v1364
    %v1597 = vpack.c.b16 %v1373, %v1365
    %v1598 = vpack.c.b16 %v1374, %v1366
    %v1599 = vpack.c.b16 %v1375, %v1367
    %v1600 = vpack.c.b16 %v1376, %v1368
    %v1601 = vpack.c.b16 %v1385, %v1377
    %v1602 = vpack.c.b16 %v1386, %v1378
    %v1603 = vpack.c.b16 %v1387, %v1379
    %v1604 = vpack.c.b16 %v1388, %v1380
    %v1605 = vpack.c.b16 %v1389, %v1381
    %v1606 = vpack.c.b16 %v1390, %v1382
    %v1607 = vpack.c.b16 %v1391, %v1383
    %v1608 = vpack.c.b16 %v1392, %v1384
    %v1609 = vpack.c.b16 %v1401, %v1393
    %v1610 = vpack.c.b16 %v1402, %v1394
    %v1611 = vpack.c.b16 %v1403, %v1395
    %v1612 = vpack.c.b16 %v1404, %v1396
    %v1613 = vpack.c.b16 %v1405, %v1397
    %v1614 = vpack.c.b16 %v1406, %v1398
    %v1615 = vpack.c.b16 %v1407, %v1399
    %v1616 = vpack.c.b16 %v1408, %v1400
    %v1617 = vpack.c.b16 %v1417, %v1409
    %v1618 = vpack.c.b16 %v1418, %v1410
    %v1619 = vpack.c.b16 %v1419, %v1411
    %v1620 = vpack.c.b16 %v1420, %v1412
    %v1621 = vpack.c.b16 %v1421, %v1413
    %v1622 = vpack.c.b16 %v1422, %v1414
    %v1623 = vpack.c.b16 %v1423, %v1415
    %v1624 = vpack.c.b16 %v1424, %v1416
    %v1625 = vpack.c.b16 %v1433, %v1425
    %v1626 = vpack.c.b16 %v1434, %v1426
    %v1627 = vpack.c.b16 %v1435, %v1427
    %v1628 = vpack.c.b16 %v1436, %v1428
    %v1629 = vpack.c.b16 %v1437, %v1429
    %v1630 = vpack.c.b16 %v1438, %v1430
    %v1631 = vpack.c.b16 %v1439, %v1431
    %v1632 = vpack.c.b16 %v1440, %v1432
    %v1633 = vpack.c.b16 %v1449, %v1441
    %v1634 = vpack.c.b16 %v1450, %v1442
    %v1635 = vpack.c.b16 %v1451, %v1443
    %v1636 = vpack.c.b16 %v1452, %v1444
    %v1637 = vpack.c.b16 %v1453, %v1445
    %v1638 = vpack.c.b16 %v1454, %v1446
    %v1639 = vpack.c.b16 %v1455, %v1447
    %v1640 = vpack.c.b16 %v1456, %v1448
    %v1641 = vpack.c.b16 %v1465, %v1457
    %v1642 = vpack.c.b16 %v1466, %v1458
    %v1643 = vpack.c.b16 %v1467, %v1459
    %v1644 = vpack.c.b16 %v1468, %v1460
    %v1645 = vpack.c.b16 %v1469, %v1461
    %v1646 = vpack.c.b16 %v1470, %v1462
    %v1647 = vpack.c.b16 %v1471, %v1463
    %v1648 = vpack.c.b16 %v1472, %v1464
    %v1649 = vpack.c.b16 %v1481, %v1473
    %v1650 = vpack.c.b16 %v1482, %v1474
    %v1651 = vpack.c.b16 %v1483, %v1475
    %v1652 = vpack.c.b16 %v1484, %v1476
    %v1653 = vpack.c.b16 %v1485, %v1477
    %v1654 = vpack.c.b16 %v1486, %v1478
    %v1655 = vpack.c.b16 %v1487, %v1479
    %v1656 = vpack.c.b16 %v1488, %v1480
    %v1657 = vpack.c.b16 %v1497, %v1489
    %v1658 = vpack.c.b16 %v1498, %v1490
    %v1659 = vpack.c.b16 %v1499, %v1491
    %v1660 = vpack.c.b16 %v1500, %v1492
    %v1661 = vpack.c.b16 %v1501, %v1493
    %v1662 = vpack.c.b16 %v1502, %v1494
    %v1663 = vpack.c.b16 %v1503, %v1495
    %v1664 = vpack.c.b16 %v1504, %v1496
    %v1665 = vpack.c.b16 %v1513, %v1505
    %v1666 = vpack.c.b16 %v1514, %v1506
    %v1667 = vpack.c.b16 %v1515, %v1507
    %v1668 = vpack.c.b16 %v1516, %v1508
    %v1669 = vpack.c.b16 %v1517, %v1509
    %v1670 = vpack.c.b16 %v1518, %v1510
    %v1671 = vpack.c.b16 %v1519, %v1511
    %v1672 = vpack.c.b16 %v1520, %v1512
    %v1673 = vpack.c.b16 %v1529, %v1521
    %v1674 = vpack.c.b16 %v1530, %v1522
    %v1675 = vpack.c.b16 %v1531, %v1523
    %v1676 = vpack.c.b16 %v1532, %v1524
    %v1677 = vpack.c.b16 %v1533, %v1525
    %v1678 = vpack.c.b16 %v1534, %v1526
    %v1679 = vpack.c.b16 %v1535, %v1527
    %v1680 = vpack.c.b16 %v1536, %v1528
    %v1681 = vpack.c.b16 %v1545, %v1537
    %v1682 = vpack.c.b16 %v1546, %v1538
    %v1683 = vpack.c.b16 %v1547, %v1539
    %v1684 = vpack.c.b16 %v1548, %v1540
    %v1685 = vpack.c.b16 %v1549, %v1541
    %v1686 = vpack.c.b16 %v1550, %v1542
    %v1687 = vpack.c.b16 %v1551, %v1543
    %v1688 = vpack.c.b16 %v1552, %v1544
    %v1689 = vpack.c.b16 %v1561, %v1553
    %v1690 = vpack.c.b16 %v1562, %v1554
    %v1691 = vpack.c.b16 %v1563, %v1555
    %v1692 = vpack.c.b16 %v1564, %v1556
    %v1693 = vpack.c.b16 %v1565, %v1557
    %v1694 = vpack.c.b16 %v1566, %v1558
    %v1695 = vpack.c.b16 %v1567, %v1559
    %v1696 = vpack.c.b16 %v1568, %v1560
    %1825 = vmatprep.subr.bf16.mxu0 %v1570
    %1826 = vmatpush1.bf16.msra.mxu0 %v1569
    %1827 = vmatprep.subr.bf16.mxu0 %v1578
    %1828 = vmatpush1.bf16.msra.mxu0 %v1577
    %1829 = vmatprep.subr.bf16.mxu0 %v1586
    %1830 = vmatpush1.bf16.msra.mxu0 %v1585
    %1831 = vmatprep.subr.bf16.mxu0 %v1594
    %1832 = vmatpush1.bf16.msra.mxu0 %v1593
    %1833 = vmatprep.subr.bf16.mxu0 %v1602
    %1834 = vmatpush1.bf16.msra.mxu0 %v1601
    %1835 = vmatprep.subr.bf16.mxu0 %v1610
    %1836 = vmatpush1.bf16.msra.mxu0 %v1609
    %1837 = vmatprep.subr.bf16.mxu0 %v1618
    %1838 = vmatpush1.bf16.msra.mxu0 %v1617
    %1839 = vmatprep.subr.bf16.mxu0 %v1626
    %1840 = vmatpush1.bf16.msra.mxu0 %v1625
    %1841 = vmatprep.subr.bf16.mxu0 %v1634
    %1842 = vmatpush1.bf16.msra.mxu0 %v1633
    %1843 = vmatprep.subr.bf16.mxu0 %v1642
    %1844 = vmatpush1.bf16.msra.mxu0 %v1641
    %1845 = vmatprep.subr.bf16.mxu0 %v1650
    %1846 = vmatpush1.bf16.msra.mxu0 %v1649
    %1847 = vmatprep.subr.bf16.mxu0 %v1658
    %1848 = vmatpush1.bf16.msra.mxu0 %v1657
    %1849 = vmatprep.subr.bf16.mxu0 %v1666
    %1850 = vmatpush1.bf16.msra.mxu0 %v1665
    %1851 = vmatprep.subr.bf16.mxu0 %v1674
    %1852 = vmatpush1.bf16.msra.mxu0 %v1673
    %1853 = vmatprep.subr.bf16.mxu0 %v1682
    %1854 = vmatpush1.bf16.msra.mxu0 %v1681
    %1855 = vmatprep.subr.bf16.mxu0 %v1690
    %1856 = vmatpush1.bf16.msra.mxu0 %v1689
    %1857 = vmatprep.mubr.bf16.mxu0 %v1184
    %1858 = vmatmul.mubr.bf16.gmra.mrb[0].mxu0 %v1184
    %v1859 = vpop.f32.mrb[0].mxu0
    %v1860 = vadd.f32 0.0, %v1859
    %v1861 = vpop.f32.mrb[0].mxu0
    %v1862 = vadd.f32 0.0, %v1861
    %v1863 = vpop.f32.mrb[0].mxu0
    %v1864 = vpop.f32.mrb[0].mxu0
    %1865 = vdwg.mxu0
    %1866 = vmatprep.subr.bf16.mxu0 %v1572
    %1867 = vmatpush1.bf16.msra.mxu0 %v1571
    %1868 = vmatprep.subr.bf16.mxu0 %v1580
    %1869 = vmatpush1.bf16.msra.mxu0 %v1579
    %1870 = vmatprep.subr.bf16.mxu0 %v1588
    %1871 = vmatpush1.bf16.msra.mxu0 %v1587
    %1872 = vmatprep.subr.bf16.mxu0 %v1596
    %1873 = vmatpush1.bf16.msra.mxu0 %v1595
    %1874 = vmatprep.subr.bf16.mxu0 %v1604
    %1875 = vmatpush1.bf16.msra.mxu0 %v1603
    %1876 = vmatprep.subr.bf16.mxu0 %v1612
    %1877 = vmatpush1.bf16.msra.mxu0 %v1611
    %1878 = vmatprep.subr.bf16.mxu0 %v1620
    %1879 = vmatpush1.bf16.msra.mxu0 %v1619
    %1880 = vmatprep.subr.bf16.mxu0 %v1628
    %1881 = vmatpush1.bf16.msra.mxu0 %v1627
    %1882 = vmatprep.subr.bf16.mxu0 %v1636
    %1883 = vmatpush1.bf16.msra.mxu0 %v1635
    %1884 = vmatprep.subr.bf16.mxu0 %v1644
    %1885 = vmatpush1.bf16.msra.mxu0 %v1643
    %1886 = vmatprep.subr.bf16.mxu0 %v1652
    %1887 = vmatpush1.bf16.msra.mxu0 %v1651
    %1888 = vmatprep.subr.bf16.mxu0 %v1660
    %1889 = vmatpush1.bf16.msra.mxu0 %v1659
    %1890 = vmatprep.subr.bf16.mxu0 %v1668
    %1891 = vmatpush1.bf16.msra.mxu0 %v1667
    %1892 = vmatprep.subr.bf16.mxu0 %v1676
    %1893 = vmatpush1.bf16.msra.mxu0 %v1675
    %1894 = vmatprep.subr.bf16.mxu0 %v1684
    %1895 = vmatpush1.bf16.msra.mxu0 %v1683
    %1896 = vmatprep.subr.bf16.mxu0 %v1692
    %1897 = vmatpush1.bf16.msra.mxu0 %v1691
    %1898 = vmatprep.mubr.bf16.mxu0 %v1184
    %1899 = vmatmul.mubr.bf16.gmra.mrb[0].mxu0 %v1184
    %v1900 = vpop.f32.mrb[0].mxu0
    %v1901 = vadd.f32 0.0, %v1900
    %v1902 = vpop.f32.mrb[0].mxu0
    %v1903 = vadd.f32 0.0, %v1902
    %v1904 = vpop.f32.mrb[0].mxu0
    %v1905 = vpop.f32.mrb[0].mxu0
    %1906 = vdwg.mxu0
    %1907 = vmatprep.subr.bf16.mxu0 %v1574
    %1908 = vmatpush1.bf16.msra.mxu0 %v1573
    %1909 = vmatprep.subr.bf16.mxu0 %v1582
    %1910 = vmatpush1.bf16.msra.mxu0 %v1581
    %1911 = vmatprep.subr.bf16.mxu0 %v1590
    %1912 = vmatpush1.bf16.msra.mxu0 %v1589
    %1913 = vmatprep.subr.bf16.mxu0 %v1598
    %1914 = vmatpush1.bf16.msra.mxu0 %v1597
    %1915 = vmatprep.subr.bf16.mxu0 %v1606
    %1916 = vmatpush1.bf16.msra.mxu0 %v1605
    %1917 = vmatprep.subr.bf16.mxu0 %v1614
    %1918 = vmatpush1.bf16.msra.mxu0 %v1613
    %1919 = vmatprep.subr.bf16.mxu0 %v1622
    %1920 = vmatpush1.bf16.msra.mxu0 %v1621
    %1921 = vmatprep.subr.bf16.mxu0 %v1630
    %1922 = vmatpush1.bf16.msra.mxu0 %v1629
    %1923 = vmatprep.subr.bf16.mxu0 %v1638
    %1924 = vmatpush1.bf16.msra.mxu0 %v1637
    %1925 = vmatprep.subr.bf16.mxu0 %v1646
    %1926 = vmatpush1.bf16.msra.mxu0 %v1645
    %1927 = vmatprep.subr.bf16.mxu0 %v1654
    %1928 = vmatpush1.bf16.msra.mxu0 %v1653
    %1929 = vmatprep.subr.bf16.mxu0 %v1662
    %1930 = vmatpush1.bf16.msra.mxu0 %v1661
    %1931 = vmatprep.subr.bf16.mxu0 %v1670
    %1932 = vmatpush1.bf16.msra.mxu0 %v1669
    %1933 = vmatprep.subr.bf16.mxu0 %v1678
    %1934 = vmatpush1.bf16.msra.mxu0 %v1677
    %1935 = vmatprep.subr.bf16.mxu0 %v1686
    %1936 = vmatpush1.bf16.msra.mxu0 %v1685
    %1937 = vmatprep.subr.bf16.mxu0 %v1694
    %1938 = vmatpush1.bf16.msra.mxu0 %v1693
    %1939 = vmatprep.mubr.bf16.mxu0 %v1184
    %1940 = vmatmul.mubr.bf16.gmra.mrb[0].mxu0 %v1184
    %v1941 = vpop.f32.mrb[0].mxu0
    %v1942 = vadd.f32 0.0, %v1941
    %v1943 = vpop.f32.mrb[0].mxu0
    %v1944 = vadd.f32 0.0, %v1943
    %v1945 = vpop.f32.mrb[0].mxu0
    %v1946 = vpop.f32.mrb[0].mxu0
    %1947 = vdwg.mxu0
    %1948 = vmatprep.subr.bf16.mxu0 %v1576
    %1949 = vmatpush1.bf16.msra.mxu0 %v1575
    %1950 = vmatprep.subr.bf16.mxu0 %v1584
    %1951 = vmatpush1.bf16.msra.mxu0 %v1583
    %1952 = vmatprep.subr.bf16.mxu0 %v1592
    %1953 = vmatpush1.bf16.msra.mxu0 %v1591
    %1954 = vmatprep.subr.bf16.mxu0 %v1600
    %1955 = vmatpush1.bf16.msra.mxu0 %v1599
    %1956 = vmatprep.subr.bf16.mxu0 %v1608
    %1957 = vmatpush1.bf16.msra.mxu0 %v1607
    %1958 = vmatprep.subr.bf16.mxu0 %v1616
    %1959 = vmatpush1.bf16.msra.mxu0 %v1615
    %1960 = vmatprep.subr.bf16.mxu0 %v1624
    %1961 = vmatpush1.bf16.msra.mxu0 %v1623
    %1962 = vmatprep.subr.bf16.mxu0 %v1632
    %1963 = vmatpush1.bf16.msra.mxu0 %v1631
    %1964 = vmatprep.subr.bf16.mxu0 %v1640
    %1965 = vmatpush1.bf16.msra.mxu0 %v1639
    %1966 = vmatprep.subr.bf16.mxu0 %v1648
    %1967 = vmatpush1.bf16.msra.mxu0 %v1647
    %1968 = vmatprep.subr.bf16.mxu0 %v1656
    %1969 = vmatpush1.bf16.msra.mxu0 %v1655
    %1970 = vmatprep.subr.bf16.mxu0 %v1664
    %1971 = vmatpush1.bf16.msra.mxu0 %v1663
    %1972 = vmatprep.subr.bf16.mxu0 %v1672
    %1973 = vmatpush1.bf16.msra.mxu0 %v1671
    %1974 = vmatprep.subr.bf16.mxu0 %v1680
    %1975 = vmatpush1.bf16.msra.mxu0 %v1679
    %1976 = vmatprep.subr.bf16.mxu0 %v1688
    %1977 = vmatpush1.bf16.msra.mxu0 %v1687
    %1978 = vmatprep.subr.bf16.mxu0 %v1696
    %1979 = vmatpush1.bf16.msra.mxu0 %v1695
    %1980 = vmatprep.mubr.bf16.mxu0 %v1184
    %1981 = vmatmul.mubr.bf16.gmra.mrb[0].mxu0 %v1184
    %v1982 = vpop.f32.mrb[0].mxu0
    %v1983 = vadd.f32 0.0, %v1982
    %v1984 = vpop.f32.mrb[0].mxu0
    %v1985 = vadd.f32 0.0, %v1984
    %v1986 = vpop.f32.mrb[0].mxu0
    %v1987 = vpop.f32.mrb[0].mxu0
    %1988 = vdwg.mxu0
    %v1989 = vadd.f32 %v1048, %v1860
    %v1990 = vadd.f32 %v1049, %v1862
    %v1991 = vadd.f32 %v1050, %v1901
    %v1992 = vadd.f32 %v1051, %v1903
    %v1997 = vrot.slane %v1942, 2
    %v1998 = vrot.slane %v1944, 2
    %v1999 = vrot.slane %v1983, 2
    %v2000 = vrot.slane %v1985, 2
    %v2005 = vadd.f32 %v1052, %v1997
    %v2006 = vadd.f32 %v1053, %v1998
    %v2007 = vadd.f32 %v1054, %v1999
    %v2008 = vadd.f32 %v1055, %v2000
    %v2009 = vxor.u32 %v1989, 2147483648
    %v2010 = vxor.u32 %v1990, 2147483648
    %v2011 = vxor.u32 %v1991, 2147483648
    %v2012 = vmul.f32 %v2009, 1.442695
    %v2013 = vpow.pop %v2012
    %v2014 = vmul.f32 %v2010, 1.442695
    %v2015 = vpow.pop %v2014
    %v2016 = vmul.f32 %v2011, 1.442695
    %v2017 = vpow.pop %v2016
    %v2018 = vadd.f32 %v2013, 1.0
    %v2019 = vadd.f32 %v2015, 1.0
    %v2020 = vadd.f32 %v2017, 1.0
    %v2021 = vrcp.pop %v2018
    %v2022 = vmul.f32 1.0, %v2021
    %v2023 = vrcp.pop %v2019
    %v2024 = vmul.f32 1.0, %v2023
    %v2025 = vrcp.pop %v2020
    %v2026 = vmul.f32 1.0, %v2025
    %v2027 = vtanh.pop %v1992
    %v2028 = vmul.f32 %v2024, 0.0
    %v2029 = vmul.f32 %v2022, %v2027
    %v2030 = vadd.f32 %v2028, %v2029
    %v2031 = vtanh.pop %v2030
    %v2032 = vmul.f32 %v2026, %v2031
    %v2033 = vxor.u32 %v2005, 2147483648
    %v2034 = vxor.u32 %v2006, 2147483648
    %v2035 = vxor.u32 %v2007, 2147483648
    %v2036 = vmul.f32 %v2033, 1.442695
    %v2037 = vpow.pop %v2036
    %v2038 = vmul.f32 %v2034, 1.442695
    %v2039 = vpow.pop %v2038
    %v2040 = vmul.f32 %v2035, 1.442695
    %v2041 = vpow.pop %v2040
    %v2042 = vadd.f32 %v2037, 1.0
    %v2043 = vadd.f32 %v2039, 1.0
    %v2044 = vadd.f32 %v2041, 1.0
    %v2045 = vrcp.pop %v2042
    %v2046 = vmul.f32 1.0, %v2045
    %v2047 = vrcp.pop %v2043
    %v2048 = vmul.f32 1.0, %v2047
    %v2049 = vrcp.pop %v2044
    %v2050 = vmul.f32 1.0, %v2049
    %v2051 = vtanh.pop %v2008
    %v2052 = vmul.f32 %v2048, 0.0
    %v2053 = vmul.f32 %v2046, %v2051
    %v2054 = vadd.f32 %v2052, %v2053
    %v2055 = vtanh.pop %v2054
    %v2056 = vmul.f32 %v2050, %v2055
    %v2058 = vrot.slane %v2056, 6
    %v2060 = vpack.c.bf16 %v2032, %v2032
    %v2061 = vpack.c.bf16 %v2058, %v2058
    %2062 = vmatprep.subr.bf16.mxu0 %v1570
    %2063 = vmatpush1.bf16.msra.mxu0 %v1569
    %2064 = vmatprep.subr.bf16.mxu0 %v1578
    %2065 = vmatpush1.bf16.msra.mxu0 %v1577
    %2066 = vmatprep.subr.bf16.mxu0 %v1586
    %2067 = vmatpush1.bf16.msra.mxu0 %v1585
    %2068 = vmatprep.subr.bf16.mxu0 %v1594
    %2069 = vmatpush1.bf16.msra.mxu0 %v1593
    %2070 = vmatprep.subr.bf16.mxu0 %v1602
    %2071 = vmatpush1.bf16.msra.mxu0 %v1601
    %2072 = vmatprep.subr.bf16.mxu0 %v1610
    %2073 = vmatpush1.bf16.msra.mxu0 %v1609
    %2074 = vmatprep.subr.bf16.mxu0 %v1618
    %2075 = vmatpush1.bf16.msra.mxu0 %v1617
    %2076 = vmatprep.subr.bf16.mxu0 %v1626
    %2077 = vmatpush1.bf16.msra.mxu0 %v1625
    %2078 = vmatprep.subr.bf16.mxu0 %v1634
    %2079 = vmatpush1.bf16.msra.mxu0 %v1633
    %2080 = vmatprep.subr.bf16.mxu0 %v1642
    %2081 = vmatpush1.bf16.msra.mxu0 %v1641
    %2082 = vmatprep.subr.bf16.mxu0 %v1650
    %2083 = vmatpush1.bf16.msra.mxu0 %v1649
    %2084 = vmatprep.subr.bf16.mxu0 %v1658
    %2085 = vmatpush1.bf16.msra.mxu0 %v1657
    %2086 = vmatprep.subr.bf16.mxu0 %v1666
    %2087 = vmatpush1.bf16.msra.mxu0 %v1665
    %2088 = vmatprep.subr.bf16.mxu0 %v1674
    %2089 = vmatpush1.bf16.msra.mxu0 %v1673
    %2090 = vmatprep.subr.bf16.mxu0 %v1682
    %2091 = vmatpush1.bf16.msra.mxu0 %v1681
    %2092 = vmatprep.subr.bf16.mxu0 %v1690
    %2093 = vmatpush1.bf16.msra.mxu0 %v1689
    %2094 = vmatprep.mubr.bf16.mxu0 %v2061
    %2095 = vmatmul.mubr.bf16.gmra.mrb[0].mxu0 %v2060
    %v2096 = vpop.f32.mrb[0].mxu0
    %v2097 = vadd.f32 0.0, %v2096
    %v2098 = vpop.f32.mrb[0].mxu0
    %v2099 = vadd.f32 0.0, %v2098
    %v2100 = vpop.f32.mrb[0].mxu0
    %v2101 = vpop.f32.mrb[0].mxu0
    %2102 = vdwg.mxu0
    %2103 = vmatprep.subr.bf16.mxu0 %v1572
    %2104 = vmatpush1.bf16.msra.mxu0 %v1571
    %2105 = vmatprep.subr.bf16.mxu0 %v1580
    %2106 = vmatpush1.bf16.msra.mxu0 %v1579
    %2107 = vmatprep.subr.bf16.mxu0 %v1588
    %2108 = vmatpush1.bf16.msra.mxu0 %v1587
    %2109 = vmatprep.subr.bf16.mxu0 %v1596
    %2110 = vmatpush1.bf16.msra.mxu0 %v1595
    %2111 = vmatprep.subr.bf16.mxu0 %v1604
    %2112 = vmatpush1.bf16.msra.mxu0 %v1603
    %2113 = vmatprep.subr.bf16.mxu0 %v1612
    %2114 = vmatpush1.bf16.msra.mxu0 %v1611
    %2115 = vmatprep.subr.bf16.mxu0 %v1620
    %2116 = vmatpush1.bf16.msra.mxu0 %v1619
    %2117 = vmatprep.subr.bf16.mxu0 %v1628
    %2118 = vmatpush1.bf16.msra.mxu0 %v1627
    %2119 = vmatprep.subr.bf16.mxu0 %v1636
    %2120 = vmatpush1.bf16.msra.mxu0 %v1635
    %2121 = vmatprep.subr.bf16.mxu0 %v1644
    %2122 = vmatpush1.bf16.msra.mxu0 %v1643
    %2123 = vmatprep.subr.bf16.mxu0 %v1652
    %2124 = vmatpush1.bf16.msra.mxu0 %v1651
    %2125 = vmatprep.subr.bf16.mxu0 %v1660
    %2126 = vmatpush1.bf16.msra.mxu0 %v1659
    %2127 = vmatprep.subr.bf16.mxu0 %v1668
    %2128 = vmatpush1.bf16.msra.mxu0 %v1667
    %2129 = vmatprep.subr.bf16.mxu0 %v1676
    %2130 = vmatpush1.bf16.msra.mxu0 %v1675
    %2131 = vmatprep.subr.bf16.mxu0 %v1684
    %2132 = vmatpush1.bf16.msra.mxu0 %v1683
    %2133 = vmatprep.subr.bf16.mxu0 %v1692
    %2134 = vmatpush1.bf16.msra.mxu0 %v1691
    %2135 = vmatprep.mubr.bf16.mxu0 %v2061
    %2136 = vmatmul.mubr.bf16.gmra.mrb[0].mxu0 %v2060
    %v2137 = vpop.f32.mrb[0].mxu0
    %v2138 = vadd.f32 0.0, %v2137
    %v2139 = vpop.f32.mrb[0].mxu0
    %v2140 = vadd.f32 0.0, %v2139
    %v2141 = vpop.f32.mrb[0].mxu0
    %v2142 = vpop.f32.mrb[0].mxu0
    %2143 = vdwg.mxu0
    %2144 = vmatprep.subr.bf16.mxu0 %v1574
    %2145 = vmatpush1.bf16.msra.mxu0 %v1573
    %2146 = vmatprep.subr.bf16.mxu0 %v1582
    %2147 = vmatpush1.bf16.msra.mxu0 %v1581
    %2148 = vmatprep.subr.bf16.mxu0 %v1590
    %2149 = vmatpush1.bf16.msra.mxu0 %v1589
    %2150 = vmatprep.subr.bf16.mxu0 %v1598
    %2151 = vmatpush1.bf16.msra.mxu0 %v1597
    %2152 = vmatprep.subr.bf16.mxu0 %v1606
    %2153 = vmatpush1.bf16.msra.mxu0 %v1605
    %2154 = vmatprep.subr.bf16.mxu0 %v1614
    %2155 = vmatpush1.bf16.msra.mxu0 %v1613
    %2156 = vmatprep.subr.bf16.mxu0 %v1622
    %2157 = vmatpush1.bf16.msra.mxu0 %v1621
    %2158 = vmatprep.subr.bf16.mxu0 %v1630
    %2159 = vmatpush1.bf16.msra.mxu0 %v1629
    %2160 = vmatprep.subr.bf16.mxu0 %v1638
    %2161 = vmatpush1.bf16.msra.mxu0 %v1637
    %2162 = vmatprep.subr.bf16.mxu0 %v1646
    %2163 = vmatpush1.bf16.msra.mxu0 %v1645
    %2164 = vmatprep.subr.bf16.mxu0 %v1654
    %2165 = vmatpush1.bf16.msra.mxu0 %v1653
    %2166 = vmatprep.subr.bf16.mxu0 %v1662
    %2167 = vmatpush1.bf16.msra.mxu0 %v1661
    %2168 = vmatprep.subr.bf16.mxu0 %v1670
    %2169 = vmatpush1.bf16.msra.mxu0 %v1669
    %2170 = vmatprep.subr.bf16.mxu0 %v1678
    %2171 = vmatpush1.bf16.msra.mxu0 %v1677
    %2172 = vmatprep.subr.bf16.mxu0 %v1686
    %2173 = vmatpush1.bf16.msra.mxu0 %v1685
    %2174 = vmatprep.subr.bf16.mxu0 %v1694
    %2175 = vmatpush1.bf16.msra.mxu0 %v1693
    %2176 = vmatprep.mubr.bf16.mxu0 %v2061
    %2177 = vmatmul.mubr.bf16.gmra.mrb[0].mxu0 %v2060
    %v2178 = vpop.f32.mrb[0].mxu0
    %v2179 = vadd.f32 0.0, %v2178
    %v2180 = vpop.f32.mrb[0].mxu0
    %v2181 = vadd.f32 0.0, %v2180
    %v2182 = vpop.f32.mrb[0].mxu0
    %v2183 = vpop.f32.mrb[0].mxu0
    %2184 = vdwg.mxu0
    %2185 = vmatprep.subr.bf16.mxu0 %v1576
    %2186 = vmatpush1.bf16.msra.mxu0 %v1575
    %2187 = vmatprep.subr.bf16.mxu0 %v1584
    %2188 = vmatpush1.bf16.msra.mxu0 %v1583
    %2189 = vmatprep.subr.bf16.mxu0 %v1592
    %2190 = vmatpush1.bf16.msra.mxu0 %v1591
    %2191 = vmatprep.subr.bf16.mxu0 %v1600
    %2192 = vmatpush1.bf16.msra.mxu0 %v1599
    %2193 = vmatprep.subr.bf16.mxu0 %v1608
    %2194 = vmatpush1.bf16.msra.mxu0 %v1607
    %2195 = vmatprep.subr.bf16.mxu0 %v1616
    %2196 = vmatpush1.bf16.msra.mxu0 %v1615
    %2197 = vmatprep.subr.bf16.mxu0 %v1624
    %2198 = vmatpush1.bf16.msra.mxu0 %v1623
    %2199 = vmatprep.subr.bf16.mxu0 %v1632
    %2200 = vmatpush1.bf16.msra.mxu0 %v1631
    %2201 = vmatprep.subr.bf16.mxu0 %v1640
    %2202 = vmatpush1.bf16.msra.mxu0 %v1639
    %2203 = vmatprep.subr.bf16.mxu0 %v1648
    %2204 = vmatpush1.bf16.msra.mxu0 %v1647
    %2205 = vmatprep.subr.bf16.mxu0 %v1656
    %2206 = vmatpush1.bf16.msra.mxu0 %v1655
    %2207 = vmatprep.subr.bf16.mxu0 %v1664
    %2208 = vmatpush1.bf16.msra.mxu0 %v1663
    %2209 = vmatprep.subr.bf16.mxu0 %v1672
    %2210 = vmatpush1.bf16.msra.mxu0 %v1671
    %2211 = vmatprep.subr.bf16.mxu0 %v1680
    %2212 = vmatpush1.bf16.msra.mxu0 %v1679
    %2213 = vmatprep.subr.bf16.mxu0 %v1688
    %2214 = vmatpush1.bf16.msra.mxu0 %v1687
    %2215 = vmatprep.subr.bf16.mxu0 %v1696
    %2216 = vmatpush1.bf16.msra.mxu0 %v1695
    %2217 = vmatprep.mubr.bf16.mxu0 %v2061
    %2218 = vmatmul.mubr.bf16.gmra.mrb[0].mxu0 %v2060
    %v2219 = vpop.f32.mrb[0].mxu0
    %v2220 = vadd.f32 0.0, %v2219
    %v2221 = vpop.f32.mrb[0].mxu0
    %v2222 = vadd.f32 0.0, %v2221
    %v2223 = vpop.f32.mrb[0].mxu0
    %v2224 = vpop.f32.mrb[0].mxu0
    %2225 = vdwg.mxu0
    %v2230 = vrot.slane %v2097, 6
    %v2231 = vrot.slane %v2099, 6
    %v2232 = vrot.slane %v2138, 6
    %v2233 = vrot.slane %v2140, 6
    %v2238 = vadd.f32 %v1048, %v2230
    %v2239 = vadd.f32 %v1049, %v2231
    %v2240 = vadd.f32 %v1050, %v2232
    %v2241 = vadd.f32 %v1051, %v2233
    %v2246 = vrot.slane %v2179, 4
    %v2247 = vrot.slane %v2181, 4
    %v2248 = vrot.slane %v2220, 4
    %v2249 = vrot.slane %v2222, 4
    %v2254 = vadd.f32 %v1052, %v2246
    %v2255 = vadd.f32 %v1053, %v2247
    %v2256 = vadd.f32 %v1054, %v2248
    %v2257 = vadd.f32 %v1055, %v2249
    %v2258 = vxor.u32 %v2238, 2147483648
    %v2259 = vxor.u32 %v2239, 2147483648
    %v2260 = vxor.u32 %v2240, 2147483648
    %v2261 = vmul.f32 %v2258, 1.442695
    %v2262 = vpow.pop %v2261
    %v2263 = vmul.f32 %v2259, 1.442695
    %v2264 = vpow.pop %v2263
    %v2265 = vmul.f32 %v2260, 1.442695
    %v2266 = vpow.pop %v2265
    %v2267 = vadd.f32 %v2262, 1.0
    %v2268 = vadd.f32 %v2264, 1.0
    %v2269 = vadd.f32 %v2266, 1.0
    %v2270 = vrcp.pop %v2267
    %v2271 = vmul.f32 1.0, %v2270
    %v2272 = vrcp.pop %v2268
    %v2273 = vmul.f32 1.0, %v2272
    %v2274 = vrcp.pop %v2269
    %v2275 = vmul.f32 1.0, %v2274
    %v2276 = vtanh.pop %v2241
    %v2278 = vrot.slane %v2030, 6
    %v2280 = vmul.f32 %v2273, %v2278
    %v2281 = vmul.f32 %v2271, %v2276
    %v2282 = vadd.f32 %v2280, %v2281
    %v2283 = vtanh.pop %v2282
    %v2284 = vmul.f32 %v2275, %v2283
    %v2285 = vxor.u32 %v2254, 2147483648
    %v2286 = vxor.u32 %v2255, 2147483648
    %v2287 = vxor.u32 %v2256, 2147483648
    %v2288 = vmul.f32 %v2285, 1.442695
    %v2289 = vpow.pop %v2288
    %v2290 = vmul.f32 %v2286, 1.442695
    %v2291 = vpow.pop %v2290
    %v2292 = vmul.f32 %v2287, 1.442695
    %v2293 = vpow.pop %v2292
    %v2294 = vadd.f32 %v2289, 1.0
    %v2295 = vadd.f32 %v2291, 1.0
    %v2296 = vadd.f32 %v2293, 1.0
    %v2297 = vrcp.pop %v2294
    %v2298 = vmul.f32 1.0, %v2297
    %v2299 = vrcp.pop %v2295
    %v2300 = vmul.f32 1.0, %v2299
    %v2301 = vrcp.pop %v2296
    %v2302 = vmul.f32 1.0, %v2301
    %v2303 = vtanh.pop %v2257
    %v2305 = vrot.slane %v2054, 2
    %v2307 = vmul.f32 %v2300, %v2305
    %v2308 = vmul.f32 %v2298, %v2303
    %v2309 = vadd.f32 %v2307, %v2308
    %v2310 = vtanh.pop %v2309
    %v2311 = vmul.f32 %v2302, %v2310
    %v2313 = vrot.slane %v2311, 2
    %v2315 = vpack.c.bf16 %v2284, %v2284
    %v2316 = vpack.c.bf16 %v2313, %v2313
    %v2319 = vrot.slane %v2315, 1
    %v2320 = vrot.slane %v2316, 1
    %2323 = vmatprep.subr.bf16.mxu0 %v1570
    %2324 = vmatpush1.bf16.msra.mxu0 %v1569
    %2325 = vmatprep.subr.bf16.mxu0 %v1578
    %2326 = vmatpush1.bf16.msra.mxu0 %v1577
    %2327 = vmatprep.subr.bf16.mxu0 %v1586
    %2328 = vmatpush1.bf16.msra.mxu0 %v1585
    %2329 = vmatprep.subr.bf16.mxu0 %v1594
    %2330 = vmatpush1.bf16.msra.mxu0 %v1593
    %2331 = vmatprep.subr.bf16.mxu0 %v1602
    %2332 = vmatpush1.bf16.msra.mxu0 %v1601
    %2333 = vmatprep.subr.bf16.mxu0 %v1610
    %2334 = vmatpush1.bf16.msra.mxu0 %v1609
    %2335 = vmatprep.subr.bf16.mxu0 %v1618
    %2336 = vmatpush1.bf16.msra.mxu0 %v1617
    %2337 = vmatprep.subr.bf16.mxu0 %v1626
    %2338 = vmatpush1.bf16.msra.mxu0 %v1625
    %2339 = vmatprep.subr.bf16.mxu0 %v1634
    %2340 = vmatpush1.bf16.msra.mxu0 %v1633
    %2341 = vmatprep.subr.bf16.mxu0 %v1642
    %2342 = vmatpush1.bf16.msra.mxu0 %v1641
    %2343 = vmatprep.subr.bf16.mxu0 %v1650
    %2344 = vmatpush1.bf16.msra.mxu0 %v1649
    %2345 = vmatprep.subr.bf16.mxu0 %v1658
    %2346 = vmatpush1.bf16.msra.mxu0 %v1657
    %2347 = vmatprep.subr.bf16.mxu0 %v1666
    %2348 = vmatpush1.bf16.msra.mxu0 %v1665
    %2349 = vmatprep.subr.bf16.mxu0 %v1674
    %2350 = vmatpush1.bf16.msra.mxu0 %v1673
    %2351 = vmatprep.subr.bf16.mxu0 %v1682
    %2352 = vmatpush1.bf16.msra.mxu0 %v1681
    %2353 = vmatprep.subr.bf16.mxu0 %v1690
    %2354 = vmatpush1.bf16.msra.mxu0 %v1689
    %2355 = vmatprep.mubr.bf16.mxu0 %v2320
    %2356 = vmatmul.mubr.bf16.gmra.mrb[0].mxu0 %v2319
    %v2357 = vpop.f32.mrb[0].mxu0
    %v2358 = vadd.f32 0.0, %v2357
    %v2359 = vpop.f32.mrb[0].mxu0
    %v2360 = vadd.f32 0.0, %v2359
    %v2361 = vpop.f32.mrb[0].mxu0
    %v2362 = vpop.f32.mrb[0].mxu0
    %2363 = vdwg.mxu0
    %2364 = vmatprep.subr.bf16.mxu0 %v1572
    %2365 = vmatpush1.bf16.msra.mxu0 %v1571
    %2366 = vmatprep.subr.bf16.mxu0 %v1580
    %2367 = vmatpush1.bf16.msra.mxu0 %v1579
    %2368 = vmatprep.subr.bf16.mxu0 %v1588
    %2369 = vmatpush1.bf16.msra.mxu0 %v1587
    %2370 = vmatprep.subr.bf16.mxu0 %v1596
    %2371 = vmatpush1.bf16.msra.mxu0 %v1595
    %2372 = vmatprep.subr.bf16.mxu0 %v1604
    %2373 = vmatpush1.bf16.msra.mxu0 %v1603
    %2374 = vmatprep.subr.bf16.mxu0 %v1612
    %2375 = vmatpush1.bf16.msra.mxu0 %v1611
    %2376 = vmatprep.subr.bf16.mxu0 %v1620
    %2377 = vmatpush1.bf16.msra.mxu0 %v1619
    %2378 = vmatprep.subr.bf16.mxu0 %v1628
    %2379 = vmatpush1.bf16.msra.mxu0 %v1627
    %2380 = vmatprep.subr.bf16.mxu0 %v1636
    %2381 = vmatpush1.bf16.msra.mxu0 %v1635
    %2382 = vmatprep.subr.bf16.mxu0 %v1644
    %2383 = vmatpush1.bf16.msra.mxu0 %v1643
    %2384 = vmatprep.subr.bf16.mxu0 %v1652
    %2385 = vmatpush1.bf16.msra.mxu0 %v1651
    %2386 = vmatprep.subr.bf16.mxu0 %v1660
    %2387 = vmatpush1.bf16.msra.mxu0 %v1659
    %2388 = vmatprep.subr.bf16.mxu0 %v1668
    %2389 = vmatpush1.bf16.msra.mxu0 %v1667
    %2390 = vmatprep.subr.bf16.mxu0 %v1676
    %2391 = vmatpush1.bf16.msra.mxu0 %v1675
    %2392 = vmatprep.subr.bf16.mxu0 %v1684
    %2393 = vmatpush1.bf16.msra.mxu0 %v1683
    %2394 = vmatprep.subr.bf16.mxu0 %v1692
    %2395 = vmatpush1.bf16.msra.mxu0 %v1691
    %2396 = vmatprep.mubr.bf16.mxu0 %v2320
    %2397 = vmatmul.mubr.bf16.gmra.mrb[0].mxu0 %v2319
    %v2398 = vpop.f32.mrb[0].mxu0
    %v2399 = vadd.f32 0.0, %v2398
    %v2400 = vpop.f32.mrb[0].mxu0
    %v2401 = vadd.f32 0.0, %v2400
    %v2402 = vpop.f32.mrb[0].mxu0
    %v2403 = vpop.f32.mrb[0].mxu0
    %2404 = vdwg.mxu0
    %2405 = vmatprep.subr.bf16.mxu0 %v1574
    %2406 = vmatpush1.bf16.msra.mxu0 %v1573
    %2407 = vmatprep.subr.bf16.mxu0 %v1582
    %2408 = vmatpush1.bf16.msra.mxu0 %v1581
    %2409 = vmatprep.subr.bf16.mxu0 %v1590
    %2410 = vmatpush1.bf16.msra.mxu0 %v1589
    %2411 = vmatprep.subr.bf16.mxu0 %v1598
    %2412 = vmatpush1.bf16.msra.mxu0 %v1597
    %2413 = vmatprep.subr.bf16.mxu0 %v1606
    %2414 = vmatpush1.bf16.msra.mxu0 %v1605
    %2415 = vmatprep.subr.bf16.mxu0 %v1614
    %2416 = vmatpush1.bf16.msra.mxu0 %v1613
    %2417 = vmatprep.subr.bf16.mxu0 %v1622
    %2418 = vmatpush1.bf16.msra.mxu0 %v1621
    %2419 = vmatprep.subr.bf16.mxu0 %v1630
    %2420 = vmatpush1.bf16.msra.mxu0 %v1629
    %2421 = vmatprep.subr.bf16.mxu0 %v1638
    %2422 = vmatpush1.bf16.msra.mxu0 %v1637
    %2423 = vmatprep.subr.bf16.mxu0 %v1646
    %2424 = vmatpush1.bf16.msra.mxu0 %v1645
    %2425 = vmatprep.subr.bf16.mxu0 %v1654
    %2426 = vmatpush1.bf16.msra.mxu0 %v1653
    %2427 = vmatprep.subr.bf16.mxu0 %v1662
    %2428 = vmatpush1.bf16.msra.mxu0 %v1661
    %2429 = vmatprep.subr.bf16.mxu0 %v1670
    %2430 = vmatpush1.bf16.msra.mxu0 %v1669
    %2431 = vmatprep.subr.bf16.mxu0 %v1678
    %2432 = vmatpush1.bf16.msra.mxu0 %v1677
    %2433 = vmatprep.subr.bf16.mxu0 %v1686
    %2434 = vmatpush1.bf16.msra.mxu0 %v1685
    %2435 = vmatprep.subr.bf16.mxu0 %v1694
    %2436 = vmatpush1.bf16.msra.mxu0 %v1693
    %2437 = vmatprep.mubr.bf16.mxu0 %v2320
    %2438 = vmatmul.mubr.bf16.gmra.mrb[0].mxu0 %v2319
    %v2439 = vpop.f32.mrb[0].mxu0
    %v2440 = vadd.f32 0.0, %v2439
    %v2441 = vpop.f32.mrb[0].mxu0
    %v2442 = vadd.f32 0.0, %v2441
    %v2443 = vpop.f32.mrb[0].mxu0
    %v2444 = vpop.f32.mrb[0].mxu0
    %2445 = vdwg.mxu0
    %2446 = vmatprep.subr.bf16.mxu0 %v1576
    %2447 = vmatpush1.bf16.msra.mxu0 %v1575
    %2448 = vmatprep.subr.bf16.mxu0 %v1584
    %2449 = vmatpush1.bf16.msra.mxu0 %v1583
    %2450 = vmatprep.subr.bf16.mxu0 %v1592
    %2451 = vmatpush1.bf16.msra.mxu0 %v1591
    %2452 = vmatprep.subr.bf16.mxu0 %v1600
    %2453 = vmatpush1.bf16.msra.mxu0 %v1599
    %2454 = vmatprep.subr.bf16.mxu0 %v1608
    %2455 = vmatpush1.bf16.msra.mxu0 %v1607
    %2456 = vmatprep.subr.bf16.mxu0 %v1616
    %2457 = vmatpush1.bf16.msra.mxu0 %v1615
    %2458 = vmatprep.subr.bf16.mxu0 %v1624
    %2459 = vmatpush1.bf16.msra.mxu0 %v1623
    %2460 = vmatprep.subr.bf16.mxu0 %v1632
    %2461 = vmatpush1.bf16.msra.mxu0 %v1631
    %2462 = vmatprep.subr.bf16.mxu0 %v1640
    %2463 = vmatpush1.bf16.msra.mxu0 %v1639
    %2464 = vmatprep.subr.bf16.mxu0 %v1648
    %2465 = vmatpush1.bf16.msra.mxu0 %v1647
    %2466 = vmatprep.subr.bf16.mxu0 %v1656
    %2467 = vmatpush1.bf16.msra.mxu0 %v1655
    %2468 = vmatprep.subr.bf16.mxu0 %v1664
    %2469 = vmatpush1.bf16.msra.mxu0 %v1663
    %2470 = vmatprep.subr.bf16.mxu0 %v1672
    %2471 = vmatpush1.bf16.msra.mxu0 %v1671
    %2472 = vmatprep.subr.bf16.mxu0 %v1680
    %2473 = vmatpush1.bf16.msra.mxu0 %v1679
    %2474 = vmatprep.subr.bf16.mxu0 %v1688
    %2475 = vmatpush1.bf16.msra.mxu0 %v1687
    %2476 = vmatprep.subr.bf16.mxu0 %v1696
    %2477 = vmatpush1.bf16.msra.mxu0 %v1695
    %2478 = vmatprep.mubr.bf16.mxu0 %v2320
    %2479 = vmatmul.mubr.bf16.gmra.mrb[0].mxu0 %v2319
    %v2480 = vpop.f32.mrb[0].mxu0
    %v2481 = vadd.f32 0.0, %v2480
    %v2482 = vpop.f32.mrb[0].mxu0
    %v2483 = vadd.f32 0.0, %v2482
    %v2484 = vpop.f32.mrb[0].mxu0
    %v2485 = vpop.f32.mrb[0].mxu0
    %2486 = vdwg.mxu0
    %v2491 = vrot.slane %v2358, 4
    %v2492 = vrot.slane %v2360, 4
    %v2493 = vrot.slane %v2399, 4
    %v2494 = vrot.slane %v2401, 4
    %v2499 = vadd.f32 %v1048, %v2491
    %v2500 = vadd.f32 %v1049, %v2492
    %v2501 = vadd.f32 %v1050, %v2493
    %v2502 = vadd.f32 %v1051, %v2494
    %v2507 = vrot.slane %v2440, 6
    %v2508 = vrot.slane %v2442, 6
    %v2509 = vrot.slane %v2481, 6
    %v2510 = vrot.slane %v2483, 6
    %v2515 = vadd.f32 %v1052, %v2507
    %v2516 = vadd.f32 %v1053, %v2508
    %v2517 = vadd.f32 %v1054, %v2509
    %v2518 = vadd.f32 %v1055, %v2510
    %v2519 = vxor.u32 %v2499, 2147483648
    %v2520 = vxor.u32 %v2500, 2147483648
    %v2521 = vxor.u32 %v2501, 2147483648
    %v2522 = vmul.f32 %v2519, 1.442695
    %v2523 = vpow.pop %v2522
    %v2524 = vmul.f32 %v2520, 1.442695
    %v2525 = vpow.pop %v2524
    %v2526 = vmul.f32 %v2521, 1.442695
    %v2527 = vpow.pop %v2526
    %v2528 = vadd.f32 %v2523, 1.0
    %v2529 = vadd.f32 %v2525, 1.0
    %v2530 = vadd.f32 %v2527, 1.0
    %v2531 = vrcp.pop %v2528
    %v2532 = vmul.f32 1.0, %v2531
    %v2533 = vrcp.pop %v2529
    %v2534 = vmul.f32 1.0, %v2533
    %v2535 = vrcp.pop %v2530
    %v2536 = vmul.f32 1.0, %v2535
    %v2537 = vtanh.pop %v2502
    %v2539 = vrot.slane %v2282, 6
    %v2541 = vmul.f32 %v2534, %v2539
    %v2542 = vmul.f32 %v2532, %v2537
    %v2543 = vadd.f32 %v2541, %v2542
    %v2544 = vtanh.pop %v2543
    %v2545 = vmul.f32 %v2536, %v2544
    %v2546 = vxor.u32 %v2515, 2147483648
    %v2547 = vxor.u32 %v2516, 2147483648
    %v2548 = vxor.u32 %v2517, 2147483648
    %v2549 = vmul.f32 %v2546, 1.442695
    %v2550 = vpow.pop %v2549
    %v2551 = vmul.f32 %v2547, 1.442695
    %v2552 = vpow.pop %v2551
    %v2553 = vmul.f32 %v2548, 1.442695
    %v2554 = vpow.pop %v2553
    %v2555 = vadd.f32 %v2550, 1.0
    %v2556 = vadd.f32 %v2552, 1.0
    %v2557 = vadd.f32 %v2554, 1.0
    %v2558 = vrcp.pop %v2555
    %v2559 = vmul.f32 1.0, %v2558
    %v2560 = vrcp.pop %v2556
    %v2561 = vmul.f32 1.0, %v2560
    %v2562 = vrcp.pop %v2557
    %v2563 = vmul.f32 1.0, %v2562
    %v2564 = vtanh.pop %v2518
    %v2566 = vrot.slane %v2309, 2
    %v2568 = vmul.f32 %v2561, %v2566
    %v2569 = vmul.f32 %v2559, %v2564
    %v2570 = vadd.f32 %v2568, %v2569
    %v2571 = vtanh.pop %v2570
    %v2572 = vmul.f32 %v2563, %v2571
    %v2574 = vrot.slane %v2572, 6
    %v2576 = vpack.c.bf16 %v2545, %v2545
    %v2577 = vpack.c.bf16 %v2574, %v2574
    %v2580 = vrot.slane %v2576, 2
    %v2581 = vrot.slane %v2577, 2
    %2584 = vmatprep.subr.bf16.mxu0 %v1570
    %2585 = vmatpush1.bf16.msra.mxu0 %v1569
    %2586 = vmatprep.subr.bf16.mxu0 %v1578
    %2587 = vmatpush1.bf16.msra.mxu0 %v1577
    %2588 = vmatprep.subr.bf16.mxu0 %v1586
    %2589 = vmatpush1.bf16.msra.mxu0 %v1585
    %2590 = vmatprep.subr.bf16.mxu0 %v1594
    %2591 = vmatpush1.bf16.msra.mxu0 %v1593
    %2592 = vmatprep.subr.bf16.mxu0 %v1602
    %2593 = vmatpush1.bf16.msra.mxu0 %v1601
    %2594 = vmatprep.subr.bf16.mxu0 %v1610
    %2595 = vmatpush1.bf16.msra.mxu0 %v1609
    %2596 = vmatprep.subr.bf16.mxu0 %v1618
    %2597 = vmatpush1.bf16.msra.mxu0 %v1617
    %2598 = vmatprep.subr.bf16.mxu0 %v1626
    %2599 = vmatpush1.bf16.msra.mxu0 %v1625
    %2600 = vmatprep.subr.bf16.mxu0 %v1634
    %2601 = vmatpush1.bf16.msra.mxu0 %v1633
    %2602 = vmatprep.subr.bf16.mxu0 %v1642
    %2603 = vmatpush1.bf16.msra.mxu0 %v1641
    %2604 = vmatprep.subr.bf16.mxu0 %v1650
    %2605 = vmatpush1.bf16.msra.mxu0 %v1649
    %2606 = vmatprep.subr.bf16.mxu0 %v1658
    %2607 = vmatpush1.bf16.msra.mxu0 %v1657
    %2608 = vmatprep.subr.bf16.mxu0 %v1666
    %2609 = vmatpush1.bf16.msra.mxu0 %v1665
    %2610 = vmatprep.subr.bf16.mxu0 %v1674
    %2611 = vmatpush1.bf16.msra.mxu0 %v1673
    %2612 = vmatprep.subr.bf16.mxu0 %v1682
    %2613 = vmatpush1.bf16.msra.mxu0 %v1681
    %2614 = vmatprep.subr.bf16.mxu0 %v1690
    %2615 = vmatpush1.bf16.msra.mxu0 %v1689
    %2616 = vmatprep.mubr.bf16.mxu0 %v2581
    %2617 = vmatmul.mubr.bf16.gmra.mrb[0].mxu0 %v2580
    %v2618 = vpop.f32.mrb[0].mxu0
    %v2619 = vadd.f32 0.0, %v2618
    %v2620 = vpop.f32.mrb[0].mxu0
    %v2621 = vadd.f32 0.0, %v2620
    %v2622 = vpop.f32.mrb[0].mxu0
    %v2623 = vpop.f32.mrb[0].mxu0
    %2624 = vdwg.mxu0
    %2625 = vmatprep.subr.bf16.mxu0 %v1572
    %2626 = vmatpush1.bf16.msra.mxu0 %v1571
    %2627 = vmatprep.subr.bf16.mxu0 %v1580
    %2628 = vmatpush1.bf16.msra.mxu0 %v1579
    %2629 = vmatprep.subr.bf16.mxu0 %v1588
    %2630 = vmatpush1.bf16.msra.mxu0 %v1587
    %2631 = vmatprep.subr.bf16.mxu0 %v1596
    %2632 = vmatpush1.bf16.msra.mxu0 %v1595
    %2633 = vmatprep.subr.bf16.mxu0 %v1604
    %2634 = vmatpush1.bf16.msra.mxu0 %v1603
    %2635 = vmatprep.subr.bf16.mxu0 %v1612
    %2636 = vmatpush1.bf16.msra.mxu0 %v1611
    %2637 = vmatprep.subr.bf16.mxu0 %v1620
    %2638 = vmatpush1.bf16.msra.mxu0 %v1619
    %2639 = vmatprep.subr.bf16.mxu0 %v1628
    %2640 = vmatpush1.bf16.msra.mxu0 %v1627
    %2641 = vmatprep.subr.bf16.mxu0 %v1636
    %2642 = vmatpush1.bf16.msra.mxu0 %v1635
    %2643 = vmatprep.subr.bf16.mxu0 %v1644
    %2644 = vmatpush1.bf16.msra.mxu0 %v1643
    %2645 = vmatprep.subr.bf16.mxu0 %v1652
    %2646 = vmatpush1.bf16.msra.mxu0 %v1651
    %2647 = vmatprep.subr.bf16.mxu0 %v1660
    %2648 = vmatpush1.bf16.msra.mxu0 %v1659
    %2649 = vmatprep.subr.bf16.mxu0 %v1668
    %2650 = vmatpush1.bf16.msra.mxu0 %v1667
    %2651 = vmatprep.subr.bf16.mxu0 %v1676
    %2652 = vmatpush1.bf16.msra.mxu0 %v1675
    %2653 = vmatprep.subr.bf16.mxu0 %v1684
    %2654 = vmatpush1.bf16.msra.mxu0 %v1683
    %2655 = vmatprep.subr.bf16.mxu0 %v1692
    %2656 = vmatpush1.bf16.msra.mxu0 %v1691
    %2657 = vmatprep.mubr.bf16.mxu0 %v2581
    %2658 = vmatmul.mubr.bf16.gmra.mrb[0].mxu0 %v2580
    %v2659 = vpop.f32.mrb[0].mxu0
    %v2660 = vadd.f32 0.0, %v2659
    %v2661 = vpop.f32.mrb[0].mxu0
    %v2662 = vadd.f32 0.0, %v2661
    %v2663 = vpop.f32.mrb[0].mxu0
    %v2664 = vpop.f32.mrb[0].mxu0
    %2665 = vdwg.mxu0
    %v2670 = vrot.slane %v2619, 2
    %v2671 = vrot.slane %v2621, 2
    %v2672 = vrot.slane %v2660, 2
    %v2673 = vrot.slane %v2662, 2
    %v2678 = vadd.f32 %v1048, %v2670
    %v2679 = vadd.f32 %v1049, %v2671
    %v2680 = vadd.f32 %v1050, %v2672
    %v2681 = vadd.f32 %v1051, %v2673
    %v2682 = vxor.u32 %v2678, 2147483648
    %v2683 = vxor.u32 %v2679, 2147483648
    %v2684 = vxor.u32 %v2680, 2147483648
    %v2685 = vmul.f32 %v2682, 1.442695
    %v2686 = vpow.pop %v2685
    %v2687 = vmul.f32 %v2683, 1.442695
    %v2688 = vpow.pop %v2687
    %v2689 = vmul.f32 %v2684, 1.442695
    %v2690 = vpow.pop %v2689
    %v2691 = vadd.f32 %v2686, 1.0
    %v2692 = vadd.f32 %v2688, 1.0
    %v2693 = vadd.f32 %v2690, 1.0
    %v2694 = vrcp.pop %v2691
    %v2695 = vmul.f32 1.0, %v2694
    %v2696 = vrcp.pop %v2692
    %v2697 = vmul.f32 1.0, %v2696
    %v2698 = vrcp.pop %v2693
    %v2699 = vmul.f32 1.0, %v2698
    %v2700 = vtanh.pop %v2681
    %v2702 = vrot.slane %v2543, 6
    %v2704 = vmul.f32 %v2697, %v2702
    %v2705 = vmul.f32 %v2695, %v2700
    %v2706 = vadd.f32 %v2704, %v2705
    %v2707 = vtanh.pop %v2706
    %v2708 = vmul.f32 %v2699, %v2707
    %v2709 = vld [vmem:[%s4] sm:$0xff]
    %v2710 = vld [vmem:[%s4 + $0x8] sm:$0xff]
    %v2711 = vld [vmem:[%s4 + $0x10] sm:$0xff]
    %v2712 = vld [vmem:[%s4 + $0x18] sm:$0xff]
    %v2713 = vld [vmem:[%s4 + $0x20] sm:$0xff]
    %v2714 = vld [vmem:[%s4 + $0x28] sm:$0xff]
    %v2715 = vld [vmem:[%s4 + $0x30] sm:$0xff]
    %v2716 = vld [vmem:[%s4 + $0x38] sm:$0xff]
    %v2717 = vld [vmem:[%s4 + $0x40] sm:$0xff]
    %v2718 = vld [vmem:[%s4 + $0x48] sm:$0xff]
    %v2719 = vld [vmem:[%s4 + $0x50] sm:$0xff]
    %v2720 = vld [vmem:[%s4 + $0x58] sm:$0xff]
    %v2721 = vld [vmem:[%s4 + $0x60] sm:$0xff]
    %v2722 = vld [vmem:[%s4 + $0x68] sm:$0xff]
    %v2723 = vld [vmem:[%s4 + $0x70] sm:$0xff]
    %v2724 = vld [vmem:[%s4 + $0x78] sm:$0xff]
    %v2725 = vld [vmem:[%s4 + $0x80] sm:$0xff]
    %v2726 = vld [vmem:[%s4 + $0x88] sm:$0xff]
    %v2727 = vld [vmem:[%s4 + $0x90] sm:$0xff]
    %v2728 = vld [vmem:[%s4 + $0x98] sm:$0xff]
    %v2729 = vld [vmem:[%s4 + $0xa0] sm:$0xff]
    %v2730 = vld [vmem:[%s4 + $0xa8] sm:$0xff]
    %v2731 = vld [vmem:[%s4 + $0xb0] sm:$0xff]
    %v2732 = vld [vmem:[%s4 + $0xb8] sm:$0xff]
    %v2733 = vld [vmem:[%s4 + $0xc0] sm:$0xff]
    %v2734 = vld [vmem:[%s4 + $0xc8] sm:$0xff]
    %v2735 = vld [vmem:[%s4 + $0xd0] sm:$0xff]
    %v2736 = vld [vmem:[%s4 + $0xd8] sm:$0xff]
    %v2737 = vld [vmem:[%s4 + $0xe0] sm:$0xff]
    %v2738 = vld [vmem:[%s4 + $0xe8] sm:$0xff]
    %v2739 = vld [vmem:[%s4 + $0xf0] sm:$0xff]
    %v2740 = vld [vmem:[%s4 + $0xf8] sm:$0xff]
    %v2741 = vld [vmem:[%s4 + $0x100] sm:$0xff]
    %v2742 = vld [vmem:[%s4 + $0x108] sm:$0xff]
    %v2743 = vld [vmem:[%s4 + $0x110] sm:$0xff]
    %v2744 = vld [vmem:[%s4 + $0x118] sm:$0xff]
    %v2745 = vld [vmem:[%s4 + $0x120] sm:$0xff]
    %v2746 = vld [vmem:[%s4 + $0x128] sm:$0xff]
    %v2747 = vld [vmem:[%s4 + $0x130] sm:$0xff]
    %v2748 = vld [vmem:[%s4 + $0x138] sm:$0xff]
    %v2749 = vld [vmem:[%s4 + $0x140] sm:$0xff]
    %v2750 = vld [vmem:[%s4 + $0x148] sm:$0xff]
    %v2751 = vld [vmem:[%s4 + $0x150] sm:$0xff]
    %v2752 = vld [vmem:[%s4 + $0x158] sm:$0xff]
    %v2753 = vld [vmem:[%s4 + $0x160] sm:$0xff]
    %v2754 = vld [vmem:[%s4 + $0x168] sm:$0xff]
    %v2755 = vld [vmem:[%s4 + $0x170] sm:$0xff]
    %v2756 = vld [vmem:[%s4 + $0x178] sm:$0xff]
    %v2757 = vld [vmem:[%s4 + $0x180] sm:$0xff]
    %v2758 = vld [vmem:[%s4 + $0x188] sm:$0xff]
    %v2759 = vld [vmem:[%s4 + $0x190] sm:$0xff]
    %v2760 = vld [vmem:[%s4 + $0x198] sm:$0xff]
    %v2761 = vld [vmem:[%s4 + $0x1a0] sm:$0xff]
    %v2762 = vld [vmem:[%s4 + $0x1a8] sm:$0xff]
    %v2763 = vld [vmem:[%s4 + $0x1b0] sm:$0xff]
    %v2764 = vld [vmem:[%s4 + $0x1b8] sm:$0xff]
    %v2765 = vld [vmem:[%s4 + $0x1c0] sm:$0xff]
    %v2766 = vld [vmem:[%s4 + $0x1c8] sm:$0xff]
    %v2767 = vld [vmem:[%s4 + $0x1d0] sm:$0xff]
    %v2768 = vld [vmem:[%s4 + $0x1d8] sm:$0xff]
    %v2769 = vld [vmem:[%s4 + $0x1e0] sm:$0xff]
    %v2770 = vld [vmem:[%s4 + $0x1e8] sm:$0xff]
    %v2771 = vld [vmem:[%s4 + $0x1f0] sm:$0xff]
    %v2772 = vld [vmem:[%s4 + $0x1f8] sm:$0xff]
    %v2773 = vld [vmem:[%s5] sm:$0x3]
    %v2775 = vlaneseq
    %v2776 = vshrl.u32 %v2775, 7
    %v2777 = vsub.s32 0, %v2776
    %v2778 = vrot.slane %v2773, %v2777
    %v2779 = vlaneseq
    %v2780 = vshrl.u32 %v2779, 7
    %v2781 = vsub.s32 1, %v2780
    %v2782 = vrot.slane %v2773, %v2781
    %v2786 = vrot.slane %v2708, 6
    %2788 = vmatprep.subr.mxu0 %v2710
    %2789 = vmatpush1.msra.mxu0 %v2709
    %2790 = vmatprep.subr.mxu0 %v2712
    %2791 = vmatpush1.msra.mxu0 %v2711
    %2792 = vmatprep.subr.mxu0 %v2714
    %2793 = vmatpush1.msra.mxu0 %v2713
    %2794 = vmatprep.subr.mxu0 %v2716
    %2795 = vmatpush1.msra.mxu0 %v2715
    %2796 = vmatprep.subr.mxu0 %v2718
    %2797 = vmatpush1.msra.mxu0 %v2717
    %2798 = vmatprep.subr.mxu0 %v2720
    %2799 = vmatpush1.msra.mxu0 %v2719
    %2800 = vmatprep.subr.mxu0 %v2722
    %2801 = vmatpush1.msra.mxu0 %v2721
    %2802 = vmatprep.subr.mxu0 %v2724
    %2803 = vmatpush1.msra.mxu0 %v2723
    %2804 = vmatprep.subr.mxu0 %v2726
    %2805 = vmatpush1.msra.mxu0 %v2725
    %2806 = vmatprep.subr.mxu0 %v2728
    %2807 = vmatpush1.msra.mxu0 %v2727
    %2808 = vmatprep.subr.mxu0 %v2730
    %2809 = vmatpush1.msra.mxu0 %v2729
    %2810 = vmatprep.subr.mxu0 %v2732
    %2811 = vmatpush1.msra.mxu0 %v2731
    %2812 = vmatprep.subr.mxu0 %v2734
    %2813 = vmatpush1.msra.mxu0 %v2733
    %2814 = vmatprep.subr.mxu0 %v2736
    %2815 = vmatpush1.msra.mxu0 %v2735
    %2816 = vmatprep.subr.mxu0 %v2738
    %2817 = vmatpush1.msra.mxu0 %v2737
    %2818 = vmatprep.subr.mxu0 %v2740
    %2819 = vmatpush1.msra.mxu0 %v2739
    %2820 = vmatprep.subr.mxu0 %v2742
    %2821 = vmatpush1.msra.mxu0 %v2741
    %2822 = vmatprep.subr.mxu0 %v2744
    %2823 = vmatpush1.msra.mxu0 %v2743
    %2824 = vmatprep.subr.mxu0 %v2746
    %2825 = vmatpush1.msra.mxu0 %v2745
    %2826 = vmatprep.subr.mxu0 %v2748
    %2827 = vmatpush1.msra.mxu0 %v2747
    %2828 = vmatprep.subr.mxu0 %v2750
    %2829 = vmatpush1.msra.mxu0 %v2749
    %2830 = vmatprep.subr.mxu0 %v2752
    %2831 = vmatpush1.msra.mxu0 %v2751
    %2832 = vmatprep.subr.mxu0 %v2754
    %2833 = vmatpush1.msra.mxu0 %v2753
    %2834 = vmatprep.subr.mxu0 %v2756
    %2835 = vmatpush1.msra.mxu0 %v2755
    %2836 = vmatprep.subr.mxu0 %v2758
    %2837 = vmatpush1.msra.mxu0 %v2757
    %2838 = vmatprep.subr.mxu0 %v2760
    %2839 = vmatpush1.msra.mxu0 %v2759
    %2840 = vmatprep.subr.mxu0 %v2762
    %2841 = vmatpush1.msra.mxu0 %v2761
    %2842 = vmatprep.subr.mxu0 %v2764
    %2843 = vmatpush1.msra.mxu0 %v2763
    %2844 = vmatprep.subr.mxu0 %v2766
    %2845 = vmatpush1.msra.mxu0 %v2765
    %2846 = vmatprep.subr.mxu0 %v2768
    %2847 = vmatpush1.msra.mxu0 %v2767
    %2848 = vmatprep.subr.mxu0 %v2770
    %2849 = vmatpush1.msra.mxu0 %v2769
    %2850 = vmatprep.subr.mxu0 %v2772
    %2851 = vmatpush1.msra.mxu0 %v2771
    %2852 = vmatprep.mubr.f32.mxu0 %v2058
    %2853 = vmatmul.mubr.f32.gmra.mrb[0].mxu0 %v2786
    %v2854 = vpop.f32.mrb[0].mxu0
    %v2855 = vadd.f32 %v2778, %v2854
    %v2856 = vpop.f32.mrb[0].mxu0
    %v2857 = vadd.f32 %v2782, %v2856
    %2858 = vdwg.mxu0
    %v2859 = vmax.f32 %v2855, 0.0
    %v2860 = vmax.f32 %v2857, 0.0
    %v2861 = vld [vmem:[%s6] sm:$0x3]
    %v2863 = vlaneseq
    %v2864 = vshrl.u32 %v2863, 7
    %v2865 = vsub.s32 0, %v2864
    %v2866 = vrot.slane %v2861, %v2865
    %v2867 = vlaneseq
    %v2868 = vshrl.u32 %v2867, 7
    %v2869 = vsub.s32 1, %v2868
    %v2870 = vrot.slane %v2861, %v2869
    %v2873 = vmul.f32 %v2859, %v2866
    %v2874 = vmul.f32 %v2860, %v2870
    %vm2875 = vcmask 1041408
    %v2876 = vsel %vm2875, %v2873, 0.0
    %v2877 = vsel %vm2875, %v2874, 0.0
    %v2878 = vadd.f32 %v2876, %v2877
    %2879 = vadd.xlane.f32.xlu0 %v2878
    %v2880 = vpop.xlane.xlu0 %2879
    %v2881 = vld [vmem:[#allocation3] sm:$0x1]
    %v2883 = vlaneseq
    %v2884 = vshrl.u32 %v2883, 7
    %v2885 = vsub.s32 0, %v2884
    %v2886 = vrot.slane %v2881, %v2885
    %v2888 = vadd.f32 %v2880, %v2886
    %v2889 = vxor.u32 %v2888, 2147483648
    %v2890 = vmul.f32 %v2889, 1.442695
    %v2891 = vpow.pop %v2890
    %v2892 = vadd.f32 %v2891, 1.0
    %v2893 = vrcp.pop %v2892
    %v2894 = vmul.f32 1.0, %v2893
    %vm2895 = vcmask 1024
    %2896 = vst.msk [vmem:[%s8] sm:$0x3] %vm2895, %v2894
  $region41: #{cnn_bilstm_forward.7} parent=0 // pred_fallthru
    _
  // Predicated region
  $region42: #{cnn_bilstm_forward.7} parent=0 // pred_check
    _
  $region43: #{cnn_bilstm_forward.7} parent=0 // pred_check_branch
    %2898 = sbr.rel (0) target = $region45
  $region44: #{cnn_bilstm_forward.7} parent=0 // pred_region
    _
  $region45: #{cnn_bilstm_forward.7} parent=0 // pred_fallthru
    _
  // Predicated region
  $region46: #{cnn_bilstm_forward.7} parent=0 // pred_check
    _
  $region47: #{cnn_bilstm_forward.7} parent=0 // pred_check_branch
    %2900 = sbr.rel (0) target = $region49
  $region48: #{cnn_bilstm_forward.7} parent=0 // pred_region
    _
  $region49: #{cnn_bilstm_forward.7} parent=0 // pred_fallthru
    _

// kernel: cnn_bilstm_forward.6
$region0: #{cnn_bilstm_forward.6}
  #allocation0 [shape = 'u32[]', space=smem, size = 0x4, offset = 0x4, fixed_abs, tag = 'smem constant byte address 0x4 - core index']
  #allocation1 [shape = 'u32[144,128]{1,0:T(1,128)}', space=vmem, size = 0x12000, scoped, tag = 'internal scratch']
  #allocation2 [shape = 'f32[8,1024]{1,0:T(8,128)}', space=vmem, size = 0x8000, scoped, tag = 'scratch operand']
  %s0 = inlined_call_operand.vmem [shape: bf16[8,2048], index: 0, kind: input, shape index: {}]
  %s1 = inlined_call_operand.vmem [shape: bf16[2048,1024], index: 1, kind: input, shape index: {}]
  %s2 = inlined_call_operand.vmem [shape: bf16[256,1024], index: 2, kind: input, shape index: {}]
  %s3 = inlined_call_operand.vmem [shape: f32[1,1024], index: 3, kind: input, shape index: {}]
  %s4 = inlined_call_operand.vmem [shape: f32[8,256], index: 4, kind: output, shape index: {}]
  %s5 = sld [smem:[#allocation0]]
  $region57: #{cnn_bilstm_forward.6} parent=0
    _
  %s7 = ssub.s32 1, %s5
  %s8 = scalar_select 0, %s7, %s5
  loop: start=0, step=1, limit=6
  $region2: #{cnn_bilstm_forward.6} parent=0 // loop_pre_header
    _
  $region3: #{cnn_bilstm_forward.6} parent=0 // loop_header
    %s10 = sphi 0, %s14
    %p11 = scmp.ge.s32.totalorder %s10, 6
    %s20 = sphi 0, %s22
    %s23 = sphi 0, %s20
    %s24 = sphi 0, %s23
    %s40 = sphi 0, %s24
    %s46 = sphi 0, %s48
    %s49 = sphi 0, %s46
    %s50 = sphi 0, %s49
    %s66 = sphi 0, %s50
    %s70 = sphi 0, %s70
    %s72 = sphi 0, %s70
    %s73 = sphi 0, %s72
    %s87 = sphi 0, %s73
    %s91 = sphi 0, %s91
    %s93 = sphi 0, %s91
    %s94 = sphi 0, %s93
    %s108 = sphi 0, %s94
    %s112 = sphi 0, %s112
    %s114 = sphi 0, %s112
    %s115 = sphi 0, %s114
    %s129 = sphi 0, %s115
  $region4: #{cnn_bilstm_forward.6} parent=0 // loop_header_branch
    %13 = sbr.rel (%p11) target = $region8
  $region5: #{cnn_bilstm_forward.6} parent=0 // loop_body
    %s15 = ssub.s32 %s10, 1
    %s16 = ssub.s32 %s10, 2
    %s17 = sadd.s32 %s10, 1
    %s18 = ssub.s32 %s10, %s17
    %p19 = scmp.eq.s32.totalorder %s18, 0
    %s21 = sadd.s32 %s20, 1
    %s22 = scalar_select %p19, %s20, %s21
    %p25 = pneg %p19
    %p26 = scmp.eq.s32.totalorder %s10, 3
    %p27 = por %p25, %p26
    %p28 = scmp.ne.s32.totalorder %s20, %s23
    %p29 = scmp.eq.s32.totalorder %s10, 0
    %p30 = por %p28, %p29
    %p31 = scmp.ne.s32.totalorder %s20, %s23
    %p32 = scmp.eq.s32.totalorder %s15, 3
    %p33 = por %p31, %p32
    %p34 = scmp.ne.s32.totalorder %s23, %s24
    %p35 = scmp.eq.s32.totalorder %s15, 0
    %p36 = por %p34, %p35
    %p37 = scmp.ne.s32.totalorder %s23, %s24
    %p38 = scmp.eq.s32.totalorder %s16, 3
    %p39 = por %p37, %p38
    %p41 = scmp.ne.s32.totalorder %s24, %s40
    %p42 = scmp.eq.s32.totalorder %s16, 0
    %p43 = por %p41, %p42
    %s44 = ssub.s32 %s10, %s17
    %p45 = scmp.eq.s32.totalorder %s44, 0
    %s47 = sadd.s32 %s46, 1
    %s48 = scalar_select %p45, %s46, %s47
    %p51 = pneg %p45
    %p52 = scmp.eq.s32.totalorder %s10, 3
    %p53 = por %p51, %p52
    %p54 = scmp.ne.s32.totalorder %s46, %s49
    %p55 = scmp.eq.s32.totalorder %s10, 0
    %p56 = por %p54, %p55
    %p57 = scmp.ne.s32.totalorder %s46, %s49
    %p58 = scmp.eq.s32.totalorder %s15, 3
    %p59 = por %p57, %p58
    %p60 = scmp.ne.s32.totalorder %s49, %s50
    %p61 = scmp.eq.s32.totalorder %s15, 0
    %p62 = por %p60, %p61
    %p63 = scmp.ne.s32.totalorder %s49, %s50
    %p64 = scmp.eq.s32.totalorder %s16, 3
    %p65 = por %p63, %p64
    %p67 = scmp.ne.s32.totalorder %s50, %s66
    %p68 = scmp.eq.s32.totalorder %s16, 0
    %p69 = por %p67, %p68
    %s71 = sadd.s32 %s70, 1
    %p74 = scmp.eq.s32.totalorder %s10, 3
    %p75 = scmp.ne.s32.totalorder %s70, %s72
    %p76 = scmp.eq.s32.totalorder %s10, 0
    %p77 = por %p75, %p76
    %p78 = scmp.ne.s32.totalorder %s70, %s72
    %p79 = scmp.eq.s32.totalorder %s15, 3
    %p80 = por %p78, %p79
    %p81 = scmp.ne.s32.totalorder %s72, %s73
    %p82 = scmp.eq.s32.totalorder %s15, 0
    %p83 = por %p81, %p82
    %p84 = scmp.ne.s32.totalorder %s72, %s73
    %p85 = scmp.eq.s32.totalorder %s16, 3
    %p86 = por %p84, %p85
    %p88 = scmp.ne.s32.totalorder %s73, %s87
    %p89 = scmp.eq.s32.totalorder %s16, 0
    %p90 = por %p88, %p89
    %s92 = sadd.s32 %s91, 1
    %p95 = scmp.eq.s32.totalorder %s10, 3
    %p96 = scmp.ne.s32.totalorder %s91, %s93
    %p97 = scmp.eq.s32.totalorder %s10, 0
    %p98 = por %p96, %p97
    %p99 = scmp.ne.s32.totalorder %s91, %s93
    %p100 = scmp.eq.s32.totalorder %s15, 3
    %p101 = por %p99, %p100
    %p102 = scmp.ne.s32.totalorder %s93, %s94
    %p103 = scmp.eq.s32.totalorder %s15, 0
    %p104 = por %p102, %p103
    %p105 = scmp.ne.s32.totalorder %s93, %s94
    %p106 = scmp.eq.s32.totalorder %s16, 3
    %p107 = por %p105, %p106
    %p109 = scmp.ne.s32.totalorder %s94, %s108
    %p110 = scmp.eq.s32.totalorder %s16, 0
    %p111 = por %p109, %p110
    %s113 = sadd.s32 %s112, 1
    %p116 = scmp.eq.s32.totalorder %s10, 3
    %p117 = scmp.ne.s32.totalorder %s112, %s114
    %p118 = scmp.eq.s32.totalorder %s10, 0
    %p119 = por %p117, %p118
    %p120 = scmp.ne.s32.totalorder %s112, %s114
    %p121 = scmp.eq.s32.totalorder %s15, 3
    %p122 = por %p120, %p121
    %p123 = scmp.ne.s32.totalorder %s114, %s115
    %p124 = scmp.eq.s32.totalorder %s15, 0
    %p125 = por %p123, %p124
    %p126 = scmp.ne.s32.totalorder %s114, %s115
    %p127 = scmp.eq.s32.totalorder %s16, 3
    %p128 = por %p126, %p127
    %p130 = scmp.ne.s32.totalorder %s115, %s129
    %p131 = scmp.eq.s32.totalorder %s16, 0
    %p132 = por %p130, %p131
    %p133 = scmp.le.s32.totalorder 1, %s10
    %p134 = scmp.lt.s32.totalorder %s10, 5
    %p135 = pnand %p133, %p134
    %p136 = pneg %p135
    // Predicated region
    $region9: #{cnn_bilstm_forward.6} parent=5 // pred_check
      _
    $region10: #{cnn_bilstm_forward.6} parent=5 // pred_check_branch
      %138 = sbr.rel (%p135) target = $region12
    $region11: #{cnn_bilstm_forward.6} parent=5 // pred_region
      %s139 = ssub.s32 %s10, 1
      // Predicated region
      $region13: #{cnn_bilstm_forward.6} parent=11 // pred_check
        %p140 = pneg %p83
      $region14: #{cnn_bilstm_forward.6} parent=11 // pred_check_branch
        %142 = sbr.rel (%p140) target = $region16
      $region15: #{cnn_bilstm_forward.6} parent=11 // pred_region
        _
      $region16: #{cnn_bilstm_forward.6} parent=11 // pred_fallthru
        _
      // Predicated region
      $region17: #{cnn_bilstm_forward.6} parent=11 // pred_check
        %p143 = pneg %p104
      $region18: #{cnn_bilstm_forward.6} parent=11 // pred_check_branch
        %145 = sbr.rel (%p143) target = $region20
      $region19: #{cnn_bilstm_forward.6} parent=11 // pred_region
        _
      $region20: #{cnn_bilstm_forward.6} parent=11 // pred_fallthru
        _
    $region12: #{cnn_bilstm_forward.6} parent=5 // pred_fallthru
      _
    %p146 = scmp.lt.s32.totalorder %s10, 4
    // Predicated region
    $region21: #{cnn_bilstm_forward.6} parent=5 // pred_check
      %p147 = pneg %p146
    $region22: #{cnn_bilstm_forward.6} parent=5 // pred_check_branch
      %149 = sbr.rel (%p147) target = $region24
    $region23: #{cnn_bilstm_forward.6} parent=5 // pred_region
      // Predicated region
      $region25: #{cnn_bilstm_forward.6} parent=23 // pred_check
        %p150 = pneg %p30
      $region26: #{cnn_bilstm_forward.6} parent=23 // pred_check_branch
        %152 = sbr.rel (%p150) target = $region28
      $region27: #{cnn_bilstm_forward.6} parent=23 // pred_region
        %s153 = smul.u32 4, %s10
        %p154 = scmp.lt.s32.totalorder %s153, 15
        %s155 = scalar_select %p154, %s153, 15
        %s156 = smul.addr %s155, 4
        %s157 = scalar_lea.vmem %s0, %s156
        %s158 = smul.u32 4, %s10
      $region28: #{cnn_bilstm_forward.6} parent=23 // pred_fallthru
        _
      // Predicated region
      $region29: #{cnn_bilstm_forward.6} parent=23 // pred_check
        %p159 = pneg %p56
      $region30: #{cnn_bilstm_forward.6} parent=23 // pred_check_branch
        %161 = sbr.rel (%p159) target = $region32
      $region31: #{cnn_bilstm_forward.6} parent=23 // pred_region
        %s162 = smul.u32 64, %s10
        %p163 = scmp.lt.s32.totalorder %s162, 255
        %s164 = scalar_select %p163, %s162, 255
        %s165 = smul.addr %s164, 8
        %s166 = smul.addr %s165, 4
        %s167 = scalar_lea.vmem %s1, %s166
        %s168 = smul.u32 64, %s10
      $region32: #{cnn_bilstm_forward.6} parent=23 // pred_fallthru
        _
    $region24: #{cnn_bilstm_forward.6} parent=5 // pred_fallthru
      _
    %p169 = scmp.le.s32.totalorder 1, %s10
    %p170 = scmp.lt.s32.totalorder %s10, 5
    %p171 = pnand %p169, %p170
    %p172 = pneg %p171
    // Predicated region
    $region33: #{cnn_bilstm_forward.6} parent=5 // pred_check
      _
    $region34: #{cnn_bilstm_forward.6} parent=5 // pred_check_branch
      %174 = sbr.rel (%p171) target = $region36
    $region35: #{cnn_bilstm_forward.6} parent=5 // pred_region
      %s175 = ssub.s32 %s10, 1
      %s176 = smul.u32 4, %s15
      %p177 = scmp.lt.s32.totalorder %s176, 15
      %s178 = scalar_select %p177, %s176, 15
      %s179 = smul.addr %s178, 4
      %s180 = scalar_lea.vmem %s0, %s179
      %p181 = pneg %p36
      %p182 = pneg %p33
      %s183 = smul.u32 64, %s15
      %p184 = scmp.lt.s32.totalorder %s183, 255
      %s185 = scalar_select %p184, %s183, 255
      %s186 = smul.addr %s185, 8
      %s187 = smul.addr %s186, 4
      %s188 = scalar_lea.vmem %s1, %s187
      %p189 = pneg %p62
      %p190 = pneg %p59
      %p191 = pneg %p83
      %p192 = pneg %p80
      %p193 = pneg %p104
      %p194 = pneg %p101
      %p195 = pneg %p125
      %p196 = pneg %p122
      %s197 = smul.u32 4, %s15
      %p198 = scmp.lt.s32.totalorder %s197, 15
      %s199 = scalar_select %p198, %s197, 15
      %s200 = smul.addr %s199, 4
      %s201 = scalar_lea.vmem %s0, %s200
      %s202 = smul.u32 4, %s15
      %s203 = smul.u32 64, %s15
      %p204 = scmp.lt.s32.totalorder %s203, 255
      %s205 = scalar_select %p204, %s203, 255
      %s206 = smul.addr %s205, 8
      %s207 = smul.addr %s206, 4
      %s208 = scalar_lea.vmem %s1, %s207
      %s209 = smul.u32 64, %s15
      %p210 = scmp.eq.s32.totalorder %s15, 0
      // Predicated region
      $region37: #{cnn_bilstm_forward.6} parent=35 // pred_check
        %p211 = pneg %p210
      $region38: #{cnn_bilstm_forward.6} parent=35 // pred_check_branch
        %213 = sbr.rel (%p211) target = $region40
      $region39: #{cnn_bilstm_forward.6} parent=35 // pred_region
        %v214 = vld [vmem:[%s3] sm:$0xff]
        %v216 = vlaneseq
        %v217 = vshrl.u32 %v216, 7
        %v218 = vsub.s32 0, %v217
        %v219 = vrot.slane %v214, %v218
        %v220 = vlaneseq
        %v221 = vshrl.u32 %v220, 7
        %v222 = vsub.s32 1, %v221
        %v223 = vrot.slane %v214, %v222
        %v224 = vlaneseq
        %v225 = vshrl.u32 %v224, 7
        %v226 = vsub.s32 2, %v225
        %v227 = vrot.slane %v214, %v226
        %v228 = vlaneseq
        %v229 = vshrl.u32 %v228, 7
        %v230 = vsub.s32 3, %v229
        %v231 = vrot.slane %v214, %v230
        %v232 = vlaneseq
        %v233 = vshrl.u32 %v232, 7
        %v234 = vsub.s32 4, %v233
        %v235 = vrot.slane %v214, %v234
        %v236 = vlaneseq
        %v237 = vshrl.u32 %v236, 7
        %v238 = vsub.s32 5, %v237
        %v239 = vrot.slane %v214, %v238
        %v240 = vlaneseq
        %v241 = vshrl.u32 %v240, 7
        %v242 = vsub.s32 6, %v241
        %v243 = vrot.slane %v214, %v242
        %v244 = vlaneseq
        %v245 = vshrl.u32 %v244, 7
        %v246 = vsub.s32 7, %v245
        %v247 = vrot.slane %v214, %v246
        %256 = vst [vmem:[#allocation2] sm:$0xff] %v219
        %257 = vst [vmem:[#allocation2 + $0x8] sm:$0xff] %v223
        %258 = vst [vmem:[#allocation2 + $0x10] sm:$0xff] %v227
        %259 = vst [vmem:[#allocation2 + $0x18] sm:$0xff] %v231
        %260 = vst [vmem:[#allocation2 + $0x20] sm:$0xff] %v235
        %261 = vst [vmem:[#allocation2 + $0x28] sm:$0xff] %v239
        %262 = vst [vmem:[#allocation2 + $0x30] sm:$0xff] %v243
        %263 = vst [vmem:[#allocation2 + $0x38] sm:$0xff] %v247
      $region40: #{cnn_bilstm_forward.6} parent=35 // pred_fallthru
        _
      %v264 = vld [vmem:[#allocation2] sm:$0xff]
      %v265 = vld [vmem:[#allocation2 + $0x8] sm:$0xff]
      %v266 = vld [vmem:[#allocation2 + $0x10] sm:$0xff]
      %v267 = vld [vmem:[#allocation2 + $0x18] sm:$0xff]
      %v268 = vld [vmem:[#allocation2 + $0x20] sm:$0xff]
      %v269 = vld [vmem:[#allocation2 + $0x28] sm:$0xff]
      %v270 = vld [vmem:[#allocation2 + $0x30] sm:$0xff]
      %v271 = vld [vmem:[#allocation2 + $0x38] sm:$0xff]
      %v272 = vld [vmem:[%s201] sm:$0xff]
      %v273 = vld [vmem:[%s201 + $0x8] sm:$0xff]
      %v274 = vld [vmem:[%s208] sm:$0xff]
      %v275 = vld [vmem:[%s208 + $0x8] sm:$0xff]
      %v276 = vld [vmem:[%s208 + $0x10] sm:$0xff]
      %v277 = vld [vmem:[%s208 + $0x18] sm:$0xff]
      %v278 = vld [vmem:[%s208 + $0x20] sm:$0xff]
      %v279 = vld [vmem:[%s208 + $0x28] sm:$0xff]
      %v280 = vld [vmem:[%s208 + $0x30] sm:$0xff]
      %v281 = vld [vmem:[%s208 + $0x38] sm:$0xff]
      %v282 = vld [vmem:[%s208 + $0x40] sm:$0xff]
      %v283 = vld [vmem:[%s208 + $0x48] sm:$0xff]
      %v284 = vld [vmem:[%s208 + $0x50] sm:$0xff]
      %v285 = vld [vmem:[%s208 + $0x58] sm:$0xff]
      %v286 = vld [vmem:[%s208 + $0x60] sm:$0xff]
      %v287 = vld [vmem:[%s208 + $0x68] sm:$0xff]
      %v288 = vld [vmem:[%s208 + $0x70] sm:$0xff]
      %v289 = vld [vmem:[%s208 + $0x78] sm:$0xff]
      %v290 = vld [vmem:[%s208 + $0x80] sm:$0xff]
      %v291 = vld [vmem:[%s208 + $0x88] sm:$0xff]
      %v292 = vld [vmem:[%s208 + $0x90] sm:$0xff]
      %v293 = vld [vmem:[%s208 + $0x98] sm:$0xff]
      %v294 = vld [vmem:[%s208 + $0xa0] sm:$0xff]
      %v295 = vld [vmem:[%s208 + $0xa8] sm:$0xff]
      %v296 = vld [vmem:[%s208 + $0xb0] sm:$0xff]
      %v297 = vld [vmem:[%s208 + $0xb8] sm:$0xff]
      %v298 = vld [vmem:[%s208 + $0xc0] sm:$0xff]
      %v299 = vld [vmem:[%s208 + $0xc8] sm:$0xff]
      %v300 = vld [vmem:[%s208 + $0xd0] sm:$0xff]
      %v301 = vld [vmem:[%s208 + $0xd8] sm:$0xff]
      %v302 = vld [vmem:[%s208 + $0xe0] sm:$0xff]
      %v303 = vld [vmem:[%s208 + $0xe8] sm:$0xff]
      %v304 = vld [vmem:[%s208 + $0xf0] sm:$0xff]
      %v305 = vld [vmem:[%s208 + $0xf8] sm:$0xff]
      %v306 = vld [vmem:[%s208 + $0x100] sm:$0xff]
      %v307 = vld [vmem:[%s208 + $0x108] sm:$0xff]
      %v308 = vld [vmem:[%s208 + $0x110] sm:$0xff]
      %v309 = vld [vmem:[%s208 + $0x118] sm:$0xff]
      %v310 = vld [vmem:[%s208 + $0x120] sm:$0xff]
      %v311 = vld [vmem:[%s208 + $0x128] sm:$0xff]
      %v312 = vld [vmem:[%s208 + $0x130] sm:$0xff]
      %v313 = vld [vmem:[%s208 + $0x138] sm:$0xff]
      %v314 = vld [vmem:[%s208 + $0x140] sm:$0xff]
      %v315 = vld [vmem:[%s208 + $0x148] sm:$0xff]
      %v316 = vld [vmem:[%s208 + $0x150] sm:$0xff]
      %v317 = vld [vmem:[%s208 + $0x158] sm:$0xff]
      %v318 = vld [vmem:[%s208 + $0x160] sm:$0xff]
      %v319 = vld [vmem:[%s208 + $0x168] sm:$0xff]
      %v320 = vld [vmem:[%s208 + $0x170] sm:$0xff]
      %v321 = vld [vmem:[%s208 + $0x178] sm:$0xff]
      %v322 = vld [vmem:[%s208 + $0x180] sm:$0xff]
      %v323 = vld [vmem:[%s208 + $0x188] sm:$0xff]
      %v324 = vld [vmem:[%s208 + $0x190] sm:$0xff]
      %v325 = vld [vmem:[%s208 + $0x198] sm:$0xff]
      %v326 = vld [vmem:[%s208 + $0x1a0] sm:$0xff]
      %v327 = vld [vmem:[%s208 + $0x1a8] sm:$0xff]
      %v328 = vld [vmem:[%s208 + $0x1b0] sm:$0xff]
      %v329 = vld [vmem:[%s208 + $0x1b8] sm:$0xff]
      %v330 = vld [vmem:[%s208 + $0x1c0] sm:$0xff]
      %v331 = vld [vmem:[%s208 + $0x1c8] sm:$0xff]
      %v332 = vld [vmem:[%s208 + $0x1d0] sm:$0xff]
      %v333 = vld [vmem:[%s208 + $0x1d8] sm:$0xff]
      %v334 = vld [vmem:[%s208 + $0x1e0] sm:$0xff]
      %v335 = vld [vmem:[%s208 + $0x1e8] sm:$0xff]
      %v336 = vld [vmem:[%s208 + $0x1f0] sm:$0xff]
      %v337 = vld [vmem:[%s208 + $0x1f8] sm:$0xff]
      %v338 = vld [vmem:[%s208 + $0x200] sm:$0xff]
      %v339 = vld [vmem:[%s208 + $0x208] sm:$0xff]
      %v340 = vld [vmem:[%s208 + $0x210] sm:$0xff]
      %v341 = vld [vmem:[%s208 + $0x218] sm:$0xff]
      %v342 = vld [vmem:[%s208 + $0x220] sm:$0xff]
      %v343 = vld [vmem:[%s208 + $0x228] sm:$0xff]
      %v344 = vld [vmem:[%s208 + $0x230] sm:$0xff]
      %v345 = vld [vmem:[%s208 + $0x238] sm:$0xff]
      %v346 = vld [vmem:[%s208 + $0x240] sm:$0xff]
      %v347 = vld [vmem:[%s208 + $0x248] sm:$0xff]
      %v348 = vld [vmem:[%s208 + $0x250] sm:$0xff]
      %v349 = vld [vmem:[%s208 + $0x258] sm:$0xff]
      %v350 = vld [vmem:[%s208 + $0x260] sm:$0xff]
      %v351 = vld [vmem:[%s208 + $0x268] sm:$0xff]
      %v352 = vld [vmem:[%s208 + $0x270] sm:$0xff]
      %v353 = vld [vmem:[%s208 + $0x278] sm:$0xff]
      %v354 = vld [vmem:[%s208 + $0x280] sm:$0xff]
      %v355 = vld [vmem:[%s208 + $0x288] sm:$0xff]
      %v356 = vld [vmem:[%s208 + $0x290] sm:$0xff]
      %v357 = vld [vmem:[%s208 + $0x298] sm:$0xff]
      %v358 = vld [vmem:[%s208 + $0x2a0] sm:$0xff]
      %v359 = vld [vmem:[%s208 + $0x2a8] sm:$0xff]
      %v360 = vld [vmem:[%s208 + $0x2b0] sm:$0xff]
      %v361 = vld [vmem:[%s208 + $0x2b8] sm:$0xff]
      %v362 = vld [vmem:[%s208 + $0x2c0] sm:$0xff]
      %v363 = vld [vmem:[%s208 + $0x2c8] sm:$0xff]
      %v364 = vld [vmem:[%s208 + $0x2d0] sm:$0xff]
      %v365 = vld [vmem:[%s208 + $0x2d8] sm:$0xff]
      %v366 = vld [vmem:[%s208 + $0x2e0] sm:$0xff]
      %v367 = vld [vmem:[%s208 + $0x2e8] sm:$0xff]
      %v368 = vld [vmem:[%s208 + $0x2f0] sm:$0xff]
      %v369 = vld [vmem:[%s208 + $0x2f8] sm:$0xff]
      %v370 = vld [vmem:[%s208 + $0x300] sm:$0xff]
      %v371 = vld [vmem:[%s208 + $0x308] sm:$0xff]
      %v372 = vld [vmem:[%s208 + $0x310] sm:$0xff]
      %v373 = vld [vmem:[%s208 + $0x318] sm:$0xff]
      %v374 = vld [vmem:[%s208 + $0x320] sm:$0xff]
      %v375 = vld [vmem:[%s208 + $0x328] sm:$0xff]
      %v376 = vld [vmem:[%s208 + $0x330] sm:$0xff]
      %v377 = vld [vmem:[%s208 + $0x338] sm:$0xff]
      %v378 = vld [vmem:[%s208 + $0x340] sm:$0xff]
      %v379 = vld [vmem:[%s208 + $0x348] sm:$0xff]
      %v380 = vld [vmem:[%s208 + $0x350] sm:$0xff]
      %v381 = vld [vmem:[%s208 + $0x358] sm:$0xff]
      %v382 = vld [vmem:[%s208 + $0x360] sm:$0xff]
      %v383 = vld [vmem:[%s208 + $0x368] sm:$0xff]
      %v384 = vld [vmem:[%s208 + $0x370] sm:$0xff]
      %v385 = vld [vmem:[%s208 + $0x378] sm:$0xff]
      %v386 = vld [vmem:[%s208 + $0x380] sm:$0xff]
      %v387 = vld [vmem:[%s208 + $0x388] sm:$0xff]
      %v388 = vld [vmem:[%s208 + $0x390] sm:$0xff]
      %v389 = vld [vmem:[%s208 + $0x398] sm:$0xff]
      %v390 = vld [vmem:[%s208 + $0x3a0] sm:$0xff]
      %v391 = vld [vmem:[%s208 + $0x3a8] sm:$0xff]
      %v392 = vld [vmem:[%s208 + $0x3b0] sm:$0xff]
      %v393 = vld [vmem:[%s208 + $0x3b8] sm:$0xff]
      %v394 = vld [vmem:[%s208 + $0x3c0] sm:$0xff]
      %v395 = vld [vmem:[%s208 + $0x3c8] sm:$0xff]
      %v396 = vld [vmem:[%s208 + $0x3d0] sm:$0xff]
      %v397 = vld [vmem:[%s208 + $0x3d8] sm:$0xff]
      %v398 = vld [vmem:[%s208 + $0x3e0] sm:$0xff]
      %v399 = vld [vmem:[%s208 + $0x3e8] sm:$0xff]
      %v400 = vld [vmem:[%s208 + $0x3f0] sm:$0xff]
      %v401 = vld [vmem:[%s208 + $0x3f8] sm:$0xff]
      %v402 = vld [vmem:[%s208 + $0x400] sm:$0xff]
      %v403 = vld [vmem:[%s208 + $0x408] sm:$0xff]
      %v404 = vld [vmem:[%s208 + $0x410] sm:$0xff]
      %v405 = vld [vmem:[%s208 + $0x418] sm:$0xff]
      %v406 = vld [vmem:[%s208 + $0x420] sm:$0xff]
      %v407 = vld [vmem:[%s208 + $0x428] sm:$0xff]
      %v408 = vld [vmem:[%s208 + $0x430] sm:$0xff]
      %v409 = vld [vmem:[%s208 + $0x438] sm:$0xff]
      %v410 = vld [vmem:[%s208 + $0x440] sm:$0xff]
      %v411 = vld [vmem:[%s208 + $0x448] sm:$0xff]
      %v412 = vld [vmem:[%s208 + $0x450] sm:$0xff]
      %v413 = vld [vmem:[%s208 + $0x458] sm:$0xff]
      %v414 = vld [vmem:[%s208 + $0x460] sm:$0xff]
      %v415 = vld [vmem:[%s208 + $0x468] sm:$0xff]
      %v416 = vld [vmem:[%s208 + $0x470] sm:$0xff]
      %v417 = vld [vmem:[%s208 + $0x478] sm:$0xff]
      %v418 = vld [vmem:[%s208 + $0x480] sm:$0xff]
      %v419 = vld [vmem:[%s208 + $0x488] sm:$0xff]
      %v420 = vld [vmem:[%s208 + $0x490] sm:$0xff]
      %v421 = vld [vmem:[%s208 + $0x498] sm:$0xff]
      %v422 = vld [vmem:[%s208 + $0x4a0] sm:$0xff]
      %v423 = vld [vmem:[%s208 + $0x4a8] sm:$0xff]
      %v424 = vld [vmem:[%s208 + $0x4b0] sm:$0xff]
      %v425 = vld [vmem:[%s208 + $0x4b8] sm:$0xff]
      %v426 = vld [vmem:[%s208 + $0x4c0] sm:$0xff]
      %v427 = vld [vmem:[%s208 + $0x4c8] sm:$0xff]
      %v428 = vld [vmem:[%s208 + $0x4d0] sm:$0xff]
      %v429 = vld [vmem:[%s208 + $0x4d8] sm:$0xff]
      %v430 = vld [vmem:[%s208 + $0x4e0] sm:$0xff]
      %v431 = vld [vmem:[%s208 + $0x4e8] sm:$0xff]
      %v432 = vld [vmem:[%s208 + $0x4f0] sm:$0xff]
      %v433 = vld [vmem:[%s208 + $0x4f8] sm:$0xff]
      %v434 = vld [vmem:[%s208 + $0x500] sm:$0xff]
      %v435 = vld [vmem:[%s208 + $0x508] sm:$0xff]
      %v436 = vld [vmem:[%s208 + $0x510] sm:$0xff]
      %v437 = vld [vmem:[%s208 + $0x518] sm:$0xff]
      %v438 = vld [vmem:[%s208 + $0x520] sm:$0xff]
      %v439 = vld [vmem:[%s208 + $0x528] sm:$0xff]
      %v440 = vld [vmem:[%s208 + $0x530] sm:$0xff]
      %v441 = vld [vmem:[%s208 + $0x538] sm:$0xff]
      %v442 = vld [vmem:[%s208 + $0x540] sm:$0xff]
      %v443 = vld [vmem:[%s208 + $0x548] sm:$0xff]
      %v444 = vld [vmem:[%s208 + $0x550] sm:$0xff]
      %v445 = vld [vmem:[%s208 + $0x558] sm:$0xff]
      %v446 = vld [vmem:[%s208 + $0x560] sm:$0xff]
      %v447 = vld [vmem:[%s208 + $0x568] sm:$0xff]
      %v448 = vld [vmem:[%s208 + $0x570] sm:$0xff]
      %v449 = vld [vmem:[%s208 + $0x578] sm:$0xff]
      %v450 = vld [vmem:[%s208 + $0x580] sm:$0xff]
      %v451 = vld [vmem:[%s208 + $0x588] sm:$0xff]
      %v452 = vld [vmem:[%s208 + $0x590] sm:$0xff]
      %v453 = vld [vmem:[%s208 + $0x598] sm:$0xff]
      %v454 = vld [vmem:[%s208 + $0x5a0] sm:$0xff]
      %v455 = vld [vmem:[%s208 + $0x5a8] sm:$0xff]
      %v456 = vld [vmem:[%s208 + $0x5b0] sm:$0xff]
      %v457 = vld [vmem:[%s208 + $0x5b8] sm:$0xff]
      %v458 = vld [vmem:[%s208 + $0x5c0] sm:$0xff]
      %v459 = vld [vmem:[%s208 + $0x5c8] sm:$0xff]
      %v460 = vld [vmem:[%s208 + $0x5d0] sm:$0xff]
      %v461 = vld [vmem:[%s208 + $0x5d8] sm:$0xff]
      %v462 = vld [vmem:[%s208 + $0x5e0] sm:$0xff]
      %v463 = vld [vmem:[%s208 + $0x5e8] sm:$0xff]
      %v464 = vld [vmem:[%s208 + $0x5f0] sm:$0xff]
      %v465 = vld [vmem:[%s208 + $0x5f8] sm:$0xff]
      %v466 = vld [vmem:[%s208 + $0x600] sm:$0xff]
      %v467 = vld [vmem:[%s208 + $0x608] sm:$0xff]
      %v468 = vld [vmem:[%s208 + $0x610] sm:$0xff]
      %v469 = vld [vmem:[%s208 + $0x618] sm:$0xff]
      %v470 = vld [vmem:[%s208 + $0x620] sm:$0xff]
      %v471 = vld [vmem:[%s208 + $0x628] sm:$0xff]
      %v472 = vld [vmem:[%s208 + $0x630] sm:$0xff]
      %v473 = vld [vmem:[%s208 + $0x638] sm:$0xff]
      %v474 = vld [vmem:[%s208 + $0x640] sm:$0xff]
      %v475 = vld [vmem:[%s208 + $0x648] sm:$0xff]
      %v476 = vld [vmem:[%s208 + $0x650] sm:$0xff]
      %v477 = vld [vmem:[%s208 + $0x658] sm:$0xff]
      %v478 = vld [vmem:[%s208 + $0x660] sm:$0xff]
      %v479 = vld [vmem:[%s208 + $0x668] sm:$0xff]
      %v480 = vld [vmem:[%s208 + $0x670] sm:$0xff]
      %v481 = vld [vmem:[%s208 + $0x678] sm:$0xff]
      %v482 = vld [vmem:[%s208 + $0x680] sm:$0xff]
      %v483 = vld [vmem:[%s208 + $0x688] sm:$0xff]
      %v484 = vld [vmem:[%s208 + $0x690] sm:$0xff]
      %v485 = vld [vmem:[%s208 + $0x698] sm:$0xff]
      %v486 = vld [vmem:[%s208 + $0x6a0] sm:$0xff]
      %v487 = vld [vmem:[%s208 + $0x6a8] sm:$0xff]
      %v488 = vld [vmem:[%s208 + $0x6b0] sm:$0xff]
      %v489 = vld [vmem:[%s208 + $0x6b8] sm:$0xff]
      %v490 = vld [vmem:[%s208 + $0x6c0] sm:$0xff]
      %v491 = vld [vmem:[%s208 + $0x6c8] sm:$0xff]
      %v492 = vld [vmem:[%s208 + $0x6d0] sm:$0xff]
      %v493 = vld [vmem:[%s208 + $0x6d8] sm:$0xff]
      %v494 = vld [vmem:[%s208 + $0x6e0] sm:$0xff]
      %v495 = vld [vmem:[%s208 + $0x6e8] sm:$0xff]
      %v496 = vld [vmem:[%s208 + $0x6f0] sm:$0xff]
      %v497 = vld [vmem:[%s208 + $0x6f8] sm:$0xff]
      %v498 = vld [vmem:[%s208 + $0x700] sm:$0xff]
      %v499 = vld [vmem:[%s208 + $0x708] sm:$0xff]
      %v500 = vld [vmem:[%s208 + $0x710] sm:$0xff]
      %v501 = vld [vmem:[%s208 + $0x718] sm:$0xff]
      %v502 = vld [vmem:[%s208 + $0x720] sm:$0xff]
      %v503 = vld [vmem:[%s208 + $0x728] sm:$0xff]
      %v504 = vld [vmem:[%s208 + $0x730] sm:$0xff]
      %v505 = vld [vmem:[%s208 + $0x738] sm:$0xff]
      %v506 = vld [vmem:[%s208 + $0x740] sm:$0xff]
      %v507 = vld [vmem:[%s208 + $0x748] sm:$0xff]
      %v508 = vld [vmem:[%s208 + $0x750] sm:$0xff]
      %v509 = vld [vmem:[%s208 + $0x758] sm:$0xff]
      %v510 = vld [vmem:[%s208 + $0x760] sm:$0xff]
      %v511 = vld [vmem:[%s208 + $0x768] sm:$0xff]
      %v512 = vld [vmem:[%s208 + $0x770] sm:$0xff]
      %v513 = vld [vmem:[%s208 + $0x778] sm:$0xff]
      %v514 = vld [vmem:[%s208 + $0x780] sm:$0xff]
      %v515 = vld [vmem:[%s208 + $0x788] sm:$0xff]
      %v516 = vld [vmem:[%s208 + $0x790] sm:$0xff]
      %v517 = vld [vmem:[%s208 + $0x798] sm:$0xff]
      %v518 = vld [vmem:[%s208 + $0x7a0] sm:$0xff]
      %v519 = vld [vmem:[%s208 + $0x7a8] sm:$0xff]
      %v520 = vld [vmem:[%s208 + $0x7b0] sm:$0xff]
      %v521 = vld [vmem:[%s208 + $0x7b8] sm:$0xff]
      %v522 = vld [vmem:[%s208 + $0x7c0] sm:$0xff]
      %v523 = vld [vmem:[%s208 + $0x7c8] sm:$0xff]
      %v524 = vld [vmem:[%s208 + $0x7d0] sm:$0xff]
      %v525 = vld [vmem:[%s208 + $0x7d8] sm:$0xff]
      %v526 = vld [vmem:[%s208 + $0x7e0] sm:$0xff]
      %v527 = vld [vmem:[%s208 + $0x7e8] sm:$0xff]
      %v528 = vld [vmem:[%s208 + $0x7f0] sm:$0xff]
      %v529 = vld [vmem:[%s208 + $0x7f8] sm:$0xff]
      %v532 = vunpack.c.l.b16 %v272
      %v533 = vunpack.c.h.b16 %v272
      %v534 = vunpack.c.l.b16 %v273
      %v535 = vunpack.c.h.b16 %v273
      %v536 = vpack.c.b16 %v532, %v532
      %v537 = vpack.c.b16 %v533, %v533
      %v538 = vpack.c.b16 %v534, %v534
      %v539 = vpack.c.b16 %v535, %v535
      %v800 = vunpack.c.l.b16 %v274
      %v801 = vunpack.c.h.b16 %v274
      %v802 = vunpack.c.l.b16 %v275
      %v803 = vunpack.c.h.b16 %v275
      %v804 = vunpack.c.l.b16 %v276
      %v805 = vunpack.c.h.b16 %v276
      %v806 = vunpack.c.l.b16 %v277
      %v807 = vunpack.c.h.b16 %v277
      %v808 = vunpack.c.l.b16 %v278
      %v809 = vunpack.c.h.b16 %v278
      %v810 = vunpack.c.l.b16 %v279
      %v811 = vunpack.c.h.b16 %v279
      %v812 = vunpack.c.l.b16 %v280
      %v813 = vunpack.c.h.b16 %v280
      %v814 = vunpack.c.l.b16 %v281
      %v815 = vunpack.c.h.b16 %v281
      %v816 = vunpack.c.l.b16 %v282
      %v817 = vunpack.c.h.b16 %v282
      %v818 = vunpack.c.l.b16 %v283
      %v819 = vunpack.c.h.b16 %v283
      %v820 = vunpack.c.l.b16 %v284
      %v821 = vunpack.c.h.b16 %v284
      %v822 = vunpack.c.l.b16 %v285
      %v823 = vunpack.c.h.b16 %v285
      %v824 = vunpack.c.l.b16 %v286
      %v825 = vunpack.c.h.b16 %v286
      %v826 = vunpack.c.l.b16 %v287
      %v827 = vunpack.c.h.b16 %v287
      %v828 = vunpack.c.l.b16 %v288
      %v829 = vunpack.c.h.b16 %v288
      %v830 = vunpack.c.l.b16 %v289
      %v831 = vunpack.c.h.b16 %v289
      %v832 = vunpack.c.l.b16 %v290
      %v833 = vunpack.c.h.b16 %v290
      %v834 = vunpack.c.l.b16 %v291
      %v835 = vunpack.c.h.b16 %v291
      %v836 = vunpack.c.l.b16 %v292
      %v837 = vunpack.c.h.b16 %v292
      %v838 = vunpack.c.l.b16 %v293
      %v839 = vunpack.c.h.b16 %v293
      %v840 = vunpack.c.l.b16 %v294
      %v841 = vunpack.c.h.b16 %v294
      %v842 = vunpack.c.l.b16 %v295
      %v843 = vunpack.c.h.b16 %v295
      %v844 = vunpack.c.l.b16 %v296
      %v845 = vunpack.c.h.b16 %v296
      %v846 = vunpack.c.l.b16 %v297
      %v847 = vunpack.c.h.b16 %v297
      %v848 = vunpack.c.l.b16 %v298
      %v849 = vunpack.c.h.b16 %v298
      %v850 = vunpack.c.l.b16 %v299
      %v851 = vunpack.c.h.b16 %v299
      %v852 = vunpack.c.l.b16 %v300
      %v853 = vunpack.c.h.b16 %v300
      %v854 = vunpack.c.l.b16 %v301
      %v855 = vunpack.c.h.b16 %v301
      %v856 = vunpack.c.l.b16 %v302
      %v857 = vunpack.c.h.b16 %v302
      %v858 = vunpack.c.l.b16 %v303
      %v859 = vunpack.c.h.b16 %v303
      %v860 = vunpack.c.l.b16 %v304
      %v861 = vunpack.c.h.b16 %v304
      %v862 = vunpack.c.l.b16 %v305
      %v863 = vunpack.c.h.b16 %v305
      %v864 = vunpack.c.l.b16 %v306
      %v865 = vunpack.c.h.b16 %v306
      %v866 = vunpack.c.l.b16 %v307
      %v867 = vunpack.c.h.b16 %v307
      %v868 = vunpack.c.l.b16 %v308
      %v869 = vunpack.c.h.b16 %v308
      %v870 = vunpack.c.l.b16 %v309
      %v871 = vunpack.c.h.b16 %v309
      %v872 = vunpack.c.l.b16 %v310
      %v873 = vunpack.c.h.b16 %v310
      %v874 = vunpack.c.l.b16 %v311
      %v875 = vunpack.c.h.b16 %v311
      %v876 = vunpack.c.l.b16 %v312
      %v877 = vunpack.c.h.b16 %v312
      %v878 = vunpack.c.l.b16 %v313
      %v879 = vunpack.c.h.b16 %v313
      %v880 = vunpack.c.l.b16 %v314
      %v881 = vunpack.c.h.b16 %v314
      %v882 = vunpack.c.l.b16 %v315
      %v883 = vunpack.c.h.b16 %v315
      %v884 = vunpack.c.l.b16 %v316
      %v885 = vunpack.c.h.b16 %v316
      %v886 = vunpack.c.l.b16 %v317
      %v887 = vunpack.c.h.b16 %v317
      %v888 = vunpack.c.l.b16 %v318
      %v889 = vunpack.c.h.b16 %v318
      %v890 = vunpack.c.l.b16 %v319
      %v891 = vunpack.c.h.b16 %v319
      %v892 = vunpack.c.l.b16 %v320
      %v893 = vunpack.c.h.b16 %v320
      %v894 = vunpack.c.l.b16 %v321
      %v895 = vunpack.c.h.b16 %v321
      %v896 = vunpack.c.l.b16 %v322
      %v897 = vunpack.c.h.b16 %v322
      %v898 = vunpack.c.l.b16 %v323
      %v899 = vunpack.c.h.b16 %v323
      %v900 = vunpack.c.l.b16 %v324
      %v901 = vunpack.c.h.b16 %v324
      %v902 = vunpack.c.l.b16 %v325
      %v903 = vunpack.c.h.b16 %v325
      %v904 = vunpack.c.l.b16 %v326
      %v905 = vunpack.c.h.b16 %v326
      %v906 = vunpack.c.l.b16 %v327
      %v907 = vunpack.c.h.b16 %v327
      %v908 = vunpack.c.l.b16 %v328
      %v909 = vunpack.c.h.b16 %v328
      %v910 = vunpack.c.l.b16 %v329
      %v911 = vunpack.c.h.b16 %v329
      %v912 = vunpack.c.l.b16 %v330
      %v913 = vunpack.c.h.b16 %v330
      %v914 = vunpack.c.l.b16 %v331
      %v915 = vunpack.c.h.b16 %v331
      %v916 = vunpack.c.l.b16 %v332
      %v917 = vunpack.c.h.b16 %v332
      %v918 = vunpack.c.l.b16 %v333
      %v919 = vunpack.c.h.b16 %v333
      %v920 = vunpack.c.l.b16 %v334
      %v921 = vunpack.c.h.b16 %v334
      %v922 = vunpack.c.l.b16 %v335
      %v923 = vunpack.c.h.b16 %v335
      %v924 = vunpack.c.l.b16 %v336
      %v925 = vunpack.c.h.b16 %v336
      %v926 = vunpack.c.l.b16 %v337
      %v927 = vunpack.c.h.b16 %v337
      %v928 = vunpack.c.l.b16 %v338
      %v929 = vunpack.c.h.b16 %v338
      %v930 = vunpack.c.l.b16 %v339
      %v931 = vunpack.c.h.b16 %v339
      %v932 = vunpack.c.l.b16 %v340
      %v933 = vunpack.c.h.b16 %v340
      %v934 = vunpack.c.l.b16 %v341
      %v935 = vunpack.c.h.b16 %v341
      %v936 = vunpack.c.l.b16 %v342
      %v937 = vunpack.c.h.b16 %v342
      %v938 = vunpack.c.l.b16 %v343
      %v939 = vunpack.c.h.b16 %v343
      %v940 = vunpack.c.l.b16 %v344
      %v941 = vunpack.c.h.b16 %v344
      %v942 = vunpack.c.l.b16 %v345
      %v943 = vunpack.c.h.b16 %v345
      %v944 = vunpack.c.l.b16 %v346
      %v945 = vunpack.c.h.b16 %v346
      %v946 = vunpack.c.l.b16 %v347
      %v947 = vunpack.c.h.b16 %v347
      %v948 = vunpack.c.l.b16 %v348
      %v949 = vunpack.c.h.b16 %v348
      %v950 = vunpack.c.l.b16 %v349
      %v951 = vunpack.c.h.b16 %v349
      %v952 = vunpack.c.l.b16 %v350
      %v953 = vunpack.c.h.b16 %v350
      %v954 = vunpack.c.l.b16 %v351
      %v955 = vunpack.c.h.b16 %v351
      %v956 = vunpack.c.l.b16 %v352
      %v957 = vunpack.c.h.b16 %v352
      %v958 = vunpack.c.l.b16 %v353
      %v959 = vunpack.c.h.b16 %v353
      %v960 = vunpack.c.l.b16 %v354
      %v961 = vunpack.c.h.b16 %v354
      %v962 = vunpack.c.l.b16 %v355
      %v963 = vunpack.c.h.b16 %v355
      %v964 = vunpack.c.l.b16 %v356
      %v965 = vunpack.c.h.b16 %v356
      %v966 = vunpack.c.l.b16 %v357
      %v967 = vunpack.c.h.b16 %v357
      %v968 = vunpack.c.l.b16 %v358
      %v969 = vunpack.c.h.b16 %v358
      %v970 = vunpack.c.l.b16 %v359
      %v971 = vunpack.c.h.b16 %v359
      %v972 = vunpack.c.l.b16 %v360
      %v973 = vunpack.c.h.b16 %v360
      %v974 = vunpack.c.l.b16 %v361
      %v975 = vunpack.c.h.b16 %v361
      %v976 = vunpack.c.l.b16 %v362
      %v977 = vunpack.c.h.b16 %v362
      %v978 = vunpack.c.l.b16 %v363
      %v979 = vunpack.c.h.b16 %v363
      %v980 = vunpack.c.l.b16 %v364
      %v981 = vunpack.c.h.b16 %v364
      %v982 = vunpack.c.l.b16 %v365
      %v983 = vunpack.c.h.b16 %v365
      %v984 = vunpack.c.l.b16 %v366
      %v985 = vunpack.c.h.b16 %v366
      %v986 = vunpack.c.l.b16 %v367
      %v987 = vunpack.c.h.b16 %v367
      %v988 = vunpack.c.l.b16 %v368
      %v989 = vunpack.c.h.b16 %v368
      %v990 = vunpack.c.l.b16 %v369
      %v991 = vunpack.c.h.b16 %v369
      %v992 = vunpack.c.l.b16 %v370
      %v993 = vunpack.c.h.b16 %v370
      %v994 = vunpack.c.l.b16 %v371
      %v995 = vunpack.c.h.b16 %v371
      %v996 = vunpack.c.l.b16 %v372
      %v997 = vunpack.c.h.b16 %v372
      %v998 = vunpack.c.l.b16 %v373
      %v999 = vunpack.c.h.b16 %v373
      %v1000 = vunpack.c.l.b16 %v374
      %v1001 = vunpack.c.h.b16 %v374
      %v1002 = vunpack.c.l.b16 %v375
      %v1003 = vunpack.c.h.b16 %v375
      %v1004 = vunpack.c.l.b16 %v376
      %v1005 = vunpack.c.h.b16 %v376
      %v1006 = vunpack.c.l.b16 %v377
      %v1007 = vunpack.c.h.b16 %v377
      %v1008 = vunpack.c.l.b16 %v378
      %v1009 = vunpack.c.h.b16 %v378
      %v1010 = vunpack.c.l.b16 %v379
      %v1011 = vunpack.c.h.b16 %v379
      %v1012 = vunpack.c.l.b16 %v380
      %v1013 = vunpack.c.h.b16 %v380
      %v1014 = vunpack.c.l.b16 %v381
      %v1015 = vunpack.c.h.b16 %v381
      %v1016 = vunpack.c.l.b16 %v382
      %v1017 = vunpack.c.h.b16 %v382
      %v1018 = vunpack.c.l.b16 %v383
      %v1019 = vunpack.c.h.b16 %v383
      %v1020 = vunpack.c.l.b16 %v384
      %v1021 = vunpack.c.h.b16 %v384
      %v1022 = vunpack.c.l.b16 %v385
      %v1023 = vunpack.c.h.b16 %v385
      %v1024 = vunpack.c.l.b16 %v386
      %v1025 = vunpack.c.h.b16 %v386
      %v1026 = vunpack.c.l.b16 %v387
      %v1027 = vunpack.c.h.b16 %v387
      %v1028 = vunpack.c.l.b16 %v388
      %v1029 = vunpack.c.h.b16 %v388
      %v1030 = vunpack.c.l.b16 %v389
      %v1031 = vunpack.c.h.b16 %v389
      %v1032 = vunpack.c.l.b16 %v390
      %v1033 = vunpack.c.h.b16 %v390
      %v1034 = vunpack.c.l.b16 %v391
      %v1035 = vunpack.c.h.b16 %v391
      %v1036 = vunpack.c.l.b16 %v392
      %v1037 = vunpack.c.h.b16 %v392
      %v1038 = vunpack.c.l.b16 %v393
      %v1039 = vunpack.c.h.b16 %v393
      %v1040 = vunpack.c.l.b16 %v394
      %v1041 = vunpack.c.h.b16 %v394
      %v1042 = vunpack.c.l.b16 %v395
      %v1043 = vunpack.c.h.b16 %v395
      %v1044 = vunpack.c.l.b16 %v396
      %v1045 = vunpack.c.h.b16 %v396
      %v1046 = vunpack.c.l.b16 %v397
      %v1047 = vunpack.c.h.b16 %v397
      %v1048 = vunpack.c.l.b16 %v398
      %v1049 = vunpack.c.h.b16 %v398
      %v1050 = vunpack.c.l.b16 %v399
      %v1051 = vunpack.c.h.b16 %v399
      %v1052 = vunpack.c.l.b16 %v400
      %v1053 = vunpack.c.h.b16 %v400
      %v1054 = vunpack.c.l.b16 %v401
      %v1055 = vunpack.c.h.b16 %v401
      %v1056 = vunpack.c.l.b16 %v402
      %v1057 = vunpack.c.h.b16 %v402
      %v1058 = vunpack.c.l.b16 %v403
      %v1059 = vunpack.c.h.b16 %v403
      %v1060 = vunpack.c.l.b16 %v404
      %v1061 = vunpack.c.h.b16 %v404
      %v1062 = vunpack.c.l.b16 %v405
      %v1063 = vunpack.c.h.b16 %v405
      %v1064 = vunpack.c.l.b16 %v406
      %v1065 = vunpack.c.h.b16 %v406
      %v1066 = vunpack.c.l.b16 %v407
      %v1067 = vunpack.c.h.b16 %v407
      %v1068 = vunpack.c.l.b16 %v408
      %v1069 = vunpack.c.h.b16 %v408
      %v1070 = vunpack.c.l.b16 %v409
      %v1071 = vunpack.c.h.b16 %v409
      %v1072 = vunpack.c.l.b16 %v410
      %v1073 = vunpack.c.h.b16 %v410
      %v1074 = vunpack.c.l.b16 %v411
      %v1075 = vunpack.c.h.b16 %v411
      %v1076 = vunpack.c.l.b16 %v412
      %v1077 = vunpack.c.h.b16 %v412
      %v1078 = vunpack.c.l.b16 %v413
      %v1079 = vunpack.c.h.b16 %v413
      %v1080 = vunpack.c.l.b16 %v414
      %v1081 = vunpack.c.h.b16 %v414
      %v1082 = vunpack.c.l.b16 %v415
      %v1083 = vunpack.c.h.b16 %v415
      %v1084 = vunpack.c.l.b16 %v416
      %v1085 = vunpack.c.h.b16 %v416
      %v1086 = vunpack.c.l.b16 %v417
      %v1087 = vunpack.c.h.b16 %v417
      %v1088 = vunpack.c.l.b16 %v418
      %v1089 = vunpack.c.h.b16 %v418
      %v1090 = vunpack.c.l.b16 %v419
      %v1091 = vunpack.c.h.b16 %v419
      %v1092 = vunpack.c.l.b16 %v420
      %v1093 = vunpack.c.h.b16 %v420
      %v1094 = vunpack.c.l.b16 %v421
      %v1095 = vunpack.c.h.b16 %v421
      %v1096 = vunpack.c.l.b16 %v422
      %v1097 = vunpack.c.h.b16 %v422
      %v1098 = vunpack.c.l.b16 %v423
      %v1099 = vunpack.c.h.b16 %v423
      %v1100 = vunpack.c.l.b16 %v424
      %v1101 = vunpack.c.h.b16 %v424
      %v1102 = vunpack.c.l.b16 %v425
      %v1103 = vunpack.c.h.b16 %v425
      %v1104 = vunpack.c.l.b16 %v426
      %v1105 = vunpack.c.h.b16 %v426
      %v1106 = vunpack.c.l.b16 %v427
      %v1107 = vunpack.c.h.b16 %v427
      %v1108 = vunpack.c.l.b16 %v428
      %v1109 = vunpack.c.h.b16 %v428
      %v1110 = vunpack.c.l.b16 %v429
      %v1111 = vunpack.c.h.b16 %v429
      %v1112 = vunpack.c.l.b16 %v430
      %v1113 = vunpack.c.h.b16 %v430
      %v1114 = vunpack.c.l.b16 %v431
      %v1115 = vunpack.c.h.b16 %v431
      %v1116 = vunpack.c.l.b16 %v432
      %v1117 = vunpack.c.h.b16 %v432
      %v1118 = vunpack.c.l.b16 %v433
      %v1119 = vunpack.c.h.b16 %v433
      %v1120 = vunpack.c.l.b16 %v434
      %v1121 = vunpack.c.h.b16 %v434
      %v1122 = vunpack.c.l.b16 %v435
      %v1123 = vunpack.c.h.b16 %v435
      %v1124 = vunpack.c.l.b16 %v436
      %v1125 = vunpack.c.h.b16 %v436
      %v1126 = vunpack.c.l.b16 %v437
      %v1127 = vunpack.c.h.b16 %v437
      %v1128 = vunpack.c.l.b16 %v438
      %v1129 = vunpack.c.h.b16 %v438
      %v1130 = vunpack.c.l.b16 %v439
      %v1131 = vunpack.c.h.b16 %v439
      %v1132 = vunpack.c.l.b16 %v440
      %v1133 = vunpack.c.h.b16 %v440
      %v1134 = vunpack.c.l.b16 %v441
      %v1135 = vunpack.c.h.b16 %v441
      %v1136 = vunpack.c.l.b16 %v442
      %v1137 = vunpack.c.h.b16 %v442
      %v1138 = vunpack.c.l.b16 %v443
      %v1139 = vunpack.c.h.b16 %v443
      %v1140 = vunpack.c.l.b16 %v444
      %v1141 = vunpack.c.h.b16 %v444
      %v1142 = vunpack.c.l.b16 %v445
      %v1143 = vunpack.c.h.b16 %v445
      %v1144 = vunpack.c.l.b16 %v446
      %v1145 = vunpack.c.h.b16 %v446
      %v1146 = vunpack.c.l.b16 %v447
      %v1147 = vunpack.c.h.b16 %v447
      %v1148 = vunpack.c.l.b16 %v448
      %v1149 = vunpack.c.h.b16 %v448
      %v1150 = vunpack.c.l.b16 %v449
      %v1151 = vunpack.c.h.b16 %v449
      %v1152 = vunpack.c.l.b16 %v450
      %v1153 = vunpack.c.h.b16 %v450
      %v1154 = vunpack.c.l.b16 %v451
      %v1155 = vunpack.c.h.b16 %v451
      %v1156 = vunpack.c.l.b16 %v452
      %v1157 = vunpack.c.h.b16 %v452
      %v1158 = vunpack.c.l.b16 %v453
      %v1159 = vunpack.c.h.b16 %v453
      %v1160 = vunpack.c.l.b16 %v454
      %v1161 = vunpack.c.h.b16 %v454
      %v1162 = vunpack.c.l.b16 %v455
      %v1163 = vunpack.c.h.b16 %v455
      %v1164 = vunpack.c.l.b16 %v456
      %v1165 = vunpack.c.h.b16 %v456
      %v1166 = vunpack.c.l.b16 %v457
      %v1167 = vunpack.c.h.b16 %v457
      %v1168 = vunpack.c.l.b16 %v458
      %v1169 = vunpack.c.h.b16 %v458
      %v1170 = vunpack.c.l.b16 %v459
      %v1171 = vunpack.c.h.b16 %v459
      %v1172 = vunpack.c.l.b16 %v460
      %v1173 = vunpack.c.h.b16 %v460
      %v1174 = vunpack.c.l.b16 %v461
      %v1175 = vunpack.c.h.b16 %v461
      %v1176 = vunpack.c.l.b16 %v462
      %v1177 = vunpack.c.h.b16 %v462
      %v1178 = vunpack.c.l.b16 %v463
      %v1179 = vunpack.c.h.b16 %v463
      %v1180 = vunpack.c.l.b16 %v464
      %v1181 = vunpack.c.h.b16 %v464
      %v1182 = vunpack.c.l.b16 %v465
      %v1183 = vunpack.c.h.b16 %v465
      %v1184 = vunpack.c.l.b16 %v466
      %v1185 = vunpack.c.h.b16 %v466
      %v1186 = vunpack.c.l.b16 %v467
      %v1187 = vunpack.c.h.b16 %v467
      %v1188 = vunpack.c.l.b16 %v468
      %v1189 = vunpack.c.h.b16 %v468
      %v1190 = vunpack.c.l.b16 %v469
      %v1191 = vunpack.c.h.b16 %v469
      %v1192 = vunpack.c.l.b16 %v470
      %v1193 = vunpack.c.h.b16 %v470
      %v1194 = vunpack.c.l.b16 %v471
      %v1195 = vunpack.c.h.b16 %v471
      %v1196 = vunpack.c.l.b16 %v472
      %v1197 = vunpack.c.h.b16 %v472
      %v1198 = vunpack.c.l.b16 %v473
      %v1199 = vunpack.c.h.b16 %v473
      %v1200 = vunpack.c.l.b16 %v474
      %v1201 = vunpack.c.h.b16 %v474
      %v1202 = vunpack.c.l.b16 %v475
      %v1203 = vunpack.c.h.b16 %v475
      %v1204 = vunpack.c.l.b16 %v476
      %v1205 = vunpack.c.h.b16 %v476
      %v1206 = vunpack.c.l.b16 %v477
      %v1207 = vunpack.c.h.b16 %v477
      %v1208 = vunpack.c.l.b16 %v478
      %v1209 = vunpack.c.h.b16 %v478
      %v1210 = vunpack.c.l.b16 %v479
      %v1211 = vunpack.c.h.b16 %v479
      %v1212 = vunpack.c.l.b16 %v480
      %v1213 = vunpack.c.h.b16 %v480
      %v1214 = vunpack.c.l.b16 %v481
      %v1215 = vunpack.c.h.b16 %v481
      %v1216 = vunpack.c.l.b16 %v482
      %v1217 = vunpack.c.h.b16 %v482
      %v1218 = vunpack.c.l.b16 %v483
      %v1219 = vunpack.c.h.b16 %v483
      %v1220 = vunpack.c.l.b16 %v484
      %v1221 = vunpack.c.h.b16 %v484
      %v1222 = vunpack.c.l.b16 %v485
      %v1223 = vunpack.c.h.b16 %v485
      %v1224 = vunpack.c.l.b16 %v486
      %v1225 = vunpack.c.h.b16 %v486
      %v1226 = vunpack.c.l.b16 %v487
      %v1227 = vunpack.c.h.b16 %v487
      %v1228 = vunpack.c.l.b16 %v488
      %v1229 = vunpack.c.h.b16 %v488
      %v1230 = vunpack.c.l.b16 %v489
      %v1231 = vunpack.c.h.b16 %v489
      %v1232 = vunpack.c.l.b16 %v490
      %v1233 = vunpack.c.h.b16 %v490
      %v1234 = vunpack.c.l.b16 %v491
      %v1235 = vunpack.c.h.b16 %v491
      %v1236 = vunpack.c.l.b16 %v492
      %v1237 = vunpack.c.h.b16 %v492
      %v1238 = vunpack.c.l.b16 %v493
      %v1239 = vunpack.c.h.b16 %v493
      %v1240 = vunpack.c.l.b16 %v494
      %v1241 = vunpack.c.h.b16 %v494
      %v1242 = vunpack.c.l.b16 %v495
      %v1243 = vunpack.c.h.b16 %v495
      %v1244 = vunpack.c.l.b16 %v496
      %v1245 = vunpack.c.h.b16 %v496
      %v1246 = vunpack.c.l.b16 %v497
      %v1247 = vunpack.c.h.b16 %v497
      %v1248 = vunpack.c.l.b16 %v498
      %v1249 = vunpack.c.h.b16 %v498
      %v1250 = vunpack.c.l.b16 %v499
      %v1251 = vunpack.c.h.b16 %v499
      %v1252 = vunpack.c.l.b16 %v500
      %v1253 = vunpack.c.h.b16 %v500
      %v1254 = vunpack.c.l.b16 %v501
      %v1255 = vunpack.c.h.b16 %v501
      %v1256 = vunpack.c.l.b16 %v502
      %v1257 = vunpack.c.h.b16 %v502
      %v1258 = vunpack.c.l.b16 %v503
      %v1259 = vunpack.c.h.b16 %v503
      %v1260 = vunpack.c.l.b16 %v504
      %v1261 = vunpack.c.h.b16 %v504
      %v1262 = vunpack.c.l.b16 %v505
      %v1263 = vunpack.c.h.b16 %v505
      %v1264 = vunpack.c.l.b16 %v506
      %v1265 = vunpack.c.h.b16 %v506
      %v1266 = vunpack.c.l.b16 %v507
      %v1267 = vunpack.c.h.b16 %v507
      %v1268 = vunpack.c.l.b16 %v508
      %v1269 = vunpack.c.h.b16 %v508
      %v1270 = vunpack.c.l.b16 %v509
      %v1271 = vunpack.c.h.b16 %v509
      %v1272 = vunpack.c.l.b16 %v510
      %v1273 = vunpack.c.h.b16 %v510
      %v1274 = vunpack.c.l.b16 %v511
      %v1275 = vunpack.c.h.b16 %v511
      %v1276 = vunpack.c.l.b16 %v512
      %v1277 = vunpack.c.h.b16 %v512
      %v1278 = vunpack.c.l.b16 %v513
      %v1279 = vunpack.c.h.b16 %v513
      %v1280 = vunpack.c.l.b16 %v514
      %v1281 = vunpack.c.h.b16 %v514
      %v1282 = vunpack.c.l.b16 %v515
      %v1283 = vunpack.c.h.b16 %v515
      %v1284 = vunpack.c.l.b16 %v516
      %v1285 = vunpack.c.h.b16 %v516
      %v1286 = vunpack.c.l.b16 %v517
      %v1287 = vunpack.c.h.b16 %v517
      %v1288 = vunpack.c.l.b16 %v518
      %v1289 = vunpack.c.h.b16 %v518
      %v1290 = vunpack.c.l.b16 %v519
      %v1291 = vunpack.c.h.b16 %v519
      %v1292 = vunpack.c.l.b16 %v520
      %v1293 = vunpack.c.h.b16 %v520
      %v1294 = vunpack.c.l.b16 %v521
      %v1295 = vunpack.c.h.b16 %v521
      %v1296 = vunpack.c.l.b16 %v522
      %v1297 = vunpack.c.h.b16 %v522
      %v1298 = vunpack.c.l.b16 %v523
      %v1299 = vunpack.c.h.b16 %v523
      %v1300 = vunpack.c.l.b16 %v524
      %v1301 = vunpack.c.h.b16 %v524
      %v1302 = vunpack.c.l.b16 %v525
      %v1303 = vunpack.c.h.b16 %v525
      %v1304 = vunpack.c.l.b16 %v526
      %v1305 = vunpack.c.h.b16 %v526
      %v1306 = vunpack.c.l.b16 %v527
      %v1307 = vunpack.c.h.b16 %v527
      %v1308 = vunpack.c.l.b16 %v528
      %v1309 = vunpack.c.h.b16 %v528
      %v1310 = vunpack.c.l.b16 %v529
      %v1311 = vunpack.c.h.b16 %v529
      %v1312 = vpack.c.b16 %v808, %v800
      %v1313 = vpack.c.b16 %v809, %v801
      %v1314 = vpack.c.b16 %v810, %v802
      %v1315 = vpack.c.b16 %v811, %v803
      %v1316 = vpack.c.b16 %v812, %v804
      %v1317 = vpack.c.b16 %v813, %v805
      %v1318 = vpack.c.b16 %v814, %v806
      %v1319 = vpack.c.b16 %v815, %v807
      %v1320 = vpack.c.b16 %v824, %v816
      %v1321 = vpack.c.b16 %v825, %v817
      %v1322 = vpack.c.b16 %v826, %v818
      %v1323 = vpack.c.b16 %v827, %v819
      %v1324 = vpack.c.b16 %v828, %v820
      %v1325 = vpack.c.b16 %v829, %v821
      %v1326 = vpack.c.b16 %v830, %v822
      %v1327 = vpack.c.b16 %v831, %v823
      %v1328 = vpack.c.b16 %v840, %v832
      %v1329 = vpack.c.b16 %v841, %v833
      %v1330 = vpack.c.b16 %v842, %v834
      %v1331 = vpack.c.b16 %v843, %v835
      %v1332 = vpack.c.b16 %v844, %v836
      %v1333 = vpack.c.b16 %v845, %v837
      %v1334 = vpack.c.b16 %v846, %v838
      %v1335 = vpack.c.b16 %v847, %v839
      %v1336 = vpack.c.b16 %v856, %v848
      %v1337 = vpack.c.b16 %v857, %v849
      %v1338 = vpack.c.b16 %v858, %v850
      %v1339 = vpack.c.b16 %v859, %v851
      %v1340 = vpack.c.b16 %v860, %v852
      %v1341 = vpack.c.b16 %v861, %v853
      %v1342 = vpack.c.b16 %v862, %v854
      %v1343 = vpack.c.b16 %v863, %v855
      %v1344 = vpack.c.b16 %v872, %v864
      %v1345 = vpack.c.b16 %v873, %v865
      %v1346 = vpack.c.b16 %v874, %v866
      %v1347 = vpack.c.b16 %v875, %v867
      %v1348 = vpack.c.b16 %v876, %v868
      %v1349 = vpack.c.b16 %v877, %v869
      %v1350 = vpack.c.b16 %v878, %v870
      %v1351 = vpack.c.b16 %v879, %v871
      %v1352 = vpack.c.b16 %v888, %v880
      %v1353 = vpack.c.b16 %v889, %v881
      %v1354 = vpack.c.b16 %v890, %v882
      %v1355 = vpack.c.b16 %v891, %v883
      %v1356 = vpack.c.b16 %v892, %v884
      %v1357 = vpack.c.b16 %v893, %v885
      %v1358 = vpack.c.b16 %v894, %v886
      %v1359 = vpack.c.b16 %v895, %v887
      %v1360 = vpack.c.b16 %v904, %v896
      %v1361 = vpack.c.b16 %v905, %v897
      %v1362 = vpack.c.b16 %v906, %v898
      %v1363 = vpack.c.b16 %v907, %v899
      %v1364 = vpack.c.b16 %v908, %v900
      %v1365 = vpack.c.b16 %v909, %v901
      %v1366 = vpack.c.b16 %v910, %v902
      %v1367 = vpack.c.b16 %v911, %v903
      %v1368 = vpack.c.b16 %v920, %v912
      %v1369 = vpack.c.b16 %v921, %v913
      %v1370 = vpack.c.b16 %v922, %v914
      %v1371 = vpack.c.b16 %v923, %v915
      %v1372 = vpack.c.b16 %v924, %v916
      %v1373 = vpack.c.b16 %v925, %v917
      %v1374 = vpack.c.b16 %v926, %v918
      %v1375 = vpack.c.b16 %v927, %v919
      %v1376 = vpack.c.b16 %v936, %v928
      %v1377 = vpack.c.b16 %v937, %v929
      %v1378 = vpack.c.b16 %v938, %v930
      %v1379 = vpack.c.b16 %v939, %v931
      %v1380 = vpack.c.b16 %v940, %v932
      %v1381 = vpack.c.b16 %v941, %v933
      %v1382 = vpack.c.b16 %v942, %v934
      %v1383 = vpack.c.b16 %v943, %v935
      %v1384 = vpack.c.b16 %v952, %v944
      %v1385 = vpack.c.b16 %v953, %v945
      %v1386 = vpack.c.b16 %v954, %v946
      %v1387 = vpack.c.b16 %v955, %v947
      %v1388 = vpack.c.b16 %v956, %v948
      %v1389 = vpack.c.b16 %v957, %v949
      %v1390 = vpack.c.b16 %v958, %v950
      %v1391 = vpack.c.b16 %v959, %v951
      %v1392 = vpack.c.b16 %v968, %v960
      %v1393 = vpack.c.b16 %v969, %v961
      %v1394 = vpack.c.b16 %v970, %v962
      %v1395 = vpack.c.b16 %v971, %v963
      %v1396 = vpack.c.b16 %v972, %v964
      %v1397 = vpack.c.b16 %v973, %v965
      %v1398 = vpack.c.b16 %v974, %v966
      %v1399 = vpack.c.b16 %v975, %v967
      %v1400 = vpack.c.b16 %v984, %v976
      %v1401 = vpack.c.b16 %v985, %v977
      %v1402 = vpack.c.b16 %v986, %v978
      %v1403 = vpack.c.b16 %v987, %v979
      %v1404 = vpack.c.b16 %v988, %v980
      %v1405 = vpack.c.b16 %v989, %v981
      %v1406 = vpack.c.b16 %v990, %v982
      %v1407 = vpack.c.b16 %v991, %v983
      %v1408 = vpack.c.b16 %v1000, %v992
      %v1409 = vpack.c.b16 %v1001, %v993
      %v1410 = vpack.c.b16 %v1002, %v994
      %v1411 = vpack.c.b16 %v1003, %v995
      %v1412 = vpack.c.b16 %v1004, %v996
      %v1413 = vpack.c.b16 %v1005, %v997
      %v1414 = vpack.c.b16 %v1006, %v998
      %v1415 = vpack.c.b16 %v1007, %v999
      %v1416 = vpack.c.b16 %v1016, %v1008
      %v1417 = vpack.c.b16 %v1017, %v1009
      %v1418 = vpack.c.b16 %v1018, %v1010
      %v1419 = vpack.c.b16 %v1019, %v1011
      %v1420 = vpack.c.b16 %v1020, %v1012
      %v1421 = vpack.c.b16 %v1021, %v1013
      %v1422 = vpack.c.b16 %v1022, %v1014
      %v1423 = vpack.c.b16 %v1023, %v1015
      %v1424 = vpack.c.b16 %v1032, %v1024
      %v1425 = vpack.c.b16 %v1033, %v1025
      %v1426 = vpack.c.b16 %v1034, %v1026
      %v1427 = vpack.c.b16 %v1035, %v1027
      %v1428 = vpack.c.b16 %v1036, %v1028
      %v1429 = vpack.c.b16 %v1037, %v1029
      %v1430 = vpack.c.b16 %v1038, %v1030
      %v1431 = vpack.c.b16 %v1039, %v1031
      %v1432 = vpack.c.b16 %v1048, %v1040
      %v1433 = vpack.c.b16 %v1049, %v1041
      %v1434 = vpack.c.b16 %v1050, %v1042
      %v1435 = vpack.c.b16 %v1051, %v1043
      %v1436 = vpack.c.b16 %v1052, %v1044
      %v1437 = vpack.c.b16 %v1053, %v1045
      %v1438 = vpack.c.b16 %v1054, %v1046
      %v1439 = vpack.c.b16 %v1055, %v1047
      %v1440 = vpack.c.b16 %v1064, %v1056
      %v1441 = vpack.c.b16 %v1065, %v1057
      %v1442 = vpack.c.b16 %v1066, %v1058
      %v1443 = vpack.c.b16 %v1067, %v1059
      %v1444 = vpack.c.b16 %v1068, %v1060
      %v1445 = vpack.c.b16 %v1069, %v1061
      %v1446 = vpack.c.b16 %v1070, %v1062
      %v1447 = vpack.c.b16 %v1071, %v1063
      %v1448 = vpack.c.b16 %v1080, %v1072
      %v1449 = vpack.c.b16 %v1081, %v1073
      %v1450 = vpack.c.b16 %v1082, %v1074
      %v1451 = vpack.c.b16 %v1083, %v1075
      %v1452 = vpack.c.b16 %v1084, %v1076
      %v1453 = vpack.c.b16 %v1085, %v1077
      %v1454 = vpack.c.b16 %v1086, %v1078
      %v1455 = vpack.c.b16 %v1087, %v1079
      %v1456 = vpack.c.b16 %v1096, %v1088
      %v1457 = vpack.c.b16 %v1097, %v1089
      %v1458 = vpack.c.b16 %v1098, %v1090
      %v1459 = vpack.c.b16 %v1099, %v1091
      %v1460 = vpack.c.b16 %v1100, %v1092
      %v1461 = vpack.c.b16 %v1101, %v1093
      %v1462 = vpack.c.b16 %v1102, %v1094
      %v1463 = vpack.c.b16 %v1103, %v1095
      %v1464 = vpack.c.b16 %v1112, %v1104
      %v1465 = vpack.c.b16 %v1113, %v1105
      %v1466 = vpack.c.b16 %v1114, %v1106
      %v1467 = vpack.c.b16 %v1115, %v1107
      %v1468 = vpack.c.b16 %v1116, %v1108
      %v1469 = vpack.c.b16 %v1117, %v1109
      %v1470 = vpack.c.b16 %v1118, %v1110
      %v1471 = vpack.c.b16 %v1119, %v1111
      %v1472 = vpack.c.b16 %v1128, %v1120
      %v1473 = vpack.c.b16 %v1129, %v1121
      %v1474 = vpack.c.b16 %v1130, %v1122
      %v1475 = vpack.c.b16 %v1131, %v1123
      %v1476 = vpack.c.b16 %v1132, %v1124
      %v1477 = vpack.c.b16 %v1133, %v1125
      %v1478 = vpack.c.b16 %v1134, %v1126
      %v1479 = vpack.c.b16 %v1135, %v1127
      %v1480 = vpack.c.b16 %v1144, %v1136
      %v1481 = vpack.c.b16 %v1145, %v1137
      %v1482 = vpack.c.b16 %v1146, %v1138
      %v1483 = vpack.c.b16 %v1147, %v1139
      %v1484 = vpack.c.b16 %v1148, %v1140
      %v1485 = vpack.c.b16 %v1149, %v1141
      %v1486 = vpack.c.b16 %v1150, %v1142
      %v1487 = vpack.c.b16 %v1151, %v1143
      %v1488 = vpack.c.b16 %v1160, %v1152
      %v1489 = vpack.c.b16 %v1161, %v1153
      %v1490 = vpack.c.b16 %v1162, %v1154
      %v1491 = vpack.c.b16 %v1163, %v1155
      %v1492 = vpack.c.b16 %v1164, %v1156
      %v1493 = vpack.c.b16 %v1165, %v1157
      %v1494 = vpack.c.b16 %v1166, %v1158
      %v1495 = vpack.c.b16 %v1167, %v1159
      %v1496 = vpack.c.b16 %v1176, %v1168
      %v1497 = vpack.c.b16 %v1177, %v1169
      %v1498 = vpack.c.b16 %v1178, %v1170
      %v1499 = vpack.c.b16 %v1179, %v1171
      %v1500 = vpack.c.b16 %v1180, %v1172
      %v1501 = vpack.c.b16 %v1181, %v1173
      %v1502 = vpack.c.b16 %v1182, %v1174
      %v1503 = vpack.c.b16 %v1183, %v1175
      %v1504 = vpack.c.b16 %v1192, %v1184
      %v1505 = vpack.c.b16 %v1193, %v1185
      %v1506 = vpack.c.b16 %v1194, %v1186
      %v1507 = vpack.c.b16 %v1195, %v1187
      %v1508 = vpack.c.b16 %v1196, %v1188
      %v1509 = vpack.c.b16 %v1197, %v1189
      %v1510 = vpack.c.b16 %v1198, %v1190
      %v1511 = vpack.c.b16 %v1199, %v1191
      %v1512 = vpack.c.b16 %v1208, %v1200
      %v1513 = vpack.c.b16 %v1209, %v1201
      %v1514 = vpack.c.b16 %v1210, %v1202
      %v1515 = vpack.c.b16 %v1211, %v1203
      %v1516 = vpack.c.b16 %v1212, %v1204
      %v1517 = vpack.c.b16 %v1213, %v1205
      %v1518 = vpack.c.b16 %v1214, %v1206
      %v1519 = vpack.c.b16 %v1215, %v1207
      %v1520 = vpack.c.b16 %v1224, %v1216
      %v1521 = vpack.c.b16 %v1225, %v1217
      %v1522 = vpack.c.b16 %v1226, %v1218
      %v1523 = vpack.c.b16 %v1227, %v1219
      %v1524 = vpack.c.b16 %v1228, %v1220
      %v1525 = vpack.c.b16 %v1229, %v1221
      %v1526 = vpack.c.b16 %v1230, %v1222
      %v1527 = vpack.c.b16 %v1231, %v1223
      %v1528 = vpack.c.b16 %v1240, %v1232
      %v1529 = vpack.c.b16 %v1241, %v1233
      %v1530 = vpack.c.b16 %v1242, %v1234
      %v1531 = vpack.c.b16 %v1243, %v1235
      %v1532 = vpack.c.b16 %v1244, %v1236
      %v1533 = vpack.c.b16 %v1245, %v1237
      %v1534 = vpack.c.b16 %v1246, %v1238
      %v1535 = vpack.c.b16 %v1247, %v1239
      %v1536 = vpack.c.b16 %v1256, %v1248
      %v1537 = vpack.c.b16 %v1257, %v1249
      %v1538 = vpack.c.b16 %v1258, %v1250
      %v1539 = vpack.c.b16 %v1259, %v1251
      %v1540 = vpack.c.b16 %v1260, %v1252
      %v1541 = vpack.c.b16 %v1261, %v1253
      %v1542 = vpack.c.b16 %v1262, %v1254
      %v1543 = vpack.c.b16 %v1263, %v1255
      %v1544 = vpack.c.b16 %v1272, %v1264
      %v1545 = vpack.c.b16 %v1273, %v1265
      %v1546 = vpack.c.b16 %v1274, %v1266
      %v1547 = vpack.c.b16 %v1275, %v1267
      %v1548 = vpack.c.b16 %v1276, %v1268
      %v1549 = vpack.c.b16 %v1277, %v1269
      %v1550 = vpack.c.b16 %v1278, %v1270
      %v1551 = vpack.c.b16 %v1279, %v1271
      %v1552 = vpack.c.b16 %v1288, %v1280
      %v1553 = vpack.c.b16 %v1289, %v1281
      %v1554 = vpack.c.b16 %v1290, %v1282
      %v1555 = vpack.c.b16 %v1291, %v1283
      %v1556 = vpack.c.b16 %v1292, %v1284
      %v1557 = vpack.c.b16 %v1293, %v1285
      %v1558 = vpack.c.b16 %v1294, %v1286
      %v1559 = vpack.c.b16 %v1295, %v1287
      %v1560 = vpack.c.b16 %v1304, %v1296
      %v1561 = vpack.c.b16 %v1305, %v1297
      %v1562 = vpack.c.b16 %v1306, %v1298
      %v1563 = vpack.c.b16 %v1307, %v1299
      %v1564 = vpack.c.b16 %v1308, %v1300
      %v1565 = vpack.c.b16 %v1309, %v1301
      %v1566 = vpack.c.b16 %v1310, %v1302
      %v1567 = vpack.c.b16 %v1311, %v1303
      %1824 = vmatprep.subr.bf16.mxu0 %v1313
      %1825 = vmatpush1.bf16.msra.mxu0 %v1312
      %1826 = vmatprep.subr.bf16.mxu0 %v1321
      %1827 = vmatpush1.bf16.msra.mxu0 %v1320
      %1828 = vmatprep.subr.bf16.mxu0 %v1329
      %1829 = vmatpush1.bf16.msra.mxu0 %v1328
      %1830 = vmatprep.subr.bf16.mxu0 %v1337
      %1831 = vmatpush1.bf16.msra.mxu0 %v1336
      %1832 = vmatprep.subr.bf16.mxu0 %v1345
      %1833 = vmatpush1.bf16.msra.mxu0 %v1344
      %1834 = vmatprep.subr.bf16.mxu0 %v1353
      %1835 = vmatpush1.bf16.msra.mxu0 %v1352
      %1836 = vmatprep.subr.bf16.mxu0 %v1361
      %1837 = vmatpush1.bf16.msra.mxu0 %v1360
      %1838 = vmatprep.subr.bf16.mxu0 %v1369
      %1839 = vmatpush1.bf16.msra.mxu0 %v1368
      %1840 = vmatprep.subr.bf16.mxu0 %v1377
      %1841 = vmatpush1.bf16.msra.mxu0 %v1376
      %1842 = vmatprep.subr.bf16.mxu0 %v1385
      %1843 = vmatpush1.bf16.msra.mxu0 %v1384
      %1844 = vmatprep.subr.bf16.mxu0 %v1393
      %1845 = vmatpush1.bf16.msra.mxu0 %v1392
      %1846 = vmatprep.subr.bf16.mxu0 %v1401
      %1847 = vmatpush1.bf16.msra.mxu0 %v1400
      %1848 = vmatprep.subr.bf16.mxu0 %v1409
      %1849 = vmatpush1.bf16.msra.mxu0 %v1408
      %1850 = vmatprep.subr.bf16.mxu0 %v1417
      %1851 = vmatpush1.bf16.msra.mxu0 %v1416
      %1852 = vmatprep.subr.bf16.mxu0 %v1425
      %1853 = vmatpush1.bf16.msra.mxu0 %v1424
      %1854 = vmatprep.subr.bf16.mxu0 %v1433
      %1855 = vmatpush1.bf16.msra.mxu0 %v1432
      %1856 = vmatprep.mubr.bf16.mxu0 %v537
      %1857 = vmatmul.mubr.bf16.gmra.mrb[0].mxu0 %v536
      %v1858 = vpop.f32.mrb[0].mxu0
      %v1859 = vadd.f32 0.0, %v1858
      %v1860 = vpop.f32.mrb[0].mxu0
      %v1861 = vadd.f32 0.0, %v1860
      %v1862 = vpop.f32.mrb[0].mxu0
      %v1863 = vpop.f32.mrb[0].mxu0
      %1864 = vdwg.mxu0
      %1865 = vmatprep.subr.bf16.mxu0 %v1441
      %1866 = vmatpush1.bf16.msra.mxu0 %v1440
      %1867 = vmatprep.subr.bf16.mxu0 %v1449
      %1868 = vmatpush1.bf16.msra.mxu0 %v1448
      %1869 = vmatprep.subr.bf16.mxu0 %v1457
      %1870 = vmatpush1.bf16.msra.mxu0 %v1456
      %1871 = vmatprep.subr.bf16.mxu0 %v1465
      %1872 = vmatpush1.bf16.msra.mxu0 %v1464
      %1873 = vmatprep.subr.bf16.mxu0 %v1473
      %1874 = vmatpush1.bf16.msra.mxu0 %v1472
      %1875 = vmatprep.subr.bf16.mxu0 %v1481
      %1876 = vmatpush1.bf16.msra.mxu0 %v1480
      %1877 = vmatprep.subr.bf16.mxu0 %v1489
      %1878 = vmatpush1.bf16.msra.mxu0 %v1488
      %1879 = vmatprep.subr.bf16.mxu0 %v1497
      %1880 = vmatpush1.bf16.msra.mxu0 %v1496
      %1881 = vmatprep.subr.bf16.mxu0 %v1505
      %1882 = vmatpush1.bf16.msra.mxu0 %v1504
      %1883 = vmatprep.subr.bf16.mxu0 %v1513
      %1884 = vmatpush1.bf16.msra.mxu0 %v1512
      %1885 = vmatprep.subr.bf16.mxu0 %v1521
      %1886 = vmatpush1.bf16.msra.mxu0 %v1520
      %1887 = vmatprep.subr.bf16.mxu0 %v1529
      %1888 = vmatpush1.bf16.msra.mxu0 %v1528
      %1889 = vmatprep.subr.bf16.mxu0 %v1537
      %1890 = vmatpush1.bf16.msra.mxu0 %v1536
      %1891 = vmatprep.subr.bf16.mxu0 %v1545
      %1892 = vmatpush1.bf16.msra.mxu0 %v1544
      %1893 = vmatprep.subr.bf16.mxu0 %v1553
      %1894 = vmatpush1.bf16.msra.mxu0 %v1552
      %1895 = vmatprep.subr.bf16.mxu0 %v1561
      %1896 = vmatpush1.bf16.msra.mxu0 %v1560
      %1897 = vmatprep.mubr.bf16.mxu0 %v539
      %1898 = vmatmul.mubr.bf16.gmra.mrb[0].mxu0 %v538
      %v1899 = vpop.f32.mrb[0].mxu0
      %v1900 = vadd.f32 %v1859, %v1899
      %v1901 = vpop.f32.mrb[0].mxu0
      %v1902 = vadd.f32 %v1861, %v1901
      %v1903 = vpop.f32.mrb[0].mxu0
      %v1904 = vpop.f32.mrb[0].mxu0
      %1905 = vdwg.mxu0
      %1906 = vmatprep.subr.bf16.mxu0 %v1315
      %1907 = vmatpush1.bf16.msra.mxu0 %v1314
      %1908 = vmatprep.subr.bf16.mxu0 %v1323
      %1909 = vmatpush1.bf16.msra.mxu0 %v1322
      %1910 = vmatprep.subr.bf16.mxu0 %v1331
      %1911 = vmatpush1.bf16.msra.mxu0 %v1330
      %1912 = vmatprep.subr.bf16.mxu0 %v1339
      %1913 = vmatpush1.bf16.msra.mxu0 %v1338
      %1914 = vmatprep.subr.bf16.mxu0 %v1347
      %1915 = vmatpush1.bf16.msra.mxu0 %v1346
      %1916 = vmatprep.subr.bf16.mxu0 %v1355
      %1917 = vmatpush1.bf16.msra.mxu0 %v1354
      %1918 = vmatprep.subr.bf16.mxu0 %v1363
      %1919 = vmatpush1.bf16.msra.mxu0 %v1362
      %1920 = vmatprep.subr.bf16.mxu0 %v1371
      %1921 = vmatpush1.bf16.msra.mxu0 %v1370
      %1922 = vmatprep.subr.bf16.mxu0 %v1379
      %1923 = vmatpush1.bf16.msra.mxu0 %v1378
      %1924 = vmatprep.subr.bf16.mxu0 %v1387
      %1925 = vmatpush1.bf16.msra.mxu0 %v1386
      %1926 = vmatprep.subr.bf16.mxu0 %v1395
      %1927 = vmatpush1.bf16.msra.mxu0 %v1394
      %1928 = vmatprep.subr.bf16.mxu0 %v1403
      %1929 = vmatpush1.bf16.msra.mxu0 %v1402
      %1930 = vmatprep.subr.bf16.mxu0 %v1411
      %1931 = vmatpush1.bf16.msra.mxu0 %v1410
      %1932 = vmatprep.subr.bf16.mxu0 %v1419
      %1933 = vmatpush1.bf16.msra.mxu0 %v1418
      %1934 = vmatprep.subr.bf16.mxu0 %v1427
      %1935 = vmatpush1.bf16.msra.mxu0 %v1426
      %1936 = vmatprep.subr.bf16.mxu0 %v1435
      %1937 = vmatpush1.bf16.msra.mxu0 %v1434
      %1938 = vmatprep.mubr.bf16.mxu0 %v537
      %1939 = vmatmul.mubr.bf16.gmra.mrb[0].mxu0 %v536
      %v1940 = vpop.f32.mrb[0].mxu0
      %v1941 = vadd.f32 0.0, %v1940
      %v1942 = vpop.f32.mrb[0].mxu0
      %v1943 = vadd.f32 0.0, %v1942
      %v1944 = vpop.f32.mrb[0].mxu0
      %v1945 = vpop.f32.mrb[0].mxu0
      %1946 = vdwg.mxu0
      %1947 = vmatprep.subr.bf16.mxu0 %v1443
      %1948 = vmatpush1.bf16.msra.mxu0 %v1442
      %1949 = vmatprep.subr.bf16.mxu0 %v1451
      %1950 = vmatpush1.bf16.msra.mxu0 %v1450
      %1951 = vmatprep.subr.bf16.mxu0 %v1459
      %1952 = vmatpush1.bf16.msra.mxu0 %v1458
      %1953 = vmatprep.subr.bf16.mxu0 %v1467
      %1954 = vmatpush1.bf16.msra.mxu0 %v1466
      %1955 = vmatprep.subr.bf16.mxu0 %v1475
      %1956 = vmatpush1.bf16.msra.mxu0 %v1474
      %1957 = vmatprep.subr.bf16.mxu0 %v1483
      %1958 = vmatpush1.bf16.msra.mxu0 %v1482
      %1959 = vmatprep.subr.bf16.mxu0 %v1491
      %1960 = vmatpush1.bf16.msra.mxu0 %v1490
      %1961 = vmatprep.subr.bf16.mxu0 %v1499
      %1962 = vmatpush1.bf16.msra.mxu0 %v1498
      %1963 = vmatprep.subr.bf16.mxu0 %v1507
      %1964 = vmatpush1.bf16.msra.mxu0 %v1506
      %1965 = vmatprep.subr.bf16.mxu0 %v1515
      %1966 = vmatpush1.bf16.msra.mxu0 %v1514
      %1967 = vmatprep.subr.bf16.mxu0 %v1523
      %1968 = vmatpush1.bf16.msra.mxu0 %v1522
      %1969 = vmatprep.subr.bf16.mxu0 %v1531
      %1970 = vmatpush1.bf16.msra.mxu0 %v1530
      %1971 = vmatprep.subr.bf16.mxu0 %v1539
      %1972 = vmatpush1.bf16.msra.mxu0 %v1538
      %1973 = vmatprep.subr.bf16.mxu0 %v1547
      %1974 = vmatpush1.bf16.msra.mxu0 %v1546
      %1975 = vmatprep.subr.bf16.mxu0 %v1555
      %1976 = vmatpush1.bf16.msra.mxu0 %v1554
      %1977 = vmatprep.subr.bf16.mxu0 %v1563
      %1978 = vmatpush1.bf16.msra.mxu0 %v1562
      %1979 = vmatprep.mubr.bf16.mxu0 %v539
      %1980 = vmatmul.mubr.bf16.gmra.mrb[0].mxu0 %v538
      %v1981 = vpop.f32.mrb[0].mxu0
      %v1982 = vadd.f32 %v1941, %v1981
      %v1983 = vpop.f32.mrb[0].mxu0
      %v1984 = vadd.f32 %v1943, %v1983
      %v1985 = vpop.f32.mrb[0].mxu0
      %v1986 = vpop.f32.mrb[0].mxu0
      %1987 = vdwg.mxu0
      %1988 = vmatprep.subr.bf16.mxu0 %v1317
      %1989 = vmatpush1.bf16.msra.mxu0 %v1316
      %1990 = vmatprep.subr.bf16.mxu0 %v1325
      %1991 = vmatpush1.bf16.msra.mxu0 %v1324
      %1992 = vmatprep.subr.bf16.mxu0 %v1333
      %1993 = vmatpush1.bf16.msra.mxu0 %v1332
      %1994 = vmatprep.subr.bf16.mxu0 %v1341
      %1995 = vmatpush1.bf16.msra.mxu0 %v1340
      %1996 = vmatprep.subr.bf16.mxu0 %v1349
      %1997 = vmatpush1.bf16.msra.mxu0 %v1348
      %1998 = vmatprep.subr.bf16.mxu0 %v1357
      %1999 = vmatpush1.bf16.msra.mxu0 %v1356
      %2000 = vmatprep.subr.bf16.mxu0 %v1365
      %2001 = vmatpush1.bf16.msra.mxu0 %v1364
      %2002 = vmatprep.subr.bf16.mxu0 %v1373
      %2003 = vmatpush1.bf16.msra.mxu0 %v1372
      %2004 = vmatprep.subr.bf16.mxu0 %v1381
      %2005 = vmatpush1.bf16.msra.mxu0 %v1380
      %2006 = vmatprep.subr.bf16.mxu0 %v1389
      %2007 = vmatpush1.bf16.msra.mxu0 %v1388
      %2008 = vmatprep.subr.bf16.mxu0 %v1397
      %2009 = vmatpush1.bf16.msra.mxu0 %v1396
      %2010 = vmatprep.subr.bf16.mxu0 %v1405
      %2011 = vmatpush1.bf16.msra.mxu0 %v1404
      %2012 = vmatprep.subr.bf16.mxu0 %v1413
      %2013 = vmatpush1.bf16.msra.mxu0 %v1412
      %2014 = vmatprep.subr.bf16.mxu0 %v1421
      %2015 = vmatpush1.bf16.msra.mxu0 %v1420
      %2016 = vmatprep.subr.bf16.mxu0 %v1429
      %2017 = vmatpush1.bf16.msra.mxu0 %v1428
      %2018 = vmatprep.subr.bf16.mxu0 %v1437
      %2019 = vmatpush1.bf16.msra.mxu0 %v1436
      %2020 = vmatprep.mubr.bf16.mxu0 %v537
      %2021 = vmatmul.mubr.bf16.gmra.mrb[0].mxu0 %v536
      %v2022 = vpop.f32.mrb[0].mxu0
      %v2023 = vadd.f32 0.0, %v2022
      %v2024 = vpop.f32.mrb[0].mxu0
      %v2025 = vadd.f32 0.0, %v2024
      %v2026 = vpop.f32.mrb[0].mxu0
      %v2027 = vpop.f32.mrb[0].mxu0
      %2028 = vdwg.mxu0
      %2029 = vmatprep.subr.bf16.mxu0 %v1445
      %2030 = vmatpush1.bf16.msra.mxu0 %v1444
      %2031 = vmatprep.subr.bf16.mxu0 %v1453
      %2032 = vmatpush1.bf16.msra.mxu0 %v1452
      %2033 = vmatprep.subr.bf16.mxu0 %v1461
      %2034 = vmatpush1.bf16.msra.mxu0 %v1460
      %2035 = vmatprep.subr.bf16.mxu0 %v1469
      %2036 = vmatpush1.bf16.msra.mxu0 %v1468
      %2037 = vmatprep.subr.bf16.mxu0 %v1477
      %2038 = vmatpush1.bf16.msra.mxu0 %v1476
      %2039 = vmatprep.subr.bf16.mxu0 %v1485
      %2040 = vmatpush1.bf16.msra.mxu0 %v1484
      %2041 = vmatprep.subr.bf16.mxu0 %v1493
      %2042 = vmatpush1.bf16.msra.mxu0 %v1492
      %2043 = vmatprep.subr.bf16.mxu0 %v1501
      %2044 = vmatpush1.bf16.msra.mxu0 %v1500
      %2045 = vmatprep.subr.bf16.mxu0 %v1509
      %2046 = vmatpush1.bf16.msra.mxu0 %v1508
      %2047 = vmatprep.subr.bf16.mxu0 %v1517
      %2048 = vmatpush1.bf16.msra.mxu0 %v1516
      %2049 = vmatprep.subr.bf16.mxu0 %v1525
      %2050 = vmatpush1.bf16.msra.mxu0 %v1524
      %2051 = vmatprep.subr.bf16.mxu0 %v1533
      %2052 = vmatpush1.bf16.msra.mxu0 %v1532
      %2053 = vmatprep.subr.bf16.mxu0 %v1541
      %2054 = vmatpush1.bf16.msra.mxu0 %v1540
      %2055 = vmatprep.subr.bf16.mxu0 %v1549
      %2056 = vmatpush1.bf16.msra.mxu0 %v1548
      %2057 = vmatprep.subr.bf16.mxu0 %v1557
      %2058 = vmatpush1.bf16.msra.mxu0 %v1556
      %2059 = vmatprep.subr.bf16.mxu0 %v1565
      %2060 = vmatpush1.bf16.msra.mxu0 %v1564
      %2061 = vmatprep.mubr.bf16.mxu0 %v539
      %2062 = vmatmul.mubr.bf16.gmra.mrb[0].mxu0 %v538
      %v2063 = vpop.f32.mrb[0].mxu0
      %v2064 = vadd.f32 %v2023, %v2063
      %v2065 = vpop.f32.mrb[0].mxu0
      %v2066 = vadd.f32 %v2025, %v2065
      %v2067 = vpop.f32.mrb[0].mxu0
      %v2068 = vpop.f32.mrb[0].mxu0
      %2069 = vdwg.mxu0
      %2070 = vmatprep.subr.bf16.mxu0 %v1319
      %2071 = vmatpush1.bf16.msra.mxu0 %v1318
      %2072 = vmatprep.subr.bf16.mxu0 %v1327
      %2073 = vmatpush1.bf16.msra.mxu0 %v1326
      %2074 = vmatprep.subr.bf16.mxu0 %v1335
      %2075 = vmatpush1.bf16.msra.mxu0 %v1334
      %2076 = vmatprep.subr.bf16.mxu0 %v1343
      %2077 = vmatpush1.bf16.msra.mxu0 %v1342
      %2078 = vmatprep.subr.bf16.mxu0 %v1351
      %2079 = vmatpush1.bf16.msra.mxu0 %v1350
      %2080 = vmatprep.subr.bf16.mxu0 %v1359
      %2081 = vmatpush1.bf16.msra.mxu0 %v1358
      %2082 = vmatprep.subr.bf16.mxu0 %v1367
      %2083 = vmatpush1.bf16.msra.mxu0 %v1366
      %2084 = vmatprep.subr.bf16.mxu0 %v1375
      %2085 = vmatpush1.bf16.msra.mxu0 %v1374
      %2086 = vmatprep.subr.bf16.mxu0 %v1383
      %2087 = vmatpush1.bf16.msra.mxu0 %v1382
      %2088 = vmatprep.subr.bf16.mxu0 %v1391
      %2089 = vmatpush1.bf16.msra.mxu0 %v1390
      %2090 = vmatprep.subr.bf16.mxu0 %v1399
      %2091 = vmatpush1.bf16.msra.mxu0 %v1398
      %2092 = vmatprep.subr.bf16.mxu0 %v1407
      %2093 = vmatpush1.bf16.msra.mxu0 %v1406
      %2094 = vmatprep.subr.bf16.mxu0 %v1415
      %2095 = vmatpush1.bf16.msra.mxu0 %v1414
      %2096 = vmatprep.subr.bf16.mxu0 %v1423
      %2097 = vmatpush1.bf16.msra.mxu0 %v1422
      %2098 = vmatprep.subr.bf16.mxu0 %v1431
      %2099 = vmatpush1.bf16.msra.mxu0 %v1430
      %2100 = vmatprep.subr.bf16.mxu0 %v1439
      %2101 = vmatpush1.bf16.msra.mxu0 %v1438
      %2102 = vmatprep.mubr.bf16.mxu0 %v537
      %2103 = vmatmul.mubr.bf16.gmra.mrb[0].mxu0 %v536
      %v2104 = vpop.f32.mrb[0].mxu0
      %v2105 = vadd.f32 0.0, %v2104
      %v2106 = vpop.f32.mrb[0].mxu0
      %v2107 = vadd.f32 0.0, %v2106
      %v2108 = vpop.f32.mrb[0].mxu0
      %v2109 = vpop.f32.mrb[0].mxu0
      %2110 = vdwg.mxu0
      %2111 = vmatprep.subr.bf16.mxu0 %v1447
      %2112 = vmatpush1.bf16.msra.mxu0 %v1446
      %2113 = vmatprep.subr.bf16.mxu0 %v1455
      %2114 = vmatpush1.bf16.msra.mxu0 %v1454
      %2115 = vmatprep.subr.bf16.mxu0 %v1463
      %2116 = vmatpush1.bf16.msra.mxu0 %v1462
      %2117 = vmatprep.subr.bf16.mxu0 %v1471
      %2118 = vmatpush1.bf16.msra.mxu0 %v1470
      %2119 = vmatprep.subr.bf16.mxu0 %v1479
      %2120 = vmatpush1.bf16.msra.mxu0 %v1478
      %2121 = vmatprep.subr.bf16.mxu0 %v1487
      %2122 = vmatpush1.bf16.msra.mxu0 %v1486
      %2123 = vmatprep.subr.bf16.mxu0 %v1495
      %2124 = vmatpush1.bf16.msra.mxu0 %v1494
      %2125 = vmatprep.subr.bf16.mxu0 %v1503
      %2126 = vmatpush1.bf16.msra.mxu0 %v1502
      %2127 = vmatprep.subr.bf16.mxu0 %v1511
      %2128 = vmatpush1.bf16.msra.mxu0 %v1510
      %2129 = vmatprep.subr.bf16.mxu0 %v1519
      %2130 = vmatpush1.bf16.msra.mxu0 %v1518
      %2131 = vmatprep.subr.bf16.mxu0 %v1527
      %2132 = vmatpush1.bf16.msra.mxu0 %v1526
      %2133 = vmatprep.subr.bf16.mxu0 %v1535
      %2134 = vmatpush1.bf16.msra.mxu0 %v1534
      %2135 = vmatprep.subr.bf16.mxu0 %v1543
      %2136 = vmatpush1.bf16.msra.mxu0 %v1542
      %2137 = vmatprep.subr.bf16.mxu0 %v1551
      %2138 = vmatpush1.bf16.msra.mxu0 %v1550
      %2139 = vmatprep.subr.bf16.mxu0 %v1559
      %2140 = vmatpush1.bf16.msra.mxu0 %v1558
      %2141 = vmatprep.subr.bf16.mxu0 %v1567
      %2142 = vmatpush1.bf16.msra.mxu0 %v1566
      %2143 = vmatprep.mubr.bf16.mxu0 %v539
      %2144 = vmatmul.mubr.bf16.gmra.mrb[0].mxu0 %v538
      %v2145 = vpop.f32.mrb[0].mxu0
      %v2146 = vadd.f32 %v2105, %v2145
      %v2147 = vpop.f32.mrb[0].mxu0
      %v2148 = vadd.f32 %v2107, %v2147
      %v2149 = vpop.f32.mrb[0].mxu0
      %v2150 = vpop.f32.mrb[0].mxu0
      %2151 = vdwg.mxu0
      %v2152 = vadd.f32 %v264, %v1900
      %v2153 = vadd.f32 %v265, %v1902
      %v2154 = vadd.f32 %v266, %v1982
      %v2155 = vadd.f32 %v267, %v1984
      %v2156 = vadd.f32 %v268, %v2064
      %v2157 = vadd.f32 %v269, %v2066
      %v2158 = vadd.f32 %v270, %v2146
      %v2159 = vadd.f32 %v271, %v2148
      %2160 = vst [vmem:[#allocation2] sm:$0xff] %v2152
      %2161 = vst [vmem:[#allocation2 + $0x8] sm:$0xff] %v2153
      %2162 = vst [vmem:[#allocation2 + $0x10] sm:$0xff] %v2154
      %2163 = vst [vmem:[#allocation2 + $0x18] sm:$0xff] %v2155
      %2164 = vst [vmem:[#allocation2 + $0x20] sm:$0xff] %v2156
      %2165 = vst [vmem:[#allocation2 + $0x28] sm:$0xff] %v2157
      %2166 = vst [vmem:[#allocation2 + $0x30] sm:$0xff] %v2158
      %2167 = vst [vmem:[#allocation2 + $0x38] sm:$0xff] %v2159
      %p2168 = scmp.eq.s32.totalorder %s15, 3
      // Predicated region
      $region41: #{cnn_bilstm_forward.6} parent=35 // pred_check
        %p2169 = pneg %p2168
      $region42: #{cnn_bilstm_forward.6} parent=35 // pred_check_branch
        %2171 = sbr.rel (%p2169) target = $region44
      $region43: #{cnn_bilstm_forward.6} parent=35 // pred_region
        %v2172 = vld [vmem:[#allocation2] sm:$0xff]
        %v2173 = vld [vmem:[#allocation2 + $0x8] sm:$0xff]
        %v2174 = vld [vmem:[#allocation2 + $0x10] sm:$0xff]
        %v2175 = vld [vmem:[#allocation2 + $0x18] sm:$0xff]
        %v2176 = vld [vmem:[#allocation2 + $0x20] sm:$0xff]
        %v2177 = vld [vmem:[#allocation2 + $0x28] sm:$0xff]
        %v2178 = vld [vmem:[#allocation2 + $0x30] sm:$0xff]
        %v2179 = vld [vmem:[#allocation2 + $0x38] sm:$0xff]
        %v2180 = vld [vmem:[%s2] sm:$0xff]
        %v2181 = vld [vmem:[%s2 + $0x8] sm:$0xff]
        %v2182 = vld [vmem:[%s2 + $0x10] sm:$0xff]
        %v2183 = vld [vmem:[%s2 + $0x18] sm:$0xff]
        %v2184 = vld [vmem:[%s2 + $0x20] sm:$0xff]
        %v2185 = vld [vmem:[%s2 + $0x28] sm:$0xff]
        %v2186 = vld [vmem:[%s2 + $0x30] sm:$0xff]
        %v2187 = vld [vmem:[%s2 + $0x38] sm:$0xff]
        %v2188 = vld [vmem:[%s2 + $0x40] sm:$0xff]
        %v2189 = vld [vmem:[%s2 + $0x48] sm:$0xff]
        %v2190 = vld [vmem:[%s2 + $0x50] sm:$0xff]
        %v2191 = vld [vmem:[%s2 + $0x58] sm:$0xff]
        %v2192 = vld [vmem:[%s2 + $0x60] sm:$0xff]
        %v2193 = vld [vmem:[%s2 + $0x68] sm:$0xff]
        %v2194 = vld [vmem:[%s2 + $0x70] sm:$0xff]
        %v2195 = vld [vmem:[%s2 + $0x78] sm:$0xff]
        %v2196 = vld [vmem:[%s2 + $0x80] sm:$0xff]
        %v2197 = vld [vmem:[%s2 + $0x88] sm:$0xff]
        %v2198 = vld [vmem:[%s2 + $0x90] sm:$0xff]
        %v2199 = vld [vmem:[%s2 + $0x98] sm:$0xff]
        %v2200 = vld [vmem:[%s2 + $0xa0] sm:$0xff]
        %v2201 = vld [vmem:[%s2 + $0xa8] sm:$0xff]
        %v2202 = vld [vmem:[%s2 + $0xb0] sm:$0xff]
        %v2203 = vld [vmem:[%s2 + $0xb8] sm:$0xff]
        %v2204 = vld [vmem:[%s2 + $0xc0] sm:$0xff]
        %v2205 = vld [vmem:[%s2 + $0xc8] sm:$0xff]
        %v2206 = vld [vmem:[%s2 + $0xd0] sm:$0xff]
        %v2207 = vld [vmem:[%s2 + $0xd8] sm:$0xff]
        %v2208 = vld [vmem:[%s2 + $0xe0] sm:$0xff]
        %v2209 = vld [vmem:[%s2 + $0xe8] sm:$0xff]
        %v2210 = vld [vmem:[%s2 + $0xf0] sm:$0xff]
        %v2211 = vld [vmem:[%s2 + $0xf8] sm:$0xff]
        %v2212 = vld [vmem:[%s2 + $0x100] sm:$0xff]
        %v2213 = vld [vmem:[%s2 + $0x108] sm:$0xff]
        %v2214 = vld [vmem:[%s2 + $0x110] sm:$0xff]
        %v2215 = vld [vmem:[%s2 + $0x118] sm:$0xff]
        %v2216 = vld [vmem:[%s2 + $0x120] sm:$0xff]
        %v2217 = vld [vmem:[%s2 + $0x128] sm:$0xff]
        %v2218 = vld [vmem:[%s2 + $0x130] sm:$0xff]
        %v2219 = vld [vmem:[%s2 + $0x138] sm:$0xff]
        %v2220 = vld [vmem:[%s2 + $0x140] sm:$0xff]
        %v2221 = vld [vmem:[%s2 + $0x148] sm:$0xff]
        %v2222 = vld [vmem:[%s2 + $0x150] sm:$0xff]
        %v2223 = vld [vmem:[%s2 + $0x158] sm:$0xff]
        %v2224 = vld [vmem:[%s2 + $0x160] sm:$0xff]
        %v2225 = vld [vmem:[%s2 + $0x168] sm:$0xff]
        %v2226 = vld [vmem:[%s2 + $0x170] sm:$0xff]
        %v2227 = vld [vmem:[%s2 + $0x178] sm:$0xff]
        %v2228 = vld [vmem:[%s2 + $0x180] sm:$0xff]
        %v2229 = vld [vmem:[%s2 + $0x188] sm:$0xff]
        %v2230 = vld [vmem:[%s2 + $0x190] sm:$0xff]
        %v2231 = vld [vmem:[%s2 + $0x198] sm:$0xff]
        %v2232 = vld [vmem:[%s2 + $0x1a0] sm:$0xff]
        %v2233 = vld [vmem:[%s2 + $0x1a8] sm:$0xff]
        %v2234 = vld [vmem:[%s2 + $0x1b0] sm:$0xff]
        %v2235 = vld [vmem:[%s2 + $0x1b8] sm:$0xff]
        %v2236 = vld [vmem:[%s2 + $0x1c0] sm:$0xff]
        %v2237 = vld [vmem:[%s2 + $0x1c8] sm:$0xff]
        %v2238 = vld [vmem:[%s2 + $0x1d0] sm:$0xff]
        %v2239 = vld [vmem:[%s2 + $0x1d8] sm:$0xff]
        %v2240 = vld [vmem:[%s2 + $0x1e0] sm:$0xff]
        %v2241 = vld [vmem:[%s2 + $0x1e8] sm:$0xff]
        %v2242 = vld [vmem:[%s2 + $0x1f0] sm:$0xff]
        %v2243 = vld [vmem:[%s2 + $0x1f8] sm:$0xff]
        %v2244 = vld [vmem:[%s2 + $0x200] sm:$0xff]
        %v2245 = vld [vmem:[%s2 + $0x208] sm:$0xff]
        %v2246 = vld [vmem:[%s2 + $0x210] sm:$0xff]
        %v2247 = vld [vmem:[%s2 + $0x218] sm:$0xff]
        %v2248 = vld [vmem:[%s2 + $0x220] sm:$0xff]
        %v2249 = vld [vmem:[%s2 + $0x228] sm:$0xff]
        %v2250 = vld [vmem:[%s2 + $0x230] sm:$0xff]
        %v2251 = vld [vmem:[%s2 + $0x238] sm:$0xff]
        %v2252 = vld [vmem:[%s2 + $0x240] sm:$0xff]
        %v2253 = vld [vmem:[%s2 + $0x248] sm:$0xff]
        %v2254 = vld [vmem:[%s2 + $0x250] sm:$0xff]
        %v2255 = vld [vmem:[%s2 + $0x258] sm:$0xff]
        %v2256 = vld [vmem:[%s2 + $0x260] sm:$0xff]
        %v2257 = vld [vmem:[%s2 + $0x268] sm:$0xff]
        %v2258 = vld [vmem:[%s2 + $0x270] sm:$0xff]
        %v2259 = vld [vmem:[%s2 + $0x278] sm:$0xff]
        %v2260 = vld [vmem:[%s2 + $0x280] sm:$0xff]
        %v2261 = vld [vmem:[%s2 + $0x288] sm:$0xff]
        %v2262 = vld [vmem:[%s2 + $0x290] sm:$0xff]
        %v2263 = vld [vmem:[%s2 + $0x298] sm:$0xff]
        %v2264 = vld [vmem:[%s2 + $0x2a0] sm:$0xff]
        %v2265 = vld [vmem:[%s2 + $0x2a8] sm:$0xff]
        %v2266 = vld [vmem:[%s2 + $0x2b0] sm:$0xff]
        %v2267 = vld [vmem:[%s2 + $0x2b8] sm:$0xff]
        %v2268 = vld [vmem:[%s2 + $0x2c0] sm:$0xff]
        %v2269 = vld [vmem:[%s2 + $0x2c8] sm:$0xff]
        %v2270 = vld [vmem:[%s2 + $0x2d0] sm:$0xff]
        %v2271 = vld [vmem:[%s2 + $0x2d8] sm:$0xff]
        %v2272 = vld [vmem:[%s2 + $0x2e0] sm:$0xff]
        %v2273 = vld [vmem:[%s2 + $0x2e8] sm:$0xff]
        %v2274 = vld [vmem:[%s2 + $0x2f0] sm:$0xff]
        %v2275 = vld [vmem:[%s2 + $0x2f8] sm:$0xff]
        %v2276 = vld [vmem:[%s2 + $0x300] sm:$0xff]
        %v2277 = vld [vmem:[%s2 + $0x308] sm:$0xff]
        %v2278 = vld [vmem:[%s2 + $0x310] sm:$0xff]
        %v2279 = vld [vmem:[%s2 + $0x318] sm:$0xff]
        %v2280 = vld [vmem:[%s2 + $0x320] sm:$0xff]
        %v2281 = vld [vmem:[%s2 + $0x328] sm:$0xff]
        %v2282 = vld [vmem:[%s2 + $0x330] sm:$0xff]
        %v2283 = vld [vmem:[%s2 + $0x338] sm:$0xff]
        %v2284 = vld [vmem:[%s2 + $0x340] sm:$0xff]
        %v2285 = vld [vmem:[%s2 + $0x348] sm:$0xff]
        %v2286 = vld [vmem:[%s2 + $0x350] sm:$0xff]
        %v2287 = vld [vmem:[%s2 + $0x358] sm:$0xff]
        %v2288 = vld [vmem:[%s2 + $0x360] sm:$0xff]
        %v2289 = vld [vmem:[%s2 + $0x368] sm:$0xff]
        %v2290 = vld [vmem:[%s2 + $0x370] sm:$0xff]
        %v2291 = vld [vmem:[%s2 + $0x378] sm:$0xff]
        %v2292 = vld [vmem:[%s2 + $0x380] sm:$0xff]
        %v2293 = vld [vmem:[%s2 + $0x388] sm:$0xff]
        %v2294 = vld [vmem:[%s2 + $0x390] sm:$0xff]
        %v2295 = vld [vmem:[%s2 + $0x398] sm:$0xff]
        %v2296 = vld [vmem:[%s2 + $0x3a0] sm:$0xff]
        %v2297 = vld [vmem:[%s2 + $0x3a8] sm:$0xff]
        %v2298 = vld [vmem:[%s2 + $0x3b0] sm:$0xff]
        %v2299 = vld [vmem:[%s2 + $0x3b8] sm:$0xff]
        %v2300 = vld [vmem:[%s2 + $0x3c0] sm:$0xff]
        %v2301 = vld [vmem:[%s2 + $0x3c8] sm:$0xff]
        %v2302 = vld [vmem:[%s2 + $0x3d0] sm:$0xff]
        %v2303 = vld [vmem:[%s2 + $0x3d8] sm:$0xff]
        %v2304 = vld [vmem:[%s2 + $0x3e0] sm:$0xff]
        %v2305 = vld [vmem:[%s2 + $0x3e8] sm:$0xff]
        %v2306 = vld [vmem:[%s2 + $0x3f0] sm:$0xff]
        %v2307 = vld [vmem:[%s2 + $0x3f8] sm:$0xff]
        %v2308 = vpack.c.bf16 0.0, 0.0
        %v2437 = vunpack.c.l.b16 %v2180
        %v2438 = vunpack.c.h.b16 %v2180
        %v2439 = vunpack.c.l.b16 %v2181
        %v2440 = vunpack.c.h.b16 %v2181
        %v2441 = vunpack.c.l.b16 %v2182
        %v2442 = vunpack.c.h.b16 %v2182
        %v2443 = vunpack.c.l.b16 %v2183
        %v2444 = vunpack.c.h.b16 %v2183
        %v2445 = vunpack.c.l.b16 %v2184
        %v2446 = vunpack.c.h.b16 %v2184
        %v2447 = vunpack.c.l.b16 %v2185
        %v2448 = vunpack.c.h.b16 %v2185
        %v2449 = vunpack.c.l.b16 %v2186
        %v2450 = vunpack.c.h.b16 %v2186
        %v2451 = vunpack.c.l.b16 %v2187
        %v2452 = vunpack.c.h.b16 %v2187
        %v2453 = vunpack.c.l.b16 %v2188
        %v2454 = vunpack.c.h.b16 %v2188
        %v2455 = vunpack.c.l.b16 %v2189
        %v2456 = vunpack.c.h.b16 %v2189
        %v2457 = vunpack.c.l.b16 %v2190
        %v2458 = vunpack.c.h.b16 %v2190
        %v2459 = vunpack.c.l.b16 %v2191
        %v2460 = vunpack.c.h.b16 %v2191
        %v2461 = vunpack.c.l.b16 %v2192
        %v2462 = vunpack.c.h.b16 %v2192
        %v2463 = vunpack.c.l.b16 %v2193
        %v2464 = vunpack.c.h.b16 %v2193
        %v2465 = vunpack.c.l.b16 %v2194
        %v2466 = vunpack.c.h.b16 %v2194
        %v2467 = vunpack.c.l.b16 %v2195
        %v2468 = vunpack.c.h.b16 %v2195
        %v2469 = vunpack.c.l.b16 %v2196
        %v2470 = vunpack.c.h.b16 %v2196
        %v2471 = vunpack.c.l.b16 %v2197
        %v2472 = vunpack.c.h.b16 %v2197
        %v2473 = vunpack.c.l.b16 %v2198
        %v2474 = vunpack.c.h.b16 %v2198
        %v2475 = vunpack.c.l.b16 %v2199
        %v2476 = vunpack.c.h.b16 %v2199
        %v2477 = vunpack.c.l.b16 %v2200
        %v2478 = vunpack.c.h.b16 %v2200
        %v2479 = vunpack.c.l.b16 %v2201
        %v2480 = vunpack.c.h.b16 %v2201
        %v2481 = vunpack.c.l.b16 %v2202
        %v2482 = vunpack.c.h.b16 %v2202
        %v2483 = vunpack.c.l.b16 %v2203
        %v2484 = vunpack.c.h.b16 %v2203
        %v2485 = vunpack.c.l.b16 %v2204
        %v2486 = vunpack.c.h.b16 %v2204
        %v2487 = vunpack.c.l.b16 %v2205
        %v2488 = vunpack.c.h.b16 %v2205
        %v2489 = vunpack.c.l.b16 %v2206
        %v2490 = vunpack.c.h.b16 %v2206
        %v2491 = vunpack.c.l.b16 %v2207
        %v2492 = vunpack.c.h.b16 %v2207
        %v2493 = vunpack.c.l.b16 %v2208
        %v2494 = vunpack.c.h.b16 %v2208
        %v2495 = vunpack.c.l.b16 %v2209
        %v2496 = vunpack.c.h.b16 %v2209
        %v2497 = vunpack.c.l.b16 %v2210
        %v2498 = vunpack.c.h.b16 %v2210
        %v2499 = vunpack.c.l.b16 %v2211
        %v2500 = vunpack.c.h.b16 %v2211
        %v2501 = vunpack.c.l.b16 %v2212
        %v2502 = vunpack.c.h.b16 %v2212
        %v2503 = vunpack.c.l.b16 %v2213
        %v2504 = vunpack.c.h.b16 %v2213
        %v2505 = vunpack.c.l.b16 %v2214
        %v2506 = vunpack.c.h.b16 %v2214
        %v2507 = vunpack.c.l.b16 %v2215
        %v2508 = vunpack.c.h.b16 %v2215
        %v2509 = vunpack.c.l.b16 %v2216
        %v2510 = vunpack.c.h.b16 %v2216
        %v2511 = vunpack.c.l.b16 %v2217
        %v2512 = vunpack.c.h.b16 %v2217
        %v2513 = vunpack.c.l.b16 %v2218
        %v2514 = vunpack.c.h.b16 %v2218
        %v2515 = vunpack.c.l.b16 %v2219
        %v2516 = vunpack.c.h.b16 %v2219
        %v2517 = vunpack.c.l.b16 %v2220
        %v2518 = vunpack.c.h.b16 %v2220
        %v2519 = vunpack.c.l.b16 %v2221
        %v2520 = vunpack.c.h.b16 %v2221
        %v2521 = vunpack.c.l.b16 %v2222
        %v2522 = vunpack.c.h.b16 %v2222
        %v2523 = vunpack.c.l.b16 %v2223
        %v2524 = vunpack.c.h.b16 %v2223
        %v2525 = vunpack.c.l.b16 %v2224
        %v2526 = vunpack.c.h.b16 %v2224
        %v2527 = vunpack.c.l.b16 %v2225
        %v2528 = vunpack.c.h.b16 %v2225
        %v2529 = vunpack.c.l.b16 %v2226
        %v2530 = vunpack.c.h.b16 %v2226
        %v2531 = vunpack.c.l.b16 %v2227
        %v2532 = vunpack.c.h.b16 %v2227
        %v2533 = vunpack.c.l.b16 %v2228
        %v2534 = vunpack.c.h.b16 %v2228
        %v2535 = vunpack.c.l.b16 %v2229
        %v2536 = vunpack.c.h.b16 %v2229
        %v2537 = vunpack.c.l.b16 %v2230
        %v2538 = vunpack.c.h.b16 %v2230
        %v2539 = vunpack.c.l.b16 %v2231
        %v2540 = vunpack.c.h.b16 %v2231
        %v2541 = vunpack.c.l.b16 %v2232
        %v2542 = vunpack.c.h.b16 %v2232
        %v2543 = vunpack.c.l.b16 %v2233
        %v2544 = vunpack.c.h.b16 %v2233
        %v2545 = vunpack.c.l.b16 %v2234
        %v2546 = vunpack.c.h.b16 %v2234
        %v2547 = vunpack.c.l.b16 %v2235
        %v2548 = vunpack.c.h.b16 %v2235
        %v2549 = vunpack.c.l.b16 %v2236
        %v2550 = vunpack.c.h.b16 %v2236
        %v2551 = vunpack.c.l.b16 %v2237
        %v2552 = vunpack.c.h.b16 %v2237
        %v2553 = vunpack.c.l.b16 %v2238
        %v2554 = vunpack.c.h.b16 %v2238
        %v2555 = vunpack.c.l.b16 %v2239
        %v2556 = vunpack.c.h.b16 %v2239
        %v2557 = vunpack.c.l.b16 %v2240
        %v2558 = vunpack.c.h.b16 %v2240
        %v2559 = vunpack.c.l.b16 %v2241
        %v2560 = vunpack.c.h.b16 %v2241
        %v2561 = vunpack.c.l.b16 %v2242
        %v2562 = vunpack.c.h.b16 %v2242
        %v2563 = vunpack.c.l.b16 %v2243
        %v2564 = vunpack.c.h.b16 %v2243
        %v2565 = vunpack.c.l.b16 %v2244
        %v2566 = vunpack.c.h.b16 %v2244
        %v2567 = vunpack.c.l.b16 %v2245
        %v2568 = vunpack.c.h.b16 %v2245
        %v2569 = vunpack.c.l.b16 %v2246
        %v2570 = vunpack.c.h.b16 %v2246
        %v2571 = vunpack.c.l.b16 %v2247
        %v2572 = vunpack.c.h.b16 %v2247
        %v2573 = vunpack.c.l.b16 %v2248
        %v2574 = vunpack.c.h.b16 %v2248
        %v2575 = vunpack.c.l.b16 %v2249
        %v2576 = vunpack.c.h.b16 %v2249
        %v2577 = vunpack.c.l.b16 %v2250
        %v2578 = vunpack.c.h.b16 %v2250
        %v2579 = vunpack.c.l.b16 %v2251
        %v2580 = vunpack.c.h.b16 %v2251
        %v2581 = vunpack.c.l.b16 %v2252
        %v2582 = vunpack.c.h.b16 %v2252
        %v2583 = vunpack.c.l.b16 %v2253
        %v2584 = vunpack.c.h.b16 %v2253
        %v2585 = vunpack.c.l.b16 %v2254
        %v2586 = vunpack.c.h.b16 %v2254
        %v2587 = vunpack.c.l.b16 %v2255
        %v2588 = vunpack.c.h.b16 %v2255
        %v2589 = vunpack.c.l.b16 %v2256
        %v2590 = vunpack.c.h.b16 %v2256
        %v2591 = vunpack.c.l.b16 %v2257
        %v2592 = vunpack.c.h.b16 %v2257
        %v2593 = vunpack.c.l.b16 %v2258
        %v2594 = vunpack.c.h.b16 %v2258
        %v2595 = vunpack.c.l.b16 %v2259
        %v2596 = vunpack.c.h.b16 %v2259
        %v2597 = vunpack.c.l.b16 %v2260
        %v2598 = vunpack.c.h.b16 %v2260
        %v2599 = vunpack.c.l.b16 %v2261
        %v2600 = vunpack.c.h.b16 %v2261
        %v2601 = vunpack.c.l.b16 %v2262
        %v2602 = vunpack.c.h.b16 %v2262
        %v2603 = vunpack.c.l.b16 %v2263
        %v2604 = vunpack.c.h.b16 %v2263
        %v2605 = vunpack.c.l.b16 %v2264
        %v2606 = vunpack.c.h.b16 %v2264
        %v2607 = vunpack.c.l.b16 %v2265
        %v2608 = vunpack.c.h.b16 %v2265
        %v2609 = vunpack.c.l.b16 %v2266
        %v2610 = vunpack.c.h.b16 %v2266
        %v2611 = vunpack.c.l.b16 %v2267
        %v2612 = vunpack.c.h.b16 %v2267
        %v2613 = vunpack.c.l.b16 %v2268
        %v2614 = vunpack.c.h.b16 %v2268
        %v2615 = vunpack.c.l.b16 %v2269
        %v2616 = vunpack.c.h.b16 %v2269
        %v2617 = vunpack.c.l.b16 %v2270
        %v2618 = vunpack.c.h.b16 %v2270
        %v2619 = vunpack.c.l.b16 %v2271
        %v2620 = vunpack.c.h.b16 %v2271
        %v2621 = vunpack.c.l.b16 %v2272
        %v2622 = vunpack.c.h.b16 %v2272
        %v2623 = vunpack.c.l.b16 %v2273
        %v2624 = vunpack.c.h.b16 %v2273
        %v2625 = vunpack.c.l.b16 %v2274
        %v2626 = vunpack.c.h.b16 %v2274
        %v2627 = vunpack.c.l.b16 %v2275
        %v2628 = vunpack.c.h.b16 %v2275
        %v2629 = vunpack.c.l.b16 %v2276
        %v2630 = vunpack.c.h.b16 %v2276
        %v2631 = vunpack.c.l.b16 %v2277
        %v2632 = vunpack.c.h.b16 %v2277
        %v2633 = vunpack.c.l.b16 %v2278
        %v2634 = vunpack.c.h.b16 %v2278
        %v2635 = vunpack.c.l.b16 %v2279
        %v2636 = vunpack.c.h.b16 %v2279
        %v2637 = vunpack.c.l.b16 %v2280
        %v2638 = vunpack.c.h.b16 %v2280
        %v2639 = vunpack.c.l.b16 %v2281
        %v2640 = vunpack.c.h.b16 %v2281
        %v2641 = vunpack.c.l.b16 %v2282
        %v2642 = vunpack.c.h.b16 %v2282
        %v2643 = vunpack.c.l.b16 %v2283
        %v2644 = vunpack.c.h.b16 %v2283
        %v2645 = vunpack.c.l.b16 %v2284
        %v2646 = vunpack.c.h.b16 %v2284
        %v2647 = vunpack.c.l.b16 %v2285
        %v2648 = vunpack.c.h.b16 %v2285
        %v2649 = vunpack.c.l.b16 %v2286
        %v2650 = vunpack.c.h.b16 %v2286
        %v2651 = vunpack.c.l.b16 %v2287
        %v2652 = vunpack.c.h.b16 %v2287
        %v2653 = vunpack.c.l.b16 %v2288
        %v2654 = vunpack.c.h.b16 %v2288
        %v2655 = vunpack.c.l.b16 %v2289
        %v2656 = vunpack.c.h.b16 %v2289
        %v2657 = vunpack.c.l.b16 %v2290
        %v2658 = vunpack.c.h.b16 %v2290
        %v2659 = vunpack.c.l.b16 %v2291
        %v2660 = vunpack.c.h.b16 %v2291
        %v2661 = vunpack.c.l.b16 %v2292
        %v2662 = vunpack.c.h.b16 %v2292
        %v2663 = vunpack.c.l.b16 %v2293
        %v2664 = vunpack.c.h.b16 %v2293
        %v2665 = vunpack.c.l.b16 %v2294
        %v2666 = vunpack.c.h.b16 %v2294
        %v2667 = vunpack.c.l.b16 %v2295
        %v2668 = vunpack.c.h.b16 %v2295
        %v2669 = vunpack.c.l.b16 %v2296
        %v2670 = vunpack.c.h.b16 %v2296
        %v2671 = vunpack.c.l.b16 %v2297
        %v2672 = vunpack.c.h.b16 %v2297
        %v2673 = vunpack.c.l.b16 %v2298
        %v2674 = vunpack.c.h.b16 %v2298
        %v2675 = vunpack.c.l.b16 %v2299
        %v2676 = vunpack.c.h.b16 %v2299
        %v2677 = vunpack.c.l.b16 %v2300
        %v2678 = vunpack.c.h.b16 %v2300
        %v2679 = vunpack.c.l.b16 %v2301
        %v2680 = vunpack.c.h.b16 %v2301
        %v2681 = vunpack.c.l.b16 %v2302
        %v2682 = vunpack.c.h.b16 %v2302
        %v2683 = vunpack.c.l.b16 %v2303
        %v2684 = vunpack.c.h.b16 %v2303
        %v2685 = vunpack.c.l.b16 %v2304
        %v2686 = vunpack.c.h.b16 %v2304
        %v2687 = vunpack.c.l.b16 %v2305
        %v2688 = vunpack.c.h.b16 %v2305
        %v2689 = vunpack.c.l.b16 %v2306
        %v2690 = vunpack.c.h.b16 %v2306
        %v2691 = vunpack.c.l.b16 %v2307
        %v2692 = vunpack.c.h.b16 %v2307
        %v2693 = vpack.c.b16 %v2445, %v2437
        %v2694 = vpack.c.b16 %v2446, %v2438
        %v2695 = vpack.c.b16 %v2447, %v2439
        %v2696 = vpack.c.b16 %v2448, %v2440
        %v2697 = vpack.c.b16 %v2449, %v2441
        %v2698 = vpack.c.b16 %v2450, %v2442
        %v2699 = vpack.c.b16 %v2451, %v2443
        %v2700 = vpack.c.b16 %v2452, %v2444
        %v2701 = vpack.c.b16 %v2461, %v2453
        %v2702 = vpack.c.b16 %v2462, %v2454
        %v2703 = vpack.c.b16 %v2463, %v2455
        %v2704 = vpack.c.b16 %v2464, %v2456
        %v2705 = vpack.c.b16 %v2465, %v2457
        %v2706 = vpack.c.b16 %v2466, %v2458
        %v2707 = vpack.c.b16 %v2467, %v2459
        %v2708 = vpack.c.b16 %v2468, %v2460
        %v2709 = vpack.c.b16 %v2477, %v2469
        %v2710 = vpack.c.b16 %v2478, %v2470
        %v2711 = vpack.c.b16 %v2479, %v2471
        %v2712 = vpack.c.b16 %v2480, %v2472
        %v2713 = vpack.c.b16 %v2481, %v2473
        %v2714 = vpack.c.b16 %v2482, %v2474
        %v2715 = vpack.c.b16 %v2483, %v2475
        %v2716 = vpack.c.b16 %v2484, %v2476
        %v2717 = vpack.c.b16 %v2493, %v2485
        %v2718 = vpack.c.b16 %v2494, %v2486
        %v2719 = vpack.c.b16 %v2495, %v2487
        %v2720 = vpack.c.b16 %v2496, %v2488
        %v2721 = vpack.c.b16 %v2497, %v2489
        %v2722 = vpack.c.b16 %v2498, %v2490
        %v2723 = vpack.c.b16 %v2499, %v2491
        %v2724 = vpack.c.b16 %v2500, %v2492
        %v2725 = vpack.c.b16 %v2509, %v2501
        %v2726 = vpack.c.b16 %v2510, %v2502
        %v2727 = vpack.c.b16 %v2511, %v2503
        %v2728 = vpack.c.b16 %v2512, %v2504
        %v2729 = vpack.c.b16 %v2513, %v2505
        %v2730 = vpack.c.b16 %v2514, %v2506
        %v2731 = vpack.c.b16 %v2515, %v2507
        %v2732 = vpack.c.b16 %v2516, %v2508
        %v2733 = vpack.c.b16 %v2525, %v2517
        %v2734 = vpack.c.b16 %v2526, %v2518
        %v2735 = vpack.c.b16 %v2527, %v2519
        %v2736 = vpack.c.b16 %v2528, %v2520
        %v2737 = vpack.c.b16 %v2529, %v2521
        %v2738 = vpack.c.b16 %v2530, %v2522
        %v2739 = vpack.c.b16 %v2531, %v2523
        %v2740 = vpack.c.b16 %v2532, %v2524
        %v2741 = vpack.c.b16 %v2541, %v2533
        %v2742 = vpack.c.b16 %v2542, %v2534
        %v2743 = vpack.c.b16 %v2543, %v2535
        %v2744 = vpack.c.b16 %v2544, %v2536
        %v2745 = vpack.c.b16 %v2545, %v2537
        %v2746 = vpack.c.b16 %v2546, %v2538
        %v2747 = vpack.c.b16 %v2547, %v2539
        %v2748 = vpack.c.b16 %v2548, %v2540
        %v2749 = vpack.c.b16 %v2557, %v2549
        %v2750 = vpack.c.b16 %v2558, %v2550
        %v2751 = vpack.c.b16 %v2559, %v2551
        %v2752 = vpack.c.b16 %v2560, %v2552
        %v2753 = vpack.c.b16 %v2561, %v2553
        %v2754 = vpack.c.b16 %v2562, %v2554
        %v2755 = vpack.c.b16 %v2563, %v2555
        %v2756 = vpack.c.b16 %v2564, %v2556
        %v2757 = vpack.c.b16 %v2573, %v2565
        %v2758 = vpack.c.b16 %v2574, %v2566
        %v2759 = vpack.c.b16 %v2575, %v2567
        %v2760 = vpack.c.b16 %v2576, %v2568
        %v2761 = vpack.c.b16 %v2577, %v2569
        %v2762 = vpack.c.b16 %v2578, %v2570
        %v2763 = vpack.c.b16 %v2579, %v2571
        %v2764 = vpack.c.b16 %v2580, %v2572
        %v2765 = vpack.c.b16 %v2589, %v2581
        %v2766 = vpack.c.b16 %v2590, %v2582
        %v2767 = vpack.c.b16 %v2591, %v2583
        %v2768 = vpack.c.b16 %v2592, %v2584
        %v2769 = vpack.c.b16 %v2593, %v2585
        %v2770 = vpack.c.b16 %v2594, %v2586
        %v2771 = vpack.c.b16 %v2595, %v2587
        %v2772 = vpack.c.b16 %v2596, %v2588
        %v2773 = vpack.c.b16 %v2605, %v2597
        %v2774 = vpack.c.b16 %v2606, %v2598
        %v2775 = vpack.c.b16 %v2607, %v2599
        %v2776 = vpack.c.b16 %v2608, %v2600
        %v2777 = vpack.c.b16 %v2609, %v2601
        %v2778 = vpack.c.b16 %v2610, %v2602
        %v2779 = vpack.c.b16 %v2611, %v2603
        %v2780 = vpack.c.b16 %v2612, %v2604
        %v2781 = vpack.c.b16 %v2621, %v2613
        %v2782 = vpack.c.b16 %v2622, %v2614
        %v2783 = vpack.c.b16 %v2623, %v2615
        %v2784 = vpack.c.b16 %v2624, %v2616
        %v2785 = vpack.c.b16 %v2625, %v2617
        %v2786 = vpack.c.b16 %v2626, %v2618
        %v2787 = vpack.c.b16 %v2627, %v2619
        %v2788 = vpack.c.b16 %v2628, %v2620
        %v2789 = vpack.c.b16 %v2637, %v2629
        %v2790 = vpack.c.b16 %v2638, %v2630
        %v2791 = vpack.c.b16 %v2639, %v2631
        %v2792 = vpack.c.b16 %v2640, %v2632
        %v2793 = vpack.c.b16 %v2641, %v2633
        %v2794 = vpack.c.b16 %v2642, %v2634
        %v2795 = vpack.c.b16 %v2643, %v2635
        %v2796 = vpack.c.b16 %v2644, %v2636
        %v2797 = vpack.c.b16 %v2653, %v2645
        %v2798 = vpack.c.b16 %v2654, %v2646
        %v2799 = vpack.c.b16 %v2655, %v2647
        %v2800 = vpack.c.b16 %v2656, %v2648
        %v2801 = vpack.c.b16 %v2657, %v2649
        %v2802 = vpack.c.b16 %v2658, %v2650
        %v2803 = vpack.c.b16 %v2659, %v2651
        %v2804 = vpack.c.b16 %v2660, %v2652
        %v2805 = vpack.c.b16 %v2669, %v2661
        %v2806 = vpack.c.b16 %v2670, %v2662
        %v2807 = vpack.c.b16 %v2671, %v2663
        %v2808 = vpack.c.b16 %v2672, %v2664
        %v2809 = vpack.c.b16 %v2673, %v2665
        %v2810 = vpack.c.b16 %v2674, %v2666
        %v2811 = vpack.c.b16 %v2675, %v2667
        %v2812 = vpack.c.b16 %v2676, %v2668
        %v2813 = vpack.c.b16 %v2685, %v2677
        %v2814 = vpack.c.b16 %v2686, %v2678
        %v2815 = vpack.c.b16 %v2687, %v2679
        %v2816 = vpack.c.b16 %v2688, %v2680
        %v2817 = vpack.c.b16 %v2689, %v2681
        %v2818 = vpack.c.b16 %v2690, %v2682
        %v2819 = vpack.c.b16 %v2691, %v2683
        %v2820 = vpack.c.b16 %v2692, %v2684
        %2949 = vmatprep.subr.bf16.mxu0 %v2694
        %2950 = vmatpush1.bf16.msra.mxu0 %v2693
        %2951 = vmatprep.subr.bf16.mxu0 %v2702
        %2952 = vmatpush1.bf16.msra.mxu0 %v2701
        %2953 = vmatprep.subr.bf16.mxu0 %v2710
        %2954 = vmatpush1.bf16.msra.mxu0 %v2709
        %2955 = vmatprep.subr.bf16.mxu0 %v2718
        %2956 = vmatpush1.bf16.msra.mxu0 %v2717
        %2957 = vmatprep.subr.bf16.mxu0 %v2726
        %2958 = vmatpush1.bf16.msra.mxu0 %v2725
        %2959 = vmatprep.subr.bf16.mxu0 %v2734
        %2960 = vmatpush1.bf16.msra.mxu0 %v2733
        %2961 = vmatprep.subr.bf16.mxu0 %v2742
        %2962 = vmatpush1.bf16.msra.mxu0 %v2741
        %2963 = vmatprep.subr.bf16.mxu0 %v2750
        %2964 = vmatpush1.bf16.msra.mxu0 %v2749
        %2965 = vmatprep.subr.bf16.mxu0 %v2758
        %2966 = vmatpush1.bf16.msra.mxu0 %v2757
        %2967 = vmatprep.subr.bf16.mxu0 %v2766
        %2968 = vmatpush1.bf16.msra.mxu0 %v2765
        %2969 = vmatprep.subr.bf16.mxu0 %v2774
        %2970 = vmatpush1.bf16.msra.mxu0 %v2773
        %2971 = vmatprep.subr.bf16.mxu0 %v2782
        %2972 = vmatpush1.bf16.msra.mxu0 %v2781
        %2973 = vmatprep.subr.bf16.mxu0 %v2790
        %2974 = vmatpush1.bf16.msra.mxu0 %v2789
        %2975 = vmatprep.subr.bf16.mxu0 %v2798
        %2976 = vmatpush1.bf16.msra.mxu0 %v2797
        %2977 = vmatprep.subr.bf16.mxu0 %v2806
        %2978 = vmatpush1.bf16.msra.mxu0 %v2805
        %2979 = vmatprep.subr.bf16.mxu0 %v2814
        %2980 = vmatpush1.bf16.msra.mxu0 %v2813
        %2981 = vmatprep.mubr.bf16.mxu0 %v2308
        %2982 = vmatmul.mubr.bf16.gmra.mrb[0].mxu0 %v2308
        %v2983 = vpop.f32.mrb[0].mxu0
        %v2984 = vadd.f32 0.0, %v2983
        %v2985 = vpop.f32.mrb[0].mxu0
        %v2986 = vadd.f32 0.0, %v2985
        %v2987 = vpop.f32.mrb[0].mxu0
        %v2988 = vpop.f32.mrb[0].mxu0
        %2989 = vdwg.mxu0
        %2990 = vmatprep.subr.bf16.mxu0 %v2696
        %2991 = vmatpush1.bf16.msra.mxu0 %v2695
        %2992 = vmatprep.subr.bf16.mxu0 %v2704
        %2993 = vmatpush1.bf16.msra.mxu0 %v2703
        %2994 = vmatprep.subr.bf16.mxu0 %v2712
        %2995 = vmatpush1.bf16.msra.mxu0 %v2711
        %2996 = vmatprep.subr.bf16.mxu0 %v2720
        %2997 = vmatpush1.bf16.msra.mxu0 %v2719
        %2998 = vmatprep.subr.bf16.mxu0 %v2728
        %2999 = vmatpush1.bf16.msra.mxu0 %v2727
        %3000 = vmatprep.subr.bf16.mxu0 %v2736
        %3001 = vmatpush1.bf16.msra.mxu0 %v2735
        %3002 = vmatprep.subr.bf16.mxu0 %v2744
        %3003 = vmatpush1.bf16.msra.mxu0 %v2743
        %3004 = vmatprep.subr.bf16.mxu0 %v2752
        %3005 = vmatpush1.bf16.msra.mxu0 %v2751
        %3006 = vmatprep.subr.bf16.mxu0 %v2760
        %3007 = vmatpush1.bf16.msra.mxu0 %v2759
        %3008 = vmatprep.subr.bf16.mxu0 %v2768
        %3009 = vmatpush1.bf16.msra.mxu0 %v2767
        %3010 = vmatprep.subr.bf16.mxu0 %v2776
        %3011 = vmatpush1.bf16.msra.mxu0 %v2775
        %3012 = vmatprep.subr.bf16.mxu0 %v2784
        %3013 = vmatpush1.bf16.msra.mxu0 %v2783
        %3014 = vmatprep.subr.bf16.mxu0 %v2792
        %3015 = vmatpush1.bf16.msra.mxu0 %v2791
        %3016 = vmatprep.subr.bf16.mxu0 %v2800
        %3017 = vmatpush1.bf16.msra.mxu0 %v2799
        %3018 = vmatprep.subr.bf16.mxu0 %v2808
        %3019 = vmatpush1.bf16.msra.mxu0 %v2807
        %3020 = vmatprep.subr.bf16.mxu0 %v2816
        %3021 = vmatpush1.bf16.msra.mxu0 %v2815
        %3022 = vmatprep.mubr.bf16.mxu0 %v2308
        %3023 = vmatmul.mubr.bf16.gmra.mrb[0].mxu0 %v2308
        %v3024 = vpop.f32.mrb[0].mxu0
        %v3025 = vadd.f32 0.0, %v3024
        %v3026 = vpop.f32.mrb[0].mxu0
        %v3027 = vadd.f32 0.0, %v3026
        %v3028 = vpop.f32.mrb[0].mxu0
        %v3029 = vpop.f32.mrb[0].mxu0
        %3030 = vdwg.mxu0
        %3031 = vmatprep.subr.bf16.mxu0 %v2698
        %3032 = vmatpush1.bf16.msra.mxu0 %v2697
        %3033 = vmatprep.subr.bf16.mxu0 %v2706
        %3034 = vmatpush1.bf16.msra.mxu0 %v2705
        %3035 = vmatprep.subr.bf16.mxu0 %v2714
        %3036 = vmatpush1.bf16.msra.mxu0 %v2713
        %3037 = vmatprep.subr.bf16.mxu0 %v2722
        %3038 = vmatpush1.bf16.msra.mxu0 %v2721
        %3039 = vmatprep.subr.bf16.mxu0 %v2730
        %3040 = vmatpush1.bf16.msra.mxu0 %v2729
        %3041 = vmatprep.subr.bf16.mxu0 %v2738
        %3042 = vmatpush1.bf16.msra.mxu0 %v2737
        %3043 = vmatprep.subr.bf16.mxu0 %v2746
        %3044 = vmatpush1.bf16.msra.mxu0 %v2745
        %3045 = vmatprep.subr.bf16.mxu0 %v2754
        %3046 = vmatpush1.bf16.msra.mxu0 %v2753
        %3047 = vmatprep.subr.bf16.mxu0 %v2762
        %3048 = vmatpush1.bf16.msra.mxu0 %v2761
        %3049 = vmatprep.subr.bf16.mxu0 %v2770
        %3050 = vmatpush1.bf16.msra.mxu0 %v2769
        %3051 = vmatprep.subr.bf16.mxu0 %v2778
        %3052 = vmatpush1.bf16.msra.mxu0 %v2777
        %3053 = vmatprep.subr.bf16.mxu0 %v2786
        %3054 = vmatpush1.bf16.msra.mxu0 %v2785
        %3055 = vmatprep.subr.bf16.mxu0 %v2794
        %3056 = vmatpush1.bf16.msra.mxu0 %v2793
        %3057 = vmatprep.subr.bf16.mxu0 %v2802
        %3058 = vmatpush1.bf16.msra.mxu0 %v2801
        %3059 = vmatprep.subr.bf16.mxu0 %v2810
        %3060 = vmatpush1.bf16.msra.mxu0 %v2809
        %3061 = vmatprep.subr.bf16.mxu0 %v2818
        %3062 = vmatpush1.bf16.msra.mxu0 %v2817
        %3063 = vmatprep.mubr.bf16.mxu0 %v2308
        %3064 = vmatmul.mubr.bf16.gmra.mrb[0].mxu0 %v2308
        %v3065 = vpop.f32.mrb[0].mxu0
        %v3066 = vadd.f32 0.0, %v3065
        %v3067 = vpop.f32.mrb[0].mxu0
        %v3068 = vadd.f32 0.0, %v3067
        %v3069 = vpop.f32.mrb[0].mxu0
        %v3070 = vpop.f32.mrb[0].mxu0
        %3071 = vdwg.mxu0
        %3072 = vmatprep.subr.bf16.mxu0 %v2700
        %3073 = vmatpush1.bf16.msra.mxu0 %v2699
        %3074 = vmatprep.subr.bf16.mxu0 %v2708
        %3075 = vmatpush1.bf16.msra.mxu0 %v2707
        %3076 = vmatprep.subr.bf16.mxu0 %v2716
        %3077 = vmatpush1.bf16.msra.mxu0 %v2715
        %3078 = vmatprep.subr.bf16.mxu0 %v2724
        %3079 = vmatpush1.bf16.msra.mxu0 %v2723
        %3080 = vmatprep.subr.bf16.mxu0 %v2732
        %3081 = vmatpush1.bf16.msra.mxu0 %v2731
        %3082 = vmatprep.subr.bf16.mxu0 %v2740
        %3083 = vmatpush1.bf16.msra.mxu0 %v2739
        %3084 = vmatprep.subr.bf16.mxu0 %v2748
        %3085 = vmatpush1.bf16.msra.mxu0 %v2747
        %3086 = vmatprep.subr.bf16.mxu0 %v2756
        %3087 = vmatpush1.bf16.msra.mxu0 %v2755
        %3088 = vmatprep.subr.bf16.mxu0 %v2764
        %3089 = vmatpush1.bf16.msra.mxu0 %v2763
        %3090 = vmatprep.subr.bf16.mxu0 %v2772
        %3091 = vmatpush1.bf16.msra.mxu0 %v2771
        %3092 = vmatprep.subr.bf16.mxu0 %v2780
        %3093 = vmatpush1.bf16.msra.mxu0 %v2779
        %3094 = vmatprep.subr.bf16.mxu0 %v2788
        %3095 = vmatpush1.bf16.msra.mxu0 %v2787
        %3096 = vmatprep.subr.bf16.mxu0 %v2796
        %3097 = vmatpush1.bf16.msra.mxu0 %v2795
        %3098 = vmatprep.subr.bf16.mxu0 %v2804
        %3099 = vmatpush1.bf16.msra.mxu0 %v2803
        %3100 = vmatprep.subr.bf16.mxu0 %v2812
        %3101 = vmatpush1.bf16.msra.mxu0 %v2811
        %3102 = vmatprep.subr.bf16.mxu0 %v2820
        %3103 = vmatpush1.bf16.msra.mxu0 %v2819
        %3104 = vmatprep.mubr.bf16.mxu0 %v2308
        %3105 = vmatmul.mubr.bf16.gmra.mrb[0].mxu0 %v2308
        %v3106 = vpop.f32.mrb[0].mxu0
        %v3107 = vadd.f32 0.0, %v3106
        %v3108 = vpop.f32.mrb[0].mxu0
        %v3109 = vadd.f32 0.0, %v3108
        %v3110 = vpop.f32.mrb[0].mxu0
        %v3111 = vpop.f32.mrb[0].mxu0
        %3112 = vdwg.mxu0
        %v3113 = vadd.f32 %v2172, %v2984
        %v3114 = vadd.f32 %v2173, %v2986
        %v3115 = vadd.f32 %v2174, %v3025
        %v3116 = vadd.f32 %v2175, %v3027
        %v3121 = vrot.slane %v3066, 2
        %v3122 = vrot.slane %v3068, 2
        %v3123 = vrot.slane %v3107, 2
        %v3124 = vrot.slane %v3109, 2
        %v3129 = vadd.f32 %v2176, %v3121
        %v3130 = vadd.f32 %v2177, %v3122
        %v3131 = vadd.f32 %v2178, %v3123
        %v3132 = vadd.f32 %v2179, %v3124
        %v3133 = vxor.u32 %v3113, 2147483648
        %v3134 = vxor.u32 %v3114, 2147483648
        %v3135 = vxor.u32 %v3115, 2147483648
        %v3136 = vmul.f32 %v3133, 1.442695
        %v3137 = vpow.pop %v3136
        %v3138 = vmul.f32 %v3134, 1.442695
        %v3139 = vpow.pop %v3138
        %v3140 = vmul.f32 %v3135, 1.442695
        %v3141 = vpow.pop %v3140
        %v3142 = vadd.f32 %v3137, 1.0
        %v3143 = vadd.f32 %v3139, 1.0
        %v3144 = vadd.f32 %v3141, 1.0
        %v3145 = vrcp.pop %v3142
        %v3146 = vmul.f32 1.0, %v3145
        %v3147 = vrcp.pop %v3143
        %v3148 = vmul.f32 1.0, %v3147
        %v3149 = vrcp.pop %v3144
        %v3150 = vmul.f32 1.0, %v3149
        %v3151 = vtanh.pop %v3116
        %v3152 = vmul.f32 %v3148, 0.0
        %v3153 = vmul.f32 %v3146, %v3151
        %v3154 = vadd.f32 %v3152, %v3153
        %v3155 = vtanh.pop %v3154
        %v3156 = vmul.f32 %v3150, %v3155
        %v3157 = vxor.u32 %v3129, 2147483648
        %v3158 = vxor.u32 %v3130, 2147483648
        %v3159 = vxor.u32 %v3131, 2147483648
        %v3160 = vmul.f32 %v3157, 1.442695
        %v3161 = vpow.pop %v3160
        %v3162 = vmul.f32 %v3158, 1.442695
        %v3163 = vpow.pop %v3162
        %v3164 = vmul.f32 %v3159, 1.442695
        %v3165 = vpow.pop %v3164
        %v3166 = vadd.f32 %v3161, 1.0
        %v3167 = vadd.f32 %v3163, 1.0
        %v3168 = vadd.f32 %v3165, 1.0
        %v3169 = vrcp.pop %v3166
        %v3170 = vmul.f32 1.0, %v3169
        %v3171 = vrcp.pop %v3167
        %v3172 = vmul.f32 1.0, %v3171
        %v3173 = vrcp.pop %v3168
        %v3174 = vmul.f32 1.0, %v3173
        %v3175 = vtanh.pop %v3132
        %v3176 = vmul.f32 %v3172, 0.0
        %v3177 = vmul.f32 %v3170, %v3175
        %v3178 = vadd.f32 %v3176, %v3177
        %v3179 = vtanh.pop %v3178
        %v3180 = vmul.f32 %v3174, %v3179
        %v3182 = vrot.slane %v3180, 6
        %v3184 = vpack.c.bf16 %v3156, %v3156
        %v3185 = vpack.c.bf16 %v3182, %v3182
        %3186 = vmatprep.subr.bf16.mxu0 %v2694
        %3187 = vmatpush1.bf16.msra.mxu0 %v2693
        %3188 = vmatprep.subr.bf16.mxu0 %v2702
        %3189 = vmatpush1.bf16.msra.mxu0 %v2701
        %3190 = vmatprep.subr.bf16.mxu0 %v2710
        %3191 = vmatpush1.bf16.msra.mxu0 %v2709
        %3192 = vmatprep.subr.bf16.mxu0 %v2718
        %3193 = vmatpush1.bf16.msra.mxu0 %v2717
        %3194 = vmatprep.subr.bf16.mxu0 %v2726
        %3195 = vmatpush1.bf16.msra.mxu0 %v2725
        %3196 = vmatprep.subr.bf16.mxu0 %v2734
        %3197 = vmatpush1.bf16.msra.mxu0 %v2733
        %3198 = vmatprep.subr.bf16.mxu0 %v2742
        %3199 = vmatpush1.bf16.msra.mxu0 %v2741
        %3200 = vmatprep.subr.bf16.mxu0 %v2750
        %3201 = vmatpush1.bf16.msra.mxu0 %v2749
        %3202 = vmatprep.subr.bf16.mxu0 %v2758
        %3203 = vmatpush1.bf16.msra.mxu0 %v2757
        %3204 = vmatprep.subr.bf16.mxu0 %v2766
        %3205 = vmatpush1.bf16.msra.mxu0 %v2765
        %3206 = vmatprep.subr.bf16.mxu0 %v2774
        %3207 = vmatpush1.bf16.msra.mxu0 %v2773
        %3208 = vmatprep.subr.bf16.mxu0 %v2782
        %3209 = vmatpush1.bf16.msra.mxu0 %v2781
        %3210 = vmatprep.subr.bf16.mxu0 %v2790
        %3211 = vmatpush1.bf16.msra.mxu0 %v2789
        %3212 = vmatprep.subr.bf16.mxu0 %v2798
        %3213 = vmatpush1.bf16.msra.mxu0 %v2797
        %3214 = vmatprep.subr.bf16.mxu0 %v2806
        %3215 = vmatpush1.bf16.msra.mxu0 %v2805
        %3216 = vmatprep.subr.bf16.mxu0 %v2814
        %3217 = vmatpush1.bf16.msra.mxu0 %v2813
        %3218 = vmatprep.mubr.bf16.mxu0 %v3185
        %3219 = vmatmul.mubr.bf16.gmra.mrb[0].mxu0 %v3184
        %v3220 = vpop.f32.mrb[0].mxu0
        %v3221 = vadd.f32 0.0, %v3220
        %v3222 = vpop.f32.mrb[0].mxu0
        %v3223 = vadd.f32 0.0, %v3222
        %v3224 = vpop.f32.mrb[0].mxu0
        %v3225 = vpop.f32.mrb[0].mxu0
        %3226 = vdwg.mxu0
        %3227 = vmatprep.subr.bf16.mxu0 %v2696
        %3228 = vmatpush1.bf16.msra.mxu0 %v2695
        %3229 = vmatprep.subr.bf16.mxu0 %v2704
        %3230 = vmatpush1.bf16.msra.mxu0 %v2703
        %3231 = vmatprep.subr.bf16.mxu0 %v2712
        %3232 = vmatpush1.bf16.msra.mxu0 %v2711
        %3233 = vmatprep.subr.bf16.mxu0 %v2720
        %3234 = vmatpush1.bf16.msra.mxu0 %v2719
        %3235 = vmatprep.subr.bf16.mxu0 %v2728
        %3236 = vmatpush1.bf16.msra.mxu0 %v2727
        %3237 = vmatprep.subr.bf16.mxu0 %v2736
        %3238 = vmatpush1.bf16.msra.mxu0 %v2735
        %3239 = vmatprep.subr.bf16.mxu0 %v2744
        %3240 = vmatpush1.bf16.msra.mxu0 %v2743
        %3241 = vmatprep.subr.bf16.mxu0 %v2752
        %3242 = vmatpush1.bf16.msra.mxu0 %v2751
        %3243 = vmatprep.subr.bf16.mxu0 %v2760
        %3244 = vmatpush1.bf16.msra.mxu0 %v2759
        %3245 = vmatprep.subr.bf16.mxu0 %v2768
        %3246 = vmatpush1.bf16.msra.mxu0 %v2767
        %3247 = vmatprep.subr.bf16.mxu0 %v2776
        %3248 = vmatpush1.bf16.msra.mxu0 %v2775
        %3249 = vmatprep.subr.bf16.mxu0 %v2784
        %3250 = vmatpush1.bf16.msra.mxu0 %v2783
        %3251 = vmatprep.subr.bf16.mxu0 %v2792
        %3252 = vmatpush1.bf16.msra.mxu0 %v2791
        %3253 = vmatprep.subr.bf16.mxu0 %v2800
        %3254 = vmatpush1.bf16.msra.mxu0 %v2799
        %3255 = vmatprep.subr.bf16.mxu0 %v2808
        %3256 = vmatpush1.bf16.msra.mxu0 %v2807
        %3257 = vmatprep.subr.bf16.mxu0 %v2816
        %3258 = vmatpush1.bf16.msra.mxu0 %v2815
        %3259 = vmatprep.mubr.bf16.mxu0 %v3185
        %3260 = vmatmul.mubr.bf16.gmra.mrb[0].mxu0 %v3184
        %v3261 = vpop.f32.mrb[0].mxu0
        %v3262 = vadd.f32 0.0, %v3261
        %v3263 = vpop.f32.mrb[0].mxu0
        %v3264 = vadd.f32 0.0, %v3263
        %v3265 = vpop.f32.mrb[0].mxu0
        %v3266 = vpop.f32.mrb[0].mxu0
        %3267 = vdwg.mxu0
        %3268 = vmatprep.subr.bf16.mxu0 %v2698
        %3269 = vmatpush1.bf16.msra.mxu0 %v2697
        %3270 = vmatprep.subr.bf16.mxu0 %v2706
        %3271 = vmatpush1.bf16.msra.mxu0 %v2705
        %3272 = vmatprep.subr.bf16.mxu0 %v2714
        %3273 = vmatpush1.bf16.msra.mxu0 %v2713
        %3274 = vmatprep.subr.bf16.mxu0 %v2722
        %3275 = vmatpush1.bf16.msra.mxu0 %v2721
        %3276 = vmatprep.subr.bf16.mxu0 %v2730
        %3277 = vmatpush1.bf16.msra.mxu0 %v2729
        %3278 = vmatprep.subr.bf16.mxu0 %v2738
        %3279 = vmatpush1.bf16.msra.mxu0 %v2737
        %3280 = vmatprep.subr.bf16.mxu0 %v2746
        %3281 = vmatpush1.bf16.msra.mxu0 %v2745
        %3282 = vmatprep.subr.bf16.mxu0 %v2754
        %3283 = vmatpush1.bf16.msra.mxu0 %v2753
        %3284 = vmatprep.subr.bf16.mxu0 %v2762
        %3285 = vmatpush1.bf16.msra.mxu0 %v2761
        %3286 = vmatprep.subr.bf16.mxu0 %v2770
        %3287 = vmatpush1.bf16.msra.mxu0 %v2769
        %3288 = vmatprep.subr.bf16.mxu0 %v2778
        %3289 = vmatpush1.bf16.msra.mxu0 %v2777
        %3290 = vmatprep.subr.bf16.mxu0 %v2786
        %3291 = vmatpush1.bf16.msra.mxu0 %v2785
        %3292 = vmatprep.subr.bf16.mxu0 %v2794
        %3293 = vmatpush1.bf16.msra.mxu0 %v2793
        %3294 = vmatprep.subr.bf16.mxu0 %v2802
        %3295 = vmatpush1.bf16.msra.mxu0 %v2801
        %3296 = vmatprep.subr.bf16.mxu0 %v2810
        %3297 = vmatpush1.bf16.msra.mxu0 %v2809
        %3298 = vmatprep.subr.bf16.mxu0 %v2818
        %3299 = vmatpush1.bf16.msra.mxu0 %v2817
        %3300 = vmatprep.mubr.bf16.mxu0 %v3185
        %3301 = vmatmul.mubr.bf16.gmra.mrb[0].mxu0 %v3184
        %v3302 = vpop.f32.mrb[0].mxu0
        %v3303 = vadd.f32 0.0, %v3302
        %v3304 = vpop.f32.mrb[0].mxu0
        %v3305 = vadd.f32 0.0, %v3304
        %v3306 = vpop.f32.mrb[0].mxu0
        %v3307 = vpop.f32.mrb[0].mxu0
        %3308 = vdwg.mxu0
        %3309 = vmatprep.subr.bf16.mxu0 %v2700
        %3310 = vmatpush1.bf16.msra.mxu0 %v2699
        %3311 = vmatprep.subr.bf16.mxu0 %v2708
        %3312 = vmatpush1.bf16.msra.mxu0 %v2707
        %3313 = vmatprep.subr.bf16.mxu0 %v2716
        %3314 = vmatpush1.bf16.msra.mxu0 %v2715
        %3315 = vmatprep.subr.bf16.mxu0 %v2724
        %3316 = vmatpush1.bf16.msra.mxu0 %v2723
        %3317 = vmatprep.subr.bf16.mxu0 %v2732
        %3318 = vmatpush1.bf16.msra.mxu0 %v2731
        %3319 = vmatprep.subr.bf16.mxu0 %v2740
        %3320 = vmatpush1.bf16.msra.mxu0 %v2739
        %3321 = vmatprep.subr.bf16.mxu0 %v2748
        %3322 = vmatpush1.bf16.msra.mxu0 %v2747
        %3323 = vmatprep.subr.bf16.mxu0 %v2756
        %3324 = vmatpush1.bf16.msra.mxu0 %v2755
        %3325 = vmatprep.subr.bf16.mxu0 %v2764
        %3326 = vmatpush1.bf16.msra.mxu0 %v2763
        %3327 = vmatprep.subr.bf16.mxu0 %v2772
        %3328 = vmatpush1.bf16.msra.mxu0 %v2771
        %3329 = vmatprep.subr.bf16.mxu0 %v2780
        %3330 = vmatpush1.bf16.msra.mxu0 %v2779
        %3331 = vmatprep.subr.bf16.mxu0 %v2788
        %3332 = vmatpush1.bf16.msra.mxu0 %v2787
        %3333 = vmatprep.subr.bf16.mxu0 %v2796
        %3334 = vmatpush1.bf16.msra.mxu0 %v2795
        %3335 = vmatprep.subr.bf16.mxu0 %v2804
        %3336 = vmatpush1.bf16.msra.mxu0 %v2803
        %3337 = vmatprep.subr.bf16.mxu0 %v2812
        %3338 = vmatpush1.bf16.msra.mxu0 %v2811
        %3339 = vmatprep.subr.bf16.mxu0 %v2820
        %3340 = vmatpush1.bf16.msra.mxu0 %v2819
        %3341 = vmatprep.mubr.bf16.mxu0 %v3185
        %3342 = vmatmul.mubr.bf16.gmra.mrb[0].mxu0 %v3184
        %v3343 = vpop.f32.mrb[0].mxu0
        %v3344 = vadd.f32 0.0, %v3343
        %v3345 = vpop.f32.mrb[0].mxu0
        %v3346 = vadd.f32 0.0, %v3345
        %v3347 = vpop.f32.mrb[0].mxu0
        %v3348 = vpop.f32.mrb[0].mxu0
        %3349 = vdwg.mxu0
        %v3354 = vrot.slane %v3221, 6
        %v3355 = vrot.slane %v3223, 6
        %v3356 = vrot.slane %v3262, 6
        %v3357 = vrot.slane %v3264, 6
        %v3362 = vadd.f32 %v2172, %v3354
        %v3363 = vadd.f32 %v2173, %v3355
        %v3364 = vadd.f32 %v2174, %v3356
        %v3365 = vadd.f32 %v2175, %v3357
        %v3370 = vrot.slane %v3303, 4
        %v3371 = vrot.slane %v3305, 4
        %v3372 = vrot.slane %v3344, 4
        %v3373 = vrot.slane %v3346, 4
        %v3378 = vadd.f32 %v2176, %v3370
        %v3379 = vadd.f32 %v2177, %v3371
        %v3380 = vadd.f32 %v2178, %v3372
        %v3381 = vadd.f32 %v2179, %v3373
        %v3382 = vxor.u32 %v3362, 2147483648
        %v3383 = vxor.u32 %v3363, 2147483648
        %v3384 = vxor.u32 %v3364, 2147483648
        %v3385 = vmul.f32 %v3382, 1.442695
        %v3386 = vpow.pop %v3385
        %v3387 = vmul.f32 %v3383, 1.442695
        %v3388 = vpow.pop %v3387
        %v3389 = vmul.f32 %v3384, 1.442695
        %v3390 = vpow.pop %v3389
        %v3391 = vadd.f32 %v3386, 1.0
        %v3392 = vadd.f32 %v3388, 1.0
        %v3393 = vadd.f32 %v3390, 1.0
        %v3394 = vrcp.pop %v3391
        %v3395 = vmul.f32 1.0, %v3394
        %v3396 = vrcp.pop %v3392
        %v3397 = vmul.f32 1.0, %v3396
        %v3398 = vrcp.pop %v3393
        %v3399 = vmul.f32 1.0, %v3398
        %v3400 = vtanh.pop %v3365
        %v3402 = vrot.slane %v3154, 6
        %v3404 = vmul.f32 %v3397, %v3402
        %v3405 = vmul.f32 %v3395, %v3400
        %v3406 = vadd.f32 %v3404, %v3405
        %v3407 = vtanh.pop %v3406
        %v3408 = vmul.f32 %v3399, %v3407
        %v3409 = vxor.u32 %v3378, 2147483648
        %v3410 = vxor.u32 %v3379, 2147483648
        %v3411 = vxor.u32 %v3380, 2147483648
        %v3412 = vmul.f32 %v3409, 1.442695
        %v3413 = vpow.pop %v3412
        %v3414 = vmul.f32 %v3410, 1.442695
        %v3415 = vpow.pop %v3414
        %v3416 = vmul.f32 %v3411, 1.442695
        %v3417 = vpow.pop %v3416
        %v3418 = vadd.f32 %v3413, 1.0
        %v3419 = vadd.f32 %v3415, 1.0
        %v3420 = vadd.f32 %v3417, 1.0
        %v3421 = vrcp.pop %v3418
        %v3422 = vmul.f32 1.0, %v3421
        %v3423 = vrcp.pop %v3419
        %v3424 = vmul.f32 1.0, %v3423
        %v3425 = vrcp.pop %v3420
        %v3426 = vmul.f32 1.0, %v3425
        %v3427 = vtanh.pop %v3381
        %v3429 = vrot.slane %v3178, 2
        %v3431 = vmul.f32 %v3424, %v3429
        %v3432 = vmul.f32 %v3422, %v3427
        %v3433 = vadd.f32 %v3431, %v3432
        %v3434 = vtanh.pop %v3433
        %v3435 = vmul.f32 %v3426, %v3434
        %v3437 = vrot.slane %v3435, 2
        %v3439 = vpack.c.bf16 %v3408, %v3408
        %v3440 = vpack.c.bf16 %v3437, %v3437
        %v3443 = vrot.slane %v3439, 1
        %v3444 = vrot.slane %v3440, 1
        %3447 = vmatprep.subr.bf16.mxu0 %v2694
        %3448 = vmatpush1.bf16.msra.mxu0 %v2693
        %3449 = vmatprep.subr.bf16.mxu0 %v2702
        %3450 = vmatpush1.bf16.msra.mxu0 %v2701
        %3451 = vmatprep.subr.bf16.mxu0 %v2710
        %3452 = vmatpush1.bf16.msra.mxu0 %v2709
        %3453 = vmatprep.subr.bf16.mxu0 %v2718
        %3454 = vmatpush1.bf16.msra.mxu0 %v2717
        %3455 = vmatprep.subr.bf16.mxu0 %v2726
        %3456 = vmatpush1.bf16.msra.mxu0 %v2725
        %3457 = vmatprep.subr.bf16.mxu0 %v2734
        %3458 = vmatpush1.bf16.msra.mxu0 %v2733
        %3459 = vmatprep.subr.bf16.mxu0 %v2742
        %3460 = vmatpush1.bf16.msra.mxu0 %v2741
        %3461 = vmatprep.subr.bf16.mxu0 %v2750
        %3462 = vmatpush1.bf16.msra.mxu0 %v2749
        %3463 = vmatprep.subr.bf16.mxu0 %v2758
        %3464 = vmatpush1.bf16.msra.mxu0 %v2757
        %3465 = vmatprep.subr.bf16.mxu0 %v2766
        %3466 = vmatpush1.bf16.msra.mxu0 %v2765
        %3467 = vmatprep.subr.bf16.mxu0 %v2774
        %3468 = vmatpush1.bf16.msra.mxu0 %v2773
        %3469 = vmatprep.subr.bf16.mxu0 %v2782
        %3470 = vmatpush1.bf16.msra.mxu0 %v2781
        %3471 = vmatprep.subr.bf16.mxu0 %v2790
        %3472 = vmatpush1.bf16.msra.mxu0 %v2789
        %3473 = vmatprep.subr.bf16.mxu0 %v2798
        %3474 = vmatpush1.bf16.msra.mxu0 %v2797
        %3475 = vmatprep.subr.bf16.mxu0 %v2806
        %3476 = vmatpush1.bf16.msra.mxu0 %v2805
        %3477 = vmatprep.subr.bf16.mxu0 %v2814
        %3478 = vmatpush1.bf16.msra.mxu0 %v2813
        %3479 = vmatprep.mubr.bf16.mxu0 %v3444
        %3480 = vmatmul.mubr.bf16.gmra.mrb[0].mxu0 %v3443
        %v3481 = vpop.f32.mrb[0].mxu0
        %v3482 = vadd.f32 0.0, %v3481
        %v3483 = vpop.f32.mrb[0].mxu0
        %v3484 = vadd.f32 0.0, %v3483
        %v3485 = vpop.f32.mrb[0].mxu0
        %v3486 = vpop.f32.mrb[0].mxu0
        %3487 = vdwg.mxu0
        %3488 = vmatprep.subr.bf16.mxu0 %v2696
        %3489 = vmatpush1.bf16.msra.mxu0 %v2695
        %3490 = vmatprep.subr.bf16.mxu0 %v2704
        %3491 = vmatpush1.bf16.msra.mxu0 %v2703
        %3492 = vmatprep.subr.bf16.mxu0 %v2712
        %3493 = vmatpush1.bf16.msra.mxu0 %v2711
        %3494 = vmatprep.subr.bf16.mxu0 %v2720
        %3495 = vmatpush1.bf16.msra.mxu0 %v2719
        %3496 = vmatprep.subr.bf16.mxu0 %v2728
        %3497 = vmatpush1.bf16.msra.mxu0 %v2727
        %3498 = vmatprep.subr.bf16.mxu0 %v2736
        %3499 = vmatpush1.bf16.msra.mxu0 %v2735
        %3500 = vmatprep.subr.bf16.mxu0 %v2744
        %3501 = vmatpush1.bf16.msra.mxu0 %v2743
        %3502 = vmatprep.subr.bf16.mxu0 %v2752
        %3503 = vmatpush1.bf16.msra.mxu0 %v2751
        %3504 = vmatprep.subr.bf16.mxu0 %v2760
        %3505 = vmatpush1.bf16.msra.mxu0 %v2759
        %3506 = vmatprep.subr.bf16.mxu0 %v2768
        %3507 = vmatpush1.bf16.msra.mxu0 %v2767
        %3508 = vmatprep.subr.bf16.mxu0 %v2776
        %3509 = vmatpush1.bf16.msra.mxu0 %v2775
        %3510 = vmatprep.subr.bf16.mxu0 %v2784
        %3511 = vmatpush1.bf16.msra.mxu0 %v2783
        %3512 = vmatprep.subr.bf16.mxu0 %v2792
        %3513 = vmatpush1.bf16.msra.mxu0 %v2791
        %3514 = vmatprep.subr.bf16.mxu0 %v2800
        %3515 = vmatpush1.bf16.msra.mxu0 %v2799
        %3516 = vmatprep.subr.bf16.mxu0 %v2808
        %3517 = vmatpush1.bf16.msra.mxu0 %v2807
        %3518 = vmatprep.subr.bf16.mxu0 %v2816
        %3519 = vmatpush1.bf16.msra.mxu0 %v2815
        %3520 = vmatprep.mubr.bf16.mxu0 %v3444
        %3521 = vmatmul.mubr.bf16.gmra.mrb[0].mxu0 %v3443
        %v3522 = vpop.f32.mrb[0].mxu0
        %v3523 = vadd.f32 0.0, %v3522
        %v3524 = vpop.f32.mrb[0].mxu0
        %v3525 = vadd.f32 0.0, %v3524
        %v3526 = vpop.f32.mrb[0].mxu0
        %v3527 = vpop.f32.mrb[0].mxu0
        %3528 = vdwg.mxu0
        %3529 = vmatprep.subr.bf16.mxu0 %v2698
        %3530 = vmatpush1.bf16.msra.mxu0 %v2697
        %3531 = vmatprep.subr.bf16.mxu0 %v2706
        %3532 = vmatpush1.bf16.msra.mxu0 %v2705
        %3533 = vmatprep.subr.bf16.mxu0 %v2714
        %3534 = vmatpush1.bf16.msra.mxu0 %v2713
        %3535 = vmatprep.subr.bf16.mxu0 %v2722
        %3536 = vmatpush1.bf16.msra.mxu0 %v2721
        %3537 = vmatprep.subr.bf16.mxu0 %v2730
        %3538 = vmatpush1.bf16.msra.mxu0 %v2729
        %3539 = vmatprep.subr.bf16.mxu0 %v2738
        %3540 = vmatpush1.bf16.msra.mxu0 %v2737
        %3541 = vmatprep.subr.bf16.mxu0 %v2746
        %3542 = vmatpush1.bf16.msra.mxu0 %v2745
        %3543 = vmatprep.subr.bf16.mxu0 %v2754
        %3544 = vmatpush1.bf16.msra.mxu0 %v2753
        %3545 = vmatprep.subr.bf16.mxu0 %v2762
        %3546 = vmatpush1.bf16.msra.mxu0 %v2761
        %3547 = vmatprep.subr.bf16.mxu0 %v2770
        %3548 = vmatpush1.bf16.msra.mxu0 %v2769
        %3549 = vmatprep.subr.bf16.mxu0 %v2778
        %3550 = vmatpush1.bf16.msra.mxu0 %v2777
        %3551 = vmatprep.subr.bf16.mxu0 %v2786
        %3552 = vmatpush1.bf16.msra.mxu0 %v2785
        %3553 = vmatprep.subr.bf16.mxu0 %v2794
        %3554 = vmatpush1.bf16.msra.mxu0 %v2793
        %3555 = vmatprep.subr.bf16.mxu0 %v2802
        %3556 = vmatpush1.bf16.msra.mxu0 %v2801
        %3557 = vmatprep.subr.bf16.mxu0 %v2810
        %3558 = vmatpush1.bf16.msra.mxu0 %v2809
        %3559 = vmatprep.subr.bf16.mxu0 %v2818
        %3560 = vmatpush1.bf16.msra.mxu0 %v2817
        %3561 = vmatprep.mubr.bf16.mxu0 %v3444
        %3562 = vmatmul.mubr.bf16.gmra.mrb[0].mxu0 %v3443
        %v3563 = vpop.f32.mrb[0].mxu0
        %v3564 = vadd.f32 0.0, %v3563
        %v3565 = vpop.f32.mrb[0].mxu0
        %v3566 = vadd.f32 0.0, %v3565
        %v3567 = vpop.f32.mrb[0].mxu0
        %v3568 = vpop.f32.mrb[0].mxu0
        %3569 = vdwg.mxu0
        %3570 = vmatprep.subr.bf16.mxu0 %v2700
        %3571 = vmatpush1.bf16.msra.mxu0 %v2699
        %3572 = vmatprep.subr.bf16.mxu0 %v2708
        %3573 = vmatpush1.bf16.msra.mxu0 %v2707
        %3574 = vmatprep.subr.bf16.mxu0 %v2716
        %3575 = vmatpush1.bf16.msra.mxu0 %v2715
        %3576 = vmatprep.subr.bf16.mxu0 %v2724
        %3577 = vmatpush1.bf16.msra.mxu0 %v2723
        %3578 = vmatprep.subr.bf16.mxu0 %v2732
        %3579 = vmatpush1.bf16.msra.mxu0 %v2731
        %3580 = vmatprep.subr.bf16.mxu0 %v2740
        %3581 = vmatpush1.bf16.msra.mxu0 %v2739
        %3582 = vmatprep.subr.bf16.mxu0 %v2748
        %3583 = vmatpush1.bf16.msra.mxu0 %v2747
        %3584 = vmatprep.subr.bf16.mxu0 %v2756
        %3585 = vmatpush1.bf16.msra.mxu0 %v2755
        %3586 = vmatprep.subr.bf16.mxu0 %v2764
        %3587 = vmatpush1.bf16.msra.mxu0 %v2763
        %3588 = vmatprep.subr.bf16.mxu0 %v2772
        %3589 = vmatpush1.bf16.msra.mxu0 %v2771
        %3590 = vmatprep.subr.bf16.mxu0 %v2780
        %3591 = vmatpush1.bf16.msra.mxu0 %v2779
        %3592 = vmatprep.subr.bf16.mxu0 %v2788
        %3593 = vmatpush1.bf16.msra.mxu0 %v2787
        %3594 = vmatprep.subr.bf16.mxu0 %v2796
        %3595 = vmatpush1.bf16.msra.mxu0 %v2795
        %3596 = vmatprep.subr.bf16.mxu0 %v2804
        %3597 = vmatpush1.bf16.msra.mxu0 %v2803
        %3598 = vmatprep.subr.bf16.mxu0 %v2812
        %3599 = vmatpush1.bf16.msra.mxu0 %v2811
        %3600 = vmatprep.subr.bf16.mxu0 %v2820
        %3601 = vmatpush1.bf16.msra.mxu0 %v2819
        %3602 = vmatprep.mubr.bf16.mxu0 %v3444
        %3603 = vmatmul.mubr.bf16.gmra.mrb[0].mxu0 %v3443
        %v3604 = vpop.f32.mrb[0].mxu0
        %v3605 = vadd.f32 0.0, %v3604
        %v3606 = vpop.f32.mrb[0].mxu0
        %v3607 = vadd.f32 0.0, %v3606
        %v3608 = vpop.f32.mrb[0].mxu0
        %v3609 = vpop.f32.mrb[0].mxu0
        %3610 = vdwg.mxu0
        %v3615 = vrot.slane %v3482, 4
        %v3616 = vrot.slane %v3484, 4
        %v3617 = vrot.slane %v3523, 4
        %v3618 = vrot.slane %v3525, 4
        %v3623 = vadd.f32 %v2172, %v3615
        %v3624 = vadd.f32 %v2173, %v3616
        %v3625 = vadd.f32 %v2174, %v3617
        %v3626 = vadd.f32 %v2175, %v3618
        %v3631 = vrot.slane %v3564, 6
        %v3632 = vrot.slane %v3566, 6
        %v3633 = vrot.slane %v3605, 6
        %v3634 = vrot.slane %v3607, 6
        %v3639 = vadd.f32 %v2176, %v3631
        %v3640 = vadd.f32 %v2177, %v3632
        %v3641 = vadd.f32 %v2178, %v3633
        %v3642 = vadd.f32 %v2179, %v3634
        %v3643 = vxor.u32 %v3623, 2147483648
        %v3644 = vxor.u32 %v3624, 2147483648
        %v3645 = vxor.u32 %v3625, 2147483648
        %v3646 = vmul.f32 %v3643, 1.442695
        %v3647 = vpow.pop %v3646
        %v3648 = vmul.f32 %v3644, 1.442695
        %v3649 = vpow.pop %v3648
        %v3650 = vmul.f32 %v3645, 1.442695
        %v3651 = vpow.pop %v3650
        %v3652 = vadd.f32 %v3647, 1.0
        %v3653 = vadd.f32 %v3649, 1.0
        %v3654 = vadd.f32 %v3651, 1.0
        %v3655 = vrcp.pop %v3652
        %v3656 = vmul.f32 1.0, %v3655
        %v3657 = vrcp.pop %v3653
        %v3658 = vmul.f32 1.0, %v3657
        %v3659 = vrcp.pop %v3654
        %v3660 = vmul.f32 1.0, %v3659
        %v3661 = vtanh.pop %v3626
        %v3663 = vrot.slane %v3406, 6
        %v3665 = vmul.f32 %v3658, %v3663
        %v3666 = vmul.f32 %v3656, %v3661
        %v3667 = vadd.f32 %v3665, %v3666
        %v3668 = vtanh.pop %v3667
        %v3669 = vmul.f32 %v3660, %v3668
        %v3670 = vxor.u32 %v3639, 2147483648
        %v3671 = vxor.u32 %v3640, 2147483648
        %v3672 = vxor.u32 %v3641, 2147483648
        %v3673 = vmul.f32 %v3670, 1.442695
        %v3674 = vpow.pop %v3673
        %v3675 = vmul.f32 %v3671, 1.442695
        %v3676 = vpow.pop %v3675
        %v3677 = vmul.f32 %v3672, 1.442695
        %v3678 = vpow.pop %v3677
        %v3679 = vadd.f32 %v3674, 1.0
        %v3680 = vadd.f32 %v3676, 1.0
        %v3681 = vadd.f32 %v3678, 1.0
        %v3682 = vrcp.pop %v3679
        %v3683 = vmul.f32 1.0, %v3682
        %v3684 = vrcp.pop %v3680
        %v3685 = vmul.f32 1.0, %v3684
        %v3686 = vrcp.pop %v3681
        %v3687 = vmul.f32 1.0, %v3686
        %v3688 = vtanh.pop %v3642
        %v3690 = vrot.slane %v3433, 2
        %v3692 = vmul.f32 %v3685, %v3690
        %v3693 = vmul.f32 %v3683, %v3688
        %v3694 = vadd.f32 %v3692, %v3693
        %v3695 = vtanh.pop %v3694
        %v3696 = vmul.f32 %v3687, %v3695
        %v3698 = vrot.slane %v3696, 6
        %v3700 = vpack.c.bf16 %v3669, %v3669
        %v3701 = vpack.c.bf16 %v3698, %v3698
        %v3704 = vrot.slane %v3700, 2
        %v3705 = vrot.slane %v3701, 2
        %3708 = vmatprep.subr.bf16.mxu0 %v2694
        %3709 = vmatpush1.bf16.msra.mxu0 %v2693
        %3710 = vmatprep.subr.bf16.mxu0 %v2702
        %3711 = vmatpush1.bf16.msra.mxu0 %v2701
        %3712 = vmatprep.subr.bf16.mxu0 %v2710
        %3713 = vmatpush1.bf16.msra.mxu0 %v2709
        %3714 = vmatprep.subr.bf16.mxu0 %v2718
        %3715 = vmatpush1.bf16.msra.mxu0 %v2717
        %3716 = vmatprep.subr.bf16.mxu0 %v2726
        %3717 = vmatpush1.bf16.msra.mxu0 %v2725
        %3718 = vmatprep.subr.bf16.mxu0 %v2734
        %3719 = vmatpush1.bf16.msra.mxu0 %v2733
        %3720 = vmatprep.subr.bf16.mxu0 %v2742
        %3721 = vmatpush1.bf16.msra.mxu0 %v2741
        %3722 = vmatprep.subr.bf16.mxu0 %v2750
        %3723 = vmatpush1.bf16.msra.mxu0 %v2749
        %3724 = vmatprep.subr.bf16.mxu0 %v2758
        %3725 = vmatpush1.bf16.msra.mxu0 %v2757
        %3726 = vmatprep.subr.bf16.mxu0 %v2766
        %3727 = vmatpush1.bf16.msra.mxu0 %v2765
        %3728 = vmatprep.subr.bf16.mxu0 %v2774
        %3729 = vmatpush1.bf16.msra.mxu0 %v2773
        %3730 = vmatprep.subr.bf16.mxu0 %v2782
        %3731 = vmatpush1.bf16.msra.mxu0 %v2781
        %3732 = vmatprep.subr.bf16.mxu0 %v2790
        %3733 = vmatpush1.bf16.msra.mxu0 %v2789
        %3734 = vmatprep.subr.bf16.mxu0 %v2798
        %3735 = vmatpush1.bf16.msra.mxu0 %v2797
        %3736 = vmatprep.subr.bf16.mxu0 %v2806
        %3737 = vmatpush1.bf16.msra.mxu0 %v2805
        %3738 = vmatprep.subr.bf16.mxu0 %v2814
        %3739 = vmatpush1.bf16.msra.mxu0 %v2813
        %3740 = vmatprep.mubr.bf16.mxu0 %v3705
        %3741 = vmatmul.mubr.bf16.gmra.mrb[0].mxu0 %v3704
        %v3742 = vpop.f32.mrb[0].mxu0
        %v3743 = vadd.f32 0.0, %v3742
        %v3744 = vpop.f32.mrb[0].mxu0
        %v3745 = vadd.f32 0.0, %v3744
        %v3746 = vpop.f32.mrb[0].mxu0
        %v3747 = vpop.f32.mrb[0].mxu0
        %3748 = vdwg.mxu0
        %3749 = vmatprep.subr.bf16.mxu0 %v2696
        %3750 = vmatpush1.bf16.msra.mxu0 %v2695
        %3751 = vmatprep.subr.bf16.mxu0 %v2704
        %3752 = vmatpush1.bf16.msra.mxu0 %v2703
        %3753 = vmatprep.subr.bf16.mxu0 %v2712
        %3754 = vmatpush1.bf16.msra.mxu0 %v2711
        %3755 = vmatprep.subr.bf16.mxu0 %v2720
        %3756 = vmatpush1.bf16.msra.mxu0 %v2719
        %3757 = vmatprep.subr.bf16.mxu0 %v2728
        %3758 = vmatpush1.bf16.msra.mxu0 %v2727
        %3759 = vmatprep.subr.bf16.mxu0 %v2736
        %3760 = vmatpush1.bf16.msra.mxu0 %v2735
        %3761 = vmatprep.subr.bf16.mxu0 %v2744
        %3762 = vmatpush1.bf16.msra.mxu0 %v2743
        %3763 = vmatprep.subr.bf16.mxu0 %v2752
        %3764 = vmatpush1.bf16.msra.mxu0 %v2751
        %3765 = vmatprep.subr.bf16.mxu0 %v2760
        %3766 = vmatpush1.bf16.msra.mxu0 %v2759
        %3767 = vmatprep.subr.bf16.mxu0 %v2768
        %3768 = vmatpush1.bf16.msra.mxu0 %v2767
        %3769 = vmatprep.subr.bf16.mxu0 %v2776
        %3770 = vmatpush1.bf16.msra.mxu0 %v2775
        %3771 = vmatprep.subr.bf16.mxu0 %v2784
        %3772 = vmatpush1.bf16.msra.mxu0 %v2783
        %3773 = vmatprep.subr.bf16.mxu0 %v2792
        %3774 = vmatpush1.bf16.msra.mxu0 %v2791
        %3775 = vmatprep.subr.bf16.mxu0 %v2800
        %3776 = vmatpush1.bf16.msra.mxu0 %v2799
        %3777 = vmatprep.subr.bf16.mxu0 %v2808
        %3778 = vmatpush1.bf16.msra.mxu0 %v2807
        %3779 = vmatprep.subr.bf16.mxu0 %v2816
        %3780 = vmatpush1.bf16.msra.mxu0 %v2815
        %3781 = vmatprep.mubr.bf16.mxu0 %v3705
        %3782 = vmatmul.mubr.bf16.gmra.mrb[0].mxu0 %v3704
        %v3783 = vpop.f32.mrb[0].mxu0
        %v3784 = vadd.f32 0.0, %v3783
        %v3785 = vpop.f32.mrb[0].mxu0
        %v3786 = vadd.f32 0.0, %v3785
        %v3787 = vpop.f32.mrb[0].mxu0
        %v3788 = vpop.f32.mrb[0].mxu0
        %3789 = vdwg.mxu0
        %3790 = vmatprep.subr.bf16.mxu0 %v2698
        %3791 = vmatpush1.bf16.msra.mxu0 %v2697
        %3792 = vmatprep.subr.bf16.mxu0 %v2706
        %3793 = vmatpush1.bf16.msra.mxu0 %v2705
        %3794 = vmatprep.subr.bf16.mxu0 %v2714
        %3795 = vmatpush1.bf16.msra.mxu0 %v2713
        %3796 = vmatprep.subr.bf16.mxu0 %v2722
        %3797 = vmatpush1.bf16.msra.mxu0 %v2721
        %3798 = vmatprep.subr.bf16.mxu0 %v2730
        %3799 = vmatpush1.bf16.msra.mxu0 %v2729
        %3800 = vmatprep.subr.bf16.mxu0 %v2738
        %3801 = vmatpush1.bf16.msra.mxu0 %v2737
        %3802 = vmatprep.subr.bf16.mxu0 %v2746
        %3803 = vmatpush1.bf16.msra.mxu0 %v2745
        %3804 = vmatprep.subr.bf16.mxu0 %v2754
        %3805 = vmatpush1.bf16.msra.mxu0 %v2753
        %3806 = vmatprep.subr.bf16.mxu0 %v2762
        %3807 = vmatpush1.bf16.msra.mxu0 %v2761
        %3808 = vmatprep.subr.bf16.mxu0 %v2770
        %3809 = vmatpush1.bf16.msra.mxu0 %v2769
        %3810 = vmatprep.subr.bf16.mxu0 %v2778
        %3811 = vmatpush1.bf16.msra.mxu0 %v2777
        %3812 = vmatprep.subr.bf16.mxu0 %v2786
        %3813 = vmatpush1.bf16.msra.mxu0 %v2785
        %3814 = vmatprep.subr.bf16.mxu0 %v2794
        %3815 = vmatpush1.bf16.msra.mxu0 %v2793
        %3816 = vmatprep.subr.bf16.mxu0 %v2802
        %3817 = vmatpush1.bf16.msra.mxu0 %v2801
        %3818 = vmatprep.subr.bf16.mxu0 %v2810
        %3819 = vmatpush1.bf16.msra.mxu0 %v2809
        %3820 = vmatprep.subr.bf16.mxu0 %v2818
        %3821 = vmatpush1.bf16.msra.mxu0 %v2817
        %3822 = vmatprep.mubr.bf16.mxu0 %v3705
        %3823 = vmatmul.mubr.bf16.gmra.mrb[0].mxu0 %v3704
        %v3824 = vpop.f32.mrb[0].mxu0
        %v3825 = vadd.f32 0.0, %v3824
        %v3826 = vpop.f32.mrb[0].mxu0
        %v3827 = vadd.f32 0.0, %v3826
        %v3828 = vpop.f32.mrb[0].mxu0
        %v3829 = vpop.f32.mrb[0].mxu0
        %3830 = vdwg.mxu0
        %3831 = vmatprep.subr.bf16.mxu0 %v2700
        %3832 = vmatpush1.bf16.msra.mxu0 %v2699
        %3833 = vmatprep.subr.bf16.mxu0 %v2708
        %3834 = vmatpush1.bf16.msra.mxu0 %v2707
        %3835 = vmatprep.subr.bf16.mxu0 %v2716
        %3836 = vmatpush1.bf16.msra.mxu0 %v2715
        %3837 = vmatprep.subr.bf16.mxu0 %v2724
        %3838 = vmatpush1.bf16.msra.mxu0 %v2723
        %3839 = vmatprep.subr.bf16.mxu0 %v2732
        %3840 = vmatpush1.bf16.msra.mxu0 %v2731
        %3841 = vmatprep.subr.bf16.mxu0 %v2740
        %3842 = vmatpush1.bf16.msra.mxu0 %v2739
        %3843 = vmatprep.subr.bf16.mxu0 %v2748
        %3844 = vmatpush1.bf16.msra.mxu0 %v2747
        %3845 = vmatprep.subr.bf16.mxu0 %v2756
        %3846 = vmatpush1.bf16.msra.mxu0 %v2755
        %3847 = vmatprep.subr.bf16.mxu0 %v2764
        %3848 = vmatpush1.bf16.msra.mxu0 %v2763
        %3849 = vmatprep.subr.bf16.mxu0 %v2772
        %3850 = vmatpush1.bf16.msra.mxu0 %v2771
        %3851 = vmatprep.subr.bf16.mxu0 %v2780
        %3852 = vmatpush1.bf16.msra.mxu0 %v2779
        %3853 = vmatprep.subr.bf16.mxu0 %v2788
        %3854 = vmatpush1.bf16.msra.mxu0 %v2787
        %3855 = vmatprep.subr.bf16.mxu0 %v2796
        %3856 = vmatpush1.bf16.msra.mxu0 %v2795
        %3857 = vmatprep.subr.bf16.mxu0 %v2804
        %3858 = vmatpush1.bf16.msra.mxu0 %v2803
        %3859 = vmatprep.subr.bf16.mxu0 %v2812
        %3860 = vmatpush1.bf16.msra.mxu0 %v2811
        %3861 = vmatprep.subr.bf16.mxu0 %v2820
        %3862 = vmatpush1.bf16.msra.mxu0 %v2819
        %3863 = vmatprep.mubr.bf16.mxu0 %v3705
        %3864 = vmatmul.mubr.bf16.gmra.mrb[0].mxu0 %v3704
        %v3865 = vpop.f32.mrb[0].mxu0
        %v3866 = vadd.f32 0.0, %v3865
        %v3867 = vpop.f32.mrb[0].mxu0
        %v3868 = vadd.f32 0.0, %v3867
        %v3869 = vpop.f32.mrb[0].mxu0
        %v3870 = vpop.f32.mrb[0].mxu0
        %3871 = vdwg.mxu0
        %v3876 = vrot.slane %v3743, 2
        %v3877 = vrot.slane %v3745, 2
        %v3878 = vrot.slane %v3784, 2
        %v3879 = vrot.slane %v3786, 2
        %v3884 = vadd.f32 %v2172, %v3876
        %v3885 = vadd.f32 %v2173, %v3877
        %v3886 = vadd.f32 %v2174, %v3878
        %v3887 = vadd.f32 %v2175, %v3879
        %v3888 = vadd.f32 %v2176, %v3825
        %v3889 = vadd.f32 %v2177, %v3827
        %v3890 = vadd.f32 %v2178, %v3866
        %v3891 = vadd.f32 %v2179, %v3868
        %v3892 = vxor.u32 %v3884, 2147483648
        %v3893 = vxor.u32 %v3885, 2147483648
        %v3894 = vxor.u32 %v3886, 2147483648
        %v3895 = vmul.f32 %v3892, 1.442695
        %v3896 = vpow.pop %v3895
        %v3897 = vmul.f32 %v3893, 1.442695
        %v3898 = vpow.pop %v3897
        %v3899 = vmul.f32 %v3894, 1.442695
        %v3900 = vpow.pop %v3899
        %v3901 = vadd.f32 %v3896, 1.0
        %v3902 = vadd.f32 %v3898, 1.0
        %v3903 = vadd.f32 %v3900, 1.0
        %v3904 = vrcp.pop %v3901
        %v3905 = vmul.f32 1.0, %v3904
        %v3906 = vrcp.pop %v3902
        %v3907 = vmul.f32 1.0, %v3906
        %v3908 = vrcp.pop %v3903
        %v3909 = vmul.f32 1.0, %v3908
        %v3910 = vtanh.pop %v3887
        %v3912 = vrot.slane %v3667, 6
        %v3914 = vmul.f32 %v3907, %v3912
        %v3915 = vmul.f32 %v3905, %v3910
        %v3916 = vadd.f32 %v3914, %v3915
        %v3917 = vtanh.pop %v3916
        %v3918 = vmul.f32 %v3909, %v3917
        %v3919 = vxor.u32 %v3888, 2147483648
        %v3920 = vxor.u32 %v3889, 2147483648
        %v3921 = vxor.u32 %v3890, 2147483648
        %v3922 = vmul.f32 %v3919, 1.442695
        %v3923 = vpow.pop %v3922
        %v3924 = vmul.f32 %v3920, 1.442695
        %v3925 = vpow.pop %v3924
        %v3926 = vmul.f32 %v3921, 1.442695
        %v3927 = vpow.pop %v3926
        %v3928 = vadd.f32 %v3923, 1.0
        %v3929 = vadd.f32 %v3925, 1.0
        %v3930 = vadd.f32 %v3927, 1.0
        %v3931 = vrcp.pop %v3928
        %v3932 = vmul.f32 1.0, %v3931
        %v3933 = vrcp.pop %v3929
        %v3934 = vmul.f32 1.0, %v3933
        %v3935 = vrcp.pop %v3930
        %v3936 = vmul.f32 1.0, %v3935
        %v3937 = vtanh.pop %v3891
        %v3939 = vrot.slane %v3694, 2
        %v3941 = vmul.f32 %v3934, %v3939
        %v3942 = vmul.f32 %v3932, %v3937
        %v3943 = vadd.f32 %v3941, %v3942
        %v3944 = vtanh.pop %v3943
        %v3945 = vmul.f32 %v3936, %v3944
        %vm3946 = vcmask 1041408
        %v3947 = vsel %vm3946, %v3156, %v3408
        %v3948 = vsel %vm3946, %v3945, %v3696
        %vm3949 = vcmask 1043456
        %v3950 = vsel %vm3949, %v3947, %v3669
        %v3951 = vsel %vm3949, %v3948, %v3435
        %vm3952 = vcmask 1045504
        %v3953 = vsel %vm3952, %v3950, %v3918
        %v3954 = vsel %vm3952, %v3951, %v3180
        %3955 = vst [vmem:[%s4] sm:$0xff] %v3953
        %3956 = vst [vmem:[%s4 + $0x8] sm:$0xff] %v3954
      $region44: #{cnn_bilstm_forward.6} parent=35 // pred_fallthru
        _
      // Predicated region
      $region45: #{cnn_bilstm_forward.6} parent=35 // pred_check
        %p3957 = pneg %p122
      $region46: #{cnn_bilstm_forward.6} parent=35 // pred_check_branch
        %3959 = sbr.rel (%p3957) target = $region48
      $region47: #{cnn_bilstm_forward.6} parent=35 // pred_region
        _
      $region48: #{cnn_bilstm_forward.6} parent=35 // pred_fallthru
        _
      // Predicated region
      $region49: #{cnn_bilstm_forward.6} parent=35 // pred_check
        %p3960 = pneg %p122
      $region50: #{cnn_bilstm_forward.6} parent=35 // pred_check_branch
        %3962 = sbr.rel (%p3960) target = $region52
      $region51: #{cnn_bilstm_forward.6} parent=35 // pred_region
        _
      $region52: #{cnn_bilstm_forward.6} parent=35 // pred_fallthru
        _
    $region36: #{cnn_bilstm_forward.6} parent=5 // pred_fallthru
      _
    %p3963 = scmp.le.s32.totalorder 2, %s10
    // Predicated region
    $region53: #{cnn_bilstm_forward.6} parent=5 // pred_check
      %p3964 = pneg %p3963
    $region54: #{cnn_bilstm_forward.6} parent=5 // pred_check_branch
      %3966 = sbr.rel (%p3964) target = $region56
    $region55: #{cnn_bilstm_forward.6} parent=5 // pred_region
      %s3967 = ssub.s32 %s10, 2
    $region56: #{cnn_bilstm_forward.6} parent=5 // pred_fallthru
      _
  $region6: #{cnn_bilstm_forward.6} parent=0 // loop_footer
    %s14 = sadd.s32 1, %s10
  $region7: #{cnn_bilstm_forward.6} parent=0 // loop_footer_branch
    %9 = sbr.rel target = $region3
  $region8: #{cnn_bilstm_forward.6} parent=0 // loop_exit
    _

</llo_original>
